<compile_context>
chip_gen: v7x
topology: tpu7x:2x2x1
jax: 0.10.0
libtpu: 0.0.40
codegen_flags: <defaults>
</compile_context>

<pallas_src>
import functools
import math

import jax
import jax.numpy as jnp
from jax.experimental import pallas as pl
from jax.experimental.pallas import tpu as pltpu

_WIDE = 1280        # channel width of the (stand-in) backbone output
_WIDE_CHUNK = 256   # channel chunk for the fused 32->1280->320 matmuls
_TARGET_M = 1024    # target rows (b_tile * tile_hw) fed to the MXU per grid step


def _round_up(x, m):
    return ((x + m - 1) // m) * m


def _choose_tiling(batch, hw):
    """Pick (b_tile, tile_hw) so each grid step processes ~_TARGET_M rows."""
    if hw >= _TARGET_M:
        return 1, _TARGET_M
    tile_hw = _round_up(hw, 32)          # 32-aligned: safe bf16/f32 reshapes
    b_tile = max(1, min(batch, 8, _TARGET_M // tile_hw))
    return b_tile, tile_hw


# ------------------------------- kernel body -------------------------------- #

def _fused_forward_kernel(
        patch_ref, clin_ref,
        stem_w_ref, stem_t_ref, standin_w_ref, standin_b_ref,
        dr_w_ref, dr_t_ref,
        cn_w_ref, cn_b_ref, cn_g_ref, cn_beta_ref,
        ca1_w_ref, ca1_b_ref, ca2_w_ref, ca2_b_ref,
        fl1_wi_ref, fl1_wc_ref, fl1_b_ref, fl1_g_ref, fl1_beta_ref,
        fl2_w_ref, fl2_b_ref, fl2_g_ref, fl2_beta_ref,
        fl3_w_ref, fl3_b_ref,
        out_ref, acc_ref,
        *, b_tile, tile_hw, hw_total, masked, ln_eps):
    """Fused stem conv + stand-in + dim_reduce + avg-pool + clinical head.

    patch_ref: (b_tile, tile_hw, 16) bf16   im2col rows of one (batch, HW) tile
    clin_ref:  (b_tile, 8)          f32     zero-padded clinical features
    out_ref:   (b_tile, 1)          f32     final logits (written at finalize)
    acc_ref:   (b_tile, 8, 320)     VMEM    sublane-partial pooling sums
    """
    hw_idx = pl.program_id(1)
    last_hw = pl.num_programs(1) - 1

    @pl.when(hw_idx == 0)
    def _init():
        acc_ref[...] = jnp.zeros_like(acc_ref)

    m = b_tile * tile_hw
    patches = patch_ref[...].reshape(m, -1)                      # (m, 16) bf16

    # stem: 3x3/s2 conv as (m,16)@(16,32); BN scale folded into bf16 weight.
    x = jnp.dot(patches, stem_w_ref[...],
                preferred_element_type=jnp.float32) + stem_t_ref[...]
    x = x * jax.nn.sigmoid(x)                                    # SiLU (f32)
    xb = x.astype(jnp.bfloat16)

    # TODO(synk): the pretrained EfficientNet-B0 MBConv stages (features[1:])
    # and pretrained weights are not reproducible in-script; a deterministic
    # 1x1 conv 32->1280 + SiLU stand-in supplies the 1280-ch map the head needs.
    # Stand-in + dim_reduce fused, chunked over 256 output channels so the
    # (m, 1280) intermediate never materializes; SiLU on the wide chunk in bf16.
    y = None
    for c in range(_WIDE // _WIDE_CHUNK):
        lo = c * _WIDE_CHUNK
        hi = lo + _WIDE_CHUNK
        h = jnp.dot(xb, standin_w_ref[:, lo:hi],
                    preferred_element_type=jnp.float32)
        h = (h + standin_b_ref[:, lo:hi]).astype(jnp.bfloat16)
        h = h * jax.nn.sigmoid(h)                                # SiLU (bf16)
        part = jnp.dot(h, dr_w_ref[lo:hi, :],
                       preferred_element_type=jnp.float32)
        y = part if y is None else y + part

    y = jnp.maximum(y + dr_t_ref[...], 0.0)          # dim_reduce BN shift + ReLU
    y = y.reshape(b_tile, tile_hw, 320)

    def _accumulate(v):
        # Per-sublane partial pooling sums (VPU adds); 8->1 reduce at finalize.
        acc_ref[...] += v.reshape(b_tile, tile_hw // 8, 8, 320).sum(axis=1)

    if masked:
        # Only the last HW tile contains padded rows.
        @pl.when(hw_idx != last_hw)
        def _acc_full():
            _accumulate(y)

        @pl.when(hw_idx == last_hw)
        def _acc_masked():
            row = hw_idx * tile_hw + jax.lax.broadcasted_iota(
                jnp.int32, (b_tile, tile_hw, 320), 1)
            _accumulate(jnp.where(row < hw_total, y, 0.0))
    else:
        _accumulate(y)

    @pl.when(hw_idx == last_hw)
    def _finalize():
        inv_sqrt2 = 1.0 / math.sqrt(2.0)

        def gelu(v):                       # exact erf GELU (torch nn.GELU default)
            return 0.5 * v * (1.0 + jax.lax.erf(v * inv_sqrt2))

        def layernorm(v, g, b):
            mu = jnp.mean(v, axis=-1, keepdims=True)
            var = jnp.mean(jnp.square(v - mu), axis=-1, keepdims=True)
            return (v - mu) * jax.lax.rsqrt(var + ln_eps) * g + b

        # adaptive_avg_pool2d((1,1)) + flatten -> (b_tile, 320)
        pooled = acc_ref[...].sum(axis=1) * (1.0 / hw_total)

        # clinical_net: Linear(3->16) + LayerNorm + GELU (+ Dropout = id, eval)
        cf = jnp.dot(clin_ref[...], cn_w_ref[...],
                     preferred_element_type=jnp.float32) + cn_b_ref[...]
        cf = gelu(layernorm(cf, cn_g_ref[...], cn_beta_ref[...]))      # (b,16)

        # clinical_attention: Linear(16->128)+GELU, Linear(128->320)+Sigmoid
        a = gelu(jnp.dot(cf, ca1_w_ref[...],
                         preferred_element_type=jnp.float32) + ca1_b_ref[...])
        attn = jax.nn.sigmoid(
            jnp.dot(a, ca2_w_ref[...],
                    preferred_element_type=jnp.float32) + ca2_b_ref[...])

        attended = pooled * attn                                        # (b,320)

        # fl1 on concat(attended, cf): two partial dots (336 = 320 + 16)
        hh = (jnp.dot(attended, fl1_wi_ref[...], preferred_element_type=jnp.float32)
              + jnp.dot(cf, fl1_wc_ref[...], preferred_element_type=jnp.float32)
              + fl1_b_ref[...])
        hh = gelu(layernorm(hh, fl1_g_ref[...], fl1_beta_ref[...]))     # (b,512)

        hh = jnp.dot(hh, fl2_w_ref[...],
                     preferred_element_type=jnp.float32) + fl2_b_ref[...]
        hh = gelu(layernorm(hh, fl2_g_ref[...], fl2_beta_ref[...]))     # (b,128)

        out_ref[...] = jnp.dot(hh, fl3_w_ref[...],
                               preferred_element_type=jnp.float32) + fl3_b_ref[...]


# ------------------------------ pallas wrapper ------------------------------- #

_WEIGHT_ORDER = ("stem_w", "stem_t", "standin_w", "standin_b", "dr_w", "dr_t",
                 "cn_w", "cn_b", "cn_g", "cn_beta",
                 "ca1_w", "ca1_b", "ca2_w", "ca2_b",
                 "fl1_wi", "fl1_wc", "fl1_b", "fl1_g", "fl1_beta",
                 "fl2_w", "fl2_b", "fl2_g", "fl2_beta",
                 "fl3_w", "fl3_b")


def _fused_forward_call(patches, clin, pp, *, b_tile, tile_hw, hw_total):
    b_pad, hw_pad, kp = patches.shape
    n_b = b_pad // b_tile
    n_hw = hw_pad // tile_hw
    masked = hw_pad != hw_total

    kernel = functools.partial(
        _fused_forward_kernel, b_tile=b_tile, tile_hw=tile_hw,
        hw_total=hw_total, masked=masked, ln_eps=1e-5)

    weights = [pp[k] for k in _WEIGHT_ORDER]

    def _const_spec(shape):                       # resident, index never changes
        return pl.BlockSpec(shape, lambda b, h: (0, 0))

    in_specs = ([pl.BlockSpec((b_tile, tile_hw, kp), lambda b, h: (b, h, 0)),
                 pl.BlockSpec((b_tile, clin.shape[1]), lambda b, h: (b, 0))]
                + [_const_spec(w.shape) for w in weights])

    return pl.pallas_call(
        kernel,
        out_shape=jax.ShapeDtypeStruct((b_pad, 1), jnp.float32),
        grid=(n_b, n_hw),
        in_specs=in_specs,
        out_specs=pl.BlockSpec((b_tile, 1), lambda b, h: (b, 0)),
        scratch_shapes=[pltpu.VMEM((b_tile, 8, 320), jnp.float32)],
        compiler_params=pltpu.CompilerParams(
            dimension_semantics=("parallel", "arbitrary"),
            vmem_limit_bytes=24 * 1024 * 1024),
    )(patches, clin, *weights)


# -------------------------------- parameters --------------------------------- #

def init_params(key):
    ks = jax.random.split(key, 16)

    def kaiming(k, fan_in, fan_out):
        # nn.init.kaiming_normal_(w, a=0.1)  (fan_in, leaky_relu)
        gain = math.sqrt(2.0 / (1.0 + 0.1 ** 2))
        std = gain / math.sqrt(fan_in)
        return std * jax.random.normal(k, (fan_in, fan_out), jnp.float32)

    def bn(c, eps):
        return dict(gamma=jnp.ones((c,), jnp.float32), beta=jnp.zeros((c,), jnp.float32),
                    mean=jnp.zeros((c,), jnp.float32), var=jnp.ones((c,), jnp.float32),
                    eps=jnp.float32(eps))

    p = {}
    # backbone stem: Conv2d(1, 32, 3, stride=2, padding=1, bias=False) -> (9, 32)
    p["stem_w"] = kaiming(ks[0], 9, 32)
    p["stem_bn"] = bn(32, 1e-3)
    # stand-in for the frozen MBConv stack producing the 1280-channel map
    p["standin_w"] = kaiming(ks[1], 32, _WIDE)
    p["standin_b"] = jnp.zeros((_WIDE,), jnp.float32)
    # dim_reduce: Conv2d(1280, 320, 1) + BatchNorm2d(320) + ReLU
    p["dr_w"] = kaiming(ks[2], _WIDE, 320)
    p["dr_b"] = jnp.zeros((320,), jnp.float32)
    p["dr_bn"] = bn(320, 1e-5)
    # clinical_net: Linear(3,16) + LayerNorm(16) + GELU (+ Dropout -> identity eval)
    p["cn_w"], p["cn_b"] = kaiming(ks[3], 3, 16), jnp.zeros((16,), jnp.float32)
    p["cn_g"], p["cn_beta"] = jnp.ones((16,), jnp.float32), jnp.zeros((16,), jnp.float32)
    # clinical_attention: Linear(16,128)+GELU, Linear(128,320)+Sigmoid
    p["ca1_w"], p["ca1_b"] = kaiming(ks[4], 16, 128), jnp.zeros((128,), jnp.float32)
    p["ca2_w"], p["ca2_b"] = kaiming(ks[5], 128, 320), jnp.zeros((320,), jnp.float32)
    # final_layers
    p["fl1_w"], p["fl1_b"] = kaiming(ks[6], 336, 512), jnp.zeros((512,), jnp.float32)
    p["fl1_g"], p["fl1_beta"] = jnp.ones((512,), jnp.float32), jnp.zeros((512,), jnp.float32)
    p["fl2_w"], p["fl2_b"] = kaiming(ks[7], 512, 128), jnp.zeros((128,), jnp.float32)
    p["fl2_g"], p["fl2_beta"] = jnp.ones((128,), jnp.float32), jnp.zeros((128,), jnp.float32)
    p["fl3_w"], p["fl3_b"] = kaiming(ks[8], 128, 1), jnp.zeros((1,), jnp.float32)
    return p


def _bn_fold(bn, conv_bias=None):
    # eval-mode BatchNorm as per-channel scale/shift (shift applied post-matmul)
    scale = bn["gamma"] / jnp.sqrt(bn["var"] + bn["eps"])
    shift = bn["beta"] - bn["mean"] * scale
    if conv_bias is not None:
        shift = shift + conv_bias * scale
    return scale, shift


def prepare_params(p):
    """Fold BN into weights, pad tiny K dims, cast image-path matmul weights to
    bf16, reshape vectors to (1, N) so every kernel operand is a 2-D tile."""
    pp = {}
    s, t = _bn_fold(p["stem_bn"])
    stem_w = jnp.pad(p["stem_w"] * s[None, :], ((0, 7), (0, 0)))     # K 9 -> 16
    pp["stem_w"] = stem_w.astype(jnp.bfloat16)                       # (16, 32)
    pp["stem_t"] = t.reshape(1, 32)

    pp["standin_w"] = p["standin_w"].astype(jnp.bfloat16)            # (32, 1280)
    pp["standin_b"] = p["standin_b"].reshape(1, _WIDE)

    s, t = _bn_fold(p["dr_bn"], conv_bias=p["dr_b"])
    pp["dr_w"] = (p["dr_w"] * s[None, :]).astype(jnp.bfloat16)       # (1280, 320)
    pp["dr_t"] = t.reshape(1, 320)

    pp["cn_w"] = jnp.pad(p["cn_w"], ((0, 5), (0, 0)))                # K 3 -> 8
    pp["cn_b"] = p["cn_b"].reshape(1, 16)
    pp["cn_g"] = p["cn_g"].reshape(1, 16)
    pp["cn_beta"] = p["cn_beta"].reshape(1, 16)

    pp["ca1_w"], pp["ca1_b"] = p["ca1_w"], p["ca1_b"].reshape(1, 128)
    pp["ca2_w"], pp["ca2_b"] = p["ca2_w"], p["ca2_b"].reshape(1, 320)

    pp["fl1_wi"] = p["fl1_w"][:320]                                  # (320, 512)
    pp["fl1_wc"] = p["fl1_w"][320:]                                  # (16, 512)
    pp["fl1_b"] = p["fl1_b"].reshape(1, 512)
    pp["fl1_g"] = p["fl1_g"].reshape(1, 512)
    pp["fl1_beta"] = p["fl1_beta"].reshape(1, 512)

    pp["fl2_w"], pp["fl2_b"] = p["fl2_w"], p["fl2_b"].reshape(1, 128)
    pp["fl2_g"] = p["fl2_g"].reshape(1, 128)
    pp["fl2_beta"] = p["fl2_beta"].reshape(1, 128)

    pp["fl3_w"], pp["fl3_b"] = p["fl3_w"], p["fl3_b"].reshape(1, 1)
    return pp


# ---------------------------------- forward ---------------------------------- #

def efficientnet_with_clinical_forward(pp, image, clinical):
    """image: (B, 1, H, W) NCHW float32; clinical: (B, 3) float32 -> (B, 1)."""
    B, _, H, W = image.shape
    Ho = (H + 2 - 3) // 2 + 1
    Wo = (W + 2 - 3) // 2 + 1
    HW = Ho * Wo

    # im2col for the 3x3 / stride-2 / pad-1 stem conv (layout plumbing only)
    xp = jnp.pad(image, ((0, 0), (0, 0), (1, 1), (1, 1)))
    cols = []
    for kh in range(3):            # (kh, kw) order matches torch weight layout
        for kw in range(3):
            cols.append(xp[:, 0, kh:kh + 2 * Ho:2, kw:kw + 2 * Wo:2])
    patches = jnp.stack(cols, axis=-1).reshape(B, HW, 9)
    patches = jnp.pad(patches, ((0, 0), (0, 0), (0, 7)))             # K 9 -> 16
    patches = patches.astype(jnp.bfloat16)                           # halve HBM stream

    b_tile, tile_hw = _choose_tiling(B, HW)
    hw_pad = _round_up(HW, tile_hw)
    b_pad = _round_up(B, b_tile)
    if hw_pad != HW or b_pad != B:
        patches = jnp.pad(patches, ((0, b_pad - B), (0, hw_pad - HW), (0, 0)))
    clin = jnp.pad(clinical, ((0, b_pad - B), (0, 5)))               # K 3 -> 8

    out = _fused_forward_call(patches, clin, pp,
                              b_tile=b_tile, tile_hw=tile_hw, hw_total=HW)
    return out[:B]                                                   # (B, 1)


# ------------------------------------ main ------------------------------------ #

if __name__ == "__main__":
    key = jax.random.PRNGKey(0)
    k_img, k_clin, k_par = jax.random.split(key, 3)

    image = jax.random.normal(k_img, (2, 1, 16, 16), jnp.float32)    # NCHW grayscale
    clinical = jax.random.normal(k_clin, (2, 3), jnp.float32)        # 3 clinical feats

    params = init_params(k_par)
    prepared = prepare_params(params)

    fwd = jax.jit(efficientnet_with_clinical_forward)
    out = jax.block_until_ready(fwd(prepared, image, clinical))
    assert out.shape == (2, 1) and out.dtype == jnp.float32
    print("KERNEL_OK")
</pallas_src>

<mosaic_0001>
module attributes {stable_mosaic.version = 11 : i64} {
  func.func @_fused_forward_kernel(%arg0: i32, %arg1: i32, %arg2: memref<2x64x16xbf16, #tpu.memory_space<vmem>>, %arg3: memref<2x8xf32, #tpu.memory_space<vmem>>, %arg4: memref<16x32xbf16, #tpu.memory_space<vmem>>, %arg5: memref<1x32xf32, #tpu.memory_space<vmem>>, %arg6: memref<32x1280xbf16, #tpu.memory_space<vmem>>, %arg7: memref<1x1280xf32, #tpu.memory_space<vmem>>, %arg8: memref<1280x320xbf16, #tpu.memory_space<vmem>>, %arg9: memref<1x320xf32, #tpu.memory_space<vmem>>, %arg10: memref<8x16xf32, #tpu.memory_space<vmem>>, %arg11: memref<1x16xf32, #tpu.memory_space<vmem>>, %arg12: memref<1x16xf32, #tpu.memory_space<vmem>>, %arg13: memref<1x16xf32, #tpu.memory_space<vmem>>, %arg14: memref<16x128xf32, #tpu.memory_space<vmem>>, %arg15: memref<1x128xf32, #tpu.memory_space<vmem>>, %arg16: memref<128x320xf32, #tpu.memory_space<vmem>>, %arg17: memref<1x320xf32, #tpu.memory_space<vmem>>, %arg18: memref<320x512xf32, #tpu.memory_space<vmem>>, %arg19: memref<16x512xf32, #tpu.memory_space<vmem>>, %arg20: memref<1x512xf32, #tpu.memory_space<vmem>>, %arg21: memref<1x512xf32, #tpu.memory_space<vmem>>, %arg22: memref<1x512xf32, #tpu.memory_space<vmem>>, %arg23: memref<512x128xf32, #tpu.memory_space<vmem>>, %arg24: memref<1x128xf32, #tpu.memory_space<vmem>>, %arg25: memref<1x128xf32, #tpu.memory_space<vmem>>, %arg26: memref<1x128xf32, #tpu.memory_space<vmem>>, %arg27: memref<128x1xf32, #tpu.memory_space<vmem>>, %arg28: memref<1x1xf32, #tpu.memory_space<vmem>>, %arg29: memref<2x1xf32, #tpu.memory_space<vmem>>, %arg30: memref<2x8x320xf32, #tpu.memory_space<vmem>>) attributes {dimension_semantics = [#tpu.dimension_semantics<parallel>, #tpu.dimension_semantics<arbitrary>], iteration_bounds = array<i64: 1, 1>, scalar_prefetch = 0 : i64, scratch_operands = 1 : i64, tpu.core_type = #tpu.core_type<tc>, window_params = [{transform_indices = @transform_0, window_bounds = array<i64: 2, 64, 16>}, {transform_indices = @transform_1, window_bounds = array<i64: 2, 8>}, {pipeline_mode = #tpu.pipeline_mode<synchronous>, transform_indices = @transform_2, window_bounds = array<i64: 16, 32>}, {pipeline_mode = #tpu.pipeline_mode<synchronous>, transform_indices = @transform_3, window_bounds = array<i64: 1, 32>}, {pipeline_mode = #tpu.pipeline_mode<synchronous>, transform_indices = @transform_4, window_bounds = array<i64: 32, 1280>}, {pipeline_mode = #tpu.pipeline_mode<synchronous>, transform_indices = @transform_5, window_bounds = array<i64: 1, 1280>}, {pipeline_mode = #tpu.pipeline_mode<synchronous>, transform_indices = @transform_6, window_bounds = array<i64: 1280, 320>}, {pipeline_mode = #tpu.pipeline_mode<synchronous>, transform_indices = @transform_7, window_bounds = array<i64: 1, 320>}, {pipeline_mode = #tpu.pipeline_mode<synchronous>, transform_indices = @transform_8, window_bounds = array<i64: 8, 16>}, {pipeline_mode = #tpu.pipeline_mode<synchronous>, transform_indices = @transform_9, window_bounds = array<i64: 1, 16>}, {pipeline_mode = #tpu.pipeline_mode<synchronous>, transform_indices = @transform_10, window_bounds = array<i64: 1, 16>}, {pipeline_mode = #tpu.pipeline_mode<synchronous>, transform_indices = @transform_11, window_bounds = array<i64: 1, 16>}, {pipeline_mode = #tpu.pipeline_mode<synchronous>, transform_indices = @transform_12, window_bounds = array<i64: 16, 128>}, {pipeline_mode = #tpu.pipeline_mode<synchronous>, transform_indices = @transform_13, window_bounds = array<i64: 1, 128>}, {pipeline_mode = #tpu.pipeline_mode<synchronous>, transform_indices = @transform_14, window_bounds = array<i64: 128, 320>}, {pipeline_mode = #tpu.pipeline_mode<synchronous>, transform_indices = @transform_15, window_bounds = array<i64: 1, 320>}, {pipeline_mode = #tpu.pipeline_mode<synchronous>, transform_indices = @transform_16, window_bounds = array<i64: 320, 512>}, {pipeline_mode = #tpu.pipeline_mode<synchronous>, transform_indices = @transform_17, window_bounds = array<i64: 16, 512>}, {pipeline_mode = #tpu.pipeline_mode<synchronous>, transform_indices = @transform_18, window_bounds = array<i64: 1, 512>}, {pipeline_mode = #tpu.pipeline_mode<synchronous>, transform_indices = @transform_19, window_bounds = array<i64: 1, 512>}, {pipeline_mode = #tpu.pipeline_mode<synchronous>, transform_indices = @transform_20, window_bounds = array<i64: 1, 512>}, {pipeline_mode = #tpu.pipeline_mode<synchronous>, transform_indices = @transform_21, window_bounds = array<i64: 512, 128>}, {pipeline_mode = #tpu.pipeline_mode<synchronous>, transform_indices = @transform_22, window_bounds = array<i64: 1, 128>}, {pipeline_mode = #tpu.pipeline_mode<synchronous>, transform_indices = @transform_23, window_bounds = array<i64: 1, 128>}, {pipeline_mode = #tpu.pipeline_mode<synchronous>, transform_indices = @transform_24, window_bounds = array<i64: 1, 128>}, {pipeline_mode = #tpu.pipeline_mode<synchronous>, transform_indices = @transform_25, window_bounds = array<i64: 128, 1>}, {pipeline_mode = #tpu.pipeline_mode<synchronous>, transform_indices = @transform_26, window_bounds = array<i64: 1, 1>}, {transform_indices = @transform_27, window_bounds = array<i64: 2, 1>}]} {
    %c0_i32 = arith.constant 0 : i32
    %0 = arith.cmpi eq, %arg1, %c0_i32 : i32
    %1 = arith.extui %0 : i1 to i32
    %c0_i32_0 = arith.constant 0 : i32
    %2 = arith.cmpi ne, %1, %c0_i32_0 : i32
    scf.if %2 {
      %cst_61 = arith.constant 0.000000e+00 : f32
      %105 = vector.broadcast %cst_61 : f32 to vector<2x8x320xf32>
      %c0_62 = arith.constant 0 : index
      %c0_63 = arith.constant 0 : index
      %c0_64 = arith.constant 0 : index
      %106 = vector.load %arg30[%c0_62, %c0_63, %c0_64] : memref<2x8x320xf32, #tpu.memory_space<vmem>>, vector<2x8x320xf32>
      tpu.vector_store %arg30[%c0_62, %c0_63, %c0_64], %105 {strides = array<i32>} : memref<2x8x320xf32, #tpu.memory_space<vmem>>, vector<2x8x320xf32>,
    } else {
    }
    %c0 = arith.constant 0 : index
    %c0_1 = arith.constant 0 : index
    %c0_2 = arith.constant 0 : index
    %3 = vector.load %arg2[%c0, %c0_1, %c0_2] : memref<2x64x16xbf16, #tpu.memory_space<vmem>>, vector<2x64x16xbf16>
    %4 = vector.shape_cast %3 : vector<2x64x16xbf16> to vector<128x16xbf16>
    %c0_3 = arith.constant 0 : index
    %c0_4 = arith.constant 0 : index
    %5 = vector.load %arg4[%c0_3, %c0_4] : memref<16x32xbf16, #tpu.memory_space<vmem>>, vector<16x32xbf16>
    %cst = arith.constant dense<0.000000e+00> : vector<128x32xf32>
    %6 = tpu.matmul %4, %5, %cst {dimension_numbers = #tpu.dot_dimension_numbers<[1], [0], [0], [1], [0, 0, 1, 1], [], []>} : vector<128x16xbf16>, vector<16x32xbf16>, vector<128x32xf32> -> vector<128x32xf32>
    %c0_5 = arith.constant 0 : index
    %c0_6 = arith.constant 0 : index
    %7 = vector.load %arg5[%c0_5, %c0_6] : memref<1x32xf32, #tpu.memory_space<vmem>>, vector<1x32xf32>
    %8 = vector.broadcast %7 : vector<1x32xf32> to vector<128x32xf32>
    %9 = arith.addf %6, %8 : vector<128x32xf32>
    %10 = arith.negf %9 : vector<128x32xf32>
    %11 = math.exp %10 : vector<128x32xf32>
    %cst_7 = arith.constant 1.000000e+00 : f32
    %12 = vector.broadcast %cst_7 : f32 to vector<128x32xf32>
    %13 = arith.addf %12, %11 : vector<128x32xf32>
    %14 = arith.divf %12, %13 : vector<128x32xf32>
    %15 = arith.mulf %9, %14 : vector<128x32xf32>
    %16 = arith.truncf %15 : vector<128x32xf32> to vector<128x32xbf16>
    %c0_8 = arith.constant 0 : index
    %c0_9 = arith.constant 0 : index
    %17 = vector.load %arg6[%c0_8, %c0_9] : memref<32x1280xbf16, #tpu.memory_space<vmem>>, vector<32x256xbf16>
    %cst_10 = arith.constant dense<0.000000e+00> : vector<128x256xf32>
    %18 = tpu.matmul %16, %17, %cst_10 {dimension_numbers = #tpu.dot_dimension_numbers<[1], [0], [0], [1], [0, 0, 1, 1], [], []>} : vector<128x32xbf16>, vector<32x256xbf16>, vector<128x256xf32> -> vector<128x256xf32>
    %c0_11 = arith.constant 0 : index
    %c0_12 = arith.constant 0 : index
    %19 = vector.load %arg7[%c0_11, %c0_12] : memref<1x1280xf32, #tpu.memory_space<vmem>>, vector<1x256xf32>
    %20 = vector.broadcast %19 : vector<1x256xf32> to vector<128x256xf32>
    %21 = arith.addf %18, %20 : vector<128x256xf32>
    %22 = arith.truncf %21 : vector<128x256xf32> to vector<128x256xbf16>
    %23 = arith.negf %22 : vector<128x256xbf16>
    %24 = math.exp %23 : vector<128x256xbf16>
    %cst_13 = arith.constant 1.000000e+00 : bf16
    %25 = vector.broadcast %cst_13 : bf16 to vector<128x256xbf16>
    %26 = arith.addf %25, %24 : vector<128x256xbf16>
    %27 = arith.divf %25, %26 : vector<128x256xbf16>
    %28 = arith.mulf %22, %27 : vector<128x256xbf16>
    %c0_14 = arith.constant 0 : index
    %c0_15 = arith.constant 0 : index
    %29 = vector.load %arg8[%c0_14, %c0_15] : memref<1280x320xbf16, #tpu.memory_space<vmem>>, vector<256x320xbf16>
    %cst_16 = arith.constant dense<0.000000e+00> : vector<128x320xf32>
    %30 = tpu.matmul %28, %29, %cst_16 {dimension_numbers = #tpu.dot_dimension_numbers<[1], [0], [0], [1], [0, 0, 1, 1], [], []>} : vector<128x256xbf16>, vector<256x320xbf16>, vector<128x320xf32> -> vector<128x320xf32>
    %c0_17 = arith.constant 0 : index
    %c256 = arith.constant 256 : index
    %31 = vector.load %arg6[%c0_17, %c256] : memref<32x1280xbf16, #tpu.memory_space<vmem>>, vector<32x256xbf16>
    %cst_18 = arith.constant dense<0.000000e+00> : vector<128x256xf32>
    %32 = tpu.matmul %16, %31, %cst_18 {dimension_numbers = #tpu.dot_dimension_numbers<[1], [0], [0], [1], [0, 0, 1, 1], [], []>} : vector<128x32xbf16>, vector<32x256xbf16>, vector<128x256xf32> -> vector<128x256xf32>
    %c0_19 = arith.constant 0 : index
    %c256_20 = arith.constant 256 : index
    %33 = vector.load %arg7[%c0_19, %c256_20] : memref<1x1280xf32, #tpu.memory_space<vmem>>, vector<1x256xf32>
    %34 = vector.broadcast %33 : vector<1x256xf32> to vector<128x256xf32>
    %35 = arith.addf %32, %34 : vector<128x256xf32>
    %36 = arith.truncf %35 : vector<128x256xf32> to vector<128x256xbf16>
    %37 = arith.negf %36 : vector<128x256xbf16>
    %38 = math.exp %37 : vector<128x256xbf16>
    %cst_21 = arith.constant 1.000000e+00 : bf16
    %39 = vector.broadcast %cst_21 : bf16 to vector<128x256xbf16>
    %40 = arith.addf %39, %38 : vector<128x256xbf16>
    %41 = arith.divf %39, %40 : vector<128x256xbf16>
    %42 = arith.mulf %36, %41 : vector<128x256xbf16>
    %c256_22 = arith.constant 256 : index
    %c0_23 = arith.constant 0 : index
    %43 = vector.load %arg8[%c256_22, %c0_23] : memref<1280x320xbf16, #tpu.memory_space<vmem>>, vector<256x320xbf16>
    %cst_24 = arith.constant dense<0.000000e+00> : vector<128x320xf32>
    %44 = tpu.matmul %42, %43, %cst_24 {dimension_numbers = #tpu.dot_dimension_numbers<[1], [0], [0], [1], [0, 0, 1, 1], [], []>} : vector<128x256xbf16>, vector<256x320xbf16>, vector<128x320xf32> -> vector<128x320xf32>
    %45 = arith.addf %30, %44 : vector<128x320xf32>
    %c0_25 = arith.constant 0 : index
    %c512 = arith.constant 512 : index
    %46 = vector.load %arg6[%c0_25, %c512] : memref<32x1280xbf16, #tpu.memory_space<vmem>>, vector<32x256xbf16>
    %cst_26 = arith.constant dense<0.000000e+00> : vector<128x256xf32>
    %47 = tpu.matmul %16, %46, %cst_26 {dimension_numbers = #tpu.dot_dimension_numbers<[1], [0], [0], [1], [0, 0, 1, 1], [], []>} : vector<128x32xbf16>, vector<32x256xbf16>, vector<128x256xf32> -> vector<128x256xf32>
    %c0_27 = arith.constant 0 : index
    %c512_28 = arith.constant 512 : index
    %48 = vector.load %arg7[%c0_27, %c512_28] : memref<1x1280xf32, #tpu.memory_space<vmem>>, vector<1x256xf32>
    %49 = vector.broadcast %48 : vector<1x256xf32> to vector<128x256xf32>
    %50 = arith.addf %47, %49 : vector<128x256xf32>
    %51 = arith.truncf %50 : vector<128x256xf32> to vector<128x256xbf16>
    %52 = arith.negf %51 : vector<128x256xbf16>
    %53 = math.exp %52 : vector<128x256xbf16>
    %cst_29 = arith.constant 1.000000e+00 : bf16
    %54 = vector.broadcast %cst_29 : bf16 to vector<128x256xbf16>
    %55 = arith.addf %54, %53 : vector<128x256xbf16>
    %56 = arith.divf %54, %55 : vector<128x256xbf16>
    %57 = arith.mulf %51, %56 : vector<128x256xbf16>
    %c512_30 = arith.constant 512 : index
    %c0_31 = arith.constant 0 : index
    %58 = vector.load %arg8[%c512_30, %c0_31] : memref<1280x320xbf16, #tpu.memory_space<vmem>>, vector<256x320xbf16>
    %cst_32 = arith.constant dense<0.000000e+00> : vector<128x320xf32>
    %59 = tpu.matmul %57, %58, %cst_32 {dimension_numbers = #tpu.dot_dimension_numbers<[1], [0], [0], [1], [0, 0, 1, 1], [], []>} : vector<128x256xbf16>, vector<256x320xbf16>, vector<128x320xf32> -> vector<128x320xf32>
    %60 = arith.addf %45, %59 : vector<128x320xf32>
    %c0_33 = arith.constant 0 : index
    %c768 = arith.constant 768 : index
    %61 = vector.load %arg6[%c0_33, %c768] : memref<32x1280xbf16, #tpu.memory_space<vmem>>, vector<32x256xbf16>
    %cst_34 = arith.constant dense<0.000000e+00> : vector<128x256xf32>
    %62 = tpu.matmul %16, %61, %cst_34 {dimension_numbers = #tpu.dot_dimension_numbers<[1], [0], [0], [1], [0, 0, 1, 1], [], []>} : vector<128x32xbf16>, vector<32x256xbf16>, vector<128x256xf32> -> vector<128x256xf32>
    %c0_35 = arith.constant 0 : index
    %c768_36 = arith.constant 768 : index
    %63 = vector.load %arg7[%c0_35, %c768_36] : memref<1x1280xf32, #tpu.memory_space<vmem>>, vector<1x256xf32>
    %64 = vector.broadcast %63 : vector<1x256xf32> to vector<128x256xf32>
    %65 = arith.addf %62, %64 : vector<128x256xf32>
    %66 = arith.truncf %65 : vector<128x256xf32> to vector<128x256xbf16>
    %67 = arith.negf %66 : vector<128x256xbf16>
    %68 = math.exp %67 : vector<128x256xbf16>
    %cst_37 = arith.constant 1.000000e+00 : bf16
    %69 = vector.broadcast %cst_37 : bf16 to vector<128x256xbf16>
    %70 = arith.addf %69, %68 : vector<128x256xbf16>
    %71 = arith.divf %69, %70 : vector<128x256xbf16>
    %72 = arith.mulf %66, %71 : vector<128x256xbf16>
    %c768_38 = arith.constant 768 : index
    %c0_39 = arith.constant 0 : index
    %73 = vector.load %arg8[%c768_38, %c0_39] : memref<1280x320xbf16, #tpu.memory_space<vmem>>, vector<256x320xbf16>
    %cst_40 = arith.constant dense<0.000000e+00> : vector<128x320xf32>
    %74 = tpu.matmul %72, %73, %cst_40 {dimension_numbers = #tpu.dot_dimension_numbers<[1], [0], [0], [1], [0, 0, 1, 1], [], []>} : vector<128x256xbf16>, vector<256x320xbf16>, vector<128x320xf32> -> vector<128x320xf32>
    %75 = arith.addf %60, %74 : vector<128x320xf32>
    %c0_41 = arith.constant 0 : index
    %c1024 = arith.constant 1024 : index
    %76 = vector.load %arg6[%c0_41, %c1024] : memref<32x1280xbf16, #tpu.memory_space<vmem>>, vector<32x256xbf16>
    %cst_42 = arith.constant dense<0.000000e+00> : vector<128x256xf32>
    %77 = tpu.matmul %16, %76, %cst_42 {dimension_numbers = #tpu.dot_dimension_numbers<[1], [0], [0], [1], [0, 0, 1, 1], [], []>} : vector<128x32xbf16>, vector<32x256xbf16>, vector<128x256xf32> -> vector<128x256xf32>
    %c0_43 = arith.constant 0 : index
    %c1024_44 = arith.constant 1024 : index
    %78 = vector.load %arg7[%c0_43, %c1024_44] : memref<1x1280xf32, #tpu.memory_space<vmem>>, vector<1x256xf32>
    %79 = vector.broadcast %78 : vector<1x256xf32> to vector<128x256xf32>
    %80 = arith.addf %77, %79 : vector<128x256xf32>
    %81 = arith.truncf %80 : vector<128x256xf32> to vector<128x256xbf16>
    %82 = arith.negf %81 : vector<128x256xbf16>
    %83 = math.exp %82 : vector<128x256xbf16>
    %cst_45 = arith.constant 1.000000e+00 : bf16
    %84 = vector.broadcast %cst_45 : bf16 to vector<128x256xbf16>
    %85 = arith.addf %84, %83 : vector<128x256xbf16>
    %86 = arith.divf %84, %85 : vector<128x256xbf16>
    %87 = arith.mulf %81, %86 : vector<128x256xbf16>
    %c1024_46 = arith.constant 1024 : index
    %c0_47 = arith.constant 0 : index
    %88 = vector.load %arg8[%c1024_46, %c0_47] : memref<1280x320xbf16, #tpu.memory_space<vmem>>, vector<256x320xbf16>
    %cst_48 = arith.constant dense<0.000000e+00> : vector<128x320xf32>
    %89 = tpu.matmul %87, %88, %cst_48 {dimension_numbers = #tpu.dot_dimension_numbers<[1], [0], [0], [1], [0, 0, 1, 1], [], []>} : vector<128x256xbf16>, vector<256x320xbf16>, vector<128x320xf32> -> vector<128x320xf32>
    %90 = arith.addf %75, %89 : vector<128x320xf32>
    %c0_49 = arith.constant 0 : index
    %c0_50 = arith.constant 0 : index
    %91 = vector.load %arg9[%c0_49, %c0_50] : memref<1x320xf32, #tpu.memory_space<vmem>>, vector<1x320xf32>
    %92 = vector.broadcast %91 : vector<1x320xf32> to vector<128x320xf32>
    %93 = arith.addf %90, %92 : vector<128x320xf32>
    %cst_51 = arith.constant 0.000000e+00 : f32
    %94 = vector.broadcast %cst_51 : f32 to vector<128x320xf32>
    %95 = arith.maximumf %93, %94 : vector<128x320xf32>
    %96 = vector.shape_cast %95 : vector<128x320xf32> to vector<2x64x320xf32>
    %c0_52 = arith.constant 0 : index
    %c0_53 = arith.constant 0 : index
    %c0_54 = arith.constant 0 : index
    %97 = vector.load %arg30[%c0_52, %c0_53, %c0_54] : memref<2x8x320xf32, #tpu.memory_space<vmem>>, vector<2x8x320xf32>
    %98 = vector.shape_cast %96 : vector<2x64x320xf32> to vector<2x8x8x320xf32>
    %cst_55 = arith.constant dense<0.000000e+00> : vector<2x8x320xf32>
    %99 = vector.multi_reduction <add>, %98, %cst_55 [1] : vector<2x8x8x320xf32> to vector<2x8x320xf32>
    %100 = arith.addf %97, %99 : vector<2x8x320xf32>
    %c0_56 = arith.constant 0 : index
    %c0_57 = arith.constant 0 : index
    %c0_58 = arith.constant 0 : index
    %101 = vector.load %arg30[%c0_56, %c0_57, %c0_58] : memref<2x8x320xf32, #tpu.memory_space<vmem>>, vector<2x8x320xf32>
    tpu.vector_store %arg30[%c0_56, %c0_57, %c0_58], %100 {strides = array<i32>} : memref<2x8x320xf32, #tpu.memory_space<vmem>>, vector<2x8x320xf32>,
    %c0_i32_59 = arith.constant 0 : i32
    %102 = arith.cmpi eq, %arg1, %c0_i32_59 : i32
    %103 = arith.extui %102 : i1 to i32
    %c0_i32_60 = arith.constant 0 : i32
    %104 = arith.cmpi ne, %103, %c0_i32_60 : i32
    scf.if %104 {
      %c0_61 = arith.constant 0 : index
      %c0_62 = arith.constant 0 : index
      %c0_63 = arith.constant 0 : index
      %105 = vector.load %arg30[%c0_61, %c0_62, %c0_63] : memref<2x8x320xf32, #tpu.memory_space<vmem>>, vector<2x8x320xf32>
      %cst_64 = arith.constant dense<0.000000e+00> : vector<2x320xf32>
      %106 = vector.multi_reduction <add>, %105, %cst_64 [1] : vector<2x8x320xf32> to vector<2x320xf32>
      %cst_65 = arith.constant 1.562500e-02 : f32
      %107 = vector.broadcast %cst_65 : f32 to vector<2x320xf32>
      %108 = arith.mulf %106, %107 : vector<2x320xf32>
      %c0_66 = arith.constant 0 : index
      %c0_67 = arith.constant 0 : index
      %109 = vector.load %arg3[%c0_66, %c0_67] : memref<2x8xf32, #tpu.memory_space<vmem>>, vector<2x8xf32>
      %c0_68 = arith.constant 0 : index
      %c0_69 = arith.constant 0 : index
      %110 = vector.load %arg10[%c0_68, %c0_69] : memref<8x16xf32, #tpu.memory_space<vmem>>, vector<8x16xf32>
      %cst_70 = arith.constant dense<0.000000e+00> : vector<2x16xf32>
      %111 = tpu.matmul %109, %110, %cst_70 {dimension_numbers = #tpu.dot_dimension_numbers<[1], [0], [0], [1], [0, 0, 1, 1], [], []>} : vector<2x8xf32>, vector<8x16xf32>, vector<2x16xf32> -> vector<2x16xf32>
      %c0_71 = arith.constant 0 : index
      %c0_72 = arith.constant 0 : index
      %112 = vector.load %arg11[%c0_71, %c0_72] : memref<1x16xf32, #tpu.memory_space<vmem>>, vector<1x16xf32>
      %113 = vector.broadcast %112 : vector<1x16xf32> to vector<2x16xf32>
      %114 = arith.addf %111, %113 : vector<2x16xf32>
      %c0_73 = arith.constant 0 : index
      %c0_74 = arith.constant 0 : index
      %115 = vector.load %arg12[%c0_73, %c0_74] : memref<1x16xf32, #tpu.memory_space<vmem>>, vector<1x16xf32>
      %c0_75 = arith.constant 0 : index
      %c0_76 = arith.constant 0 : index
      %116 = vector.load %arg13[%c0_75, %c0_76] : memref<1x16xf32, #tpu.memory_space<vmem>>, vector<1x16xf32>
      %cst_77 = arith.constant dense<0.000000e+00> : vector<2xf32>
      %117 = vector.multi_reduction <add>, %114, %cst_77 [1] : vector<2x16xf32> to vector<2xf32>
      %118 = vector.shape_cast %117 : vector<2xf32> to vector<2x1xf32>
      %cst_78 = arith.constant 1.600000e+01 : f32
      %119 = vector.broadcast %cst_78 : f32 to vector<2x1xf32>
      %120 = arith.divf %118, %119 : vector<2x1xf32>
      %121 = vector.broadcast %120 : vector<2x1xf32> to vector<2x16xf32>
      %122 = arith.subf %114, %121 : vector<2x16xf32>
      %123 = arith.mulf %122, %122 : vector<2x16xf32>
      %cst_79 = arith.constant dense<0.000000e+00> : vector<2xf32>
      %124 = vector.multi_reduction <add>, %123, %cst_79 [1] : vector<2x16xf32> to vector<2xf32>
      %125 = vector.shape_cast %124 : vector<2xf32> to vector<2x1xf32>
      %cst_80 = arith.constant 1.600000e+01 : f32
      %126 = vector.broadcast %cst_80 : f32 to vector<2x1xf32>
      %127 = arith.divf %125, %126 : vector<2x1xf32>
      %128 = vector.broadcast %120 : vector<2x1xf32> to vector<2x16xf32>
      %129 = arith.subf %114, %128 : vector<2x16xf32>
      %cst_81 = arith.constant 9.99999974E-6 : f32
      %130 = vector.broadcast %cst_81 : f32 to vector<2x1xf32>
      %131 = arith.addf %127, %130 : vector<2x1xf32>
      %132 = math.rsqrt %131 : vector<2x1xf32>
      %133 = vector.broadcast %132 : vector<2x1xf32> to vector<2x16xf32>
      %134 = arith.mulf %129, %133 : vector<2x16xf32>
      %135 = vector.broadcast %115 : vector<1x16xf32> to vector<2x16xf32>
      %136 = arith.mulf %134, %135 : vector<2x16xf32>
      %137 = vector.broadcast %116 : vector<1x16xf32> to vector<2x16xf32>
      %138 = arith.addf %136, %137 : vector<2x16xf32>
      %cst_82 = arith.constant 5.000000e-01 : f32
      %139 = vector.broadcast %cst_82 : f32 to vector<2x16xf32>
      %140 = arith.mulf %139, %138 : vector<2x16xf32>
      %cst_83 = arith.constant 0.707106769 : f32
      %141 = vector.broadcast %cst_83 : f32 to vector<2x16xf32>
      %142 = arith.mulf %138, %141 : vector<2x16xf32>
      %143 = math.erf %142 : vector<2x16xf32>
      %cst_84 = arith.constant 1.000000e+00 : f32
      %144 = vector.broadcast %cst_84 : f32 to vector<2x16xf32>
      %145 = arith.addf %144, %143 : vector<2x16xf32>
      %146 = arith.mulf %140, %145 : vector<2x16xf32>
      %c0_85 = arith.constant 0 : index
      %c0_86 = arith.constant 0 : index
      %147 = vector.load %arg14[%c0_85, %c0_86] : memref<16x128xf32, #tpu.memory_space<vmem>>, vector<16x128xf32>
      %cst_87 = arith.constant dense<0.000000e+00> : vector<2x128xf32>
      %148 = tpu.matmul %146, %147, %cst_87 {dimension_numbers = #tpu.dot_dimension_numbers<[1], [0], [0], [1], [0, 0, 1, 1], [], []>} : vector<2x16xf32>, vector<16x128xf32>, vector<2x128xf32> -> vector<2x128xf32>
      %c0_88 = arith.constant 0 : index
      %c0_89 = arith.constant 0 : index
      %149 = vector.load %arg15[%c0_88, %c0_89] : memref<1x128xf32, #tpu.memory_space<vmem>>, vector<1x128xf32>
      %150 = vector.broadcast %149 : vector<1x128xf32> to vector<2x128xf32>
      %151 = arith.addf %148, %150 : vector<2x128xf32>
      %cst_90 = arith.constant 5.000000e-01 : f32
      %152 = vector.broadcast %cst_90 : f32 to vector<2x128xf32>
      %153 = arith.mulf %152, %151 : vector<2x128xf32>
      %cst_91 = arith.constant 0.707106769 : f32
      %154 = vector.broadcast %cst_91 : f32 to vector<2x128xf32>
      %155 = arith.mulf %151, %154 : vector<2x128xf32>
      %156 = math.erf %155 : vector<2x128xf32>
      %cst_92 = arith.constant 1.000000e+00 : f32
      %157 = vector.broadcast %cst_92 : f32 to vector<2x128xf32>
      %158 = arith.addf %157, %156 : vector<2x128xf32>
      %159 = arith.mulf %153, %158 : vector<2x128xf32>
      %c0_93 = arith.constant 0 : index
      %c0_94 = arith.constant 0 : index
      %160 = vector.load %arg16[%c0_93, %c0_94] : memref<128x320xf32, #tpu.memory_space<vmem>>, vector<128x320xf32>
      %cst_95 = arith.constant dense<0.000000e+00> : vector<2x320xf32>
      %161 = tpu.matmul %159, %160, %cst_95 {dimension_numbers = #tpu.dot_dimension_numbers<[1], [0], [0], [1], [0, 0, 1, 1], [], []>} : vector<2x128xf32>, vector<128x320xf32>, vector<2x320xf32> -> vector<2x320xf32>
      %c0_96 = arith.constant 0 : index
      %c0_97 = arith.constant 0 : index
      %162 = vector.load %arg17[%c0_96, %c0_97] : memref<1x320xf32, #tpu.memory_space<vmem>>, vector<1x320xf32>
      %163 = vector.broadcast %162 : vector<1x320xf32> to vector<2x320xf32>
      %164 = arith.addf %161, %163 : vector<2x320xf32>
      %165 = arith.negf %164 : vector<2x320xf32>
      %166 = math.exp %165 : vector<2x320xf32>
      %cst_98 = arith.constant 1.000000e+00 : f32
      %167 = vector.broadcast %cst_98 : f32 to vector<2x320xf32>
      %168 = arith.addf %167, %166 : vector<2x320xf32>
      %169 = arith.divf %167, %168 : vector<2x320xf32>
      %170 = arith.mulf %108, %169 : vector<2x320xf32>
      %c0_99 = arith.constant 0 : index
      %c0_100 = arith.constant 0 : index
      %171 = vector.load %arg18[%c0_99, %c0_100] : memref<320x512xf32, #tpu.memory_space<vmem>>, vector<320x512xf32>
      %cst_101 = arith.constant dense<0.000000e+00> : vector<2x512xf32>
      %172 = tpu.matmul %170, %171, %cst_101 {dimension_numbers = #tpu.dot_dimension_numbers<[1], [0], [0], [1], [0, 0, 1, 1], [], []>} : vector<2x320xf32>, vector<320x512xf32>, vector<2x512xf32> -> vector<2x512xf32>
      %c0_102 = arith.constant 0 : index
      %c0_103 = arith.constant 0 : index
      %173 = vector.load %arg19[%c0_102, %c0_103] : memref<16x512xf32, #tpu.memory_space<vmem>>, vector<16x512xf32>
      %cst_104 = arith.constant dense<0.000000e+00> : vector<2x512xf32>
      %174 = tpu.matmul %146, %173, %cst_104 {dimension_numbers = #tpu.dot_dimension_numbers<[1], [0], [0], [1], [0, 0, 1, 1], [], []>} : vector<2x16xf32>, vector<16x512xf32>, vector<2x512xf32> -> vector<2x512xf32>
      %175 = arith.addf %172, %174 : vector<2x512xf32>
      %c0_105 = arith.constant 0 : index
      %c0_106 = arith.constant 0 : index
      %176 = vector.load %arg20[%c0_105, %c0_106] : memref<1x512xf32, #tpu.memory_space<vmem>>, vector<1x512xf32>
      %177 = vector.broadcast %176 : vector<1x512xf32> to vector<2x512xf32>
      %178 = arith.addf %175, %177 : vector<2x512xf32>
      %c0_107 = arith.constant 0 : index
      %c0_108 = arith.constant 0 : index
      %179 = vector.load %arg21[%c0_107, %c0_108] : memref<1x512xf32, #tpu.memory_space<vmem>>, vector<1x512xf32>
      %c0_109 = arith.constant 0 : index
      %c0_110 = arith.constant 0 : index
      %180 = vector.load %arg22[%c0_109, %c0_110] : memref<1x512xf32, #tpu.memory_space<vmem>>, vector<1x512xf32>
      %cst_111 = arith.constant dense<0.000000e+00> : vector<2xf32>
      %181 = vector.multi_reduction <add>, %178, %cst_111 [1] : vector<2x512xf32> to vector<2xf32>
      %182 = vector.shape_cast %181 : vector<2xf32> to vector<2x1xf32>
      %cst_112 = arith.constant 5.120000e+02 : f32
      %183 = vector.broadcast %cst_112 : f32 to vector<2x1xf32>
      %184 = arith.divf %182, %183 : vector<2x1xf32>
      %185 = vector.broadcast %184 : vector<2x1xf32> to vector<2x512xf32>
      %186 = arith.subf %178, %185 : vector<2x512xf32>
      %187 = arith.mulf %186, %186 : vector<2x512xf32>
      %cst_113 = arith.constant dense<0.000000e+00> : vector<2xf32>
      %188 = vector.multi_reduction <add>, %187, %cst_113 [1] : vector<2x512xf32> to vector<2xf32>
      %189 = vector.shape_cast %188 : vector<2xf32> to vector<2x1xf32>
      %cst_114 = arith.constant 5.120000e+02 : f32
      %190 = vector.broadcast %cst_114 : f32 to vector<2x1xf32>
      %191 = arith.divf %189, %190 : vector<2x1xf32>
      %192 = vector.broadcast %184 : vector<2x1xf32> to vector<2x512xf32>
      %193 = arith.subf %178, %192 : vector<2x512xf32>
      %cst_115 = arith.constant 9.99999974E-6 : f32
      %194 = vector.broadcast %cst_115 : f32 to vector<2x1xf32>
      %195 = arith.addf %191, %194 : vector<2x1xf32>
      %196 = math.rsqrt %195 : vector<2x1xf32>
      %197 = vector.broadcast %196 : vector<2x1xf32> to vector<2x512xf32>
      %198 = arith.mulf %193, %197 : vector<2x512xf32>
      %199 = vector.broadcast %179 : vector<1x512xf32> to vector<2x512xf32>
      %200 = arith.mulf %198, %199 : vector<2x512xf32>
      %201 = vector.broadcast %180 : vector<1x512xf32> to vector<2x512xf32>
      %202 = arith.addf %200, %201 : vector<2x512xf32>
      %cst_116 = arith.constant 5.000000e-01 : f32
      %203 = vector.broadcast %cst_116 : f32 to vector<2x512xf32>
      %204 = arith.mulf %203, %202 : vector<2x512xf32>
      %cst_117 = arith.constant 0.707106769 : f32
      %205 = vector.broadcast %cst_117 : f32 to vector<2x512xf32>
      %206 = arith.mulf %202, %205 : vector<2x512xf32>
      %207 = math.erf %206 : vector<2x512xf32>
      %cst_118 = arith.constant 1.000000e+00 : f32
      %208 = vector.broadcast %cst_118 : f32 to vector<2x512xf32>
      %209 = arith.addf %208, %207 : vector<2x512xf32>
      %210 = arith.mulf %204, %209 : vector<2x512xf32>
      %c0_119 = arith.constant 0 : index
      %c0_120 = arith.constant 0 : index
      %211 = vector.load %arg23[%c0_119, %c0_120] : memref<512x128xf32, #tpu.memory_space<vmem>>, vector<512x128xf32>
      %cst_121 = arith.constant dense<0.000000e+00> : vector<2x128xf32>
      %212 = tpu.matmul %210, %211, %cst_121 {dimension_numbers = #tpu.dot_dimension_numbers<[1], [0], [0], [1], [0, 0, 1, 1], [], []>} : vector<2x512xf32>, vector<512x128xf32>, vector<2x128xf32> -> vector<2x128xf32>
      %c0_122 = arith.constant 0 : index
      %c0_123 = arith.constant 0 : index
      %213 = vector.load %arg24[%c0_122, %c0_123] : memref<1x128xf32, #tpu.memory_space<vmem>>, vector<1x128xf32>
      %214 = vector.broadcast %213 : vector<1x128xf32> to vector<2x128xf32>
      %215 = arith.addf %212, %214 : vector<2x128xf32>
      %c0_124 = arith.constant 0 : index
      %c0_125 = arith.constant 0 : index
      %216 = vector.load %arg25[%c0_124, %c0_125] : memref<1x128xf32, #tpu.memory_space<vmem>>, vector<1x128xf32>
      %c0_126 = arith.constant 0 : index
      %c0_127 = arith.constant 0 : index
      %217 = vector.load %arg26[%c0_126, %c0_127] : memref<1x128xf32, #tpu.memory_space<vmem>>, vector<1x128xf32>
      %cst_128 = arith.constant dense<0.000000e+00> : vector<2xf32>
      %218 = vector.multi_reduction <add>, %215, %cst_128 [1] : vector<2x128xf32> to vector<2xf32>
      %219 = vector.shape_cast %218 : vector<2xf32> to vector<2x1xf32>
      %cst_129 = arith.constant 1.280000e+02 : f32
      %220 = vector.broadcast %cst_129 : f32 to vector<2x1xf32>
      %221 = arith.divf %219, %220 : vector<2x1xf32>
      %222 = vector.broadcast %221 : vector<2x1xf32> to vector<2x128xf32>
      %223 = arith.subf %215, %222 : vector<2x128xf32>
      %224 = arith.mulf %223, %223 : vector<2x128xf32>
      %cst_130 = arith.constant dense<0.000000e+00> : vector<2xf32>
      %225 = vector.multi_reduction <add>, %224, %cst_130 [1] : vector<2x128xf32> to vector<2xf32>
      %226 = vector.shape_cast %225 : vector<2xf32> to vector<2x1xf32>
      %cst_131 = arith.constant 1.280000e+02 : f32
      %227 = vector.broadcast %cst_131 : f32 to vector<2x1xf32>
      %228 = arith.divf %226, %227 : vector<2x1xf32>
      %229 = vector.broadcast %221 : vector<2x1xf32> to vector<2x128xf32>
      %230 = arith.subf %215, %229 : vector<2x128xf32>
      %cst_132 = arith.constant 9.99999974E-6 : f32
      %231 = vector.broadcast %cst_132 : f32 to vector<2x1xf32>
      %232 = arith.addf %228, %231 : vector<2x1xf32>
      %233 = math.rsqrt %232 : vector<2x1xf32>
      %234 = vector.broadcast %233 : vector<2x1xf32> to vector<2x128xf32>
      %235 = arith.mulf %230, %234 : vector<2x128xf32>
      %236 = vector.broadcast %216 : vector<1x128xf32> to vector<2x128xf32>
      %237 = arith.mulf %235, %236 : vector<2x128xf32>
      %238 = vector.broadcast %217 : vector<1x128xf32> to vector<2x128xf32>
      %239 = arith.addf %237, %238 : vector<2x128xf32>
      %cst_133 = arith.constant 5.000000e-01 : f32
      %240 = vector.broadcast %cst_133 : f32 to vector<2x128xf32>
      %241 = arith.mulf %240, %239 : vector<2x128xf32>
      %cst_134 = arith.constant 0.707106769 : f32
      %242 = vector.broadcast %cst_134 : f32 to vector<2x128xf32>
      %243 = arith.mulf %239, %242 : vector<2x128xf32>
      %244 = math.erf %243 : vector<2x128xf32>
      %cst_135 = arith.constant 1.000000e+00 : f32
      %245 = vector.broadcast %cst_135 : f32 to vector<2x128xf32>
      %246 = arith.addf %245, %244 : vector<2x128xf32>
      %247 = arith.mulf %241, %246 : vector<2x128xf32>
      %c0_136 = arith.constant 0 : index
      %c0_137 = arith.constant 0 : index
      %248 = vector.load %arg27[%c0_136, %c0_137] : memref<128x1xf32, #tpu.memory_space<vmem>>, vector<128x1xf32>
      %cst_138 = arith.constant dense<0.000000e+00> : vector<2x1xf32>
      %249 = tpu.matmul %247, %248, %cst_138 {dimension_numbers = #tpu.dot_dimension_numbers<[1], [0], [0], [1], [0, 0, 1, 1], [], []>} : vector<2x128xf32>, vector<128x1xf32>, vector<2x1xf32> -> vector<2x1xf32>
      %c0_139 = arith.constant 0 : index
      %c0_140 = arith.constant 0 : index
      %250 = vector.load %arg28[%c0_139, %c0_140] : memref<1x1xf32, #tpu.memory_space<vmem>>, vector<1x1xf32>
      %251 = vector.broadcast %250 : vector<1x1xf32> to vector<2x1xf32>
      %252 = arith.addf %249, %251 : vector<2x1xf32>
      %c0_141 = arith.constant 0 : index
      %c0_142 = arith.constant 0 : index
      %253 = vector.load %arg29[%c0_141, %c0_142] : memref<2x1xf32, #tpu.memory_space<vmem>>, vector<2x1xf32>
      tpu.vector_store %arg29[%c0_141, %c0_142], %252 {strides = array<i32>} : memref<2x1xf32, #tpu.memory_space<vmem>>, vector<2x1xf32>,
    } else {
    }
    return
  }
  func.func @transform_0(%arg0: i32, %arg1: i32) -> (i32, i32, i32) {
    %c0_i32 = arith.constant 0 : i32
    %c0_i32_0 = arith.constant 0 : i32
    return %arg0, %arg1, %c0_i32 : i32, i32, i32
  }
  func.func @transform_1(%arg0: i32, %arg1: i32) -> (i32, i32) {
    %c0_i32 = arith.constant 0 : i32
    %c0_i32_0 = arith.constant 0 : i32
    return %arg0, %c0_i32 : i32, i32
  }
  func.func @transform_2(%arg0: i32, %arg1: i32) -> (i32, i32) {
    %c0_i32 = arith.constant 0 : i32
    %c0_i32_0 = arith.constant 0 : i32
    %c0_i32_1 = arith.constant 0 : i32
    return %c0_i32, %c0_i32_0 : i32, i32
  }
  func.func @transform_3(%arg0: i32, %arg1: i32) -> (i32, i32) {
    %c0_i32 = arith.constant 0 : i32
    %c0_i32_0 = arith.constant 0 : i32
    %c0_i32_1 = arith.constant 0 : i32
    return %c0_i32, %c0_i32_0 : i32, i32
  }
  func.func @transform_4(%arg0: i32, %arg1: i32) -> (i32, i32) {
    %c0_i32 = arith.constant 0 : i32
    %c0_i32_0 = arith.constant 0 : i32
    %c0_i32_1 = arith.constant 0 : i32
    return %c0_i32, %c0_i32_0 : i32, i32
  }
  func.func @transform_5(%arg0: i32, %arg1: i32) -> (i32, i32) {
    %c0_i32 = arith.constant 0 : i32
    %c0_i32_0 = arith.constant 0 : i32
    %c0_i32_1 = arith.constant 0 : i32
    return %c0_i32, %c0_i32_0 : i32, i32
  }
  func.func @transform_6(%arg0: i32, %arg1: i32) -> (i32, i32) {
    %c0_i32 = arith.constant 0 : i32
    %c0_i32_0 = arith.constant 0 : i32
    %c0_i32_1 = arith.constant 0 : i32
    return %c0_i32, %c0_i32_0 : i32, i32
  }
  func.func @transform_7(%arg0: i32, %arg1: i32) -> (i32, i32) {
    %c0_i32 = arith.constant 0 : i32
    %c0_i32_0 = arith.constant 0 : i32
    %c0_i32_1 = arith.constant 0 : i32
    return %c0_i32, %c0_i32_0 : i32, i32
  }
  func.func @transform_8(%arg0: i32, %arg1: i32) -> (i32, i32) {
    %c0_i32 = arith.constant 0 : i32
    %c0_i32_0 = arith.constant 0 : i32
    %c0_i32_1 = arith.constant 0 : i32
    return %c0_i32, %c0_i32_0 : i32, i32
  }
  func.func @transform_9(%arg0: i32, %arg1: i32) -> (i32, i32) {
    %c0_i32 = arith.constant 0 : i32
    %c0_i32_0 = arith.constant 0 : i32
    %c0_i32_1 = arith.constant 0 : i32
    return %c0_i32, %c0_i32_0 : i32, i32
  }
  func.func @transform_10(%arg0: i32, %arg1: i32) -> (i32, i32) {
    %c0_i32 = arith.constant 0 : i32
    %c0_i32_0 = arith.constant 0 : i32
    %c0_i32_1 = arith.constant 0 : i32
    return %c0_i32, %c0_i32_0 : i32, i32
  }
  func.func @transform_11(%arg0: i32, %arg1: i32) -> (i32, i32) {
    %c0_i32 = arith.constant 0 : i32
    %c0_i32_0 = arith.constant 0 : i32
    %c0_i32_1 = arith.constant 0 : i32
    return %c0_i32, %c0_i32_0 : i32, i32
  }
  func.func @transform_12(%arg0: i32, %arg1: i32) -> (i32, i32) {
    %c0_i32 = arith.constant 0 : i32
    %c0_i32_0 = arith.constant 0 : i32
    %c0_i32_1 = arith.constant 0 : i32
    return %c0_i32, %c0_i32_0 : i32, i32
  }
  func.func @transform_13(%arg0: i32, %arg1: i32) -> (i32, i32) {
    %c0_i32 = arith.constant 0 : i32
    %c0_i32_0 = arith.constant 0 : i32
    %c0_i32_1 = arith.constant 0 : i32
    return %c0_i32, %c0_i32_0 : i32, i32
  }
  func.func @transform_14(%arg0: i32, %arg1: i32) -> (i32, i32) {
    %c0_i32 = arith.constant 0 : i32
    %c0_i32_0 = arith.constant 0 : i32
    %c0_i32_1 = arith.constant 0 : i32
    return %c0_i32, %c0_i32_0 : i32, i32
  }
  func.func @transform_15(%arg0: i32, %arg1: i32) -> (i32, i32) {
    %c0_i32 = arith.constant 0 : i32
    %c0_i32_0 = arith.constant 0 : i32
    %c0_i32_1 = arith.constant 0 : i32
    return %c0_i32, %c0_i32_0 : i32, i32
  }
  func.func @transform_16(%arg0: i32, %arg1: i32) -> (i32, i32) {
    %c0_i32 = arith.constant 0 : i32
    %c0_i32_0 = arith.constant 0 : i32
    %c0_i32_1 = arith.constant 0 : i32
    return %c0_i32, %c0_i32_0 : i32, i32
  }
  func.func @transform_17(%arg0: i32, %arg1: i32) -> (i32, i32) {
    %c0_i32 = arith.constant 0 : i32
    %c0_i32_0 = arith.constant 0 : i32
    %c0_i32_1 = arith.constant 0 : i32
    return %c0_i32, %c0_i32_0 : i32, i32
  }
  func.func @transform_18(%arg0: i32, %arg1: i32) -> (i32, i32) {
    %c0_i32 = arith.constant 0 : i32
    %c0_i32_0 = arith.constant 0 : i32
    %c0_i32_1 = arith.constant 0 : i32
    return %c0_i32, %c0_i32_0 : i32, i32
  }
  func.func @transform_19(%arg0: i32, %arg1: i32) -> (i32, i32) {
    %c0_i32 = arith.constant 0 : i32
    %c0_i32_0 = arith.constant 0 : i32
    %c0_i32_1 = arith.constant 0 : i32
    return %c0_i32, %c0_i32_0 : i32, i32
  }
  func.func @transform_20(%arg0: i32, %arg1: i32) -> (i32, i32) {
    %c0_i32 = arith.constant 0 : i32
    %c0_i32_0 = arith.constant 0 : i32
    %c0_i32_1 = arith.constant 0 : i32
    return %c0_i32, %c0_i32_0 : i32, i32
  }
  func.func @transform_21(%arg0: i32, %arg1: i32) -> (i32, i32) {
    %c0_i32 = arith.constant 0 : i32
    %c0_i32_0 = arith.constant 0 : i32
    %c0_i32_1 = arith.constant 0 : i32
    return %c0_i32, %c0_i32_0 : i32, i32
  }
  func.func @transform_22(%arg0: i32, %arg1: i32) -> (i32, i32) {
    %c0_i32 = arith.constant 0 : i32
    %c0_i32_0 = arith.constant 0 : i32
    %c0_i32_1 = arith.constant 0 : i32
    return %c0_i32, %c0_i32_0 : i32, i32
  }
  func.func @transform_23(%arg0: i32, %arg1: i32) -> (i32, i32) {
    %c0_i32 = arith.constant 0 : i32
    %c0_i32_0 = arith.constant 0 : i32
    %c0_i32_1 = arith.constant 0 : i32
    return %c0_i32, %c0_i32_0 : i32, i32
  }
  func.func @transform_24(%arg0: i32, %arg1: i32) -> (i32, i32) {
    %c0_i32 = arith.constant 0 : i32
    %c0_i32_0 = arith.constant 0 : i32
    %c0_i32_1 = arith.constant 0 : i32
    return %c0_i32, %c0_i32_0 : i32, i32
  }
  func.func @transform_25(%arg0: i32, %arg1: i32) -> (i32, i32) {
    %c0_i32 = arith.constant 0 : i32
    %c0_i32_0 = arith.constant 0 : i32
    %c0_i32_1 = arith.constant 0 : i32
    return %c0_i32, %c0_i32_0 : i32, i32
  }
  func.func @transform_26(%arg0: i32, %arg1: i32) -> (i32, i32) {
    %c0_i32 = arith.constant 0 : i32
    %c0_i32_0 = arith.constant 0 : i32
    %c0_i32_1 = arith.constant 0 : i32
    return %c0_i32, %c0_i32_0 : i32, i32
  }
  func.func @transform_27(%arg0: i32, %arg1: i32) -> (i32, i32) {
    %c0_i32 = arith.constant 0 : i32
    %c0_i32_0 = arith.constant 0 : i32
    return %arg0, %c0_i32 : i32, i32
  }
}

</mosaic_0001>

<llo_original>
// kernel: efficientnet_with_clinical_forward.1
$region0: #{efficientnet_with_clinical_forward.1}
  #allocation0 [shape = 'u32[]', space=smem, size = 0x4, offset = 0x4, fixed_abs, tag = 'smem constant byte address 0x4 - core index']
  #allocation1 [shape = 'u32[144,128]{1,0:T(1,128)}', space=vmem, size = 0x12000, scoped, tag = 'internal scratch']
  #allocation2 [shape = 'f32[2,8,320]{2,1,0:T(8,128)}', space=vmem, size = 0x6000, scoped, tag = 'scratch operand']
  #allocation3 [shape = 'f32[1,1]{1,0:T(1,128)S(1)}', space=vmem, size = 0x200, scoped, tag = 'scoped memory for efficientnet_with_clinical_forward.1']
  %s0 = inlined_call_operand.vmem [shape: bf16[2,64,16], index: 0, kind: input, shape index: {}]
  %s1 = inlined_call_operand.vmem [shape: f32[2,8], index: 1, kind: input, shape index: {}]
  %s2 = inlined_call_operand.vmem [shape: bf16[16,32], index: 2, kind: input, shape index: {}]
  %s3 = inlined_call_operand.vmem [shape: f32[1,32], index: 3, kind: input, shape index: {}]
  %s4 = inlined_call_operand.vmem [shape: bf16[32,1280], index: 4, kind: input, shape index: {}]
  %s5 = inlined_call_operand.vmem [shape: f32[1,1280], index: 5, kind: input, shape index: {}]
  %s6 = inlined_call_operand.vmem [shape: bf16[1280,320], index: 6, kind: input, shape index: {}]
  %s7 = inlined_call_operand.vmem [shape: f32[1,320], index: 7, kind: input, shape index: {}]
  %s8 = inlined_call_operand.vmem [shape: f32[8,16], index: 8, kind: input, shape index: {}]
  %s9 = inlined_call_operand.vmem [shape: f32[1,16], index: 9, kind: input, shape index: {}]
  %s10 = inlined_call_operand.vmem [shape: f32[1,16], index: 10, kind: input, shape index: {}]
  %s11 = inlined_call_operand.vmem [shape: f32[1,16], index: 11, kind: input, shape index: {}]
  %s12 = inlined_call_operand.vmem [shape: f32[16,128], index: 12, kind: input, shape index: {}]
  %s13 = inlined_call_operand.vmem [shape: f32[1,128], index: 13, kind: input, shape index: {}]
  %s14 = inlined_call_operand.vmem [shape: f32[128,320], index: 14, kind: input, shape index: {}]
  %s15 = inlined_call_operand.vmem [shape: f32[1,320], index: 15, kind: input, shape index: {}]
  %s16 = inlined_call_operand.vmem [shape: f32[320,512], index: 16, kind: input, shape index: {}]
  %s17 = inlined_call_operand.vmem [shape: f32[16,512], index: 17, kind: input, shape index: {}]
  %s18 = inlined_call_operand.vmem [shape: f32[1,512], index: 18, kind: input, shape index: {}]
  %s19 = inlined_call_operand.vmem [shape: f32[1,512], index: 19, kind: input, shape index: {}]
  %s20 = inlined_call_operand.vmem [shape: f32[1,512], index: 20, kind: input, shape index: {}]
  %s21 = inlined_call_operand.vmem [shape: f32[512,128], index: 21, kind: input, shape index: {}]
  %s22 = inlined_call_operand.vmem [shape: f32[1,128], index: 22, kind: input, shape index: {}]
  %s23 = inlined_call_operand.vmem [shape: f32[1,128], index: 23, kind: input, shape index: {}]
  %s24 = inlined_call_operand.vmem [shape: f32[1,128], index: 24, kind: input, shape index: {}]
  %s25 = inlined_call_operand.vmem [shape: f32[128,1], index: 25, kind: input, shape index: {}]
  %s26 = inlined_call_operand.<no memory space> [shape: f32[1,1], index: 26, kind: input, shape index: {}]
  %s27 = inlined_call_operand.vmem [shape: f32[2,1], index: 27, kind: output, shape index: {}]
  %s28 = sld [smem:[#allocation0]]
  $region126: #{efficientnet_with_clinical_forward.1} parent=0
    _
  %s30 = ssub.s32 1, %s28
  %s31 = scalar_select 0, %s30, %s28
  %v32 = vstv %s26
  %33 = vst [vmem:[#allocation3] sm:$0x1] %v32
  // Predicated region
  $region2: #{efficientnet_with_clinical_forward.1} parent=0 // pred_check
    _
  $region3: #{efficientnet_with_clinical_forward.1} parent=0 // pred_check_branch
    %35 = sbr.rel (0) target = $region5
  $region4: #{efficientnet_with_clinical_forward.1} parent=0 // pred_region
    _
  $region5: #{efficientnet_with_clinical_forward.1} parent=0 // pred_fallthru
    _
  // Predicated region
  $region6: #{efficientnet_with_clinical_forward.1} parent=0 // pred_check
    _
  $region7: #{efficientnet_with_clinical_forward.1} parent=0 // pred_check_branch
    %37 = sbr.rel (0) target = $region9
  $region8: #{efficientnet_with_clinical_forward.1} parent=0 // pred_region
    _
  $region9: #{efficientnet_with_clinical_forward.1} parent=0 // pred_fallthru
    _
  // Predicated region
  $region10: #{efficientnet_with_clinical_forward.1} parent=0 // pred_check
    _
  $region11: #{efficientnet_with_clinical_forward.1} parent=0 // pred_check_branch
    %39 = sbr.rel (0) target = $region13
  $region12: #{efficientnet_with_clinical_forward.1} parent=0 // pred_region
    _
  $region13: #{efficientnet_with_clinical_forward.1} parent=0 // pred_fallthru
    _
  // Predicated region
  $region14: #{efficientnet_with_clinical_forward.1} parent=0 // pred_check
    _
  $region15: #{efficientnet_with_clinical_forward.1} parent=0 // pred_check_branch
    %41 = sbr.rel (0) target = $region17
  $region16: #{efficientnet_with_clinical_forward.1} parent=0 // pred_region
    _
  $region17: #{efficientnet_with_clinical_forward.1} parent=0 // pred_fallthru
    _
  // Predicated region
  $region18: #{efficientnet_with_clinical_forward.1} parent=0 // pred_check
    _
  $region19: #{efficientnet_with_clinical_forward.1} parent=0 // pred_check_branch
    %43 = sbr.rel (0) target = $region21
  $region20: #{efficientnet_with_clinical_forward.1} parent=0 // pred_region
    _
  $region21: #{efficientnet_with_clinical_forward.1} parent=0 // pred_fallthru
    _
  // Predicated region
  $region22: #{efficientnet_with_clinical_forward.1} parent=0 // pred_check
    _
  $region23: #{efficientnet_with_clinical_forward.1} parent=0 // pred_check_branch
    %45 = sbr.rel (0) target = $region25
  $region24: #{efficientnet_with_clinical_forward.1} parent=0 // pred_region
    _
  $region25: #{efficientnet_with_clinical_forward.1} parent=0 // pred_fallthru
    _
  // Predicated region
  $region26: #{efficientnet_with_clinical_forward.1} parent=0 // pred_check
    _
  $region27: #{efficientnet_with_clinical_forward.1} parent=0 // pred_check_branch
    %47 = sbr.rel (0) target = $region29
  $region28: #{efficientnet_with_clinical_forward.1} parent=0 // pred_region
    _
  $region29: #{efficientnet_with_clinical_forward.1} parent=0 // pred_fallthru
    _
  // Predicated region
  $region30: #{efficientnet_with_clinical_forward.1} parent=0 // pred_check
    _
  $region31: #{efficientnet_with_clinical_forward.1} parent=0 // pred_check_branch
    %49 = sbr.rel (0) target = $region33
  $region32: #{efficientnet_with_clinical_forward.1} parent=0 // pred_region
    _
  $region33: #{efficientnet_with_clinical_forward.1} parent=0 // pred_fallthru
    _
  // Predicated region
  $region34: #{efficientnet_with_clinical_forward.1} parent=0 // pred_check
    _
  $region35: #{efficientnet_with_clinical_forward.1} parent=0 // pred_check_branch
    %51 = sbr.rel (0) target = $region37
  $region36: #{efficientnet_with_clinical_forward.1} parent=0 // pred_region
    _
  $region37: #{efficientnet_with_clinical_forward.1} parent=0 // pred_fallthru
    _
  // Predicated region
  $region38: #{efficientnet_with_clinical_forward.1} parent=0 // pred_check
    _
  $region39: #{efficientnet_with_clinical_forward.1} parent=0 // pred_check_branch
    %53 = sbr.rel (0) target = $region41
  $region40: #{efficientnet_with_clinical_forward.1} parent=0 // pred_region
    _
  $region41: #{efficientnet_with_clinical_forward.1} parent=0 // pred_fallthru
    _
  // Predicated region
  $region42: #{efficientnet_with_clinical_forward.1} parent=0 // pred_check
    _
  $region43: #{efficientnet_with_clinical_forward.1} parent=0 // pred_check_branch
    %55 = sbr.rel (0) target = $region45
  $region44: #{efficientnet_with_clinical_forward.1} parent=0 // pred_region
    _
  $region45: #{efficientnet_with_clinical_forward.1} parent=0 // pred_fallthru
    _
  // Predicated region
  $region46: #{efficientnet_with_clinical_forward.1} parent=0 // pred_check
    _
  $region47: #{efficientnet_with_clinical_forward.1} parent=0 // pred_check_branch
    %57 = sbr.rel (0) target = $region49
  $region48: #{efficientnet_with_clinical_forward.1} parent=0 // pred_region
    _
  $region49: #{efficientnet_with_clinical_forward.1} parent=0 // pred_fallthru
    _
  // Predicated region
  $region50: #{efficientnet_with_clinical_forward.1} parent=0 // pred_check
    _
  $region51: #{efficientnet_with_clinical_forward.1} parent=0 // pred_check_branch
    %59 = sbr.rel (0) target = $region53
  $region52: #{efficientnet_with_clinical_forward.1} parent=0 // pred_region
    _
  $region53: #{efficientnet_with_clinical_forward.1} parent=0 // pred_fallthru
    _
  // Predicated region
  $region54: #{efficientnet_with_clinical_forward.1} parent=0 // pred_check
    _
  $region55: #{efficientnet_with_clinical_forward.1} parent=0 // pred_check_branch
    %61 = sbr.rel (0) target = $region57
  $region56: #{efficientnet_with_clinical_forward.1} parent=0 // pred_region
    _
  $region57: #{efficientnet_with_clinical_forward.1} parent=0 // pred_fallthru
    _
  // Predicated region
  $region58: #{efficientnet_with_clinical_forward.1} parent=0 // pred_check
    _
  $region59: #{efficientnet_with_clinical_forward.1} parent=0 // pred_check_branch
    %63 = sbr.rel (0) target = $region61
  $region60: #{efficientnet_with_clinical_forward.1} parent=0 // pred_region
    _
  $region61: #{efficientnet_with_clinical_forward.1} parent=0 // pred_fallthru
    _
  // Predicated region
  $region62: #{efficientnet_with_clinical_forward.1} parent=0 // pred_check
    _
  $region63: #{efficientnet_with_clinical_forward.1} parent=0 // pred_check_branch
    %65 = sbr.rel (0) target = $region65
  $region64: #{efficientnet_with_clinical_forward.1} parent=0 // pred_region
    _
  $region65: #{efficientnet_with_clinical_forward.1} parent=0 // pred_fallthru
    _
  // Predicated region
  $region66: #{efficientnet_with_clinical_forward.1} parent=0 // pred_check
    _
  $region67: #{efficientnet_with_clinical_forward.1} parent=0 // pred_check_branch
    %67 = sbr.rel (0) target = $region69
  $region68: #{efficientnet_with_clinical_forward.1} parent=0 // pred_region
    _
  $region69: #{efficientnet_with_clinical_forward.1} parent=0 // pred_fallthru
    _
  // Predicated region
  $region70: #{efficientnet_with_clinical_forward.1} parent=0 // pred_check
    _
  $region71: #{efficientnet_with_clinical_forward.1} parent=0 // pred_check_branch
    %69 = sbr.rel (0) target = $region73
  $region72: #{efficientnet_with_clinical_forward.1} parent=0 // pred_region
    _
  $region73: #{efficientnet_with_clinical_forward.1} parent=0 // pred_fallthru
    _
  // Predicated region
  $region74: #{efficientnet_with_clinical_forward.1} parent=0 // pred_check
    _
  $region75: #{efficientnet_with_clinical_forward.1} parent=0 // pred_check_branch
    %71 = sbr.rel (0) target = $region77
  $region76: #{efficientnet_with_clinical_forward.1} parent=0 // pred_region
    _
  $region77: #{efficientnet_with_clinical_forward.1} parent=0 // pred_fallthru
    _
  // Predicated region
  $region78: #{efficientnet_with_clinical_forward.1} parent=0 // pred_check
    _
  $region79: #{efficientnet_with_clinical_forward.1} parent=0 // pred_check_branch
    %73 = sbr.rel (0) target = $region81
  $region80: #{efficientnet_with_clinical_forward.1} parent=0 // pred_region
    _
  $region81: #{efficientnet_with_clinical_forward.1} parent=0 // pred_fallthru
    _
  // Predicated region
  $region82: #{efficientnet_with_clinical_forward.1} parent=0 // pred_check
    _
  $region83: #{efficientnet_with_clinical_forward.1} parent=0 // pred_check_branch
    %75 = sbr.rel (0) target = $region85
  $region84: #{efficientnet_with_clinical_forward.1} parent=0 // pred_region
    _
  $region85: #{efficientnet_with_clinical_forward.1} parent=0 // pred_fallthru
    _
  // Predicated region
  $region86: #{efficientnet_with_clinical_forward.1} parent=0 // pred_check
    _
  $region87: #{efficientnet_with_clinical_forward.1} parent=0 // pred_check_branch
    %77 = sbr.rel (0) target = $region89
  $region88: #{efficientnet_with_clinical_forward.1} parent=0 // pred_region
    _
  $region89: #{efficientnet_with_clinical_forward.1} parent=0 // pred_fallthru
    _
  // Predicated region
  $region90: #{efficientnet_with_clinical_forward.1} parent=0 // pred_check
    _
  $region91: #{efficientnet_with_clinical_forward.1} parent=0 // pred_check_branch
    %79 = sbr.rel (0) target = $region93
  $region92: #{efficientnet_with_clinical_forward.1} parent=0 // pred_region
    _
  $region93: #{efficientnet_with_clinical_forward.1} parent=0 // pred_fallthru
    _
  // Predicated region
  $region94: #{efficientnet_with_clinical_forward.1} parent=0 // pred_check
    _
  $region95: #{efficientnet_with_clinical_forward.1} parent=0 // pred_check_branch
    %81 = sbr.rel (0) target = $region97
  $region96: #{efficientnet_with_clinical_forward.1} parent=0 // pred_region
    _
  $region97: #{efficientnet_with_clinical_forward.1} parent=0 // pred_fallthru
    _
  // Predicated region
  $region98: #{efficientnet_with_clinical_forward.1} parent=0 // pred_check
    _
  $region99: #{efficientnet_with_clinical_forward.1} parent=0 // pred_check_branch
    %83 = sbr.rel (0) target = $region101
  $region100: #{efficientnet_with_clinical_forward.1} parent=0 // pred_region
    _
  $region101: #{efficientnet_with_clinical_forward.1} parent=0 // pred_fallthru
    _
  // Predicated region
  $region102: #{efficientnet_with_clinical_forward.1} parent=0 // pred_check
    _
  $region103: #{efficientnet_with_clinical_forward.1} parent=0 // pred_check_branch
    %85 = sbr.rel (0) target = $region105
  $region104: #{efficientnet_with_clinical_forward.1} parent=0 // pred_region
    _
  $region105: #{efficientnet_with_clinical_forward.1} parent=0 // pred_fallthru
    _
  // Predicated region
  $region106: #{efficientnet_with_clinical_forward.1} parent=0 // pred_check
    _
  $region107: #{efficientnet_with_clinical_forward.1} parent=0 // pred_check_branch
    %87 = sbr.rel (0) target = $region109
  $region108: #{efficientnet_with_clinical_forward.1} parent=0 // pred_region
    _
  $region109: #{efficientnet_with_clinical_forward.1} parent=0 // pred_fallthru
    _
  %p90 = scmp.eq.s32.totalorder 0, 0
  // Predicated region
  $region110: #{efficientnet_with_clinical_forward.1} parent=0 // pred_check
    %p91 = pneg %p90
  $region111: #{efficientnet_with_clinical_forward.1} parent=0 // pred_check_branch
    %93 = sbr.rel (%p91) target = $region113
  $region112: #{efficientnet_with_clinical_forward.1} parent=0 // pred_region
    %94 = vst [vmem:[#allocation2] sm:$0xff] 0.0
    %95 = vst [vmem:[#allocation2 + $0x8] sm:$0xff] 0.0
    %vm96 = vcmask 523264
    %97 = vst.msk [vmem:[#allocation2 + $0x10] sm:$0xff] %vm96, 0.0
    %98 = vst [vmem:[#allocation2 + $0x18] sm:$0xff] 0.0
    %99 = vst [vmem:[#allocation2 + $0x20] sm:$0xff] 0.0
    %100 = vst.msk [vmem:[#allocation2 + $0x28] sm:$0xff] %vm96, 0.0
  $region113: #{efficientnet_with_clinical_forward.1} parent=0 // pred_fallthru
    _
  %v101 = vld [vmem:[%s0] sm:$0xf]
  %v102 = vld [vmem:[%s0 + $0x4] sm:$0xf]
  %v103 = vld [vmem:[%s0 + $0x8] sm:$0xf]
  %v104 = vld [vmem:[%s0 + $0xc] sm:$0xf]
  %v105 = vld [vmem:[%s0 + $0x10] sm:$0xf]
  %v106 = vld [vmem:[%s0 + $0x14] sm:$0xf]
  %v107 = vld [vmem:[%s0 + $0x18] sm:$0xf]
  %v108 = vld [vmem:[%s0 + $0x1c] sm:$0xf]
  %v109 = vld [vmem:[%s0 + $0x20] sm:$0xf]
  %v110 = vld [vmem:[%s0 + $0x24] sm:$0xf]
  %v111 = vld [vmem:[%s0 + $0x28] sm:$0xf]
  %v112 = vld [vmem:[%s0 + $0x2c] sm:$0xf]
  %v113 = vld [vmem:[%s0 + $0x30] sm:$0xf]
  %v114 = vld [vmem:[%s0 + $0x34] sm:$0xf]
  %v115 = vld [vmem:[%s0 + $0x38] sm:$0xf]
  %v116 = vld [vmem:[%s0 + $0x3c] sm:$0xf]
  %v117 = vld [vmem:[%s2] sm:$0xf]
  %v118 = vld [vmem:[%s2 + $0x4] sm:$0xf]
  %v119 = vld [vmem:[%s3] sm:$0x1]
  %v121 = vlaneseq
  %v122 = vshrl.u32 %v121, 7
  %v123 = vsub.s32 0, %v122
  %v124 = vrot.slane %v119, %v123
  %v142 = vunpack.c.l.b16 %v101
  %v143 = vunpack.c.l.b16 %v102
  %v144 = vunpack.c.l.b16 %v103
  %v145 = vunpack.c.l.b16 %v104
  %v146 = vunpack.c.l.b16 %v105
  %v147 = vunpack.c.l.b16 %v106
  %v148 = vunpack.c.l.b16 %v107
  %v149 = vunpack.c.l.b16 %v108
  %v150 = vunpack.c.l.b16 %v109
  %v151 = vunpack.c.l.b16 %v110
  %v152 = vunpack.c.l.b16 %v111
  %v153 = vunpack.c.l.b16 %v112
  %v154 = vunpack.c.l.b16 %v113
  %v155 = vunpack.c.l.b16 %v114
  %v156 = vunpack.c.l.b16 %v115
  %v157 = vunpack.c.l.b16 %v116
  %v158 = vpack.c.b16 %v143, %v142
  %v159 = vpack.c.b16 %v145, %v144
  %v160 = vpack.c.b16 %v147, %v146
  %v161 = vpack.c.b16 %v149, %v148
  %v162 = vpack.c.b16 %v151, %v150
  %v163 = vpack.c.b16 %v153, %v152
  %v164 = vpack.c.b16 %v155, %v154
  %v165 = vpack.c.b16 %v157, %v156
  %v168 = vunpack.c.l.b16 %v117
  %v169 = vunpack.c.l.b16 %v118
  %v170 = vpack.c.b16 %v169, %v168
  %vm172 = vcmask 130048
  %v174 = vsel %vm172, %v158, 0
  %v177 = vsel %vm172, %v159, 0
  %v180 = vsel %vm172, %v160, 0
  %v183 = vsel %vm172, %v161, 0
  %v186 = vsel %vm172, %v162, 0
  %v189 = vsel %vm172, %v163, 0
  %v192 = vsel %vm172, %v164, 0
  %v195 = vsel %vm172, %v165, 0
  %197 = vmatprep.subr.bf16.mxu0 0
  %198 = vmatpush1.bf16.msra.mxu0 %v170
  %199 = vmatprep.subr.bf16.mxu0 0
  %200 = vmatpush1.bf16.msra.mxu0 0
  %201 = vmatprep.subr.bf16.mxu0 0
  %202 = vmatpush1.bf16.msra.mxu0 0
  %203 = vmatprep.subr.bf16.mxu0 0
  %204 = vmatpush1.bf16.msra.mxu0 0
  %205 = vmatprep.subr.bf16.mxu0 0
  %206 = vmatpush1.bf16.msra.mxu0 0
  %207 = vmatprep.subr.bf16.mxu0 0
  %208 = vmatpush1.bf16.msra.mxu0 0
  %209 = vmatprep.subr.bf16.mxu0 0
  %210 = vmatpush1.bf16.msra.mxu0 0
  %211 = vmatprep.subr.bf16.mxu0 0
  %212 = vmatpush1.bf16.msra.mxu0 0
  %213 = vmatprep.subr.bf16.mxu0 0
  %214 = vmatpush1.bf16.msra.mxu0 0
  %215 = vmatprep.subr.bf16.mxu0 0
  %216 = vmatpush1.bf16.msra.mxu0 0
  %217 = vmatprep.subr.bf16.mxu0 0
  %218 = vmatpush1.bf16.msra.mxu0 0
  %219 = vmatprep.subr.bf16.mxu0 0
  %220 = vmatpush1.bf16.msra.mxu0 0
  %221 = vmatprep.subr.bf16.mxu0 0
  %222 = vmatpush1.bf16.msra.mxu0 0
  %223 = vmatprep.subr.bf16.mxu0 0
  %224 = vmatpush1.bf16.msra.mxu0 0
  %225 = vmatprep.subr.bf16.mxu0 0
  %226 = vmatpush1.bf16.msra.mxu0 0
  %227 = vmatprep.subr.bf16.mxu0 0
  %228 = vmatpush1.bf16.msra.mxu0 0
  %229 = vmatprep.mubr.bf16.mxu0 0
  %230 = vmatmul.mubr.bf16.gmra.mrb[0].mxu0 %v174
  %v231 = vpop.f32.mrb[0].mxu0
  %v232 = vadd.f32 %v124, %v231
  %v233 = vpop.f32.mrb[0].mxu0
  %v234 = vpop.f32.mrb[0].mxu0
  %v235 = vadd.f32 %v124, %v234
  %v236 = vpop.f32.mrb[0].mxu0
  %237 = vmatprep.mubr.bf16.mxu0 0
  %238 = vmatmul.mubr.bf16.gmra.mrb[0].mxu0 %v177
  %v239 = vpop.f32.mrb[0].mxu0
  %v240 = vadd.f32 %v124, %v239
  %v241 = vpop.f32.mrb[0].mxu0
  %v242 = vpop.f32.mrb[0].mxu0
  %v243 = vadd.f32 %v124, %v242
  %v244 = vpop.f32.mrb[0].mxu0
  %245 = vmatprep.mubr.bf16.mxu0 0
  %246 = vmatmul.mubr.bf16.gmra.mrb[0].mxu0 %v180
  %v247 = vpop.f32.mrb[0].mxu0
  %v248 = vadd.f32 %v124, %v247
  %v249 = vpop.f32.mrb[0].mxu0
  %v250 = vpop.f32.mrb[0].mxu0
  %v251 = vadd.f32 %v124, %v250
  %v252 = vpop.f32.mrb[0].mxu0
  %253 = vmatprep.mubr.bf16.mxu0 0
  %254 = vmatmul.mubr.bf16.gmra.mrb[0].mxu0 %v183
  %v255 = vpop.f32.mrb[0].mxu0
  %v256 = vadd.f32 %v124, %v255
  %v257 = vpop.f32.mrb[0].mxu0
  %v258 = vpop.f32.mrb[0].mxu0
  %v259 = vadd.f32 %v124, %v258
  %v260 = vpop.f32.mrb[0].mxu0
  %261 = vmatprep.mubr.bf16.mxu0 0
  %262 = vmatmul.mubr.bf16.gmra.mrb[0].mxu0 %v186
  %v263 = vpop.f32.mrb[0].mxu0
  %v264 = vadd.f32 %v124, %v263
  %v265 = vpop.f32.mrb[0].mxu0
  %v266 = vpop.f32.mrb[0].mxu0
  %v267 = vadd.f32 %v124, %v266
  %v268 = vpop.f32.mrb[0].mxu0
  %269 = vmatprep.mubr.bf16.mxu0 0
  %270 = vmatmul.mubr.bf16.gmra.mrb[0].mxu0 %v189
  %v271 = vpop.f32.mrb[0].mxu0
  %v272 = vadd.f32 %v124, %v271
  %v273 = vpop.f32.mrb[0].mxu0
  %v274 = vpop.f32.mrb[0].mxu0
  %v275 = vadd.f32 %v124, %v274
  %v276 = vpop.f32.mrb[0].mxu0
  %277 = vmatprep.mubr.bf16.mxu0 0
  %278 = vmatmul.mubr.bf16.gmra.mrb[0].mxu0 %v192
  %v279 = vpop.f32.mrb[0].mxu0
  %v280 = vadd.f32 %v124, %v279
  %v281 = vpop.f32.mrb[0].mxu0
  %v282 = vpop.f32.mrb[0].mxu0
  %v283 = vadd.f32 %v124, %v282
  %v284 = vpop.f32.mrb[0].mxu0
  %285 = vmatprep.mubr.bf16.mxu0 0
  %286 = vmatmul.mubr.bf16.gmra.mrb[0].mxu0 %v195
  %v287 = vpop.f32.mrb[0].mxu0
  %v288 = vadd.f32 %v124, %v287
  %v289 = vpop.f32.mrb[0].mxu0
  %v290 = vpop.f32.mrb[0].mxu0
  %v291 = vadd.f32 %v124, %v290
  %v292 = vpop.f32.mrb[0].mxu0
  %293 = vdwg.mxu0
  %v294 = vxor.u32 %v232, 2147483648
  %v295 = vxor.u32 %v235, 2147483648
  %v296 = vxor.u32 %v240, 2147483648
  %v297 = vxor.u32 %v243, 2147483648
  %v298 = vxor.u32 %v248, 2147483648
  %v299 = vxor.u32 %v251, 2147483648
  %v300 = vxor.u32 %v256, 2147483648
  %v301 = vxor.u32 %v259, 2147483648
  %v302 = vxor.u32 %v264, 2147483648
  %v303 = vxor.u32 %v267, 2147483648
  %v304 = vxor.u32 %v272, 2147483648
  %v305 = vxor.u32 %v275, 2147483648
  %v306 = vxor.u32 %v280, 2147483648
  %v307 = vxor.u32 %v283, 2147483648
  %v308 = vxor.u32 %v288, 2147483648
  %v309 = vxor.u32 %v291, 2147483648
  %v310 = vmul.f32 %v294, 1.442695
  %v311 = vpow.pop %v310
  %v312 = vmul.f32 %v295, 1.442695
  %v313 = vpow.pop %v312
  %v314 = vmul.f32 %v296, 1.442695
  %v315 = vpow.pop %v314
  %v316 = vmul.f32 %v297, 1.442695
  %v317 = vpow.pop %v316
  %v318 = vmul.f32 %v298, 1.442695
  %v319 = vpow.pop %v318
  %v320 = vmul.f32 %v299, 1.442695
  %v321 = vpow.pop %v320
  %v322 = vmul.f32 %v300, 1.442695
  %v323 = vpow.pop %v322
  %v324 = vmul.f32 %v301, 1.442695
  %v325 = vpow.pop %v324
  %v326 = vmul.f32 %v302, 1.442695
  %v327 = vpow.pop %v326
  %v328 = vmul.f32 %v303, 1.442695
  %v329 = vpow.pop %v328
  %v330 = vmul.f32 %v304, 1.442695
  %v331 = vpow.pop %v330
  %v332 = vmul.f32 %v305, 1.442695
  %v333 = vpow.pop %v332
  %v334 = vmul.f32 %v306, 1.442695
  %v335 = vpow.pop %v334
  %v336 = vmul.f32 %v307, 1.442695
  %v337 = vpow.pop %v336
  %v338 = vmul.f32 %v308, 1.442695
  %v339 = vpow.pop %v338
  %v340 = vmul.f32 %v309, 1.442695
  %v341 = vpow.pop %v340
  %v342 = vadd.f32 %v311, 1.0
  %v343 = vadd.f32 %v313, 1.0
  %v344 = vadd.f32 %v315, 1.0
  %v345 = vadd.f32 %v317, 1.0
  %v346 = vadd.f32 %v319, 1.0
  %v347 = vadd.f32 %v321, 1.0
  %v348 = vadd.f32 %v323, 1.0
  %v349 = vadd.f32 %v325, 1.0
  %v350 = vadd.f32 %v327, 1.0
  %v351 = vadd.f32 %v329, 1.0
  %v352 = vadd.f32 %v331, 1.0
  %v353 = vadd.f32 %v333, 1.0
  %v354 = vadd.f32 %v335, 1.0
  %v355 = vadd.f32 %v337, 1.0
  %v356 = vadd.f32 %v339, 1.0
  %v357 = vadd.f32 %v341, 1.0
  %v358 = vrcp.pop %v342
  %v359 = vmul.f32 1.0, %v358
  %v360 = vrcp.pop %v343
  %v361 = vmul.f32 1.0, %v360
  %v362 = vrcp.pop %v344
  %v363 = vmul.f32 1.0, %v362
  %v364 = vrcp.pop %v345
  %v365 = vmul.f32 1.0, %v364
  %v366 = vrcp.pop %v346
  %v367 = vmul.f32 1.0, %v366
  %v368 = vrcp.pop %v347
  %v369 = vmul.f32 1.0, %v368
  %v370 = vrcp.pop %v348
  %v371 = vmul.f32 1.0, %v370
  %v372 = vrcp.pop %v349
  %v373 = vmul.f32 1.0, %v372
  %v374 = vrcp.pop %v350
  %v375 = vmul.f32 1.0, %v374
  %v376 = vrcp.pop %v351
  %v377 = vmul.f32 1.0, %v376
  %v378 = vrcp.pop %v352
  %v379 = vmul.f32 1.0, %v378
  %v380 = vrcp.pop %v353
  %v381 = vmul.f32 1.0, %v380
  %v382 = vrcp.pop %v354
  %v383 = vmul.f32 1.0, %v382
  %v384 = vrcp.pop %v355
  %v385 = vmul.f32 1.0, %v384
  %v386 = vrcp.pop %v356
  %v387 = vmul.f32 1.0, %v386
  %v388 = vrcp.pop %v357
  %v389 = vmul.f32 1.0, %v388
  %v390 = vmul.f32 %v232, %v359
  %v391 = vmul.f32 %v235, %v361
  %v392 = vmul.f32 %v240, %v363
  %v393 = vmul.f32 %v243, %v365
  %v394 = vmul.f32 %v248, %v367
  %v395 = vmul.f32 %v251, %v369
  %v396 = vmul.f32 %v256, %v371
  %v397 = vmul.f32 %v259, %v373
  %v398 = vmul.f32 %v264, %v375
  %v399 = vmul.f32 %v267, %v377
  %v400 = vmul.f32 %v272, %v379
  %v401 = vmul.f32 %v275, %v381
  %v402 = vmul.f32 %v280, %v383
  %v403 = vmul.f32 %v283, %v385
  %v404 = vmul.f32 %v288, %v387
  %v405 = vmul.f32 %v291, %v389
  %v406 = vpack.c.bf16 %v391, %v390
  %v407 = vpack.c.bf16 %v393, %v392
  %v408 = vpack.c.bf16 %v395, %v394
  %v409 = vpack.c.bf16 %v397, %v396
  %v410 = vpack.c.bf16 %v399, %v398
  %v411 = vpack.c.bf16 %v401, %v400
  %v412 = vpack.c.bf16 %v403, %v402
  %v413 = vpack.c.bf16 %v405, %v404
  %v414 = vld [vmem:[%s4] sm:$0xff]
  %v415 = vld [vmem:[%s4 + $0x28] sm:$0xff]
  %v416 = vld [vmem:[%s4 + $0x50] sm:$0xff]
  %v417 = vld [vmem:[%s4 + $0x78] sm:$0xff]
  %v418 = vld [vmem:[%s5] sm:$0x3]
  %v420 = vlaneseq
  %v421 = vshrl.u32 %v420, 7
  %v422 = vsub.s32 0, %v421
  %v423 = vrot.slane %v418, %v422
  %v424 = vlaneseq
  %v425 = vshrl.u32 %v424, 7
  %v426 = vsub.s32 1, %v425
  %v427 = vrot.slane %v418, %v426
  %v434 = vunpack.c.l.b16 %v414
  %v435 = vunpack.c.h.b16 %v414
  %v436 = vunpack.c.l.b16 %v415
  %v437 = vunpack.c.h.b16 %v415
  %v438 = vunpack.c.l.b16 %v416
  %v439 = vunpack.c.h.b16 %v416
  %v440 = vunpack.c.l.b16 %v417
  %v441 = vunpack.c.h.b16 %v417
  %v442 = vpack.c.b16 %v436, %v434
  %v443 = vpack.c.b16 %v437, %v435
  %v444 = vpack.c.b16 %v440, %v438
  %v445 = vpack.c.b16 %v441, %v439
  %vm450 = vcmask 261120
  %v452 = vsel %vm450, %v406, 0
  %v455 = vsel %vm450, %v407, 0
  %v458 = vsel %vm450, %v408, 0
  %v461 = vsel %vm450, %v409, 0
  %v464 = vsel %vm450, %v410, 0
  %v467 = vsel %vm450, %v411, 0
  %v470 = vsel %vm450, %v412, 0
  %v473 = vsel %vm450, %v413, 0
  %475 = vmatprep.subr.bf16.mxu0 %v443
  %476 = vmatpush1.bf16.msra.mxu0 %v442
  %477 = vmatprep.subr.bf16.mxu0 %v445
  %478 = vmatpush1.bf16.msra.mxu0 %v444
  %479 = vmatprep.subr.bf16.mxu0 0
  %480 = vmatpush1.bf16.msra.mxu0 0
  %481 = vmatprep.subr.bf16.mxu0 0
  %482 = vmatpush1.bf16.msra.mxu0 0
  %483 = vmatprep.subr.bf16.mxu0 0
  %484 = vmatpush1.bf16.msra.mxu0 0
  %485 = vmatprep.subr.bf16.mxu0 0
  %486 = vmatpush1.bf16.msra.mxu0 0
  %487 = vmatprep.subr.bf16.mxu0 0
  %488 = vmatpush1.bf16.msra.mxu0 0
  %489 = vmatprep.subr.bf16.mxu0 0
  %490 = vmatpush1.bf16.msra.mxu0 0
  %491 = vmatprep.subr.bf16.mxu0 0
  %492 = vmatpush1.bf16.msra.mxu0 0
  %493 = vmatprep.subr.bf16.mxu0 0
  %494 = vmatpush1.bf16.msra.mxu0 0
  %495 = vmatprep.subr.bf16.mxu0 0
  %496 = vmatpush1.bf16.msra.mxu0 0
  %497 = vmatprep.subr.bf16.mxu0 0
  %498 = vmatpush1.bf16.msra.mxu0 0
  %499 = vmatprep.subr.bf16.mxu0 0
  %500 = vmatpush1.bf16.msra.mxu0 0
  %501 = vmatprep.subr.bf16.mxu0 0
  %502 = vmatpush1.bf16.msra.mxu0 0
  %503 = vmatprep.subr.bf16.mxu0 0
  %504 = vmatpush1.bf16.msra.mxu0 0
  %505 = vmatprep.subr.bf16.mxu0 0
  %506 = vmatpush1.bf16.msra.mxu0 0
  %507 = vmatprep.mubr.bf16.mxu0 0
  %508 = vmatmul.mubr.bf16.gmra.mrb[0].mxu0 %v452
  %v509 = vpop.f32.mrb[0].mxu0
  %v510 = vadd.f32 %v423, %v509
  %v511 = vpop.f32.mrb[0].mxu0
  %v512 = vadd.f32 %v427, %v511
  %v513 = vpop.f32.mrb[0].mxu0
  %v514 = vadd.f32 %v423, %v513
  %v515 = vpop.f32.mrb[0].mxu0
  %v516 = vadd.f32 %v427, %v515
  %517 = vmatprep.mubr.bf16.mxu0 0
  %518 = vmatmul.mubr.bf16.gmra.mrb[0].mxu0 %v455
  %v519 = vpop.f32.mrb[0].mxu0
  %v520 = vadd.f32 %v423, %v519
  %v521 = vpop.f32.mrb[0].mxu0
  %v522 = vadd.f32 %v427, %v521
  %v523 = vpop.f32.mrb[0].mxu0
  %v524 = vadd.f32 %v423, %v523
  %v525 = vpop.f32.mrb[0].mxu0
  %v526 = vadd.f32 %v427, %v525
  %527 = vmatprep.mubr.bf16.mxu0 0
  %528 = vmatmul.mubr.bf16.gmra.mrb[0].mxu0 %v458
  %v529 = vpop.f32.mrb[0].mxu0
  %v530 = vadd.f32 %v423, %v529
  %v531 = vpop.f32.mrb[0].mxu0
  %v532 = vadd.f32 %v427, %v531
  %v533 = vpop.f32.mrb[0].mxu0
  %v534 = vadd.f32 %v423, %v533
  %v535 = vpop.f32.mrb[0].mxu0
  %v536 = vadd.f32 %v427, %v535
  %537 = vmatprep.mubr.bf16.mxu0 0
  %538 = vmatmul.mubr.bf16.gmra.mrb[0].mxu0 %v461
  %v539 = vpop.f32.mrb[0].mxu0
  %v540 = vadd.f32 %v423, %v539
  %v541 = vpop.f32.mrb[0].mxu0
  %v542 = vadd.f32 %v427, %v541
  %v543 = vpop.f32.mrb[0].mxu0
  %v544 = vadd.f32 %v423, %v543
  %v545 = vpop.f32.mrb[0].mxu0
  %v546 = vadd.f32 %v427, %v545
  %547 = vmatprep.mubr.bf16.mxu0 0
  %548 = vmatmul.mubr.bf16.gmra.mrb[0].mxu0 %v464
  %v549 = vpop.f32.mrb[0].mxu0
  %v550 = vadd.f32 %v423, %v549
  %v551 = vpop.f32.mrb[0].mxu0
  %v552 = vadd.f32 %v427, %v551
  %v553 = vpop.f32.mrb[0].mxu0
  %v554 = vadd.f32 %v423, %v553
  %v555 = vpop.f32.mrb[0].mxu0
  %v556 = vadd.f32 %v427, %v555
  %557 = vmatprep.mubr.bf16.mxu0 0
  %558 = vmatmul.mubr.bf16.gmra.mrb[0].mxu0 %v467
  %v559 = vpop.f32.mrb[0].mxu0
  %v560 = vadd.f32 %v423, %v559
  %v561 = vpop.f32.mrb[0].mxu0
  %v562 = vadd.f32 %v427, %v561
  %v563 = vpop.f32.mrb[0].mxu0
  %v564 = vadd.f32 %v423, %v563
  %v565 = vpop.f32.mrb[0].mxu0
  %v566 = vadd.f32 %v427, %v565
  %567 = vmatprep.mubr.bf16.mxu0 0
  %568 = vmatmul.mubr.bf16.gmra.mrb[0].mxu0 %v470
  %v569 = vpop.f32.mrb[0].mxu0
  %v570 = vadd.f32 %v423, %v569
  %v571 = vpop.f32.mrb[0].mxu0
  %v572 = vadd.f32 %v427, %v571
  %v573 = vpop.f32.mrb[0].mxu0
  %v574 = vadd.f32 %v423, %v573
  %v575 = vpop.f32.mrb[0].mxu0
  %v576 = vadd.f32 %v427, %v575
  %577 = vmatprep.mubr.bf16.mxu0 0
  %578 = vmatmul.mubr.bf16.gmra.mrb[0].mxu0 %v473
  %v579 = vpop.f32.mrb[0].mxu0
  %v580 = vadd.f32 %v423, %v579
  %v581 = vpop.f32.mrb[0].mxu0
  %v582 = vadd.f32 %v427, %v581
  %v583 = vpop.f32.mrb[0].mxu0
  %v584 = vadd.f32 %v423, %v583
  %v585 = vpop.f32.mrb[0].mxu0
  %v586 = vadd.f32 %v427, %v585
  %587 = vdwg.mxu0
  %v588 = vpack.c.bf16 %v514, %v510
  %v589 = vpack.c.bf16 %v516, %v512
  %v590 = vpack.c.bf16 %v524, %v520
  %v591 = vpack.c.bf16 %v526, %v522
  %v592 = vpack.c.bf16 %v534, %v530
  %v593 = vpack.c.bf16 %v536, %v532
  %v594 = vpack.c.bf16 %v544, %v540
  %v595 = vpack.c.bf16 %v546, %v542
  %v596 = vpack.c.bf16 %v554, %v550
  %v597 = vpack.c.bf16 %v556, %v552
  %v598 = vpack.c.bf16 %v564, %v560
  %v599 = vpack.c.bf16 %v566, %v562
  %v600 = vpack.c.bf16 %v574, %v570
  %v601 = vpack.c.bf16 %v576, %v572
  %v602 = vpack.c.bf16 %v584, %v580
  %v603 = vpack.c.bf16 %v586, %v582
  %v604 = vxor.u32 %v588, 2147516416
  %v605 = vxor.u32 %v589, 2147516416
  %v606 = vxor.u32 %v590, 2147516416
  %v607 = vxor.u32 %v591, 2147516416
  %v608 = vxor.u32 %v592, 2147516416
  %v609 = vxor.u32 %v593, 2147516416
  %v610 = vxor.u32 %v594, 2147516416
  %v611 = vxor.u32 %v595, 2147516416
  %v612 = vxor.u32 %v596, 2147516416
  %v613 = vxor.u32 %v597, 2147516416
  %v614 = vxor.u32 %v598, 2147516416
  %v615 = vxor.u32 %v599, 2147516416
  %v616 = vxor.u32 %v600, 2147516416
  %v617 = vxor.u32 %v601, 2147516416
  %v618 = vxor.u32 %v602, 2147516416
  %v619 = vxor.u32 %v603, 2147516416
  %v621 = vmul.bf16 %v604, 1069105081
  %v622 = vpow.bf16.pop %v621
  %v624 = vmul.bf16 %v605, 1069105081
  %v625 = vpow.bf16.pop %v624
  %v627 = vmul.bf16 %v606, 1069105081
  %v628 = vpow.bf16.pop %v627
  %v630 = vmul.bf16 %v607, 1069105081
  %v631 = vpow.bf16.pop %v630
  %v633 = vmul.bf16 %v608, 1069105081
  %v634 = vpow.bf16.pop %v633
  %v636 = vmul.bf16 %v609, 1069105081
  %v637 = vpow.bf16.pop %v636
  %v639 = vmul.bf16 %v610, 1069105081
  %v640 = vpow.bf16.pop %v639
  %v642 = vmul.bf16 %v611, 1069105081
  %v643 = vpow.bf16.pop %v642
  %v645 = vmul.bf16 %v612, 1069105081
  %v646 = vpow.bf16.pop %v645
  %v648 = vmul.bf16 %v613, 1069105081
  %v649 = vpow.bf16.pop %v648
  %v651 = vmul.bf16 %v614, 1069105081
  %v652 = vpow.bf16.pop %v651
  %v654 = vmul.bf16 %v615, 1069105081
  %v655 = vpow.bf16.pop %v654
  %v657 = vmul.bf16 %v616, 1069105081
  %v658 = vpow.bf16.pop %v657
  %v660 = vmul.bf16 %v617, 1069105081
  %v661 = vpow.bf16.pop %v660
  %v663 = vmul.bf16 %v618, 1069105081
  %v664 = vpow.bf16.pop %v663
  %v666 = vmul.bf16 %v619, 1069105081
  %v667 = vpow.bf16.pop %v666
  %v668 = vadd.bf16 %v622, 1065369472
  %v669 = vadd.bf16 %v625, 1065369472
  %v670 = vadd.bf16 %v628, 1065369472
  %v671 = vadd.bf16 %v631, 1065369472
  %v672 = vadd.bf16 %v634, 1065369472
  %v673 = vadd.bf16 %v637, 1065369472
  %v674 = vadd.bf16 %v640, 1065369472
  %v675 = vadd.bf16 %v643, 1065369472
  %v676 = vadd.bf16 %v646, 1065369472
  %v677 = vadd.bf16 %v649, 1065369472
  %v678 = vadd.bf16 %v652, 1065369472
  %v679 = vadd.bf16 %v655, 1065369472
  %v680 = vadd.bf16 %v658, 1065369472
  %v681 = vadd.bf16 %v661, 1065369472
  %v682 = vadd.bf16 %v664, 1065369472
  %v683 = vadd.bf16 %v667, 1065369472
  %v684 = vrcp.bf16.pop %v668
  %v685 = vmul.bf16 1065369472, %v684
  %v686 = vrcp.bf16.pop %v669
  %v687 = vmul.bf16 1065369472, %v686
  %v688 = vrcp.bf16.pop %v670
  %v689 = vmul.bf16 1065369472, %v688
  %v690 = vrcp.bf16.pop %v671
  %v691 = vmul.bf16 1065369472, %v690
  %v692 = vrcp.bf16.pop %v672
  %v693 = vmul.bf16 1065369472, %v692
  %v694 = vrcp.bf16.pop %v673
  %v695 = vmul.bf16 1065369472, %v694
  %v696 = vrcp.bf16.pop %v674
  %v697 = vmul.bf16 1065369472, %v696
  %v698 = vrcp.bf16.pop %v675
  %v699 = vmul.bf16 1065369472, %v698
  %v700 = vrcp.bf16.pop %v676
  %v701 = vmul.bf16 1065369472, %v700
  %v702 = vrcp.bf16.pop %v677
  %v703 = vmul.bf16 1065369472, %v702
  %v704 = vrcp.bf16.pop %v678
  %v705 = vmul.bf16 1065369472, %v704
  %v706 = vrcp.bf16.pop %v679
  %v707 = vmul.bf16 1065369472, %v706
  %v708 = vrcp.bf16.pop %v680
  %v709 = vmul.bf16 1065369472, %v708
  %v710 = vrcp.bf16.pop %v681
  %v711 = vmul.bf16 1065369472, %v710
  %v712 = vrcp.bf16.pop %v682
  %v713 = vmul.bf16 1065369472, %v712
  %v714 = vrcp.bf16.pop %v683
  %v715 = vmul.bf16 1065369472, %v714
  %v716 = vmul.bf16 %v588, %v685
  %v717 = vmul.bf16 %v589, %v687
  %v718 = vmul.bf16 %v590, %v689
  %v719 = vmul.bf16 %v591, %v691
  %v720 = vmul.bf16 %v592, %v693
  %v721 = vmul.bf16 %v593, %v695
  %v722 = vmul.bf16 %v594, %v697
  %v723 = vmul.bf16 %v595, %v699
  %v724 = vmul.bf16 %v596, %v701
  %v725 = vmul.bf16 %v597, %v703
  %v726 = vmul.bf16 %v598, %v705
  %v727 = vmul.bf16 %v599, %v707
  %v728 = vmul.bf16 %v600, %v709
  %v729 = vmul.bf16 %v601, %v711
  %v730 = vmul.bf16 %v602, %v713
  %v731 = vmul.bf16 %v603, %v715
  %v732 = vld [vmem:[%s6] sm:$0xff]
  %v733 = vld [vmem:[%s6 + $0x8] sm:$0xf]
  %v734 = vld [vmem:[%s6 + $0xc] sm:$0xff]
  %v735 = vld [vmem:[%s6 + $0x14] sm:$0xf]
  %v736 = vld [vmem:[%s6 + $0x18] sm:$0xff]
  %v737 = vld [vmem:[%s6 + $0x20] sm:$0xf]
  %v738 = vld [vmem:[%s6 + $0x24] sm:$0xff]
  %v739 = vld [vmem:[%s6 + $0x2c] sm:$0xf]
  %v740 = vld [vmem:[%s6 + $0x30] sm:$0xff]
  %v741 = vld [vmem:[%s6 + $0x38] sm:$0xf]
  %v742 = vld [vmem:[%s6 + $0x3c] sm:$0xff]
  %v743 = vld [vmem:[%s6 + $0x44] sm:$0xf]
  %v744 = vld [vmem:[%s6 + $0x48] sm:$0xff]
  %v745 = vld [vmem:[%s6 + $0x50] sm:$0xf]
  %v746 = vld [vmem:[%s6 + $0x54] sm:$0xff]
  %v747 = vld [vmem:[%s6 + $0x5c] sm:$0xf]
  %v748 = vld [vmem:[%s6 + $0x60] sm:$0xff]
  %v749 = vld [vmem:[%s6 + $0x68] sm:$0xf]
  %v750 = vld [vmem:[%s6 + $0x6c] sm:$0xff]
  %v751 = vld [vmem:[%s6 + $0x74] sm:$0xf]
  %v752 = vld [vmem:[%s6 + $0x78] sm:$0xff]
  %v753 = vld [vmem:[%s6 + $0x80] sm:$0xf]
  %v754 = vld [vmem:[%s6 + $0x84] sm:$0xff]
  %v755 = vld [vmem:[%s6 + $0x8c] sm:$0xf]
  %v756 = vld [vmem:[%s6 + $0x90] sm:$0xff]
  %v757 = vld [vmem:[%s6 + $0x98] sm:$0xf]
  %v758 = vld [vmem:[%s6 + $0x9c] sm:$0xff]
  %v759 = vld [vmem:[%s6 + $0xa4] sm:$0xf]
  %v760 = vld [vmem:[%s6 + $0xa8] sm:$0xff]
  %v761 = vld [vmem:[%s6 + $0xb0] sm:$0xf]
  %v762 = vld [vmem:[%s6 + $0xb4] sm:$0xff]
  %v763 = vld [vmem:[%s6 + $0xbc] sm:$0xf]
  %v764 = vld [vmem:[%s6 + $0xc0] sm:$0xff]
  %v765 = vld [vmem:[%s6 + $0xc8] sm:$0xf]
  %v766 = vld [vmem:[%s6 + $0xcc] sm:$0xff]
  %v767 = vld [vmem:[%s6 + $0xd4] sm:$0xf]
  %v768 = vld [vmem:[%s6 + $0xd8] sm:$0xff]
  %v769 = vld [vmem:[%s6 + $0xe0] sm:$0xf]
  %v770 = vld [vmem:[%s6 + $0xe4] sm:$0xff]
  %v771 = vld [vmem:[%s6 + $0xec] sm:$0xf]
  %v772 = vld [vmem:[%s6 + $0xf0] sm:$0xff]
  %v773 = vld [vmem:[%s6 + $0xf8] sm:$0xf]
  %v774 = vld [vmem:[%s6 + $0xfc] sm:$0xff]
  %v775 = vld [vmem:[%s6 + $0x104] sm:$0xf]
  %v776 = vld [vmem:[%s6 + $0x108] sm:$0xff]
  %v777 = vld [vmem:[%s6 + $0x110] sm:$0xf]
  %v778 = vld [vmem:[%s6 + $0x114] sm:$0xff]
  %v779 = vld [vmem:[%s6 + $0x11c] sm:$0xf]
  %v780 = vld [vmem:[%s6 + $0x120] sm:$0xff]
  %v781 = vld [vmem:[%s6 + $0x128] sm:$0xf]
  %v782 = vld [vmem:[%s6 + $0x12c] sm:$0xff]
  %v783 = vld [vmem:[%s6 + $0x134] sm:$0xf]
  %v784 = vld [vmem:[%s6 + $0x138] sm:$0xff]
  %v785 = vld [vmem:[%s6 + $0x140] sm:$0xf]
  %v786 = vld [vmem:[%s6 + $0x144] sm:$0xff]
  %v787 = vld [vmem:[%s6 + $0x14c] sm:$0xf]
  %v788 = vld [vmem:[%s6 + $0x150] sm:$0xff]
  %v789 = vld [vmem:[%s6 + $0x158] sm:$0xf]
  %v790 = vld [vmem:[%s6 + $0x15c] sm:$0xff]
  %v791 = vld [vmem:[%s6 + $0x164] sm:$0xf]
  %v792 = vld [vmem:[%s6 + $0x168] sm:$0xff]
  %v793 = vld [vmem:[%s6 + $0x170] sm:$0xf]
  %v794 = vld [vmem:[%s6 + $0x174] sm:$0xff]
  %v795 = vld [vmem:[%s6 + $0x17c] sm:$0xf]
  %v796 = vld [vmem:[%s4 + $0x8] sm:$0xff]
  %v797 = vld [vmem:[%s4 + $0x30] sm:$0xff]
  %v798 = vld [vmem:[%s4 + $0x58] sm:$0xff]
  %v799 = vld [vmem:[%s4 + $0x80] sm:$0xff]
  %v800 = vld [vmem:[%s5 + $0x2] sm:$0x3]
  %v802 = vlaneseq
  %v803 = vshrl.u32 %v802, 7
  %v804 = vsub.s32 0, %v803
  %v805 = vrot.slane %v800, %v804
  %v806 = vlaneseq
  %v807 = vshrl.u32 %v806, 7
  %v808 = vsub.s32 1, %v807
  %v809 = vrot.slane %v800, %v808
  %v816 = vunpack.c.l.b16 %v796
  %v817 = vunpack.c.h.b16 %v796
  %v818 = vunpack.c.l.b16 %v797
  %v819 = vunpack.c.h.b16 %v797
  %v820 = vunpack.c.l.b16 %v798
  %v821 = vunpack.c.h.b16 %v798
  %v822 = vunpack.c.l.b16 %v799
  %v823 = vunpack.c.h.b16 %v799
  %v824 = vpack.c.b16 %v818, %v816
  %v825 = vpack.c.b16 %v819, %v817
  %v826 = vpack.c.b16 %v822, %v820
  %v827 = vpack.c.b16 %v823, %v821
  %832 = vmatprep.subr.bf16.mxu0 %v825
  %833 = vmatpush1.bf16.msra.mxu0 %v824
  %834 = vmatprep.subr.bf16.mxu0 %v827
  %835 = vmatpush1.bf16.msra.mxu0 %v826
  %836 = vmatprep.subr.bf16.mxu0 0
  %837 = vmatpush1.bf16.msra.mxu0 0
  %838 = vmatprep.subr.bf16.mxu0 0
  %839 = vmatpush1.bf16.msra.mxu0 0
  %840 = vmatprep.subr.bf16.mxu0 0
  %841 = vmatpush1.bf16.msra.mxu0 0
  %842 = vmatprep.subr.bf16.mxu0 0
  %843 = vmatpush1.bf16.msra.mxu0 0
  %844 = vmatprep.subr.bf16.mxu0 0
  %845 = vmatpush1.bf16.msra.mxu0 0
  %846 = vmatprep.subr.bf16.mxu0 0
  %847 = vmatpush1.bf16.msra.mxu0 0
  %848 = vmatprep.subr.bf16.mxu0 0
  %849 = vmatpush1.bf16.msra.mxu0 0
  %850 = vmatprep.subr.bf16.mxu0 0
  %851 = vmatpush1.bf16.msra.mxu0 0
  %852 = vmatprep.subr.bf16.mxu0 0
  %853 = vmatpush1.bf16.msra.mxu0 0
  %854 = vmatprep.subr.bf16.mxu0 0
  %855 = vmatpush1.bf16.msra.mxu0 0
  %856 = vmatprep.subr.bf16.mxu0 0
  %857 = vmatpush1.bf16.msra.mxu0 0
  %858 = vmatprep.subr.bf16.mxu0 0
  %859 = vmatpush1.bf16.msra.mxu0 0
  %860 = vmatprep.subr.bf16.mxu0 0
  %861 = vmatpush1.bf16.msra.mxu0 0
  %862 = vmatprep.subr.bf16.mxu0 0
  %863 = vmatpush1.bf16.msra.mxu0 0
  %864 = vmatprep.mubr.bf16.mxu0 0
  %865 = vmatmul.mubr.bf16.gmra.mrb[0].mxu0 %v452
  %v866 = vpop.f32.mrb[0].mxu0
  %v867 = vadd.f32 %v805, %v866
  %v868 = vpop.f32.mrb[0].mxu0
  %v869 = vadd.f32 %v809, %v868
  %v870 = vpop.f32.mrb[0].mxu0
  %v871 = vadd.f32 %v805, %v870
  %v872 = vpop.f32.mrb[0].mxu0
  %v873 = vadd.f32 %v809, %v872
  %874 = vmatprep.mubr.bf16.mxu0 0
  %875 = vmatmul.mubr.bf16.gmra.mrb[0].mxu0 %v455
  %v876 = vpop.f32.mrb[0].mxu0
  %v877 = vadd.f32 %v805, %v876
  %v878 = vpop.f32.mrb[0].mxu0
  %v879 = vadd.f32 %v809, %v878
  %v880 = vpop.f32.mrb[0].mxu0
  %v881 = vadd.f32 %v805, %v880
  %v882 = vpop.f32.mrb[0].mxu0
  %v883 = vadd.f32 %v809, %v882
  %884 = vmatprep.mubr.bf16.mxu0 0
  %885 = vmatmul.mubr.bf16.gmra.mrb[0].mxu0 %v458
  %v886 = vpop.f32.mrb[0].mxu0
  %v887 = vadd.f32 %v805, %v886
  %v888 = vpop.f32.mrb[0].mxu0
  %v889 = vadd.f32 %v809, %v888
  %v890 = vpop.f32.mrb[0].mxu0
  %v891 = vadd.f32 %v805, %v890
  %v892 = vpop.f32.mrb[0].mxu0
  %v893 = vadd.f32 %v809, %v892
  %894 = vmatprep.mubr.bf16.mxu0 0
  %895 = vmatmul.mubr.bf16.gmra.mrb[0].mxu0 %v461
  %v896 = vpop.f32.mrb[0].mxu0
  %v897 = vadd.f32 %v805, %v896
  %v898 = vpop.f32.mrb[0].mxu0
  %v899 = vadd.f32 %v809, %v898
  %v900 = vpop.f32.mrb[0].mxu0
  %v901 = vadd.f32 %v805, %v900
  %v902 = vpop.f32.mrb[0].mxu0
  %v903 = vadd.f32 %v809, %v902
  %904 = vmatprep.mubr.bf16.mxu0 0
  %905 = vmatmul.mubr.bf16.gmra.mrb[0].mxu0 %v464
  %v906 = vpop.f32.mrb[0].mxu0
  %v907 = vadd.f32 %v805, %v906
  %v908 = vpop.f32.mrb[0].mxu0
  %v909 = vadd.f32 %v809, %v908
  %v910 = vpop.f32.mrb[0].mxu0
  %v911 = vadd.f32 %v805, %v910
  %v912 = vpop.f32.mrb[0].mxu0
  %v913 = vadd.f32 %v809, %v912
  %914 = vmatprep.mubr.bf16.mxu0 0
  %915 = vmatmul.mubr.bf16.gmra.mrb[0].mxu0 %v467
  %v916 = vpop.f32.mrb[0].mxu0
  %v917 = vadd.f32 %v805, %v916
  %v918 = vpop.f32.mrb[0].mxu0
  %v919 = vadd.f32 %v809, %v918
  %v920 = vpop.f32.mrb[0].mxu0
  %v921 = vadd.f32 %v805, %v920
  %v922 = vpop.f32.mrb[0].mxu0
  %v923 = vadd.f32 %v809, %v922
  %924 = vmatprep.mubr.bf16.mxu0 0
  %925 = vmatmul.mubr.bf16.gmra.mrb[0].mxu0 %v470
  %v926 = vpop.f32.mrb[0].mxu0
  %v927 = vadd.f32 %v805, %v926
  %v928 = vpop.f32.mrb[0].mxu0
  %v929 = vadd.f32 %v809, %v928
  %v930 = vpop.f32.mrb[0].mxu0
  %v931 = vadd.f32 %v805, %v930
  %v932 = vpop.f32.mrb[0].mxu0
  %v933 = vadd.f32 %v809, %v932
  %934 = vmatprep.mubr.bf16.mxu0 0
  %935 = vmatmul.mubr.bf16.gmra.mrb[0].mxu0 %v473
  %v936 = vpop.f32.mrb[0].mxu0
  %v937 = vadd.f32 %v805, %v936
  %v938 = vpop.f32.mrb[0].mxu0
  %v939 = vadd.f32 %v809, %v938
  %v940 = vpop.f32.mrb[0].mxu0
  %v941 = vadd.f32 %v805, %v940
  %v942 = vpop.f32.mrb[0].mxu0
  %v943 = vadd.f32 %v809, %v942
  %944 = vdwg.mxu0
  %v945 = vpack.c.bf16 %v871, %v867
  %v946 = vpack.c.bf16 %v873, %v869
  %v947 = vpack.c.bf16 %v881, %v877
  %v948 = vpack.c.bf16 %v883, %v879
  %v949 = vpack.c.bf16 %v891, %v887
  %v950 = vpack.c.bf16 %v893, %v889
  %v951 = vpack.c.bf16 %v901, %v897
  %v952 = vpack.c.bf16 %v903, %v899
  %v953 = vpack.c.bf16 %v911, %v907
  %v954 = vpack.c.bf16 %v913, %v909
  %v955 = vpack.c.bf16 %v921, %v917
  %v956 = vpack.c.bf16 %v923, %v919
  %v957 = vpack.c.bf16 %v931, %v927
  %v958 = vpack.c.bf16 %v933, %v929
  %v959 = vpack.c.bf16 %v941, %v937
  %v960 = vpack.c.bf16 %v943, %v939
  %v961 = vxor.u32 %v945, 2147516416
  %v962 = vxor.u32 %v946, 2147516416
  %v963 = vxor.u32 %v947, 2147516416
  %v964 = vxor.u32 %v948, 2147516416
  %v965 = vxor.u32 %v949, 2147516416
  %v966 = vxor.u32 %v950, 2147516416
  %v967 = vxor.u32 %v951, 2147516416
  %v968 = vxor.u32 %v952, 2147516416
  %v969 = vxor.u32 %v953, 2147516416
  %v970 = vxor.u32 %v954, 2147516416
  %v971 = vxor.u32 %v955, 2147516416
  %v972 = vxor.u32 %v956, 2147516416
  %v973 = vxor.u32 %v957, 2147516416
  %v974 = vxor.u32 %v958, 2147516416
  %v975 = vxor.u32 %v959, 2147516416
  %v976 = vxor.u32 %v960, 2147516416
  %v978 = vmul.bf16 %v961, 1069105081
  %v979 = vpow.bf16.pop %v978
  %v981 = vmul.bf16 %v962, 1069105081
  %v982 = vpow.bf16.pop %v981
  %v984 = vmul.bf16 %v963, 1069105081
  %v985 = vpow.bf16.pop %v984
  %v987 = vmul.bf16 %v964, 1069105081
  %v988 = vpow.bf16.pop %v987
  %v990 = vmul.bf16 %v965, 1069105081
  %v991 = vpow.bf16.pop %v990
  %v993 = vmul.bf16 %v966, 1069105081
  %v994 = vpow.bf16.pop %v993
  %v996 = vmul.bf16 %v967, 1069105081
  %v997 = vpow.bf16.pop %v996
  %v999 = vmul.bf16 %v968, 1069105081
  %v1000 = vpow.bf16.pop %v999
  %v1002 = vmul.bf16 %v969, 1069105081
  %v1003 = vpow.bf16.pop %v1002
  %v1005 = vmul.bf16 %v970, 1069105081
  %v1006 = vpow.bf16.pop %v1005
  %v1008 = vmul.bf16 %v971, 1069105081
  %v1009 = vpow.bf16.pop %v1008
  %v1011 = vmul.bf16 %v972, 1069105081
  %v1012 = vpow.bf16.pop %v1011
  %v1014 = vmul.bf16 %v973, 1069105081
  %v1015 = vpow.bf16.pop %v1014
  %v1017 = vmul.bf16 %v974, 1069105081
  %v1018 = vpow.bf16.pop %v1017
  %v1020 = vmul.bf16 %v975, 1069105081
  %v1021 = vpow.bf16.pop %v1020
  %v1023 = vmul.bf16 %v976, 1069105081
  %v1024 = vpow.bf16.pop %v1023
  %v1025 = vadd.bf16 %v979, 1065369472
  %v1026 = vadd.bf16 %v982, 1065369472
  %v1027 = vadd.bf16 %v985, 1065369472
  %v1028 = vadd.bf16 %v988, 1065369472
  %v1029 = vadd.bf16 %v991, 1065369472
  %v1030 = vadd.bf16 %v994, 1065369472
  %v1031 = vadd.bf16 %v997, 1065369472
  %v1032 = vadd.bf16 %v1000, 1065369472
  %v1033 = vadd.bf16 %v1003, 1065369472
  %v1034 = vadd.bf16 %v1006, 1065369472
  %v1035 = vadd.bf16 %v1009, 1065369472
  %v1036 = vadd.bf16 %v1012, 1065369472
  %v1037 = vadd.bf16 %v1015, 1065369472
  %v1038 = vadd.bf16 %v1018, 1065369472
  %v1039 = vadd.bf16 %v1021, 1065369472
  %v1040 = vadd.bf16 %v1024, 1065369472
  %v1041 = vrcp.bf16.pop %v1025
  %v1042 = vmul.bf16 1065369472, %v1041
  %v1043 = vrcp.bf16.pop %v1026
  %v1044 = vmul.bf16 1065369472, %v1043
  %v1045 = vrcp.bf16.pop %v1027
  %v1046 = vmul.bf16 1065369472, %v1045
  %v1047 = vrcp.bf16.pop %v1028
  %v1048 = vmul.bf16 1065369472, %v1047
  %v1049 = vrcp.bf16.pop %v1029
  %v1050 = vmul.bf16 1065369472, %v1049
  %v1051 = vrcp.bf16.pop %v1030
  %v1052 = vmul.bf16 1065369472, %v1051
  %v1053 = vrcp.bf16.pop %v1031
  %v1054 = vmul.bf16 1065369472, %v1053
  %v1055 = vrcp.bf16.pop %v1032
  %v1056 = vmul.bf16 1065369472, %v1055
  %v1057 = vrcp.bf16.pop %v1033
  %v1058 = vmul.bf16 1065369472, %v1057
  %v1059 = vrcp.bf16.pop %v1034
  %v1060 = vmul.bf16 1065369472, %v1059
  %v1061 = vrcp.bf16.pop %v1035
  %v1062 = vmul.bf16 1065369472, %v1061
  %v1063 = vrcp.bf16.pop %v1036
  %v1064 = vmul.bf16 1065369472, %v1063
  %v1065 = vrcp.bf16.pop %v1037
  %v1066 = vmul.bf16 1065369472, %v1065
  %v1067 = vrcp.bf16.pop %v1038
  %v1068 = vmul.bf16 1065369472, %v1067
  %v1069 = vrcp.bf16.pop %v1039
  %v1070 = vmul.bf16 1065369472, %v1069
  %v1071 = vrcp.bf16.pop %v1040
  %v1072 = vmul.bf16 1065369472, %v1071
  %v1073 = vmul.bf16 %v945, %v1042
  %v1074 = vmul.bf16 %v946, %v1044
  %v1075 = vmul.bf16 %v947, %v1046
  %v1076 = vmul.bf16 %v948, %v1048
  %v1077 = vmul.bf16 %v949, %v1050
  %v1078 = vmul.bf16 %v950, %v1052
  %v1079 = vmul.bf16 %v951, %v1054
  %v1080 = vmul.bf16 %v952, %v1056
  %v1081 = vmul.bf16 %v953, %v1058
  %v1082 = vmul.bf16 %v954, %v1060
  %v1083 = vmul.bf16 %v955, %v1062
  %v1084 = vmul.bf16 %v956, %v1064
  %v1085 = vmul.bf16 %v957, %v1066
  %v1086 = vmul.bf16 %v958, %v1068
  %v1087 = vmul.bf16 %v959, %v1070
  %v1088 = vmul.bf16 %v960, %v1072
  %v1089 = vld [vmem:[%s6 + $0x180] sm:$0xff]
  %v1090 = vld [vmem:[%s6 + $0x188] sm:$0xf]
  %v1091 = vld [vmem:[%s6 + $0x18c] sm:$0xff]
  %v1092 = vld [vmem:[%s6 + $0x194] sm:$0xf]
  %v1093 = vld [vmem:[%s6 + $0x198] sm:$0xff]
  %v1094 = vld [vmem:[%s6 + $0x1a0] sm:$0xf]
  %v1095 = vld [vmem:[%s6 + $0x1a4] sm:$0xff]
  %v1096 = vld [vmem:[%s6 + $0x1ac] sm:$0xf]
  %v1097 = vld [vmem:[%s6 + $0x1b0] sm:$0xff]
  %v1098 = vld [vmem:[%s6 + $0x1b8] sm:$0xf]
  %v1099 = vld [vmem:[%s6 + $0x1bc] sm:$0xff]
  %v1100 = vld [vmem:[%s6 + $0x1c4] sm:$0xf]
  %v1101 = vld [vmem:[%s6 + $0x1c8] sm:$0xff]
  %v1102 = vld [vmem:[%s6 + $0x1d0] sm:$0xf]
  %v1103 = vld [vmem:[%s6 + $0x1d4] sm:$0xff]
  %v1104 = vld [vmem:[%s6 + $0x1dc] sm:$0xf]
  %v1105 = vld [vmem:[%s6 + $0x1e0] sm:$0xff]
  %v1106 = vld [vmem:[%s6 + $0x1e8] sm:$0xf]
  %v1107 = vld [vmem:[%s6 + $0x1ec] sm:$0xff]
  %v1108 = vld [vmem:[%s6 + $0x1f4] sm:$0xf]
  %v1109 = vld [vmem:[%s6 + $0x1f8] sm:$0xff]
  %v1110 = vld [vmem:[%s6 + $0x200] sm:$0xf]
  %v1111 = vld [vmem:[%s6 + $0x204] sm:$0xff]
  %v1112 = vld [vmem:[%s6 + $0x20c] sm:$0xf]
  %v1113 = vld [vmem:[%s6 + $0x210] sm:$0xff]
  %v1114 = vld [vmem:[%s6 + $0x218] sm:$0xf]
  %v1115 = vld [vmem:[%s6 + $0x21c] sm:$0xff]
  %v1116 = vld [vmem:[%s6 + $0x224] sm:$0xf]
  %v1117 = vld [vmem:[%s6 + $0x228] sm:$0xff]
  %v1118 = vld [vmem:[%s6 + $0x230] sm:$0xf]
  %v1119 = vld [vmem:[%s6 + $0x234] sm:$0xff]
  %v1120 = vld [vmem:[%s6 + $0x23c] sm:$0xf]
  %v1121 = vld [vmem:[%s6 + $0x240] sm:$0xff]
  %v1122 = vld [vmem:[%s6 + $0x248] sm:$0xf]
  %v1123 = vld [vmem:[%s6 + $0x24c] sm:$0xff]
  %v1124 = vld [vmem:[%s6 + $0x254] sm:$0xf]
  %v1125 = vld [vmem:[%s6 + $0x258] sm:$0xff]
  %v1126 = vld [vmem:[%s6 + $0x260] sm:$0xf]
  %v1127 = vld [vmem:[%s6 + $0x264] sm:$0xff]
  %v1128 = vld [vmem:[%s6 + $0x26c] sm:$0xf]
  %v1129 = vld [vmem:[%s6 + $0x270] sm:$0xff]
  %v1130 = vld [vmem:[%s6 + $0x278] sm:$0xf]
  %v1131 = vld [vmem:[%s6 + $0x27c] sm:$0xff]
  %v1132 = vld [vmem:[%s6 + $0x284] sm:$0xf]
  %v1133 = vld [vmem:[%s6 + $0x288] sm:$0xff]
  %v1134 = vld [vmem:[%s6 + $0x290] sm:$0xf]
  %v1135 = vld [vmem:[%s6 + $0x294] sm:$0xff]
  %v1136 = vld [vmem:[%s6 + $0x29c] sm:$0xf]
  %v1137 = vld [vmem:[%s6 + $0x2a0] sm:$0xff]
  %v1138 = vld [vmem:[%s6 + $0x2a8] sm:$0xf]
  %v1139 = vld [vmem:[%s6 + $0x2ac] sm:$0xff]
  %v1140 = vld [vmem:[%s6 + $0x2b4] sm:$0xf]
  %v1141 = vld [vmem:[%s6 + $0x2b8] sm:$0xff]
  %v1142 = vld [vmem:[%s6 + $0x2c0] sm:$0xf]
  %v1143 = vld [vmem:[%s6 + $0x2c4] sm:$0xff]
  %v1144 = vld [vmem:[%s6 + $0x2cc] sm:$0xf]
  %v1145 = vld [vmem:[%s6 + $0x2d0] sm:$0xff]
  %v1146 = vld [vmem:[%s6 + $0x2d8] sm:$0xf]
  %v1147 = vld [vmem:[%s6 + $0x2dc] sm:$0xff]
  %v1148 = vld [vmem:[%s6 + $0x2e4] sm:$0xf]
  %v1149 = vld [vmem:[%s6 + $0x2e8] sm:$0xff]
  %v1150 = vld [vmem:[%s6 + $0x2f0] sm:$0xf]
  %v1151 = vld [vmem:[%s6 + $0x2f4] sm:$0xff]
  %v1152 = vld [vmem:[%s6 + $0x2fc] sm:$0xf]
  %v1217 = vunpack.c.l.b16 %v1089
  %v1218 = vunpack.c.h.b16 %v1089
  %v1219 = vunpack.c.l.b16 %v1090
  %v1220 = vunpack.c.l.b16 %v1091
  %v1221 = vunpack.c.h.b16 %v1091
  %v1222 = vunpack.c.l.b16 %v1092
  %v1223 = vunpack.c.l.b16 %v1093
  %v1224 = vunpack.c.h.b16 %v1093
  %v1225 = vunpack.c.l.b16 %v1094
  %v1226 = vunpack.c.l.b16 %v1095
  %v1227 = vunpack.c.h.b16 %v1095
  %v1228 = vunpack.c.l.b16 %v1096
  %v1229 = vunpack.c.l.b16 %v1097
  %v1230 = vunpack.c.h.b16 %v1097
  %v1231 = vunpack.c.l.b16 %v1098
  %v1232 = vunpack.c.l.b16 %v1099
  %v1233 = vunpack.c.h.b16 %v1099
  %v1234 = vunpack.c.l.b16 %v1100
  %v1235 = vunpack.c.l.b16 %v1101
  %v1236 = vunpack.c.h.b16 %v1101
  %v1237 = vunpack.c.l.b16 %v1102
  %v1238 = vunpack.c.l.b16 %v1103
  %v1239 = vunpack.c.h.b16 %v1103
  %v1240 = vunpack.c.l.b16 %v1104
  %v1241 = vunpack.c.l.b16 %v1105
  %v1242 = vunpack.c.h.b16 %v1105
  %v1243 = vunpack.c.l.b16 %v1106
  %v1244 = vunpack.c.l.b16 %v1107
  %v1245 = vunpack.c.h.b16 %v1107
  %v1246 = vunpack.c.l.b16 %v1108
  %v1247 = vunpack.c.l.b16 %v1109
  %v1248 = vunpack.c.h.b16 %v1109
  %v1249 = vunpack.c.l.b16 %v1110
  %v1250 = vunpack.c.l.b16 %v1111
  %v1251 = vunpack.c.h.b16 %v1111
  %v1252 = vunpack.c.l.b16 %v1112
  %v1253 = vunpack.c.l.b16 %v1113
  %v1254 = vunpack.c.h.b16 %v1113
  %v1255 = vunpack.c.l.b16 %v1114
  %v1256 = vunpack.c.l.b16 %v1115
  %v1257 = vunpack.c.h.b16 %v1115
  %v1258 = vunpack.c.l.b16 %v1116
  %v1259 = vunpack.c.l.b16 %v1117
  %v1260 = vunpack.c.h.b16 %v1117
  %v1261 = vunpack.c.l.b16 %v1118
  %v1262 = vunpack.c.l.b16 %v1119
  %v1263 = vunpack.c.h.b16 %v1119
  %v1264 = vunpack.c.l.b16 %v1120
  %v1265 = vunpack.c.l.b16 %v1121
  %v1266 = vunpack.c.h.b16 %v1121
  %v1267 = vunpack.c.l.b16 %v1122
  %v1268 = vunpack.c.l.b16 %v1123
  %v1269 = vunpack.c.h.b16 %v1123
  %v1270 = vunpack.c.l.b16 %v1124
  %v1271 = vunpack.c.l.b16 %v1125
  %v1272 = vunpack.c.h.b16 %v1125
  %v1273 = vunpack.c.l.b16 %v1126
  %v1274 = vunpack.c.l.b16 %v1127
  %v1275 = vunpack.c.h.b16 %v1127
  %v1276 = vunpack.c.l.b16 %v1128
  %v1277 = vunpack.c.l.b16 %v1129
  %v1278 = vunpack.c.h.b16 %v1129
  %v1279 = vunpack.c.l.b16 %v1130
  %v1280 = vunpack.c.l.b16 %v1131
  %v1281 = vunpack.c.h.b16 %v1131
  %v1282 = vunpack.c.l.b16 %v1132
  %v1283 = vunpack.c.l.b16 %v1133
  %v1284 = vunpack.c.h.b16 %v1133
  %v1285 = vunpack.c.l.b16 %v1134
  %v1286 = vunpack.c.l.b16 %v1135
  %v1287 = vunpack.c.h.b16 %v1135
  %v1288 = vunpack.c.l.b16 %v1136
  %v1289 = vunpack.c.l.b16 %v1137
  %v1290 = vunpack.c.h.b16 %v1137
  %v1291 = vunpack.c.l.b16 %v1138
  %v1292 = vunpack.c.l.b16 %v1139
  %v1293 = vunpack.c.h.b16 %v1139
  %v1294 = vunpack.c.l.b16 %v1140
  %v1295 = vunpack.c.l.b16 %v1141
  %v1296 = vunpack.c.h.b16 %v1141
  %v1297 = vunpack.c.l.b16 %v1142
  %v1298 = vunpack.c.l.b16 %v1143
  %v1299 = vunpack.c.h.b16 %v1143
  %v1300 = vunpack.c.l.b16 %v1144
  %v1301 = vunpack.c.l.b16 %v1145
  %v1302 = vunpack.c.h.b16 %v1145
  %v1303 = vunpack.c.l.b16 %v1146
  %v1304 = vunpack.c.l.b16 %v1147
  %v1305 = vunpack.c.h.b16 %v1147
  %v1306 = vunpack.c.l.b16 %v1148
  %v1307 = vunpack.c.l.b16 %v1149
  %v1308 = vunpack.c.h.b16 %v1149
  %v1309 = vunpack.c.l.b16 %v1150
  %v1310 = vunpack.c.l.b16 %v1151
  %v1311 = vunpack.c.h.b16 %v1151
  %v1312 = vunpack.c.l.b16 %v1152
  %v1313 = vpack.c.b16 %v1220, %v1217
  %v1314 = vpack.c.b16 %v1221, %v1218
  %v1315 = vpack.c.b16 %v1222, %v1219
  %v1316 = vpack.c.b16 %v1226, %v1223
  %v1317 = vpack.c.b16 %v1227, %v1224
  %v1318 = vpack.c.b16 %v1228, %v1225
  %v1319 = vpack.c.b16 %v1232, %v1229
  %v1320 = vpack.c.b16 %v1233, %v1230
  %v1321 = vpack.c.b16 %v1234, %v1231
  %v1322 = vpack.c.b16 %v1238, %v1235
  %v1323 = vpack.c.b16 %v1239, %v1236
  %v1324 = vpack.c.b16 %v1240, %v1237
  %v1325 = vpack.c.b16 %v1244, %v1241
  %v1326 = vpack.c.b16 %v1245, %v1242
  %v1327 = vpack.c.b16 %v1246, %v1243
  %v1328 = vpack.c.b16 %v1250, %v1247
  %v1329 = vpack.c.b16 %v1251, %v1248
  %v1330 = vpack.c.b16 %v1252, %v1249
  %v1331 = vpack.c.b16 %v1256, %v1253
  %v1332 = vpack.c.b16 %v1257, %v1254
  %v1333 = vpack.c.b16 %v1258, %v1255
  %v1334 = vpack.c.b16 %v1262, %v1259
  %v1335 = vpack.c.b16 %v1263, %v1260
  %v1336 = vpack.c.b16 %v1264, %v1261
  %v1337 = vpack.c.b16 %v1268, %v1265
  %v1338 = vpack.c.b16 %v1269, %v1266
  %v1339 = vpack.c.b16 %v1270, %v1267
  %v1340 = vpack.c.b16 %v1274, %v1271
  %v1341 = vpack.c.b16 %v1275, %v1272
  %v1342 = vpack.c.b16 %v1276, %v1273
  %v1343 = vpack.c.b16 %v1280, %v1277
  %v1344 = vpack.c.b16 %v1281, %v1278
  %v1345 = vpack.c.b16 %v1282, %v1279
  %v1346 = vpack.c.b16 %v1286, %v1283
  %v1347 = vpack.c.b16 %v1287, %v1284
  %v1348 = vpack.c.b16 %v1288, %v1285
  %v1349 = vpack.c.b16 %v1292, %v1289
  %v1350 = vpack.c.b16 %v1293, %v1290
  %v1351 = vpack.c.b16 %v1294, %v1291
  %v1352 = vpack.c.b16 %v1298, %v1295
  %v1353 = vpack.c.b16 %v1299, %v1296
  %v1354 = vpack.c.b16 %v1300, %v1297
  %v1355 = vpack.c.b16 %v1304, %v1301
  %v1356 = vpack.c.b16 %v1305, %v1302
  %v1357 = vpack.c.b16 %v1306, %v1303
  %v1358 = vpack.c.b16 %v1310, %v1307
  %v1359 = vpack.c.b16 %v1311, %v1308
  %v1360 = vpack.c.b16 %v1312, %v1309
  %1409 = vmatprep.subr.bf16.mxu0 %v1314
  %1410 = vmatpush1.bf16.msra.mxu0 %v1313
  %1411 = vmatprep.subr.bf16.mxu0 %v1317
  %1412 = vmatpush1.bf16.msra.mxu0 %v1316
  %1413 = vmatprep.subr.bf16.mxu0 %v1320
  %1414 = vmatpush1.bf16.msra.mxu0 %v1319
  %1415 = vmatprep.subr.bf16.mxu0 %v1323
  %1416 = vmatpush1.bf16.msra.mxu0 %v1322
  %1417 = vmatprep.subr.bf16.mxu0 %v1326
  %1418 = vmatpush1.bf16.msra.mxu0 %v1325
  %1419 = vmatprep.subr.bf16.mxu0 %v1329
  %1420 = vmatpush1.bf16.msra.mxu0 %v1328
  %1421 = vmatprep.subr.bf16.mxu0 %v1332
  %1422 = vmatpush1.bf16.msra.mxu0 %v1331
  %1423 = vmatprep.subr.bf16.mxu0 %v1335
  %1424 = vmatpush1.bf16.msra.mxu0 %v1334
  %1425 = vmatprep.subr.bf16.mxu0 %v1338
  %1426 = vmatpush1.bf16.msra.mxu0 %v1337
  %1427 = vmatprep.subr.bf16.mxu0 %v1341
  %1428 = vmatpush1.bf16.msra.mxu0 %v1340
  %1429 = vmatprep.subr.bf16.mxu0 %v1344
  %1430 = vmatpush1.bf16.msra.mxu0 %v1343
  %1431 = vmatprep.subr.bf16.mxu0 %v1347
  %1432 = vmatpush1.bf16.msra.mxu0 %v1346
  %1433 = vmatprep.subr.bf16.mxu0 %v1350
  %1434 = vmatpush1.bf16.msra.mxu0 %v1349
  %1435 = vmatprep.subr.bf16.mxu0 %v1353
  %1436 = vmatpush1.bf16.msra.mxu0 %v1352
  %1437 = vmatprep.subr.bf16.mxu0 %v1356
  %1438 = vmatpush1.bf16.msra.mxu0 %v1355
  %1439 = vmatprep.subr.bf16.mxu0 %v1359
  %1440 = vmatpush1.bf16.msra.mxu0 %v1358
  %1441 = vmatprep.mubr.bf16.mxu0 %v1074
  %1442 = vmatmul.mubr.bf16.gmra.mrb[0].mxu0 %v1073
  %v1443 = vpop.f32.mrb[0].mxu0
  %v1444 = vadd.f32 0.0, %v1443
  %v1445 = vpop.f32.mrb[0].mxu0
  %v1446 = vadd.f32 0.0, %v1445
  %v1447 = vpop.f32.mrb[0].mxu0
  %v1448 = vadd.f32 0.0, %v1447
  %v1449 = vpop.f32.mrb[0].mxu0
  %v1450 = vadd.f32 0.0, %v1449
  %1451 = vmatprep.mubr.bf16.mxu0 %v1076
  %1452 = vmatmul.mubr.bf16.gmra.mrb[0].mxu0 %v1075
  %v1453 = vpop.f32.mrb[0].mxu0
  %v1454 = vadd.f32 0.0, %v1453
  %v1455 = vpop.f32.mrb[0].mxu0
  %v1456 = vadd.f32 0.0, %v1455
  %v1457 = vpop.f32.mrb[0].mxu0
  %v1458 = vadd.f32 0.0, %v1457
  %v1459 = vpop.f32.mrb[0].mxu0
  %v1460 = vadd.f32 0.0, %v1459
  %1461 = vmatprep.mubr.bf16.mxu0 %v1078
  %1462 = vmatmul.mubr.bf16.gmra.mrb[0].mxu0 %v1077
  %v1463 = vpop.f32.mrb[0].mxu0
  %v1464 = vadd.f32 0.0, %v1463
  %v1465 = vpop.f32.mrb[0].mxu0
  %v1466 = vadd.f32 0.0, %v1465
  %v1467 = vpop.f32.mrb[0].mxu0
  %v1468 = vadd.f32 0.0, %v1467
  %v1469 = vpop.f32.mrb[0].mxu0
  %v1470 = vadd.f32 0.0, %v1469
  %1471 = vmatprep.mubr.bf16.mxu0 %v1080
  %1472 = vmatmul.mubr.bf16.gmra.mrb[0].mxu0 %v1079
  %v1473 = vpop.f32.mrb[0].mxu0
  %v1474 = vadd.f32 0.0, %v1473
  %v1475 = vpop.f32.mrb[0].mxu0
  %v1476 = vadd.f32 0.0, %v1475
  %v1477 = vpop.f32.mrb[0].mxu0
  %v1478 = vadd.f32 0.0, %v1477
  %v1479 = vpop.f32.mrb[0].mxu0
  %v1480 = vadd.f32 0.0, %v1479
  %1481 = vmatprep.mubr.bf16.mxu0 %v1082
  %1482 = vmatmul.mubr.bf16.gmra.mrb[0].mxu0 %v1081
  %v1483 = vpop.f32.mrb[0].mxu0
  %v1484 = vadd.f32 0.0, %v1483
  %v1485 = vpop.f32.mrb[0].mxu0
  %v1486 = vadd.f32 0.0, %v1485
  %v1487 = vpop.f32.mrb[0].mxu0
  %v1488 = vadd.f32 0.0, %v1487
  %v1489 = vpop.f32.mrb[0].mxu0
  %v1490 = vadd.f32 0.0, %v1489
  %1491 = vmatprep.mubr.bf16.mxu0 %v1084
  %1492 = vmatmul.mubr.bf16.gmra.mrb[0].mxu0 %v1083
  %v1493 = vpop.f32.mrb[0].mxu0
  %v1494 = vadd.f32 0.0, %v1493
  %v1495 = vpop.f32.mrb[0].mxu0
  %v1496 = vadd.f32 0.0, %v1495
  %v1497 = vpop.f32.mrb[0].mxu0
  %v1498 = vadd.f32 0.0, %v1497
  %v1499 = vpop.f32.mrb[0].mxu0
  %v1500 = vadd.f32 0.0, %v1499
  %1501 = vmatprep.mubr.bf16.mxu0 %v1086
  %1502 = vmatmul.mubr.bf16.gmra.mrb[0].mxu0 %v1085
  %v1503 = vpop.f32.mrb[0].mxu0
  %v1504 = vadd.f32 0.0, %v1503
  %v1505 = vpop.f32.mrb[0].mxu0
  %v1506 = vadd.f32 0.0, %v1505
  %v1507 = vpop.f32.mrb[0].mxu0
  %v1508 = vadd.f32 0.0, %v1507
  %v1509 = vpop.f32.mrb[0].mxu0
  %v1510 = vadd.f32 0.0, %v1509
  %1511 = vmatprep.mubr.bf16.mxu0 %v1088
  %1512 = vmatmul.mubr.bf16.gmra.mrb[0].mxu0 %v1087
  %v1513 = vpop.f32.mrb[0].mxu0
  %v1514 = vadd.f32 0.0, %v1513
  %v1515 = vpop.f32.mrb[0].mxu0
  %v1516 = vadd.f32 0.0, %v1515
  %v1517 = vpop.f32.mrb[0].mxu0
  %v1518 = vadd.f32 0.0, %v1517
  %v1519 = vpop.f32.mrb[0].mxu0
  %v1520 = vadd.f32 0.0, %v1519
  %1521 = vdwg.mxu0
  %1522 = vmatprep.subr.bf16.mxu0 0
  %1523 = vmatpush1.bf16.msra.mxu0 %v1315
  %1524 = vmatprep.subr.bf16.mxu0 0
  %1525 = vmatpush1.bf16.msra.mxu0 %v1318
  %1526 = vmatprep.subr.bf16.mxu0 0
  %1527 = vmatpush1.bf16.msra.mxu0 %v1321
  %1528 = vmatprep.subr.bf16.mxu0 0
  %1529 = vmatpush1.bf16.msra.mxu0 %v1324
  %1530 = vmatprep.subr.bf16.mxu0 0
  %1531 = vmatpush1.bf16.msra.mxu0 %v1327
  %1532 = vmatprep.subr.bf16.mxu0 0
  %1533 = vmatpush1.bf16.msra.mxu0 %v1330
  %1534 = vmatprep.subr.bf16.mxu0 0
  %1535 = vmatpush1.bf16.msra.mxu0 %v1333
  %1536 = vmatprep.subr.bf16.mxu0 0
  %1537 = vmatpush1.bf16.msra.mxu0 %v1336
  %1538 = vmatprep.subr.bf16.mxu0 0
  %1539 = vmatpush1.bf16.msra.mxu0 %v1339
  %1540 = vmatprep.subr.bf16.mxu0 0
  %1541 = vmatpush1.bf16.msra.mxu0 %v1342
  %1542 = vmatprep.subr.bf16.mxu0 0
  %1543 = vmatpush1.bf16.msra.mxu0 %v1345
  %1544 = vmatprep.subr.bf16.mxu0 0
  %1545 = vmatpush1.bf16.msra.mxu0 %v1348
  %1546 = vmatprep.subr.bf16.mxu0 0
  %1547 = vmatpush1.bf16.msra.mxu0 %v1351
  %1548 = vmatprep.subr.bf16.mxu0 0
  %1549 = vmatpush1.bf16.msra.mxu0 %v1354
  %1550 = vmatprep.subr.bf16.mxu0 0
  %1551 = vmatpush1.bf16.msra.mxu0 %v1357
  %1552 = vmatprep.subr.bf16.mxu0 0
  %1553 = vmatpush1.bf16.msra.mxu0 %v1360
  %1554 = vmatprep.mubr.bf16.mxu0 %v1074
  %1555 = vmatmul.mubr.bf16.gmra.mrb[0].mxu0 %v1073
  %v1556 = vpop.f32.mrb[0].mxu0
  %v1557 = vadd.f32 0.0, %v1556
  %v1558 = vpop.f32.mrb[0].mxu0
  %v1559 = vpop.f32.mrb[0].mxu0
  %v1560 = vadd.f32 0.0, %v1559
  %v1561 = vpop.f32.mrb[0].mxu0
  %1562 = vmatprep.mubr.bf16.mxu0 %v1076
  %1563 = vmatmul.mubr.bf16.gmra.mrb[0].mxu0 %v1075
  %v1564 = vpop.f32.mrb[0].mxu0
  %v1565 = vadd.f32 0.0, %v1564
  %v1566 = vpop.f32.mrb[0].mxu0
  %v1567 = vpop.f32.mrb[0].mxu0
  %v1568 = vadd.f32 0.0, %v1567
  %v1569 = vpop.f32.mrb[0].mxu0
  %1570 = vmatprep.mubr.bf16.mxu0 %v1078
  %1571 = vmatmul.mubr.bf16.gmra.mrb[0].mxu0 %v1077
  %v1572 = vpop.f32.mrb[0].mxu0
  %v1573 = vadd.f32 0.0, %v1572
  %v1574 = vpop.f32.mrb[0].mxu0
  %v1575 = vpop.f32.mrb[0].mxu0
  %v1576 = vadd.f32 0.0, %v1575
  %v1577 = vpop.f32.mrb[0].mxu0
  %1578 = vmatprep.mubr.bf16.mxu0 %v1080
  %1579 = vmatmul.mubr.bf16.gmra.mrb[0].mxu0 %v1079
  %v1580 = vpop.f32.mrb[0].mxu0
  %v1581 = vadd.f32 0.0, %v1580
  %v1582 = vpop.f32.mrb[0].mxu0
  %v1583 = vpop.f32.mrb[0].mxu0
  %v1584 = vadd.f32 0.0, %v1583
  %v1585 = vpop.f32.mrb[0].mxu0
  %1586 = vmatprep.mubr.bf16.mxu0 %v1082
  %1587 = vmatmul.mubr.bf16.gmra.mrb[0].mxu0 %v1081
  %v1588 = vpop.f32.mrb[0].mxu0
  %v1589 = vadd.f32 0.0, %v1588
  %v1590 = vpop.f32.mrb[0].mxu0
  %v1591 = vpop.f32.mrb[0].mxu0
  %v1592 = vadd.f32 0.0, %v1591
  %v1593 = vpop.f32.mrb[0].mxu0
  %1594 = vmatprep.mubr.bf16.mxu0 %v1084
  %1595 = vmatmul.mubr.bf16.gmra.mrb[0].mxu0 %v1083
  %v1596 = vpop.f32.mrb[0].mxu0
  %v1597 = vadd.f32 0.0, %v1596
  %v1598 = vpop.f32.mrb[0].mxu0
  %v1599 = vpop.f32.mrb[0].mxu0
  %v1600 = vadd.f32 0.0, %v1599
  %v1601 = vpop.f32.mrb[0].mxu0
  %1602 = vmatprep.mubr.bf16.mxu0 %v1086
  %1603 = vmatmul.mubr.bf16.gmra.mrb[0].mxu0 %v1085
  %v1604 = vpop.f32.mrb[0].mxu0
  %v1605 = vadd.f32 0.0, %v1604
  %v1606 = vpop.f32.mrb[0].mxu0
  %v1607 = vpop.f32.mrb[0].mxu0
  %v1608 = vadd.f32 0.0, %v1607
  %v1609 = vpop.f32.mrb[0].mxu0
  %1610 = vmatprep.mubr.bf16.mxu0 %v1088
  %1611 = vmatmul.mubr.bf16.gmra.mrb[0].mxu0 %v1087
  %v1612 = vpop.f32.mrb[0].mxu0
  %v1613 = vadd.f32 0.0, %v1612
  %v1614 = vpop.f32.mrb[0].mxu0
  %v1615 = vpop.f32.mrb[0].mxu0
  %v1616 = vadd.f32 0.0, %v1615
  %v1617 = vpop.f32.mrb[0].mxu0
  %1618 = vdwg.mxu0
  %v1683 = vunpack.c.l.b16 %v732
  %v1684 = vunpack.c.h.b16 %v732
  %v1685 = vunpack.c.l.b16 %v733
  %v1686 = vunpack.c.l.b16 %v734
  %v1687 = vunpack.c.h.b16 %v734
  %v1688 = vunpack.c.l.b16 %v735
  %v1689 = vunpack.c.l.b16 %v736
  %v1690 = vunpack.c.h.b16 %v736
  %v1691 = vunpack.c.l.b16 %v737
  %v1692 = vunpack.c.l.b16 %v738
  %v1693 = vunpack.c.h.b16 %v738
  %v1694 = vunpack.c.l.b16 %v739
  %v1695 = vunpack.c.l.b16 %v740
  %v1696 = vunpack.c.h.b16 %v740
  %v1697 = vunpack.c.l.b16 %v741
  %v1698 = vunpack.c.l.b16 %v742
  %v1699 = vunpack.c.h.b16 %v742
  %v1700 = vunpack.c.l.b16 %v743
  %v1701 = vunpack.c.l.b16 %v744
  %v1702 = vunpack.c.h.b16 %v744
  %v1703 = vunpack.c.l.b16 %v745
  %v1704 = vunpack.c.l.b16 %v746
  %v1705 = vunpack.c.h.b16 %v746
  %v1706 = vunpack.c.l.b16 %v747
  %v1707 = vunpack.c.l.b16 %v748
  %v1708 = vunpack.c.h.b16 %v748
  %v1709 = vunpack.c.l.b16 %v749
  %v1710 = vunpack.c.l.b16 %v750
  %v1711 = vunpack.c.h.b16 %v750
  %v1712 = vunpack.c.l.b16 %v751
  %v1713 = vunpack.c.l.b16 %v752
  %v1714 = vunpack.c.h.b16 %v752
  %v1715 = vunpack.c.l.b16 %v753
  %v1716 = vunpack.c.l.b16 %v754
  %v1717 = vunpack.c.h.b16 %v754
  %v1718 = vunpack.c.l.b16 %v755
  %v1719 = vunpack.c.l.b16 %v756
  %v1720 = vunpack.c.h.b16 %v756
  %v1721 = vunpack.c.l.b16 %v757
  %v1722 = vunpack.c.l.b16 %v758
  %v1723 = vunpack.c.h.b16 %v758
  %v1724 = vunpack.c.l.b16 %v759
  %v1725 = vunpack.c.l.b16 %v760
  %v1726 = vunpack.c.h.b16 %v760
  %v1727 = vunpack.c.l.b16 %v761
  %v1728 = vunpack.c.l.b16 %v762
  %v1729 = vunpack.c.h.b16 %v762
  %v1730 = vunpack.c.l.b16 %v763
  %v1731 = vunpack.c.l.b16 %v764
  %v1732 = vunpack.c.h.b16 %v764
  %v1733 = vunpack.c.l.b16 %v765
  %v1734 = vunpack.c.l.b16 %v766
  %v1735 = vunpack.c.h.b16 %v766
  %v1736 = vunpack.c.l.b16 %v767
  %v1737 = vunpack.c.l.b16 %v768
  %v1738 = vunpack.c.h.b16 %v768
  %v1739 = vunpack.c.l.b16 %v769
  %v1740 = vunpack.c.l.b16 %v770
  %v1741 = vunpack.c.h.b16 %v770
  %v1742 = vunpack.c.l.b16 %v771
  %v1743 = vunpack.c.l.b16 %v772
  %v1744 = vunpack.c.h.b16 %v772
  %v1745 = vunpack.c.l.b16 %v773
  %v1746 = vunpack.c.l.b16 %v774
  %v1747 = vunpack.c.h.b16 %v774
  %v1748 = vunpack.c.l.b16 %v775
  %v1749 = vunpack.c.l.b16 %v776
  %v1750 = vunpack.c.h.b16 %v776
  %v1751 = vunpack.c.l.b16 %v777
  %v1752 = vunpack.c.l.b16 %v778
  %v1753 = vunpack.c.h.b16 %v778
  %v1754 = vunpack.c.l.b16 %v779
  %v1755 = vunpack.c.l.b16 %v780
  %v1756 = vunpack.c.h.b16 %v780
  %v1757 = vunpack.c.l.b16 %v781
  %v1758 = vunpack.c.l.b16 %v782
  %v1759 = vunpack.c.h.b16 %v782
  %v1760 = vunpack.c.l.b16 %v783
  %v1761 = vunpack.c.l.b16 %v784
  %v1762 = vunpack.c.h.b16 %v784
  %v1763 = vunpack.c.l.b16 %v785
  %v1764 = vunpack.c.l.b16 %v786
  %v1765 = vunpack.c.h.b16 %v786
  %v1766 = vunpack.c.l.b16 %v787
  %v1767 = vunpack.c.l.b16 %v788
  %v1768 = vunpack.c.h.b16 %v788
  %v1769 = vunpack.c.l.b16 %v789
  %v1770 = vunpack.c.l.b16 %v790
  %v1771 = vunpack.c.h.b16 %v790
  %v1772 = vunpack.c.l.b16 %v791
  %v1773 = vunpack.c.l.b16 %v792
  %v1774 = vunpack.c.h.b16 %v792
  %v1775 = vunpack.c.l.b16 %v793
  %v1776 = vunpack.c.l.b16 %v794
  %v1777 = vunpack.c.h.b16 %v794
  %v1778 = vunpack.c.l.b16 %v795
  %v1779 = vpack.c.b16 %v1686, %v1683
  %v1780 = vpack.c.b16 %v1687, %v1684
  %v1781 = vpack.c.b16 %v1688, %v1685
  %v1782 = vpack.c.b16 %v1692, %v1689
  %v1783 = vpack.c.b16 %v1693, %v1690
  %v1784 = vpack.c.b16 %v1694, %v1691
  %v1785 = vpack.c.b16 %v1698, %v1695
  %v1786 = vpack.c.b16 %v1699, %v1696
  %v1787 = vpack.c.b16 %v1700, %v1697
  %v1788 = vpack.c.b16 %v1704, %v1701
  %v1789 = vpack.c.b16 %v1705, %v1702
  %v1790 = vpack.c.b16 %v1706, %v1703
  %v1791 = vpack.c.b16 %v1710, %v1707
  %v1792 = vpack.c.b16 %v1711, %v1708
  %v1793 = vpack.c.b16 %v1712, %v1709
  %v1794 = vpack.c.b16 %v1716, %v1713
  %v1795 = vpack.c.b16 %v1717, %v1714
  %v1796 = vpack.c.b16 %v1718, %v1715
  %v1797 = vpack.c.b16 %v1722, %v1719
  %v1798 = vpack.c.b16 %v1723, %v1720
  %v1799 = vpack.c.b16 %v1724, %v1721
  %v1800 = vpack.c.b16 %v1728, %v1725
  %v1801 = vpack.c.b16 %v1729, %v1726
  %v1802 = vpack.c.b16 %v1730, %v1727
  %v1803 = vpack.c.b16 %v1734, %v1731
  %v1804 = vpack.c.b16 %v1735, %v1732
  %v1805 = vpack.c.b16 %v1736, %v1733
  %v1806 = vpack.c.b16 %v1740, %v1737
  %v1807 = vpack.c.b16 %v1741, %v1738
  %v1808 = vpack.c.b16 %v1742, %v1739
  %v1809 = vpack.c.b16 %v1746, %v1743
  %v1810 = vpack.c.b16 %v1747, %v1744
  %v1811 = vpack.c.b16 %v1748, %v1745
  %v1812 = vpack.c.b16 %v1752, %v1749
  %v1813 = vpack.c.b16 %v1753, %v1750
  %v1814 = vpack.c.b16 %v1754, %v1751
  %v1815 = vpack.c.b16 %v1758, %v1755
  %v1816 = vpack.c.b16 %v1759, %v1756
  %v1817 = vpack.c.b16 %v1760, %v1757
  %v1818 = vpack.c.b16 %v1764, %v1761
  %v1819 = vpack.c.b16 %v1765, %v1762
  %v1820 = vpack.c.b16 %v1766, %v1763
  %v1821 = vpack.c.b16 %v1770, %v1767
  %v1822 = vpack.c.b16 %v1771, %v1768
  %v1823 = vpack.c.b16 %v1772, %v1769
  %v1824 = vpack.c.b16 %v1776, %v1773
  %v1825 = vpack.c.b16 %v1777, %v1774
  %v1826 = vpack.c.b16 %v1778, %v1775
  %1875 = vmatprep.subr.bf16.mxu0 %v1780
  %1876 = vmatpush1.bf16.msra.mxu0 %v1779
  %1877 = vmatprep.subr.bf16.mxu0 %v1783
  %1878 = vmatpush1.bf16.msra.mxu0 %v1782
  %1879 = vmatprep.subr.bf16.mxu0 %v1786
  %1880 = vmatpush1.bf16.msra.mxu0 %v1785
  %1881 = vmatprep.subr.bf16.mxu0 %v1789
  %1882 = vmatpush1.bf16.msra.mxu0 %v1788
  %1883 = vmatprep.subr.bf16.mxu0 %v1792
  %1884 = vmatpush1.bf16.msra.mxu0 %v1791
  %1885 = vmatprep.subr.bf16.mxu0 %v1795
  %1886 = vmatpush1.bf16.msra.mxu0 %v1794
  %1887 = vmatprep.subr.bf16.mxu0 %v1798
  %1888 = vmatpush1.bf16.msra.mxu0 %v1797
  %1889 = vmatprep.subr.bf16.mxu0 %v1801
  %1890 = vmatpush1.bf16.msra.mxu0 %v1800
  %1891 = vmatprep.subr.bf16.mxu0 %v1804
  %1892 = vmatpush1.bf16.msra.mxu0 %v1803
  %1893 = vmatprep.subr.bf16.mxu0 %v1807
  %1894 = vmatpush1.bf16.msra.mxu0 %v1806
  %1895 = vmatprep.subr.bf16.mxu0 %v1810
  %1896 = vmatpush1.bf16.msra.mxu0 %v1809
  %1897 = vmatprep.subr.bf16.mxu0 %v1813
  %1898 = vmatpush1.bf16.msra.mxu0 %v1812
  %1899 = vmatprep.subr.bf16.mxu0 %v1816
  %1900 = vmatpush1.bf16.msra.mxu0 %v1815
  %1901 = vmatprep.subr.bf16.mxu0 %v1819
  %1902 = vmatpush1.bf16.msra.mxu0 %v1818
  %1903 = vmatprep.subr.bf16.mxu0 %v1822
  %1904 = vmatpush1.bf16.msra.mxu0 %v1821
  %1905 = vmatprep.subr.bf16.mxu0 %v1825
  %1906 = vmatpush1.bf16.msra.mxu0 %v1824
  %1907 = vmatprep.mubr.bf16.mxu0 %v717
  %1908 = vmatmul.mubr.bf16.gmra.mrb[0].mxu0 %v716
  %v1909 = vpop.f32.mrb[0].mxu0
  %v1910 = vadd.f32 %v1444, %v1909
  %v1911 = vpop.f32.mrb[0].mxu0
  %v1912 = vadd.f32 %v1446, %v1911
  %v1913 = vpop.f32.mrb[0].mxu0
  %v1914 = vadd.f32 %v1448, %v1913
  %v1915 = vpop.f32.mrb[0].mxu0
  %v1916 = vadd.f32 %v1450, %v1915
  %1917 = vmatprep.mubr.bf16.mxu0 %v719
  %1918 = vmatmul.mubr.bf16.gmra.mrb[0].mxu0 %v718
  %v1919 = vpop.f32.mrb[0].mxu0
  %v1920 = vadd.f32 %v1454, %v1919
  %v1921 = vpop.f32.mrb[0].mxu0
  %v1922 = vadd.f32 %v1456, %v1921
  %v1923 = vpop.f32.mrb[0].mxu0
  %v1924 = vadd.f32 %v1458, %v1923
  %v1925 = vpop.f32.mrb[0].mxu0
  %v1926 = vadd.f32 %v1460, %v1925
  %1927 = vmatprep.mubr.bf16.mxu0 %v721
  %1928 = vmatmul.mubr.bf16.gmra.mrb[0].mxu0 %v720
  %v1929 = vpop.f32.mrb[0].mxu0
  %v1930 = vadd.f32 %v1464, %v1929
  %v1931 = vpop.f32.mrb[0].mxu0
  %v1932 = vadd.f32 %v1466, %v1931
  %v1933 = vpop.f32.mrb[0].mxu0
  %v1934 = vadd.f32 %v1468, %v1933
  %v1935 = vpop.f32.mrb[0].mxu0
  %v1936 = vadd.f32 %v1470, %v1935
  %1937 = vmatprep.mubr.bf16.mxu0 %v723
  %1938 = vmatmul.mubr.bf16.gmra.mrb[0].mxu0 %v722
  %v1939 = vpop.f32.mrb[0].mxu0
  %v1940 = vadd.f32 %v1474, %v1939
  %v1941 = vpop.f32.mrb[0].mxu0
  %v1942 = vadd.f32 %v1476, %v1941
  %v1943 = vpop.f32.mrb[0].mxu0
  %v1944 = vadd.f32 %v1478, %v1943
  %v1945 = vpop.f32.mrb[0].mxu0
  %v1946 = vadd.f32 %v1480, %v1945
  %1947 = vmatprep.mubr.bf16.mxu0 %v725
  %1948 = vmatmul.mubr.bf16.gmra.mrb[0].mxu0 %v724
  %v1949 = vpop.f32.mrb[0].mxu0
  %v1950 = vadd.f32 %v1484, %v1949
  %v1951 = vpop.f32.mrb[0].mxu0
  %v1952 = vadd.f32 %v1486, %v1951
  %v1953 = vpop.f32.mrb[0].mxu0
  %v1954 = vadd.f32 %v1488, %v1953
  %v1955 = vpop.f32.mrb[0].mxu0
  %v1956 = vadd.f32 %v1490, %v1955
  %1957 = vmatprep.mubr.bf16.mxu0 %v727
  %1958 = vmatmul.mubr.bf16.gmra.mrb[0].mxu0 %v726
  %v1959 = vpop.f32.mrb[0].mxu0
  %v1960 = vadd.f32 %v1494, %v1959
  %v1961 = vpop.f32.mrb[0].mxu0
  %v1962 = vadd.f32 %v1496, %v1961
  %v1963 = vpop.f32.mrb[0].mxu0
  %v1964 = vadd.f32 %v1498, %v1963
  %v1965 = vpop.f32.mrb[0].mxu0
  %v1966 = vadd.f32 %v1500, %v1965
  %1967 = vmatprep.mubr.bf16.mxu0 %v729
  %1968 = vmatmul.mubr.bf16.gmra.mrb[0].mxu0 %v728
  %v1969 = vpop.f32.mrb[0].mxu0
  %v1970 = vadd.f32 %v1504, %v1969
  %v1971 = vpop.f32.mrb[0].mxu0
  %v1972 = vadd.f32 %v1506, %v1971
  %v1973 = vpop.f32.mrb[0].mxu0
  %v1974 = vadd.f32 %v1508, %v1973
  %v1975 = vpop.f32.mrb[0].mxu0
  %v1976 = vadd.f32 %v1510, %v1975
  %1977 = vmatprep.mubr.bf16.mxu0 %v731
  %1978 = vmatmul.mubr.bf16.gmra.mrb[0].mxu0 %v730
  %v1979 = vpop.f32.mrb[0].mxu0
  %v1980 = vadd.f32 %v1514, %v1979
  %v1981 = vpop.f32.mrb[0].mxu0
  %v1982 = vadd.f32 %v1516, %v1981
  %v1983 = vpop.f32.mrb[0].mxu0
  %v1984 = vadd.f32 %v1518, %v1983
  %v1985 = vpop.f32.mrb[0].mxu0
  %v1986 = vadd.f32 %v1520, %v1985
  %1987 = vdwg.mxu0
  %1988 = vmatprep.subr.bf16.mxu0 0
  %1989 = vmatpush1.bf16.msra.mxu0 %v1781
  %1990 = vmatprep.subr.bf16.mxu0 0
  %1991 = vmatpush1.bf16.msra.mxu0 %v1784
  %1992 = vmatprep.subr.bf16.mxu0 0
  %1993 = vmatpush1.bf16.msra.mxu0 %v1787
  %1994 = vmatprep.subr.bf16.mxu0 0
  %1995 = vmatpush1.bf16.msra.mxu0 %v1790
  %1996 = vmatprep.subr.bf16.mxu0 0
  %1997 = vmatpush1.bf16.msra.mxu0 %v1793
  %1998 = vmatprep.subr.bf16.mxu0 0
  %1999 = vmatpush1.bf16.msra.mxu0 %v1796
  %2000 = vmatprep.subr.bf16.mxu0 0
  %2001 = vmatpush1.bf16.msra.mxu0 %v1799
  %2002 = vmatprep.subr.bf16.mxu0 0
  %2003 = vmatpush1.bf16.msra.mxu0 %v1802
  %2004 = vmatprep.subr.bf16.mxu0 0
  %2005 = vmatpush1.bf16.msra.mxu0 %v1805
  %2006 = vmatprep.subr.bf16.mxu0 0
  %2007 = vmatpush1.bf16.msra.mxu0 %v1808
  %2008 = vmatprep.subr.bf16.mxu0 0
  %2009 = vmatpush1.bf16.msra.mxu0 %v1811
  %2010 = vmatprep.subr.bf16.mxu0 0
  %2011 = vmatpush1.bf16.msra.mxu0 %v1814
  %2012 = vmatprep.subr.bf16.mxu0 0
  %2013 = vmatpush1.bf16.msra.mxu0 %v1817
  %2014 = vmatprep.subr.bf16.mxu0 0
  %2015 = vmatpush1.bf16.msra.mxu0 %v1820
  %2016 = vmatprep.subr.bf16.mxu0 0
  %2017 = vmatpush1.bf16.msra.mxu0 %v1823
  %2018 = vmatprep.subr.bf16.mxu0 0
  %2019 = vmatpush1.bf16.msra.mxu0 %v1826
  %2020 = vmatprep.mubr.bf16.mxu0 %v717
  %2021 = vmatmul.mubr.bf16.gmra.mrb[0].mxu0 %v716
  %v2022 = vpop.f32.mrb[0].mxu0
  %v2023 = vadd.f32 %v1557, %v2022
  %v2024 = vpop.f32.mrb[0].mxu0
  %v2025 = vpop.f32.mrb[0].mxu0
  %v2026 = vadd.f32 %v1560, %v2025
  %v2027 = vpop.f32.mrb[0].mxu0
  %2028 = vmatprep.mubr.bf16.mxu0 %v719
  %2029 = vmatmul.mubr.bf16.gmra.mrb[0].mxu0 %v718
  %v2030 = vpop.f32.mrb[0].mxu0
  %v2031 = vadd.f32 %v1565, %v2030
  %v2032 = vpop.f32.mrb[0].mxu0
  %v2033 = vpop.f32.mrb[0].mxu0
  %v2034 = vadd.f32 %v1568, %v2033
  %v2035 = vpop.f32.mrb[0].mxu0
  %2036 = vmatprep.mubr.bf16.mxu0 %v721
  %2037 = vmatmul.mubr.bf16.gmra.mrb[0].mxu0 %v720
  %v2038 = vpop.f32.mrb[0].mxu0
  %v2039 = vadd.f32 %v1573, %v2038
  %v2040 = vpop.f32.mrb[0].mxu0
  %v2041 = vpop.f32.mrb[0].mxu0
  %v2042 = vadd.f32 %v1576, %v2041
  %v2043 = vpop.f32.mrb[0].mxu0
  %2044 = vmatprep.mubr.bf16.mxu0 %v723
  %2045 = vmatmul.mubr.bf16.gmra.mrb[0].mxu0 %v722
  %v2046 = vpop.f32.mrb[0].mxu0
  %v2047 = vadd.f32 %v1581, %v2046
  %v2048 = vpop.f32.mrb[0].mxu0
  %v2049 = vpop.f32.mrb[0].mxu0
  %v2050 = vadd.f32 %v1584, %v2049
  %v2051 = vpop.f32.mrb[0].mxu0
  %2052 = vmatprep.mubr.bf16.mxu0 %v725
  %2053 = vmatmul.mubr.bf16.gmra.mrb[0].mxu0 %v724
  %v2054 = vpop.f32.mrb[0].mxu0
  %v2055 = vadd.f32 %v1589, %v2054
  %v2056 = vpop.f32.mrb[0].mxu0
  %v2057 = vpop.f32.mrb[0].mxu0
  %v2058 = vadd.f32 %v1592, %v2057
  %v2059 = vpop.f32.mrb[0].mxu0
  %2060 = vmatprep.mubr.bf16.mxu0 %v727
  %2061 = vmatmul.mubr.bf16.gmra.mrb[0].mxu0 %v726
  %v2062 = vpop.f32.mrb[0].mxu0
  %v2063 = vadd.f32 %v1597, %v2062
  %v2064 = vpop.f32.mrb[0].mxu0
  %v2065 = vpop.f32.mrb[0].mxu0
  %v2066 = vadd.f32 %v1600, %v2065
  %v2067 = vpop.f32.mrb[0].mxu0
  %2068 = vmatprep.mubr.bf16.mxu0 %v729
  %2069 = vmatmul.mubr.bf16.gmra.mrb[0].mxu0 %v728
  %v2070 = vpop.f32.mrb[0].mxu0
  %v2071 = vadd.f32 %v1605, %v2070
  %v2072 = vpop.f32.mrb[0].mxu0
  %v2073 = vpop.f32.mrb[0].mxu0
  %v2074 = vadd.f32 %v1608, %v2073
  %v2075 = vpop.f32.mrb[0].mxu0
  %2076 = vmatprep.mubr.bf16.mxu0 %v731
  %2077 = vmatmul.mubr.bf16.gmra.mrb[0].mxu0 %v730
  %v2078 = vpop.f32.mrb[0].mxu0
  %v2079 = vadd.f32 %v1613, %v2078
  %v2080 = vpop.f32.mrb[0].mxu0
  %v2081 = vpop.f32.mrb[0].mxu0
  %v2082 = vadd.f32 %v1616, %v2081
  %v2083 = vpop.f32.mrb[0].mxu0
  %2084 = vdwg.mxu0
  %v2085 = vld [vmem:[%s4 + $0x10] sm:$0xff]
  %v2086 = vld [vmem:[%s4 + $0x38] sm:$0xff]
  %v2087 = vld [vmem:[%s4 + $0x60] sm:$0xff]
  %v2088 = vld [vmem:[%s4 + $0x88] sm:$0xff]
  %v2089 = vld [vmem:[%s5 + $0x4] sm:$0x3]
  %v2091 = vlaneseq
  %v2092 = vshrl.u32 %v2091, 7
  %v2093 = vsub.s32 0, %v2092
  %v2094 = vrot.slane %v2089, %v2093
  %v2095 = vlaneseq
  %v2096 = vshrl.u32 %v2095, 7
  %v2097 = vsub.s32 1, %v2096
  %v2098 = vrot.slane %v2089, %v2097
  %v2105 = vunpack.c.l.b16 %v2085
  %v2106 = vunpack.c.h.b16 %v2085
  %v2107 = vunpack.c.l.b16 %v2086
  %v2108 = vunpack.c.h.b16 %v2086
  %v2109 = vunpack.c.l.b16 %v2087
  %v2110 = vunpack.c.h.b16 %v2087
  %v2111 = vunpack.c.l.b16 %v2088
  %v2112 = vunpack.c.h.b16 %v2088
  %v2113 = vpack.c.b16 %v2107, %v2105
  %v2114 = vpack.c.b16 %v2108, %v2106
  %v2115 = vpack.c.b16 %v2111, %v2109
  %v2116 = vpack.c.b16 %v2112, %v2110
  %2121 = vmatprep.subr.bf16.mxu0 %v2114
  %2122 = vmatpush1.bf16.msra.mxu0 %v2113
  %2123 = vmatprep.subr.bf16.mxu0 %v2116
  %2124 = vmatpush1.bf16.msra.mxu0 %v2115
  %2125 = vmatprep.subr.bf16.mxu0 0
  %2126 = vmatpush1.bf16.msra.mxu0 0
  %2127 = vmatprep.subr.bf16.mxu0 0
  %2128 = vmatpush1.bf16.msra.mxu0 0
  %2129 = vmatprep.subr.bf16.mxu0 0
  %2130 = vmatpush1.bf16.msra.mxu0 0
  %2131 = vmatprep.subr.bf16.mxu0 0
  %2132 = vmatpush1.bf16.msra.mxu0 0
  %2133 = vmatprep.subr.bf16.mxu0 0
  %2134 = vmatpush1.bf16.msra.mxu0 0
  %2135 = vmatprep.subr.bf16.mxu0 0
  %2136 = vmatpush1.bf16.msra.mxu0 0
  %2137 = vmatprep.subr.bf16.mxu0 0
  %2138 = vmatpush1.bf16.msra.mxu0 0
  %2139 = vmatprep.subr.bf16.mxu0 0
  %2140 = vmatpush1.bf16.msra.mxu0 0
  %2141 = vmatprep.subr.bf16.mxu0 0
  %2142 = vmatpush1.bf16.msra.mxu0 0
  %2143 = vmatprep.subr.bf16.mxu0 0
  %2144 = vmatpush1.bf16.msra.mxu0 0
  %2145 = vmatprep.subr.bf16.mxu0 0
  %2146 = vmatpush1.bf16.msra.mxu0 0
  %2147 = vmatprep.subr.bf16.mxu0 0
  %2148 = vmatpush1.bf16.msra.mxu0 0
  %2149 = vmatprep.subr.bf16.mxu0 0
  %2150 = vmatpush1.bf16.msra.mxu0 0
  %2151 = vmatprep.subr.bf16.mxu0 0
  %2152 = vmatpush1.bf16.msra.mxu0 0
  %2153 = vmatprep.mubr.bf16.mxu0 0
  %2154 = vmatmul.mubr.bf16.gmra.mrb[0].mxu0 %v452
  %v2155 = vpop.f32.mrb[0].mxu0
  %v2156 = vadd.f32 %v2094, %v2155
  %v2157 = vpop.f32.mrb[0].mxu0
  %v2158 = vadd.f32 %v2098, %v2157
  %v2159 = vpop.f32.mrb[0].mxu0
  %v2160 = vadd.f32 %v2094, %v2159
  %v2161 = vpop.f32.mrb[0].mxu0
  %v2162 = vadd.f32 %v2098, %v2161
  %2163 = vmatprep.mubr.bf16.mxu0 0
  %2164 = vmatmul.mubr.bf16.gmra.mrb[0].mxu0 %v455
  %v2165 = vpop.f32.mrb[0].mxu0
  %v2166 = vadd.f32 %v2094, %v2165
  %v2167 = vpop.f32.mrb[0].mxu0
  %v2168 = vadd.f32 %v2098, %v2167
  %v2169 = vpop.f32.mrb[0].mxu0
  %v2170 = vadd.f32 %v2094, %v2169
  %v2171 = vpop.f32.mrb[0].mxu0
  %v2172 = vadd.f32 %v2098, %v2171
  %2173 = vmatprep.mubr.bf16.mxu0 0
  %2174 = vmatmul.mubr.bf16.gmra.mrb[0].mxu0 %v458
  %v2175 = vpop.f32.mrb[0].mxu0
  %v2176 = vadd.f32 %v2094, %v2175
  %v2177 = vpop.f32.mrb[0].mxu0
  %v2178 = vadd.f32 %v2098, %v2177
  %v2179 = vpop.f32.mrb[0].mxu0
  %v2180 = vadd.f32 %v2094, %v2179
  %v2181 = vpop.f32.mrb[0].mxu0
  %v2182 = vadd.f32 %v2098, %v2181
  %2183 = vmatprep.mubr.bf16.mxu0 0
  %2184 = vmatmul.mubr.bf16.gmra.mrb[0].mxu0 %v461
  %v2185 = vpop.f32.mrb[0].mxu0
  %v2186 = vadd.f32 %v2094, %v2185
  %v2187 = vpop.f32.mrb[0].mxu0
  %v2188 = vadd.f32 %v2098, %v2187
  %v2189 = vpop.f32.mrb[0].mxu0
  %v2190 = vadd.f32 %v2094, %v2189
  %v2191 = vpop.f32.mrb[0].mxu0
  %v2192 = vadd.f32 %v2098, %v2191
  %2193 = vmatprep.mubr.bf16.mxu0 0
  %2194 = vmatmul.mubr.bf16.gmra.mrb[0].mxu0 %v464
  %v2195 = vpop.f32.mrb[0].mxu0
  %v2196 = vadd.f32 %v2094, %v2195
  %v2197 = vpop.f32.mrb[0].mxu0
  %v2198 = vadd.f32 %v2098, %v2197
  %v2199 = vpop.f32.mrb[0].mxu0
  %v2200 = vadd.f32 %v2094, %v2199
  %v2201 = vpop.f32.mrb[0].mxu0
  %v2202 = vadd.f32 %v2098, %v2201
  %2203 = vmatprep.mubr.bf16.mxu0 0
  %2204 = vmatmul.mubr.bf16.gmra.mrb[0].mxu0 %v467
  %v2205 = vpop.f32.mrb[0].mxu0
  %v2206 = vadd.f32 %v2094, %v2205
  %v2207 = vpop.f32.mrb[0].mxu0
  %v2208 = vadd.f32 %v2098, %v2207
  %v2209 = vpop.f32.mrb[0].mxu0
  %v2210 = vadd.f32 %v2094, %v2209
  %v2211 = vpop.f32.mrb[0].mxu0
  %v2212 = vadd.f32 %v2098, %v2211
  %2213 = vmatprep.mubr.bf16.mxu0 0
  %2214 = vmatmul.mubr.bf16.gmra.mrb[0].mxu0 %v470
  %v2215 = vpop.f32.mrb[0].mxu0
  %v2216 = vadd.f32 %v2094, %v2215
  %v2217 = vpop.f32.mrb[0].mxu0
  %v2218 = vadd.f32 %v2098, %v2217
  %v2219 = vpop.f32.mrb[0].mxu0
  %v2220 = vadd.f32 %v2094, %v2219
  %v2221 = vpop.f32.mrb[0].mxu0
  %v2222 = vadd.f32 %v2098, %v2221
  %2223 = vmatprep.mubr.bf16.mxu0 0
  %2224 = vmatmul.mubr.bf16.gmra.mrb[0].mxu0 %v473
  %v2225 = vpop.f32.mrb[0].mxu0
  %v2226 = vadd.f32 %v2094, %v2225
  %v2227 = vpop.f32.mrb[0].mxu0
  %v2228 = vadd.f32 %v2098, %v2227
  %v2229 = vpop.f32.mrb[0].mxu0
  %v2230 = vadd.f32 %v2094, %v2229
  %v2231 = vpop.f32.mrb[0].mxu0
  %v2232 = vadd.f32 %v2098, %v2231
  %2233 = vdwg.mxu0
  %v2234 = vpack.c.bf16 %v2160, %v2156
  %v2235 = vpack.c.bf16 %v2162, %v2158
  %v2236 = vpack.c.bf16 %v2170, %v2166
  %v2237 = vpack.c.bf16 %v2172, %v2168
  %v2238 = vpack.c.bf16 %v2180, %v2176
  %v2239 = vpack.c.bf16 %v2182, %v2178
  %v2240 = vpack.c.bf16 %v2190, %v2186
  %v2241 = vpack.c.bf16 %v2192, %v2188
  %v2242 = vpack.c.bf16 %v2200, %v2196
  %v2243 = vpack.c.bf16 %v2202, %v2198
  %v2244 = vpack.c.bf16 %v2210, %v2206
  %v2245 = vpack.c.bf16 %v2212, %v2208
  %v2246 = vpack.c.bf16 %v2220, %v2216
  %v2247 = vpack.c.bf16 %v2222, %v2218
  %v2248 = vpack.c.bf16 %v2230, %v2226
  %v2249 = vpack.c.bf16 %v2232, %v2228
  %v2250 = vxor.u32 %v2234, 2147516416
  %v2251 = vxor.u32 %v2235, 2147516416
  %v2252 = vxor.u32 %v2236, 2147516416
  %v2253 = vxor.u32 %v2237, 2147516416
  %v2254 = vxor.u32 %v2238, 2147516416
  %v2255 = vxor.u32 %v2239, 2147516416
  %v2256 = vxor.u32 %v2240, 2147516416
  %v2257 = vxor.u32 %v2241, 2147516416
  %v2258 = vxor.u32 %v2242, 2147516416
  %v2259 = vxor.u32 %v2243, 2147516416
  %v2260 = vxor.u32 %v2244, 2147516416
  %v2261 = vxor.u32 %v2245, 2147516416
  %v2262 = vxor.u32 %v2246, 2147516416
  %v2263 = vxor.u32 %v2247, 2147516416
  %v2264 = vxor.u32 %v2248, 2147516416
  %v2265 = vxor.u32 %v2249, 2147516416
  %v2267 = vmul.bf16 %v2250, 1069105081
  %v2268 = vpow.bf16.pop %v2267
  %v2270 = vmul.bf16 %v2251, 1069105081
  %v2271 = vpow.bf16.pop %v2270
  %v2273 = vmul.bf16 %v2252, 1069105081
  %v2274 = vpow.bf16.pop %v2273
  %v2276 = vmul.bf16 %v2253, 1069105081
  %v2277 = vpow.bf16.pop %v2276
  %v2279 = vmul.bf16 %v2254, 1069105081
  %v2280 = vpow.bf16.pop %v2279
  %v2282 = vmul.bf16 %v2255, 1069105081
  %v2283 = vpow.bf16.pop %v2282
  %v2285 = vmul.bf16 %v2256, 1069105081
  %v2286 = vpow.bf16.pop %v2285
  %v2288 = vmul.bf16 %v2257, 1069105081
  %v2289 = vpow.bf16.pop %v2288
  %v2291 = vmul.bf16 %v2258, 1069105081
  %v2292 = vpow.bf16.pop %v2291
  %v2294 = vmul.bf16 %v2259, 1069105081
  %v2295 = vpow.bf16.pop %v2294
  %v2297 = vmul.bf16 %v2260, 1069105081
  %v2298 = vpow.bf16.pop %v2297
  %v2300 = vmul.bf16 %v2261, 1069105081
  %v2301 = vpow.bf16.pop %v2300
  %v2303 = vmul.bf16 %v2262, 1069105081
  %v2304 = vpow.bf16.pop %v2303
  %v2306 = vmul.bf16 %v2263, 1069105081
  %v2307 = vpow.bf16.pop %v2306
  %v2309 = vmul.bf16 %v2264, 1069105081
  %v2310 = vpow.bf16.pop %v2309
  %v2312 = vmul.bf16 %v2265, 1069105081
  %v2313 = vpow.bf16.pop %v2312
  %v2314 = vadd.bf16 %v2268, 1065369472
  %v2315 = vadd.bf16 %v2271, 1065369472
  %v2316 = vadd.bf16 %v2274, 1065369472
  %v2317 = vadd.bf16 %v2277, 1065369472
  %v2318 = vadd.bf16 %v2280, 1065369472
  %v2319 = vadd.bf16 %v2283, 1065369472
  %v2320 = vadd.bf16 %v2286, 1065369472
  %v2321 = vadd.bf16 %v2289, 1065369472
  %v2322 = vadd.bf16 %v2292, 1065369472
  %v2323 = vadd.bf16 %v2295, 1065369472
  %v2324 = vadd.bf16 %v2298, 1065369472
  %v2325 = vadd.bf16 %v2301, 1065369472
  %v2326 = vadd.bf16 %v2304, 1065369472
  %v2327 = vadd.bf16 %v2307, 1065369472
  %v2328 = vadd.bf16 %v2310, 1065369472
  %v2329 = vadd.bf16 %v2313, 1065369472
  %v2330 = vrcp.bf16.pop %v2314
  %v2331 = vmul.bf16 1065369472, %v2330
  %v2332 = vrcp.bf16.pop %v2315
  %v2333 = vmul.bf16 1065369472, %v2332
  %v2334 = vrcp.bf16.pop %v2316
  %v2335 = vmul.bf16 1065369472, %v2334
  %v2336 = vrcp.bf16.pop %v2317
  %v2337 = vmul.bf16 1065369472, %v2336
  %v2338 = vrcp.bf16.pop %v2318
  %v2339 = vmul.bf16 1065369472, %v2338
  %v2340 = vrcp.bf16.pop %v2319
  %v2341 = vmul.bf16 1065369472, %v2340
  %v2342 = vrcp.bf16.pop %v2320
  %v2343 = vmul.bf16 1065369472, %v2342
  %v2344 = vrcp.bf16.pop %v2321
  %v2345 = vmul.bf16 1065369472, %v2344
  %v2346 = vrcp.bf16.pop %v2322
  %v2347 = vmul.bf16 1065369472, %v2346
  %v2348 = vrcp.bf16.pop %v2323
  %v2349 = vmul.bf16 1065369472, %v2348
  %v2350 = vrcp.bf16.pop %v2324
  %v2351 = vmul.bf16 1065369472, %v2350
  %v2352 = vrcp.bf16.pop %v2325
  %v2353 = vmul.bf16 1065369472, %v2352
  %v2354 = vrcp.bf16.pop %v2326
  %v2355 = vmul.bf16 1065369472, %v2354
  %v2356 = vrcp.bf16.pop %v2327
  %v2357 = vmul.bf16 1065369472, %v2356
  %v2358 = vrcp.bf16.pop %v2328
  %v2359 = vmul.bf16 1065369472, %v2358
  %v2360 = vrcp.bf16.pop %v2329
  %v2361 = vmul.bf16 1065369472, %v2360
  %v2362 = vmul.bf16 %v2234, %v2331
  %v2363 = vmul.bf16 %v2235, %v2333
  %v2364 = vmul.bf16 %v2236, %v2335
  %v2365 = vmul.bf16 %v2237, %v2337
  %v2366 = vmul.bf16 %v2238, %v2339
  %v2367 = vmul.bf16 %v2239, %v2341
  %v2368 = vmul.bf16 %v2240, %v2343
  %v2369 = vmul.bf16 %v2241, %v2345
  %v2370 = vmul.bf16 %v2242, %v2347
  %v2371 = vmul.bf16 %v2243, %v2349
  %v2372 = vmul.bf16 %v2244, %v2351
  %v2373 = vmul.bf16 %v2245, %v2353
  %v2374 = vmul.bf16 %v2246, %v2355
  %v2375 = vmul.bf16 %v2247, %v2357
  %v2376 = vmul.bf16 %v2248, %v2359
  %v2377 = vmul.bf16 %v2249, %v2361
  %v2378 = vld [vmem:[%s6 + $0x300] sm:$0xff]
  %v2379 = vld [vmem:[%s6 + $0x308] sm:$0xf]
  %v2380 = vld [vmem:[%s6 + $0x30c] sm:$0xff]
  %v2381 = vld [vmem:[%s6 + $0x314] sm:$0xf]
  %v2382 = vld [vmem:[%s6 + $0x318] sm:$0xff]
  %v2383 = vld [vmem:[%s6 + $0x320] sm:$0xf]
  %v2384 = vld [vmem:[%s6 + $0x324] sm:$0xff]
  %v2385 = vld [vmem:[%s6 + $0x32c] sm:$0xf]
  %v2386 = vld [vmem:[%s6 + $0x330] sm:$0xff]
  %v2387 = vld [vmem:[%s6 + $0x338] sm:$0xf]
  %v2388 = vld [vmem:[%s6 + $0x33c] sm:$0xff]
  %v2389 = vld [vmem:[%s6 + $0x344] sm:$0xf]
  %v2390 = vld [vmem:[%s6 + $0x348] sm:$0xff]
  %v2391 = vld [vmem:[%s6 + $0x350] sm:$0xf]
  %v2392 = vld [vmem:[%s6 + $0x354] sm:$0xff]
  %v2393 = vld [vmem:[%s6 + $0x35c] sm:$0xf]
  %v2394 = vld [vmem:[%s6 + $0x360] sm:$0xff]
  %v2395 = vld [vmem:[%s6 + $0x368] sm:$0xf]
  %v2396 = vld [vmem:[%s6 + $0x36c] sm:$0xff]
  %v2397 = vld [vmem:[%s6 + $0x374] sm:$0xf]
  %v2398 = vld [vmem:[%s6 + $0x378] sm:$0xff]
  %v2399 = vld [vmem:[%s6 + $0x380] sm:$0xf]
  %v2400 = vld [vmem:[%s6 + $0x384] sm:$0xff]
  %v2401 = vld [vmem:[%s6 + $0x38c] sm:$0xf]
  %v2402 = vld [vmem:[%s6 + $0x390] sm:$0xff]
  %v2403 = vld [vmem:[%s6 + $0x398] sm:$0xf]
  %v2404 = vld [vmem:[%s6 + $0x39c] sm:$0xff]
  %v2405 = vld [vmem:[%s6 + $0x3a4] sm:$0xf]
  %v2406 = vld [vmem:[%s6 + $0x3a8] sm:$0xff]
  %v2407 = vld [vmem:[%s6 + $0x3b0] sm:$0xf]
  %v2408 = vld [vmem:[%s6 + $0x3b4] sm:$0xff]
  %v2409 = vld [vmem:[%s6 + $0x3bc] sm:$0xf]
  %v2410 = vld [vmem:[%s6 + $0x3c0] sm:$0xff]
  %v2411 = vld [vmem:[%s6 + $0x3c8] sm:$0xf]
  %v2412 = vld [vmem:[%s6 + $0x3cc] sm:$0xff]
  %v2413 = vld [vmem:[%s6 + $0x3d4] sm:$0xf]
  %v2414 = vld [vmem:[%s6 + $0x3d8] sm:$0xff]
  %v2415 = vld [vmem:[%s6 + $0x3e0] sm:$0xf]
  %v2416 = vld [vmem:[%s6 + $0x3e4] sm:$0xff]
  %v2417 = vld [vmem:[%s6 + $0x3ec] sm:$0xf]
  %v2418 = vld [vmem:[%s6 + $0x3f0] sm:$0xff]
  %v2419 = vld [vmem:[%s6 + $0x3f8] sm:$0xf]
  %v2420 = vld [vmem:[%s6 + $0x3fc] sm:$0xff]
  %v2421 = vld [vmem:[%s6 + $0x404] sm:$0xf]
  %v2422 = vld [vmem:[%s6 + $0x408] sm:$0xff]
  %v2423 = vld [vmem:[%s6 + $0x410] sm:$0xf]
  %v2424 = vld [vmem:[%s6 + $0x414] sm:$0xff]
  %v2425 = vld [vmem:[%s6 + $0x41c] sm:$0xf]
  %v2426 = vld [vmem:[%s6 + $0x420] sm:$0xff]
  %v2427 = vld [vmem:[%s6 + $0x428] sm:$0xf]
  %v2428 = vld [vmem:[%s6 + $0x42c] sm:$0xff]
  %v2429 = vld [vmem:[%s6 + $0x434] sm:$0xf]
  %v2430 = vld [vmem:[%s6 + $0x438] sm:$0xff]
  %v2431 = vld [vmem:[%s6 + $0x440] sm:$0xf]
  %v2432 = vld [vmem:[%s6 + $0x444] sm:$0xff]
  %v2433 = vld [vmem:[%s6 + $0x44c] sm:$0xf]
  %v2434 = vld [vmem:[%s6 + $0x450] sm:$0xff]
  %v2435 = vld [vmem:[%s6 + $0x458] sm:$0xf]
  %v2436 = vld [vmem:[%s6 + $0x45c] sm:$0xff]
  %v2437 = vld [vmem:[%s6 + $0x464] sm:$0xf]
  %v2438 = vld [vmem:[%s6 + $0x468] sm:$0xff]
  %v2439 = vld [vmem:[%s6 + $0x470] sm:$0xf]
  %v2440 = vld [vmem:[%s6 + $0x474] sm:$0xff]
  %v2441 = vld [vmem:[%s6 + $0x47c] sm:$0xf]
  %v2506 = vunpack.c.l.b16 %v2378
  %v2507 = vunpack.c.h.b16 %v2378
  %v2508 = vunpack.c.l.b16 %v2379
  %v2509 = vunpack.c.l.b16 %v2380
  %v2510 = vunpack.c.h.b16 %v2380
  %v2511 = vunpack.c.l.b16 %v2381
  %v2512 = vunpack.c.l.b16 %v2382
  %v2513 = vunpack.c.h.b16 %v2382
  %v2514 = vunpack.c.l.b16 %v2383
  %v2515 = vunpack.c.l.b16 %v2384
  %v2516 = vunpack.c.h.b16 %v2384
  %v2517 = vunpack.c.l.b16 %v2385
  %v2518 = vunpack.c.l.b16 %v2386
  %v2519 = vunpack.c.h.b16 %v2386
  %v2520 = vunpack.c.l.b16 %v2387
  %v2521 = vunpack.c.l.b16 %v2388
  %v2522 = vunpack.c.h.b16 %v2388
  %v2523 = vunpack.c.l.b16 %v2389
  %v2524 = vunpack.c.l.b16 %v2390
  %v2525 = vunpack.c.h.b16 %v2390
  %v2526 = vunpack.c.l.b16 %v2391
  %v2527 = vunpack.c.l.b16 %v2392
  %v2528 = vunpack.c.h.b16 %v2392
  %v2529 = vunpack.c.l.b16 %v2393
  %v2530 = vunpack.c.l.b16 %v2394
  %v2531 = vunpack.c.h.b16 %v2394
  %v2532 = vunpack.c.l.b16 %v2395
  %v2533 = vunpack.c.l.b16 %v2396
  %v2534 = vunpack.c.h.b16 %v2396
  %v2535 = vunpack.c.l.b16 %v2397
  %v2536 = vunpack.c.l.b16 %v2398
  %v2537 = vunpack.c.h.b16 %v2398
  %v2538 = vunpack.c.l.b16 %v2399
  %v2539 = vunpack.c.l.b16 %v2400
  %v2540 = vunpack.c.h.b16 %v2400
  %v2541 = vunpack.c.l.b16 %v2401
  %v2542 = vunpack.c.l.b16 %v2402
  %v2543 = vunpack.c.h.b16 %v2402
  %v2544 = vunpack.c.l.b16 %v2403
  %v2545 = vunpack.c.l.b16 %v2404
  %v2546 = vunpack.c.h.b16 %v2404
  %v2547 = vunpack.c.l.b16 %v2405
  %v2548 = vunpack.c.l.b16 %v2406
  %v2549 = vunpack.c.h.b16 %v2406
  %v2550 = vunpack.c.l.b16 %v2407
  %v2551 = vunpack.c.l.b16 %v2408
  %v2552 = vunpack.c.h.b16 %v2408
  %v2553 = vunpack.c.l.b16 %v2409
  %v2554 = vunpack.c.l.b16 %v2410
  %v2555 = vunpack.c.h.b16 %v2410
  %v2556 = vunpack.c.l.b16 %v2411
  %v2557 = vunpack.c.l.b16 %v2412
  %v2558 = vunpack.c.h.b16 %v2412
  %v2559 = vunpack.c.l.b16 %v2413
  %v2560 = vunpack.c.l.b16 %v2414
  %v2561 = vunpack.c.h.b16 %v2414
  %v2562 = vunpack.c.l.b16 %v2415
  %v2563 = vunpack.c.l.b16 %v2416
  %v2564 = vunpack.c.h.b16 %v2416
  %v2565 = vunpack.c.l.b16 %v2417
  %v2566 = vunpack.c.l.b16 %v2418
  %v2567 = vunpack.c.h.b16 %v2418
  %v2568 = vunpack.c.l.b16 %v2419
  %v2569 = vunpack.c.l.b16 %v2420
  %v2570 = vunpack.c.h.b16 %v2420
  %v2571 = vunpack.c.l.b16 %v2421
  %v2572 = vunpack.c.l.b16 %v2422
  %v2573 = vunpack.c.h.b16 %v2422
  %v2574 = vunpack.c.l.b16 %v2423
  %v2575 = vunpack.c.l.b16 %v2424
  %v2576 = vunpack.c.h.b16 %v2424
  %v2577 = vunpack.c.l.b16 %v2425
  %v2578 = vunpack.c.l.b16 %v2426
  %v2579 = vunpack.c.h.b16 %v2426
  %v2580 = vunpack.c.l.b16 %v2427
  %v2581 = vunpack.c.l.b16 %v2428
  %v2582 = vunpack.c.h.b16 %v2428
  %v2583 = vunpack.c.l.b16 %v2429
  %v2584 = vunpack.c.l.b16 %v2430
  %v2585 = vunpack.c.h.b16 %v2430
  %v2586 = vunpack.c.l.b16 %v2431
  %v2587 = vunpack.c.l.b16 %v2432
  %v2588 = vunpack.c.h.b16 %v2432
  %v2589 = vunpack.c.l.b16 %v2433
  %v2590 = vunpack.c.l.b16 %v2434
  %v2591 = vunpack.c.h.b16 %v2434
  %v2592 = vunpack.c.l.b16 %v2435
  %v2593 = vunpack.c.l.b16 %v2436
  %v2594 = vunpack.c.h.b16 %v2436
  %v2595 = vunpack.c.l.b16 %v2437
  %v2596 = vunpack.c.l.b16 %v2438
  %v2597 = vunpack.c.h.b16 %v2438
  %v2598 = vunpack.c.l.b16 %v2439
  %v2599 = vunpack.c.l.b16 %v2440
  %v2600 = vunpack.c.h.b16 %v2440
  %v2601 = vunpack.c.l.b16 %v2441
  %v2602 = vpack.c.b16 %v2509, %v2506
  %v2603 = vpack.c.b16 %v2510, %v2507
  %v2604 = vpack.c.b16 %v2511, %v2508
  %v2605 = vpack.c.b16 %v2515, %v2512
  %v2606 = vpack.c.b16 %v2516, %v2513
  %v2607 = vpack.c.b16 %v2517, %v2514
  %v2608 = vpack.c.b16 %v2521, %v2518
  %v2609 = vpack.c.b16 %v2522, %v2519
  %v2610 = vpack.c.b16 %v2523, %v2520
  %v2611 = vpack.c.b16 %v2527, %v2524
  %v2612 = vpack.c.b16 %v2528, %v2525
  %v2613 = vpack.c.b16 %v2529, %v2526
  %v2614 = vpack.c.b16 %v2533, %v2530
  %v2615 = vpack.c.b16 %v2534, %v2531
  %v2616 = vpack.c.b16 %v2535, %v2532
  %v2617 = vpack.c.b16 %v2539, %v2536
  %v2618 = vpack.c.b16 %v2540, %v2537
  %v2619 = vpack.c.b16 %v2541, %v2538
  %v2620 = vpack.c.b16 %v2545, %v2542
  %v2621 = vpack.c.b16 %v2546, %v2543
  %v2622 = vpack.c.b16 %v2547, %v2544
  %v2623 = vpack.c.b16 %v2551, %v2548
  %v2624 = vpack.c.b16 %v2552, %v2549
  %v2625 = vpack.c.b16 %v2553, %v2550
  %v2626 = vpack.c.b16 %v2557, %v2554
  %v2627 = vpack.c.b16 %v2558, %v2555
  %v2628 = vpack.c.b16 %v2559, %v2556
  %v2629 = vpack.c.b16 %v2563, %v2560
  %v2630 = vpack.c.b16 %v2564, %v2561
  %v2631 = vpack.c.b16 %v2565, %v2562
  %v2632 = vpack.c.b16 %v2569, %v2566
  %v2633 = vpack.c.b16 %v2570, %v2567
  %v2634 = vpack.c.b16 %v2571, %v2568
  %v2635 = vpack.c.b16 %v2575, %v2572
  %v2636 = vpack.c.b16 %v2576, %v2573
  %v2637 = vpack.c.b16 %v2577, %v2574
  %v2638 = vpack.c.b16 %v2581, %v2578
  %v2639 = vpack.c.b16 %v2582, %v2579
  %v2640 = vpack.c.b16 %v2583, %v2580
  %v2641 = vpack.c.b16 %v2587, %v2584
  %v2642 = vpack.c.b16 %v2588, %v2585
  %v2643 = vpack.c.b16 %v2589, %v2586
  %v2644 = vpack.c.b16 %v2593, %v2590
  %v2645 = vpack.c.b16 %v2594, %v2591
  %v2646 = vpack.c.b16 %v2595, %v2592
  %v2647 = vpack.c.b16 %v2599, %v2596
  %v2648 = vpack.c.b16 %v2600, %v2597
  %v2649 = vpack.c.b16 %v2601, %v2598
  %2698 = vmatprep.subr.bf16.mxu0 %v2603
  %2699 = vmatpush1.bf16.msra.mxu0 %v2602
  %2700 = vmatprep.subr.bf16.mxu0 %v2606
  %2701 = vmatpush1.bf16.msra.mxu0 %v2605
  %2702 = vmatprep.subr.bf16.mxu0 %v2609
  %2703 = vmatpush1.bf16.msra.mxu0 %v2608
  %2704 = vmatprep.subr.bf16.mxu0 %v2612
  %2705 = vmatpush1.bf16.msra.mxu0 %v2611
  %2706 = vmatprep.subr.bf16.mxu0 %v2615
  %2707 = vmatpush1.bf16.msra.mxu0 %v2614
  %2708 = vmatprep.subr.bf16.mxu0 %v2618
  %2709 = vmatpush1.bf16.msra.mxu0 %v2617
  %2710 = vmatprep.subr.bf16.mxu0 %v2621
  %2711 = vmatpush1.bf16.msra.mxu0 %v2620
  %2712 = vmatprep.subr.bf16.mxu0 %v2624
  %2713 = vmatpush1.bf16.msra.mxu0 %v2623
  %2714 = vmatprep.subr.bf16.mxu0 %v2627
  %2715 = vmatpush1.bf16.msra.mxu0 %v2626
  %2716 = vmatprep.subr.bf16.mxu0 %v2630
  %2717 = vmatpush1.bf16.msra.mxu0 %v2629
  %2718 = vmatprep.subr.bf16.mxu0 %v2633
  %2719 = vmatpush1.bf16.msra.mxu0 %v2632
  %2720 = vmatprep.subr.bf16.mxu0 %v2636
  %2721 = vmatpush1.bf16.msra.mxu0 %v2635
  %2722 = vmatprep.subr.bf16.mxu0 %v2639
  %2723 = vmatpush1.bf16.msra.mxu0 %v2638
  %2724 = vmatprep.subr.bf16.mxu0 %v2642
  %2725 = vmatpush1.bf16.msra.mxu0 %v2641
  %2726 = vmatprep.subr.bf16.mxu0 %v2645
  %2727 = vmatpush1.bf16.msra.mxu0 %v2644
  %2728 = vmatprep.subr.bf16.mxu0 %v2648
  %2729 = vmatpush1.bf16.msra.mxu0 %v2647
  %2730 = vmatprep.mubr.bf16.mxu0 %v2363
  %2731 = vmatmul.mubr.bf16.gmra.mrb[0].mxu0 %v2362
  %v2732 = vpop.f32.mrb[0].mxu0
  %v2733 = vadd.f32 0.0, %v2732
  %v2734 = vpop.f32.mrb[0].mxu0
  %v2735 = vadd.f32 0.0, %v2734
  %v2736 = vpop.f32.mrb[0].mxu0
  %v2737 = vadd.f32 0.0, %v2736
  %v2738 = vpop.f32.mrb[0].mxu0
  %v2739 = vadd.f32 0.0, %v2738
  %2740 = vmatprep.mubr.bf16.mxu0 %v2365
  %2741 = vmatmul.mubr.bf16.gmra.mrb[0].mxu0 %v2364
  %v2742 = vpop.f32.mrb[0].mxu0
  %v2743 = vadd.f32 0.0, %v2742
  %v2744 = vpop.f32.mrb[0].mxu0
  %v2745 = vadd.f32 0.0, %v2744
  %v2746 = vpop.f32.mrb[0].mxu0
  %v2747 = vadd.f32 0.0, %v2746
  %v2748 = vpop.f32.mrb[0].mxu0
  %v2749 = vadd.f32 0.0, %v2748
  %2750 = vmatprep.mubr.bf16.mxu0 %v2367
  %2751 = vmatmul.mubr.bf16.gmra.mrb[0].mxu0 %v2366
  %v2752 = vpop.f32.mrb[0].mxu0
  %v2753 = vadd.f32 0.0, %v2752
  %v2754 = vpop.f32.mrb[0].mxu0
  %v2755 = vadd.f32 0.0, %v2754
  %v2756 = vpop.f32.mrb[0].mxu0
  %v2757 = vadd.f32 0.0, %v2756
  %v2758 = vpop.f32.mrb[0].mxu0
  %v2759 = vadd.f32 0.0, %v2758
  %2760 = vmatprep.mubr.bf16.mxu0 %v2369
  %2761 = vmatmul.mubr.bf16.gmra.mrb[0].mxu0 %v2368
  %v2762 = vpop.f32.mrb[0].mxu0
  %v2763 = vadd.f32 0.0, %v2762
  %v2764 = vpop.f32.mrb[0].mxu0
  %v2765 = vadd.f32 0.0, %v2764
  %v2766 = vpop.f32.mrb[0].mxu0
  %v2767 = vadd.f32 0.0, %v2766
  %v2768 = vpop.f32.mrb[0].mxu0
  %v2769 = vadd.f32 0.0, %v2768
  %2770 = vmatprep.mubr.bf16.mxu0 %v2371
  %2771 = vmatmul.mubr.bf16.gmra.mrb[0].mxu0 %v2370
  %v2772 = vpop.f32.mrb[0].mxu0
  %v2773 = vadd.f32 0.0, %v2772
  %v2774 = vpop.f32.mrb[0].mxu0
  %v2775 = vadd.f32 0.0, %v2774
  %v2776 = vpop.f32.mrb[0].mxu0
  %v2777 = vadd.f32 0.0, %v2776
  %v2778 = vpop.f32.mrb[0].mxu0
  %v2779 = vadd.f32 0.0, %v2778
  %2780 = vmatprep.mubr.bf16.mxu0 %v2373
  %2781 = vmatmul.mubr.bf16.gmra.mrb[0].mxu0 %v2372
  %v2782 = vpop.f32.mrb[0].mxu0
  %v2783 = vadd.f32 0.0, %v2782
  %v2784 = vpop.f32.mrb[0].mxu0
  %v2785 = vadd.f32 0.0, %v2784
  %v2786 = vpop.f32.mrb[0].mxu0
  %v2787 = vadd.f32 0.0, %v2786
  %v2788 = vpop.f32.mrb[0].mxu0
  %v2789 = vadd.f32 0.0, %v2788
  %2790 = vmatprep.mubr.bf16.mxu0 %v2375
  %2791 = vmatmul.mubr.bf16.gmra.mrb[0].mxu0 %v2374
  %v2792 = vpop.f32.mrb[0].mxu0
  %v2793 = vadd.f32 0.0, %v2792
  %v2794 = vpop.f32.mrb[0].mxu0
  %v2795 = vadd.f32 0.0, %v2794
  %v2796 = vpop.f32.mrb[0].mxu0
  %v2797 = vadd.f32 0.0, %v2796
  %v2798 = vpop.f32.mrb[0].mxu0
  %v2799 = vadd.f32 0.0, %v2798
  %2800 = vmatprep.mubr.bf16.mxu0 %v2377
  %2801 = vmatmul.mubr.bf16.gmra.mrb[0].mxu0 %v2376
  %v2802 = vpop.f32.mrb[0].mxu0
  %v2803 = vadd.f32 0.0, %v2802
  %v2804 = vpop.f32.mrb[0].mxu0
  %v2805 = vadd.f32 0.0, %v2804
  %v2806 = vpop.f32.mrb[0].mxu0
  %v2807 = vadd.f32 0.0, %v2806
  %v2808 = vpop.f32.mrb[0].mxu0
  %v2809 = vadd.f32 0.0, %v2808
  %2810 = vdwg.mxu0
  %2811 = vmatprep.subr.bf16.mxu0 0
  %2812 = vmatpush1.bf16.msra.mxu0 %v2604
  %2813 = vmatprep.subr.bf16.mxu0 0
  %2814 = vmatpush1.bf16.msra.mxu0 %v2607
  %2815 = vmatprep.subr.bf16.mxu0 0
  %2816 = vmatpush1.bf16.msra.mxu0 %v2610
  %2817 = vmatprep.subr.bf16.mxu0 0
  %2818 = vmatpush1.bf16.msra.mxu0 %v2613
  %2819 = vmatprep.subr.bf16.mxu0 0
  %2820 = vmatpush1.bf16.msra.mxu0 %v2616
  %2821 = vmatprep.subr.bf16.mxu0 0
  %2822 = vmatpush1.bf16.msra.mxu0 %v2619
  %2823 = vmatprep.subr.bf16.mxu0 0
  %2824 = vmatpush1.bf16.msra.mxu0 %v2622
  %2825 = vmatprep.subr.bf16.mxu0 0
  %2826 = vmatpush1.bf16.msra.mxu0 %v2625
  %2827 = vmatprep.subr.bf16.mxu0 0
  %2828 = vmatpush1.bf16.msra.mxu0 %v2628
  %2829 = vmatprep.subr.bf16.mxu0 0
  %2830 = vmatpush1.bf16.msra.mxu0 %v2631
  %2831 = vmatprep.subr.bf16.mxu0 0
  %2832 = vmatpush1.bf16.msra.mxu0 %v2634
  %2833 = vmatprep.subr.bf16.mxu0 0
  %2834 = vmatpush1.bf16.msra.mxu0 %v2637
  %2835 = vmatprep.subr.bf16.mxu0 0
  %2836 = vmatpush1.bf16.msra.mxu0 %v2640
  %2837 = vmatprep.subr.bf16.mxu0 0
  %2838 = vmatpush1.bf16.msra.mxu0 %v2643
  %2839 = vmatprep.subr.bf16.mxu0 0
  %2840 = vmatpush1.bf16.msra.mxu0 %v2646
  %2841 = vmatprep.subr.bf16.mxu0 0
  %2842 = vmatpush1.bf16.msra.mxu0 %v2649
  %2843 = vmatprep.mubr.bf16.mxu0 %v2363
  %2844 = vmatmul.mubr.bf16.gmra.mrb[0].mxu0 %v2362
  %v2845 = vpop.f32.mrb[0].mxu0
  %v2846 = vadd.f32 0.0, %v2845
  %v2847 = vpop.f32.mrb[0].mxu0
  %v2848 = vpop.f32.mrb[0].mxu0
  %v2849 = vadd.f32 0.0, %v2848
  %v2850 = vpop.f32.mrb[0].mxu0
  %2851 = vmatprep.mubr.bf16.mxu0 %v2365
  %2852 = vmatmul.mubr.bf16.gmra.mrb[0].mxu0 %v2364
  %v2853 = vpop.f32.mrb[0].mxu0
  %v2854 = vadd.f32 0.0, %v2853
  %v2855 = vpop.f32.mrb[0].mxu0
  %v2856 = vpop.f32.mrb[0].mxu0
  %v2857 = vadd.f32 0.0, %v2856
  %v2858 = vpop.f32.mrb[0].mxu0
  %2859 = vmatprep.mubr.bf16.mxu0 %v2367
  %2860 = vmatmul.mubr.bf16.gmra.mrb[0].mxu0 %v2366
  %v2861 = vpop.f32.mrb[0].mxu0
  %v2862 = vadd.f32 0.0, %v2861
  %v2863 = vpop.f32.mrb[0].mxu0
  %v2864 = vpop.f32.mrb[0].mxu0
  %v2865 = vadd.f32 0.0, %v2864
  %v2866 = vpop.f32.mrb[0].mxu0
  %2867 = vmatprep.mubr.bf16.mxu0 %v2369
  %2868 = vmatmul.mubr.bf16.gmra.mrb[0].mxu0 %v2368
  %v2869 = vpop.f32.mrb[0].mxu0
  %v2870 = vadd.f32 0.0, %v2869
  %v2871 = vpop.f32.mrb[0].mxu0
  %v2872 = vpop.f32.mrb[0].mxu0
  %v2873 = vadd.f32 0.0, %v2872
  %v2874 = vpop.f32.mrb[0].mxu0
  %2875 = vmatprep.mubr.bf16.mxu0 %v2371
  %2876 = vmatmul.mubr.bf16.gmra.mrb[0].mxu0 %v2370
  %v2877 = vpop.f32.mrb[0].mxu0
  %v2878 = vadd.f32 0.0, %v2877
  %v2879 = vpop.f32.mrb[0].mxu0
  %v2880 = vpop.f32.mrb[0].mxu0
  %v2881 = vadd.f32 0.0, %v2880
  %v2882 = vpop.f32.mrb[0].mxu0
  %2883 = vmatprep.mubr.bf16.mxu0 %v2373
  %2884 = vmatmul.mubr.bf16.gmra.mrb[0].mxu0 %v2372
  %v2885 = vpop.f32.mrb[0].mxu0
  %v2886 = vadd.f32 0.0, %v2885
  %v2887 = vpop.f32.mrb[0].mxu0
  %v2888 = vpop.f32.mrb[0].mxu0
  %v2889 = vadd.f32 0.0, %v2888
  %v2890 = vpop.f32.mrb[0].mxu0
  %2891 = vmatprep.mubr.bf16.mxu0 %v2375
  %2892 = vmatmul.mubr.bf16.gmra.mrb[0].mxu0 %v2374
  %v2893 = vpop.f32.mrb[0].mxu0
  %v2894 = vadd.f32 0.0, %v2893
  %v2895 = vpop.f32.mrb[0].mxu0
  %v2896 = vpop.f32.mrb[0].mxu0
  %v2897 = vadd.f32 0.0, %v2896
  %v2898 = vpop.f32.mrb[0].mxu0
  %2899 = vmatprep.mubr.bf16.mxu0 %v2377
  %2900 = vmatmul.mubr.bf16.gmra.mrb[0].mxu0 %v2376
  %v2901 = vpop.f32.mrb[0].mxu0
  %v2902 = vadd.f32 0.0, %v2901
  %v2903 = vpop.f32.mrb[0].mxu0
  %v2904 = vpop.f32.mrb[0].mxu0
  %v2905 = vadd.f32 0.0, %v2904
  %v2906 = vpop.f32.mrb[0].mxu0
  %2907 = vdwg.mxu0
  %v2908 = vadd.f32 %v1910, %v2733
  %v2909 = vadd.f32 %v1912, %v2735
  %v2910 = vadd.f32 %v2023, %v2846
  %v2911 = vadd.f32 %v1914, %v2737
  %v2912 = vadd.f32 %v1916, %v2739
  %v2913 = vadd.f32 %v2026, %v2849
  %v2914 = vadd.f32 %v1920, %v2743
  %v2915 = vadd.f32 %v1922, %v2745
  %v2916 = vadd.f32 %v2031, %v2854
  %v2917 = vadd.f32 %v1924, %v2747
  %v2918 = vadd.f32 %v1926, %v2749
  %v2919 = vadd.f32 %v2034, %v2857
  %v2920 = vadd.f32 %v1930, %v2753
  %v2921 = vadd.f32 %v1932, %v2755
  %v2922 = vadd.f32 %v2039, %v2862
  %v2923 = vadd.f32 %v1934, %v2757
  %v2924 = vadd.f32 %v1936, %v2759
  %v2925 = vadd.f32 %v2042, %v2865
  %v2926 = vadd.f32 %v1940, %v2763
  %v2927 = vadd.f32 %v1942, %v2765
  %v2928 = vadd.f32 %v2047, %v2870
  %v2929 = vadd.f32 %v1944, %v2767
  %v2930 = vadd.f32 %v1946, %v2769
  %v2931 = vadd.f32 %v2050, %v2873
  %v2932 = vadd.f32 %v1950, %v2773
  %v2933 = vadd.f32 %v1952, %v2775
  %v2934 = vadd.f32 %v2055, %v2878
  %v2935 = vadd.f32 %v1954, %v2777
  %v2936 = vadd.f32 %v1956, %v2779
  %v2937 = vadd.f32 %v2058, %v2881
  %v2938 = vadd.f32 %v1960, %v2783
  %v2939 = vadd.f32 %v1962, %v2785
  %v2940 = vadd.f32 %v2063, %v2886
  %v2941 = vadd.f32 %v1964, %v2787
  %v2942 = vadd.f32 %v1966, %v2789
  %v2943 = vadd.f32 %v2066, %v2889
  %v2944 = vadd.f32 %v1970, %v2793
  %v2945 = vadd.f32 %v1972, %v2795
  %v2946 = vadd.f32 %v2071, %v2894
  %v2947 = vadd.f32 %v1974, %v2797
  %v2948 = vadd.f32 %v1976, %v2799
  %v2949 = vadd.f32 %v2074, %v2897
  %v2950 = vadd.f32 %v1980, %v2803
  %v2951 = vadd.f32 %v1982, %v2805
  %v2952 = vadd.f32 %v2079, %v2902
  %v2953 = vadd.f32 %v1984, %v2807
  %v2954 = vadd.f32 %v1986, %v2809
  %v2955 = vadd.f32 %v2082, %v2905
  %v2956 = vld [vmem:[%s4 + $0x18] sm:$0xff]
  %v2957 = vld [vmem:[%s4 + $0x40] sm:$0xff]
  %v2958 = vld [vmem:[%s4 + $0x68] sm:$0xff]
  %v2959 = vld [vmem:[%s4 + $0x90] sm:$0xff]
  %v2960 = vld [vmem:[%s5 + $0x6] sm:$0x3]
  %v2962 = vlaneseq
  %v2963 = vshrl.u32 %v2962, 7
  %v2964 = vsub.s32 0, %v2963
  %v2965 = vrot.slane %v2960, %v2964
  %v2966 = vlaneseq
  %v2967 = vshrl.u32 %v2966, 7
  %v2968 = vsub.s32 1, %v2967
  %v2969 = vrot.slane %v2960, %v2968
  %v2976 = vunpack.c.l.b16 %v2956
  %v2977 = vunpack.c.h.b16 %v2956
  %v2978 = vunpack.c.l.b16 %v2957
  %v2979 = vunpack.c.h.b16 %v2957
  %v2980 = vunpack.c.l.b16 %v2958
  %v2981 = vunpack.c.h.b16 %v2958
  %v2982 = vunpack.c.l.b16 %v2959
  %v2983 = vunpack.c.h.b16 %v2959
  %v2984 = vpack.c.b16 %v2978, %v2976
  %v2985 = vpack.c.b16 %v2979, %v2977
  %v2986 = vpack.c.b16 %v2982, %v2980
  %v2987 = vpack.c.b16 %v2983, %v2981
  %2992 = vmatprep.subr.bf16.mxu0 %v2985
  %2993 = vmatpush1.bf16.msra.mxu0 %v2984
  %2994 = vmatprep.subr.bf16.mxu0 %v2987
  %2995 = vmatpush1.bf16.msra.mxu0 %v2986
  %2996 = vmatprep.subr.bf16.mxu0 0
  %2997 = vmatpush1.bf16.msra.mxu0 0
  %2998 = vmatprep.subr.bf16.mxu0 0
  %2999 = vmatpush1.bf16.msra.mxu0 0
  %3000 = vmatprep.subr.bf16.mxu0 0
  %3001 = vmatpush1.bf16.msra.mxu0 0
  %3002 = vmatprep.subr.bf16.mxu0 0
  %3003 = vmatpush1.bf16.msra.mxu0 0
  %3004 = vmatprep.subr.bf16.mxu0 0
  %3005 = vmatpush1.bf16.msra.mxu0 0
  %3006 = vmatprep.subr.bf16.mxu0 0
  %3007 = vmatpush1.bf16.msra.mxu0 0
  %3008 = vmatprep.subr.bf16.mxu0 0
  %3009 = vmatpush1.bf16.msra.mxu0 0
  %3010 = vmatprep.subr.bf16.mxu0 0
  %3011 = vmatpush1.bf16.msra.mxu0 0
  %3012 = vmatprep.subr.bf16.mxu0 0
  %3013 = vmatpush1.bf16.msra.mxu0 0
  %3014 = vmatprep.subr.bf16.mxu0 0
  %3015 = vmatpush1.bf16.msra.mxu0 0
  %3016 = vmatprep.subr.bf16.mxu0 0
  %3017 = vmatpush1.bf16.msra.mxu0 0
  %3018 = vmatprep.subr.bf16.mxu0 0
  %3019 = vmatpush1.bf16.msra.mxu0 0
  %3020 = vmatprep.subr.bf16.mxu0 0
  %3021 = vmatpush1.bf16.msra.mxu0 0
  %3022 = vmatprep.subr.bf16.mxu0 0
  %3023 = vmatpush1.bf16.msra.mxu0 0
  %3024 = vmatprep.mubr.bf16.mxu0 0
  %3025 = vmatmul.mubr.bf16.gmra.mrb[0].mxu0 %v452
  %v3026 = vpop.f32.mrb[0].mxu0
  %v3027 = vadd.f32 %v2965, %v3026
  %v3028 = vpop.f32.mrb[0].mxu0
  %v3029 = vadd.f32 %v2969, %v3028
  %v3030 = vpop.f32.mrb[0].mxu0
  %v3031 = vadd.f32 %v2965, %v3030
  %v3032 = vpop.f32.mrb[0].mxu0
  %v3033 = vadd.f32 %v2969, %v3032
  %3034 = vmatprep.mubr.bf16.mxu0 0
  %3035 = vmatmul.mubr.bf16.gmra.mrb[0].mxu0 %v455
  %v3036 = vpop.f32.mrb[0].mxu0
  %v3037 = vadd.f32 %v2965, %v3036
  %v3038 = vpop.f32.mrb[0].mxu0
  %v3039 = vadd.f32 %v2969, %v3038
  %v3040 = vpop.f32.mrb[0].mxu0
  %v3041 = vadd.f32 %v2965, %v3040
  %v3042 = vpop.f32.mrb[0].mxu0
  %v3043 = vadd.f32 %v2969, %v3042
  %3044 = vmatprep.mubr.bf16.mxu0 0
  %3045 = vmatmul.mubr.bf16.gmra.mrb[0].mxu0 %v458
  %v3046 = vpop.f32.mrb[0].mxu0
  %v3047 = vadd.f32 %v2965, %v3046
  %v3048 = vpop.f32.mrb[0].mxu0
  %v3049 = vadd.f32 %v2969, %v3048
  %v3050 = vpop.f32.mrb[0].mxu0
  %v3051 = vadd.f32 %v2965, %v3050
  %v3052 = vpop.f32.mrb[0].mxu0
  %v3053 = vadd.f32 %v2969, %v3052
  %3054 = vmatprep.mubr.bf16.mxu0 0
  %3055 = vmatmul.mubr.bf16.gmra.mrb[0].mxu0 %v461
  %v3056 = vpop.f32.mrb[0].mxu0
  %v3057 = vadd.f32 %v2965, %v3056
  %v3058 = vpop.f32.mrb[0].mxu0
  %v3059 = vadd.f32 %v2969, %v3058
  %v3060 = vpop.f32.mrb[0].mxu0
  %v3061 = vadd.f32 %v2965, %v3060
  %v3062 = vpop.f32.mrb[0].mxu0
  %v3063 = vadd.f32 %v2969, %v3062
  %3064 = vmatprep.mubr.bf16.mxu0 0
  %3065 = vmatmul.mubr.bf16.gmra.mrb[0].mxu0 %v464
  %v3066 = vpop.f32.mrb[0].mxu0
  %v3067 = vadd.f32 %v2965, %v3066
  %v3068 = vpop.f32.mrb[0].mxu0
  %v3069 = vadd.f32 %v2969, %v3068
  %v3070 = vpop.f32.mrb[0].mxu0
  %v3071 = vadd.f32 %v2965, %v3070
  %v3072 = vpop.f32.mrb[0].mxu0
  %v3073 = vadd.f32 %v2969, %v3072
  %3074 = vmatprep.mubr.bf16.mxu0 0
  %3075 = vmatmul.mubr.bf16.gmra.mrb[0].mxu0 %v467
  %v3076 = vpop.f32.mrb[0].mxu0
  %v3077 = vadd.f32 %v2965, %v3076
  %v3078 = vpop.f32.mrb[0].mxu0
  %v3079 = vadd.f32 %v2969, %v3078
  %v3080 = vpop.f32.mrb[0].mxu0
  %v3081 = vadd.f32 %v2965, %v3080
  %v3082 = vpop.f32.mrb[0].mxu0
  %v3083 = vadd.f32 %v2969, %v3082
  %3084 = vmatprep.mubr.bf16.mxu0 0
  %3085 = vmatmul.mubr.bf16.gmra.mrb[0].mxu0 %v470
  %v3086 = vpop.f32.mrb[0].mxu0
  %v3087 = vadd.f32 %v2965, %v3086
  %v3088 = vpop.f32.mrb[0].mxu0
  %v3089 = vadd.f32 %v2969, %v3088
  %v3090 = vpop.f32.mrb[0].mxu0
  %v3091 = vadd.f32 %v2965, %v3090
  %v3092 = vpop.f32.mrb[0].mxu0
  %v3093 = vadd.f32 %v2969, %v3092
  %3094 = vmatprep.mubr.bf16.mxu0 0
  %3095 = vmatmul.mubr.bf16.gmra.mrb[0].mxu0 %v473
  %v3096 = vpop.f32.mrb[0].mxu0
  %v3097 = vadd.f32 %v2965, %v3096
  %v3098 = vpop.f32.mrb[0].mxu0
  %v3099 = vadd.f32 %v2969, %v3098
  %v3100 = vpop.f32.mrb[0].mxu0
  %v3101 = vadd.f32 %v2965, %v3100
  %v3102 = vpop.f32.mrb[0].mxu0
  %v3103 = vadd.f32 %v2969, %v3102
  %3104 = vdwg.mxu0
  %v3105 = vpack.c.bf16 %v3031, %v3027
  %v3106 = vpack.c.bf16 %v3033, %v3029
  %v3107 = vpack.c.bf16 %v3041, %v3037
  %v3108 = vpack.c.bf16 %v3043, %v3039
  %v3109 = vpack.c.bf16 %v3051, %v3047
  %v3110 = vpack.c.bf16 %v3053, %v3049
  %v3111 = vpack.c.bf16 %v3061, %v3057
  %v3112 = vpack.c.bf16 %v3063, %v3059
  %v3113 = vpack.c.bf16 %v3071, %v3067
  %v3114 = vpack.c.bf16 %v3073, %v3069
  %v3115 = vpack.c.bf16 %v3081, %v3077
  %v3116 = vpack.c.bf16 %v3083, %v3079
  %v3117 = vpack.c.bf16 %v3091, %v3087
  %v3118 = vpack.c.bf16 %v3093, %v3089
  %v3119 = vpack.c.bf16 %v3101, %v3097
  %v3120 = vpack.c.bf16 %v3103, %v3099
  %v3121 = vxor.u32 %v3105, 2147516416
  %v3122 = vxor.u32 %v3106, 2147516416
  %v3123 = vxor.u32 %v3107, 2147516416
  %v3124 = vxor.u32 %v3108, 2147516416
  %v3125 = vxor.u32 %v3109, 2147516416
  %v3126 = vxor.u32 %v3110, 2147516416
  %v3127 = vxor.u32 %v3111, 2147516416
  %v3128 = vxor.u32 %v3112, 2147516416
  %v3129 = vxor.u32 %v3113, 2147516416
  %v3130 = vxor.u32 %v3114, 2147516416
  %v3131 = vxor.u32 %v3115, 2147516416
  %v3132 = vxor.u32 %v3116, 2147516416
  %v3133 = vxor.u32 %v3117, 2147516416
  %v3134 = vxor.u32 %v3118, 2147516416
  %v3135 = vxor.u32 %v3119, 2147516416
  %v3136 = vxor.u32 %v3120, 2147516416
  %v3138 = vmul.bf16 %v3121, 1069105081
  %v3139 = vpow.bf16.pop %v3138
  %v3141 = vmul.bf16 %v3122, 1069105081
  %v3142 = vpow.bf16.pop %v3141
  %v3144 = vmul.bf16 %v3123, 1069105081
  %v3145 = vpow.bf16.pop %v3144
  %v3147 = vmul.bf16 %v3124, 1069105081
  %v3148 = vpow.bf16.pop %v3147
  %v3150 = vmul.bf16 %v3125, 1069105081
  %v3151 = vpow.bf16.pop %v3150
  %v3153 = vmul.bf16 %v3126, 1069105081
  %v3154 = vpow.bf16.pop %v3153
  %v3156 = vmul.bf16 %v3127, 1069105081
  %v3157 = vpow.bf16.pop %v3156
  %v3159 = vmul.bf16 %v3128, 1069105081
  %v3160 = vpow.bf16.pop %v3159
  %v3162 = vmul.bf16 %v3129, 1069105081
  %v3163 = vpow.bf16.pop %v3162
  %v3165 = vmul.bf16 %v3130, 1069105081
  %v3166 = vpow.bf16.pop %v3165
  %v3168 = vmul.bf16 %v3131, 1069105081
  %v3169 = vpow.bf16.pop %v3168
  %v3171 = vmul.bf16 %v3132, 1069105081
  %v3172 = vpow.bf16.pop %v3171
  %v3174 = vmul.bf16 %v3133, 1069105081
  %v3175 = vpow.bf16.pop %v3174
  %v3177 = vmul.bf16 %v3134, 1069105081
  %v3178 = vpow.bf16.pop %v3177
  %v3180 = vmul.bf16 %v3135, 1069105081
  %v3181 = vpow.bf16.pop %v3180
  %v3183 = vmul.bf16 %v3136, 1069105081
  %v3184 = vpow.bf16.pop %v3183
  %v3185 = vadd.bf16 %v3139, 1065369472
  %v3186 = vadd.bf16 %v3142, 1065369472
  %v3187 = vadd.bf16 %v3145, 1065369472
  %v3188 = vadd.bf16 %v3148, 1065369472
  %v3189 = vadd.bf16 %v3151, 1065369472
  %v3190 = vadd.bf16 %v3154, 1065369472
  %v3191 = vadd.bf16 %v3157, 1065369472
  %v3192 = vadd.bf16 %v3160, 1065369472
  %v3193 = vadd.bf16 %v3163, 1065369472
  %v3194 = vadd.bf16 %v3166, 1065369472
  %v3195 = vadd.bf16 %v3169, 1065369472
  %v3196 = vadd.bf16 %v3172, 1065369472
  %v3197 = vadd.bf16 %v3175, 1065369472
  %v3198 = vadd.bf16 %v3178, 1065369472
  %v3199 = vadd.bf16 %v3181, 1065369472
  %v3200 = vadd.bf16 %v3184, 1065369472
  %v3201 = vrcp.bf16.pop %v3185
  %v3202 = vmul.bf16 1065369472, %v3201
  %v3203 = vrcp.bf16.pop %v3186
  %v3204 = vmul.bf16 1065369472, %v3203
  %v3205 = vrcp.bf16.pop %v3187
  %v3206 = vmul.bf16 1065369472, %v3205
  %v3207 = vrcp.bf16.pop %v3188
  %v3208 = vmul.bf16 1065369472, %v3207
  %v3209 = vrcp.bf16.pop %v3189
  %v3210 = vmul.bf16 1065369472, %v3209
  %v3211 = vrcp.bf16.pop %v3190
  %v3212 = vmul.bf16 1065369472, %v3211
  %v3213 = vrcp.bf16.pop %v3191
  %v3214 = vmul.bf16 1065369472, %v3213
  %v3215 = vrcp.bf16.pop %v3192
  %v3216 = vmul.bf16 1065369472, %v3215
  %v3217 = vrcp.bf16.pop %v3193
  %v3218 = vmul.bf16 1065369472, %v3217
  %v3219 = vrcp.bf16.pop %v3194
  %v3220 = vmul.bf16 1065369472, %v3219
  %v3221 = vrcp.bf16.pop %v3195
  %v3222 = vmul.bf16 1065369472, %v3221
  %v3223 = vrcp.bf16.pop %v3196
  %v3224 = vmul.bf16 1065369472, %v3223
  %v3225 = vrcp.bf16.pop %v3197
  %v3226 = vmul.bf16 1065369472, %v3225
  %v3227 = vrcp.bf16.pop %v3198
  %v3228 = vmul.bf16 1065369472, %v3227
  %v3229 = vrcp.bf16.pop %v3199
  %v3230 = vmul.bf16 1065369472, %v3229
  %v3231 = vrcp.bf16.pop %v3200
  %v3232 = vmul.bf16 1065369472, %v3231
  %v3233 = vmul.bf16 %v3105, %v3202
  %v3234 = vmul.bf16 %v3106, %v3204
  %v3235 = vmul.bf16 %v3107, %v3206
  %v3236 = vmul.bf16 %v3108, %v3208
  %v3237 = vmul.bf16 %v3109, %v3210
  %v3238 = vmul.bf16 %v3110, %v3212
  %v3239 = vmul.bf16 %v3111, %v3214
  %v3240 = vmul.bf16 %v3112, %v3216
  %v3241 = vmul.bf16 %v3113, %v3218
  %v3242 = vmul.bf16 %v3114, %v3220
  %v3243 = vmul.bf16 %v3115, %v3222
  %v3244 = vmul.bf16 %v3116, %v3224
  %v3245 = vmul.bf16 %v3117, %v3226
  %v3246 = vmul.bf16 %v3118, %v3228
  %v3247 = vmul.bf16 %v3119, %v3230
  %v3248 = vmul.bf16 %v3120, %v3232
  %v3249 = vld [vmem:[%s6 + $0x480] sm:$0xff]
  %v3250 = vld [vmem:[%s6 + $0x488] sm:$0xf]
  %v3251 = vld [vmem:[%s6 + $0x48c] sm:$0xff]
  %v3252 = vld [vmem:[%s6 + $0x494] sm:$0xf]
  %v3253 = vld [vmem:[%s6 + $0x498] sm:$0xff]
  %v3254 = vld [vmem:[%s6 + $0x4a0] sm:$0xf]
  %v3255 = vld [vmem:[%s6 + $0x4a4] sm:$0xff]
  %v3256 = vld [vmem:[%s6 + $0x4ac] sm:$0xf]
  %v3257 = vld [vmem:[%s6 + $0x4b0] sm:$0xff]
  %v3258 = vld [vmem:[%s6 + $0x4b8] sm:$0xf]
  %v3259 = vld [vmem:[%s6 + $0x4bc] sm:$0xff]
  %v3260 = vld [vmem:[%s6 + $0x4c4] sm:$0xf]
  %v3261 = vld [vmem:[%s6 + $0x4c8] sm:$0xff]
  %v3262 = vld [vmem:[%s6 + $0x4d0] sm:$0xf]
  %v3263 = vld [vmem:[%s6 + $0x4d4] sm:$0xff]
  %v3264 = vld [vmem:[%s6 + $0x4dc] sm:$0xf]
  %v3265 = vld [vmem:[%s6 + $0x4e0] sm:$0xff]
  %v3266 = vld [vmem:[%s6 + $0x4e8] sm:$0xf]
  %v3267 = vld [vmem:[%s6 + $0x4ec] sm:$0xff]
  %v3268 = vld [vmem:[%s6 + $0x4f4] sm:$0xf]
  %v3269 = vld [vmem:[%s6 + $0x4f8] sm:$0xff]
  %v3270 = vld [vmem:[%s6 + $0x500] sm:$0xf]
  %v3271 = vld [vmem:[%s6 + $0x504] sm:$0xff]
  %v3272 = vld [vmem:[%s6 + $0x50c] sm:$0xf]
  %v3273 = vld [vmem:[%s6 + $0x510] sm:$0xff]
  %v3274 = vld [vmem:[%s6 + $0x518] sm:$0xf]
  %v3275 = vld [vmem:[%s6 + $0x51c] sm:$0xff]
  %v3276 = vld [vmem:[%s6 + $0x524] sm:$0xf]
  %v3277 = vld [vmem:[%s6 + $0x528] sm:$0xff]
  %v3278 = vld [vmem:[%s6 + $0x530] sm:$0xf]
  %v3279 = vld [vmem:[%s6 + $0x534] sm:$0xff]
  %v3280 = vld [vmem:[%s6 + $0x53c] sm:$0xf]
  %v3281 = vld [vmem:[%s6 + $0x540] sm:$0xff]
  %v3282 = vld [vmem:[%s6 + $0x548] sm:$0xf]
  %v3283 = vld [vmem:[%s6 + $0x54c] sm:$0xff]
  %v3284 = vld [vmem:[%s6 + $0x554] sm:$0xf]
  %v3285 = vld [vmem:[%s6 + $0x558] sm:$0xff]
  %v3286 = vld [vmem:[%s6 + $0x560] sm:$0xf]
  %v3287 = vld [vmem:[%s6 + $0x564] sm:$0xff]
  %v3288 = vld [vmem:[%s6 + $0x56c] sm:$0xf]
  %v3289 = vld [vmem:[%s6 + $0x570] sm:$0xff]
  %v3290 = vld [vmem:[%s6 + $0x578] sm:$0xf]
  %v3291 = vld [vmem:[%s6 + $0x57c] sm:$0xff]
  %v3292 = vld [vmem:[%s6 + $0x584] sm:$0xf]
  %v3293 = vld [vmem:[%s6 + $0x588] sm:$0xff]
  %v3294 = vld [vmem:[%s6 + $0x590] sm:$0xf]
  %v3295 = vld [vmem:[%s6 + $0x594] sm:$0xff]
  %v3296 = vld [vmem:[%s6 + $0x59c] sm:$0xf]
  %v3297 = vld [vmem:[%s6 + $0x5a0] sm:$0xff]
  %v3298 = vld [vmem:[%s6 + $0x5a8] sm:$0xf]
  %v3299 = vld [vmem:[%s6 + $0x5ac] sm:$0xff]
  %v3300 = vld [vmem:[%s6 + $0x5b4] sm:$0xf]
  %v3301 = vld [vmem:[%s6 + $0x5b8] sm:$0xff]
  %v3302 = vld [vmem:[%s6 + $0x5c0] sm:$0xf]
  %v3303 = vld [vmem:[%s6 + $0x5c4] sm:$0xff]
  %v3304 = vld [vmem:[%s6 + $0x5cc] sm:$0xf]
  %v3305 = vld [vmem:[%s6 + $0x5d0] sm:$0xff]
  %v3306 = vld [vmem:[%s6 + $0x5d8] sm:$0xf]
  %v3307 = vld [vmem:[%s6 + $0x5dc] sm:$0xff]
  %v3308 = vld [vmem:[%s6 + $0x5e4] sm:$0xf]
  %v3309 = vld [vmem:[%s6 + $0x5e8] sm:$0xff]
  %v3310 = vld [vmem:[%s6 + $0x5f0] sm:$0xf]
  %v3311 = vld [vmem:[%s6 + $0x5f4] sm:$0xff]
  %v3312 = vld [vmem:[%s6 + $0x5fc] sm:$0xf]
  %v3377 = vunpack.c.l.b16 %v3249
  %v3378 = vunpack.c.h.b16 %v3249
  %v3379 = vunpack.c.l.b16 %v3250
  %v3380 = vunpack.c.l.b16 %v3251
  %v3381 = vunpack.c.h.b16 %v3251
  %v3382 = vunpack.c.l.b16 %v3252
  %v3383 = vunpack.c.l.b16 %v3253
  %v3384 = vunpack.c.h.b16 %v3253
  %v3385 = vunpack.c.l.b16 %v3254
  %v3386 = vunpack.c.l.b16 %v3255
  %v3387 = vunpack.c.h.b16 %v3255
  %v3388 = vunpack.c.l.b16 %v3256
  %v3389 = vunpack.c.l.b16 %v3257
  %v3390 = vunpack.c.h.b16 %v3257
  %v3391 = vunpack.c.l.b16 %v3258
  %v3392 = vunpack.c.l.b16 %v3259
  %v3393 = vunpack.c.h.b16 %v3259
  %v3394 = vunpack.c.l.b16 %v3260
  %v3395 = vunpack.c.l.b16 %v3261
  %v3396 = vunpack.c.h.b16 %v3261
  %v3397 = vunpack.c.l.b16 %v3262
  %v3398 = vunpack.c.l.b16 %v3263
  %v3399 = vunpack.c.h.b16 %v3263
  %v3400 = vunpack.c.l.b16 %v3264
  %v3401 = vunpack.c.l.b16 %v3265
  %v3402 = vunpack.c.h.b16 %v3265
  %v3403 = vunpack.c.l.b16 %v3266
  %v3404 = vunpack.c.l.b16 %v3267
  %v3405 = vunpack.c.h.b16 %v3267
  %v3406 = vunpack.c.l.b16 %v3268
  %v3407 = vunpack.c.l.b16 %v3269
  %v3408 = vunpack.c.h.b16 %v3269
  %v3409 = vunpack.c.l.b16 %v3270
  %v3410 = vunpack.c.l.b16 %v3271
  %v3411 = vunpack.c.h.b16 %v3271
  %v3412 = vunpack.c.l.b16 %v3272
  %v3413 = vunpack.c.l.b16 %v3273
  %v3414 = vunpack.c.h.b16 %v3273
  %v3415 = vunpack.c.l.b16 %v3274
  %v3416 = vunpack.c.l.b16 %v3275
  %v3417 = vunpack.c.h.b16 %v3275
  %v3418 = vunpack.c.l.b16 %v3276
  %v3419 = vunpack.c.l.b16 %v3277
  %v3420 = vunpack.c.h.b16 %v3277
  %v3421 = vunpack.c.l.b16 %v3278
  %v3422 = vunpack.c.l.b16 %v3279
  %v3423 = vunpack.c.h.b16 %v3279
  %v3424 = vunpack.c.l.b16 %v3280
  %v3425 = vunpack.c.l.b16 %v3281
  %v3426 = vunpack.c.h.b16 %v3281
  %v3427 = vunpack.c.l.b16 %v3282
  %v3428 = vunpack.c.l.b16 %v3283
  %v3429 = vunpack.c.h.b16 %v3283
  %v3430 = vunpack.c.l.b16 %v3284
  %v3431 = vunpack.c.l.b16 %v3285
  %v3432 = vunpack.c.h.b16 %v3285
  %v3433 = vunpack.c.l.b16 %v3286
  %v3434 = vunpack.c.l.b16 %v3287
  %v3435 = vunpack.c.h.b16 %v3287
  %v3436 = vunpack.c.l.b16 %v3288
  %v3437 = vunpack.c.l.b16 %v3289
  %v3438 = vunpack.c.h.b16 %v3289
  %v3439 = vunpack.c.l.b16 %v3290
  %v3440 = vunpack.c.l.b16 %v3291
  %v3441 = vunpack.c.h.b16 %v3291
  %v3442 = vunpack.c.l.b16 %v3292
  %v3443 = vunpack.c.l.b16 %v3293
  %v3444 = vunpack.c.h.b16 %v3293
  %v3445 = vunpack.c.l.b16 %v3294
  %v3446 = vunpack.c.l.b16 %v3295
  %v3447 = vunpack.c.h.b16 %v3295
  %v3448 = vunpack.c.l.b16 %v3296
  %v3449 = vunpack.c.l.b16 %v3297
  %v3450 = vunpack.c.h.b16 %v3297
  %v3451 = vunpack.c.l.b16 %v3298
  %v3452 = vunpack.c.l.b16 %v3299
  %v3453 = vunpack.c.h.b16 %v3299
  %v3454 = vunpack.c.l.b16 %v3300
  %v3455 = vunpack.c.l.b16 %v3301
  %v3456 = vunpack.c.h.b16 %v3301
  %v3457 = vunpack.c.l.b16 %v3302
  %v3458 = vunpack.c.l.b16 %v3303
  %v3459 = vunpack.c.h.b16 %v3303
  %v3460 = vunpack.c.l.b16 %v3304
  %v3461 = vunpack.c.l.b16 %v3305
  %v3462 = vunpack.c.h.b16 %v3305
  %v3463 = vunpack.c.l.b16 %v3306
  %v3464 = vunpack.c.l.b16 %v3307
  %v3465 = vunpack.c.h.b16 %v3307
  %v3466 = vunpack.c.l.b16 %v3308
  %v3467 = vunpack.c.l.b16 %v3309
  %v3468 = vunpack.c.h.b16 %v3309
  %v3469 = vunpack.c.l.b16 %v3310
  %v3470 = vunpack.c.l.b16 %v3311
  %v3471 = vunpack.c.h.b16 %v3311
  %v3472 = vunpack.c.l.b16 %v3312
  %v3473 = vpack.c.b16 %v3380, %v3377
  %v3474 = vpack.c.b16 %v3381, %v3378
  %v3475 = vpack.c.b16 %v3382, %v3379
  %v3476 = vpack.c.b16 %v3386, %v3383
  %v3477 = vpack.c.b16 %v3387, %v3384
  %v3478 = vpack.c.b16 %v3388, %v3385
  %v3479 = vpack.c.b16 %v3392, %v3389
  %v3480 = vpack.c.b16 %v3393, %v3390
  %v3481 = vpack.c.b16 %v3394, %v3391
  %v3482 = vpack.c.b16 %v3398, %v3395
  %v3483 = vpack.c.b16 %v3399, %v3396
  %v3484 = vpack.c.b16 %v3400, %v3397
  %v3485 = vpack.c.b16 %v3404, %v3401
  %v3486 = vpack.c.b16 %v3405, %v3402
  %v3487 = vpack.c.b16 %v3406, %v3403
  %v3488 = vpack.c.b16 %v3410, %v3407
  %v3489 = vpack.c.b16 %v3411, %v3408
  %v3490 = vpack.c.b16 %v3412, %v3409
  %v3491 = vpack.c.b16 %v3416, %v3413
  %v3492 = vpack.c.b16 %v3417, %v3414
  %v3493 = vpack.c.b16 %v3418, %v3415
  %v3494 = vpack.c.b16 %v3422, %v3419
  %v3495 = vpack.c.b16 %v3423, %v3420
  %v3496 = vpack.c.b16 %v3424, %v3421
  %v3497 = vpack.c.b16 %v3428, %v3425
  %v3498 = vpack.c.b16 %v3429, %v3426
  %v3499 = vpack.c.b16 %v3430, %v3427
  %v3500 = vpack.c.b16 %v3434, %v3431
  %v3501 = vpack.c.b16 %v3435, %v3432
  %v3502 = vpack.c.b16 %v3436, %v3433
  %v3503 = vpack.c.b16 %v3440, %v3437
  %v3504 = vpack.c.b16 %v3441, %v3438
  %v3505 = vpack.c.b16 %v3442, %v3439
  %v3506 = vpack.c.b16 %v3446, %v3443
  %v3507 = vpack.c.b16 %v3447, %v3444
  %v3508 = vpack.c.b16 %v3448, %v3445
  %v3509 = vpack.c.b16 %v3452, %v3449
  %v3510 = vpack.c.b16 %v3453, %v3450
  %v3511 = vpack.c.b16 %v3454, %v3451
  %v3512 = vpack.c.b16 %v3458, %v3455
  %v3513 = vpack.c.b16 %v3459, %v3456
  %v3514 = vpack.c.b16 %v3460, %v3457
  %v3515 = vpack.c.b16 %v3464, %v3461
  %v3516 = vpack.c.b16 %v3465, %v3462
  %v3517 = vpack.c.b16 %v3466, %v3463
  %v3518 = vpack.c.b16 %v3470, %v3467
  %v3519 = vpack.c.b16 %v3471, %v3468
  %v3520 = vpack.c.b16 %v3472, %v3469
  %3569 = vmatprep.subr.bf16.mxu0 %v3474
  %3570 = vmatpush1.bf16.msra.mxu0 %v3473
  %3571 = vmatprep.subr.bf16.mxu0 %v3477
  %3572 = vmatpush1.bf16.msra.mxu0 %v3476
  %3573 = vmatprep.subr.bf16.mxu0 %v3480
  %3574 = vmatpush1.bf16.msra.mxu0 %v3479
  %3575 = vmatprep.subr.bf16.mxu0 %v3483
  %3576 = vmatpush1.bf16.msra.mxu0 %v3482
  %3577 = vmatprep.subr.bf16.mxu0 %v3486
  %3578 = vmatpush1.bf16.msra.mxu0 %v3485
  %3579 = vmatprep.subr.bf16.mxu0 %v3489
  %3580 = vmatpush1.bf16.msra.mxu0 %v3488
  %3581 = vmatprep.subr.bf16.mxu0 %v3492
  %3582 = vmatpush1.bf16.msra.mxu0 %v3491
  %3583 = vmatprep.subr.bf16.mxu0 %v3495
  %3584 = vmatpush1.bf16.msra.mxu0 %v3494
  %3585 = vmatprep.subr.bf16.mxu0 %v3498
  %3586 = vmatpush1.bf16.msra.mxu0 %v3497
  %3587 = vmatprep.subr.bf16.mxu0 %v3501
  %3588 = vmatpush1.bf16.msra.mxu0 %v3500
  %3589 = vmatprep.subr.bf16.mxu0 %v3504
  %3590 = vmatpush1.bf16.msra.mxu0 %v3503
  %3591 = vmatprep.subr.bf16.mxu0 %v3507
  %3592 = vmatpush1.bf16.msra.mxu0 %v3506
  %3593 = vmatprep.subr.bf16.mxu0 %v3510
  %3594 = vmatpush1.bf16.msra.mxu0 %v3509
  %3595 = vmatprep.subr.bf16.mxu0 %v3513
  %3596 = vmatpush1.bf16.msra.mxu0 %v3512
  %3597 = vmatprep.subr.bf16.mxu0 %v3516
  %3598 = vmatpush1.bf16.msra.mxu0 %v3515
  %3599 = vmatprep.subr.bf16.mxu0 %v3519
  %3600 = vmatpush1.bf16.msra.mxu0 %v3518
  %3601 = vmatprep.mubr.bf16.mxu0 %v3234
  %3602 = vmatmul.mubr.bf16.gmra.mrb[0].mxu0 %v3233
  %v3603 = vpop.f32.mrb[0].mxu0
  %v3604 = vadd.f32 0.0, %v3603
  %v3605 = vpop.f32.mrb[0].mxu0
  %v3606 = vadd.f32 0.0, %v3605
  %v3607 = vpop.f32.mrb[0].mxu0
  %v3608 = vadd.f32 0.0, %v3607
  %v3609 = vpop.f32.mrb[0].mxu0
  %v3610 = vadd.f32 0.0, %v3609
  %3611 = vmatprep.mubr.bf16.mxu0 %v3236
  %3612 = vmatmul.mubr.bf16.gmra.mrb[0].mxu0 %v3235
  %v3613 = vpop.f32.mrb[0].mxu0
  %v3614 = vadd.f32 0.0, %v3613
  %v3615 = vpop.f32.mrb[0].mxu0
  %v3616 = vadd.f32 0.0, %v3615
  %v3617 = vpop.f32.mrb[0].mxu0
  %v3618 = vadd.f32 0.0, %v3617
  %v3619 = vpop.f32.mrb[0].mxu0
  %v3620 = vadd.f32 0.0, %v3619
  %3621 = vmatprep.mubr.bf16.mxu0 %v3238
  %3622 = vmatmul.mubr.bf16.gmra.mrb[0].mxu0 %v3237
  %v3623 = vpop.f32.mrb[0].mxu0
  %v3624 = vadd.f32 0.0, %v3623
  %v3625 = vpop.f32.mrb[0].mxu0
  %v3626 = vadd.f32 0.0, %v3625
  %v3627 = vpop.f32.mrb[0].mxu0
  %v3628 = vadd.f32 0.0, %v3627
  %v3629 = vpop.f32.mrb[0].mxu0
  %v3630 = vadd.f32 0.0, %v3629
  %3631 = vmatprep.mubr.bf16.mxu0 %v3240
  %3632 = vmatmul.mubr.bf16.gmra.mrb[0].mxu0 %v3239
  %v3633 = vpop.f32.mrb[0].mxu0
  %v3634 = vadd.f32 0.0, %v3633
  %v3635 = vpop.f32.mrb[0].mxu0
  %v3636 = vadd.f32 0.0, %v3635
  %v3637 = vpop.f32.mrb[0].mxu0
  %v3638 = vadd.f32 0.0, %v3637
  %v3639 = vpop.f32.mrb[0].mxu0
  %v3640 = vadd.f32 0.0, %v3639
  %3641 = vmatprep.mubr.bf16.mxu0 %v3242
  %3642 = vmatmul.mubr.bf16.gmra.mrb[0].mxu0 %v3241
  %v3643 = vpop.f32.mrb[0].mxu0
  %v3644 = vadd.f32 0.0, %v3643
  %v3645 = vpop.f32.mrb[0].mxu0
  %v3646 = vadd.f32 0.0, %v3645
  %v3647 = vpop.f32.mrb[0].mxu0
  %v3648 = vadd.f32 0.0, %v3647
  %v3649 = vpop.f32.mrb[0].mxu0
  %v3650 = vadd.f32 0.0, %v3649
  %3651 = vmatprep.mubr.bf16.mxu0 %v3244
  %3652 = vmatmul.mubr.bf16.gmra.mrb[0].mxu0 %v3243
  %v3653 = vpop.f32.mrb[0].mxu0
  %v3654 = vadd.f32 0.0, %v3653
  %v3655 = vpop.f32.mrb[0].mxu0
  %v3656 = vadd.f32 0.0, %v3655
  %v3657 = vpop.f32.mrb[0].mxu0
  %v3658 = vadd.f32 0.0, %v3657
  %v3659 = vpop.f32.mrb[0].mxu0
  %v3660 = vadd.f32 0.0, %v3659
  %3661 = vmatprep.mubr.bf16.mxu0 %v3246
  %3662 = vmatmul.mubr.bf16.gmra.mrb[0].mxu0 %v3245
  %v3663 = vpop.f32.mrb[0].mxu0
  %v3664 = vadd.f32 0.0, %v3663
  %v3665 = vpop.f32.mrb[0].mxu0
  %v3666 = vadd.f32 0.0, %v3665
  %v3667 = vpop.f32.mrb[0].mxu0
  %v3668 = vadd.f32 0.0, %v3667
  %v3669 = vpop.f32.mrb[0].mxu0
  %v3670 = vadd.f32 0.0, %v3669
  %3671 = vmatprep.mubr.bf16.mxu0 %v3248
  %3672 = vmatmul.mubr.bf16.gmra.mrb[0].mxu0 %v3247
  %v3673 = vpop.f32.mrb[0].mxu0
  %v3674 = vadd.f32 0.0, %v3673
  %v3675 = vpop.f32.mrb[0].mxu0
  %v3676 = vadd.f32 0.0, %v3675
  %v3677 = vpop.f32.mrb[0].mxu0
  %v3678 = vadd.f32 0.0, %v3677
  %v3679 = vpop.f32.mrb[0].mxu0
  %v3680 = vadd.f32 0.0, %v3679
  %3681 = vdwg.mxu0
  %3682 = vmatprep.subr.bf16.mxu0 0
  %3683 = vmatpush1.bf16.msra.mxu0 %v3475
  %3684 = vmatprep.subr.bf16.mxu0 0
  %3685 = vmatpush1.bf16.msra.mxu0 %v3478
  %3686 = vmatprep.subr.bf16.mxu0 0
  %3687 = vmatpush1.bf16.msra.mxu0 %v3481
  %3688 = vmatprep.subr.bf16.mxu0 0
  %3689 = vmatpush1.bf16.msra.mxu0 %v3484
  %3690 = vmatprep.subr.bf16.mxu0 0
  %3691 = vmatpush1.bf16.msra.mxu0 %v3487
  %3692 = vmatprep.subr.bf16.mxu0 0
  %3693 = vmatpush1.bf16.msra.mxu0 %v3490
  %3694 = vmatprep.subr.bf16.mxu0 0
  %3695 = vmatpush1.bf16.msra.mxu0 %v3493
  %3696 = vmatprep.subr.bf16.mxu0 0
  %3697 = vmatpush1.bf16.msra.mxu0 %v3496
  %3698 = vmatprep.subr.bf16.mxu0 0
  %3699 = vmatpush1.bf16.msra.mxu0 %v3499
  %3700 = vmatprep.subr.bf16.mxu0 0
  %3701 = vmatpush1.bf16.msra.mxu0 %v3502
  %3702 = vmatprep.subr.bf16.mxu0 0
  %3703 = vmatpush1.bf16.msra.mxu0 %v3505
  %3704 = vmatprep.subr.bf16.mxu0 0
  %3705 = vmatpush1.bf16.msra.mxu0 %v3508
  %3706 = vmatprep.subr.bf16.mxu0 0
  %3707 = vmatpush1.bf16.msra.mxu0 %v3511
  %3708 = vmatprep.subr.bf16.mxu0 0
  %3709 = vmatpush1.bf16.msra.mxu0 %v3514
  %3710 = vmatprep.subr.bf16.mxu0 0
  %3711 = vmatpush1.bf16.msra.mxu0 %v3517
  %3712 = vmatprep.subr.bf16.mxu0 0
  %3713 = vmatpush1.bf16.msra.mxu0 %v3520
  %3714 = vmatprep.mubr.bf16.mxu0 %v3234
  %3715 = vmatmul.mubr.bf16.gmra.mrb[0].mxu0 %v3233
  %v3716 = vpop.f32.mrb[0].mxu0
  %v3717 = vadd.f32 0.0, %v3716
  %v3718 = vpop.f32.mrb[0].mxu0
  %v3719 = vpop.f32.mrb[0].mxu0
  %v3720 = vadd.f32 0.0, %v3719
  %v3721 = vpop.f32.mrb[0].mxu0
  %3722 = vmatprep.mubr.bf16.mxu0 %v3236
  %3723 = vmatmul.mubr.bf16.gmra.mrb[0].mxu0 %v3235
  %v3724 = vpop.f32.mrb[0].mxu0
  %v3725 = vadd.f32 0.0, %v3724
  %v3726 = vpop.f32.mrb[0].mxu0
  %v3727 = vpop.f32.mrb[0].mxu0
  %v3728 = vadd.f32 0.0, %v3727
  %v3729 = vpop.f32.mrb[0].mxu0
  %3730 = vmatprep.mubr.bf16.mxu0 %v3238
  %3731 = vmatmul.mubr.bf16.gmra.mrb[0].mxu0 %v3237
  %v3732 = vpop.f32.mrb[0].mxu0
  %v3733 = vadd.f32 0.0, %v3732
  %v3734 = vpop.f32.mrb[0].mxu0
  %v3735 = vpop.f32.mrb[0].mxu0
  %v3736 = vadd.f32 0.0, %v3735
  %v3737 = vpop.f32.mrb[0].mxu0
  %3738 = vmatprep.mubr.bf16.mxu0 %v3240
  %3739 = vmatmul.mubr.bf16.gmra.mrb[0].mxu0 %v3239
  %v3740 = vpop.f32.mrb[0].mxu0
  %v3741 = vadd.f32 0.0, %v3740
  %v3742 = vpop.f32.mrb[0].mxu0
  %v3743 = vpop.f32.mrb[0].mxu0
  %v3744 = vadd.f32 0.0, %v3743
  %v3745 = vpop.f32.mrb[0].mxu0
  %3746 = vmatprep.mubr.bf16.mxu0 %v3242
  %3747 = vmatmul.mubr.bf16.gmra.mrb[0].mxu0 %v3241
  %v3748 = vpop.f32.mrb[0].mxu0
  %v3749 = vadd.f32 0.0, %v3748
  %v3750 = vpop.f32.mrb[0].mxu0
  %v3751 = vpop.f32.mrb[0].mxu0
  %v3752 = vadd.f32 0.0, %v3751
  %v3753 = vpop.f32.mrb[0].mxu0
  %3754 = vmatprep.mubr.bf16.mxu0 %v3244
  %3755 = vmatmul.mubr.bf16.gmra.mrb[0].mxu0 %v3243
  %v3756 = vpop.f32.mrb[0].mxu0
  %v3757 = vadd.f32 0.0, %v3756
  %v3758 = vpop.f32.mrb[0].mxu0
  %v3759 = vpop.f32.mrb[0].mxu0
  %v3760 = vadd.f32 0.0, %v3759
  %v3761 = vpop.f32.mrb[0].mxu0
  %3762 = vmatprep.mubr.bf16.mxu0 %v3246
  %3763 = vmatmul.mubr.bf16.gmra.mrb[0].mxu0 %v3245
  %v3764 = vpop.f32.mrb[0].mxu0
  %v3765 = vadd.f32 0.0, %v3764
  %v3766 = vpop.f32.mrb[0].mxu0
  %v3767 = vpop.f32.mrb[0].mxu0
  %v3768 = vadd.f32 0.0, %v3767
  %v3769 = vpop.f32.mrb[0].mxu0
  %3770 = vmatprep.mubr.bf16.mxu0 %v3248
  %3771 = vmatmul.mubr.bf16.gmra.mrb[0].mxu0 %v3247
  %v3772 = vpop.f32.mrb[0].mxu0
  %v3773 = vadd.f32 0.0, %v3772
  %v3774 = vpop.f32.mrb[0].mxu0
  %v3775 = vpop.f32.mrb[0].mxu0
  %v3776 = vadd.f32 0.0, %v3775
  %v3777 = vpop.f32.mrb[0].mxu0
  %3778 = vdwg.mxu0
  %v3779 = vadd.f32 %v2908, %v3604
  %v3780 = vadd.f32 %v2909, %v3606
  %v3781 = vadd.f32 %v2910, %v3717
  %v3782 = vadd.f32 %v2911, %v3608
  %v3783 = vadd.f32 %v2912, %v3610
  %v3784 = vadd.f32 %v2913, %v3720
  %v3785 = vadd.f32 %v2914, %v3614
  %v3786 = vadd.f32 %v2915, %v3616
  %v3787 = vadd.f32 %v2916, %v3725
  %v3788 = vadd.f32 %v2917, %v3618
  %v3789 = vadd.f32 %v2918, %v3620
  %v3790 = vadd.f32 %v2919, %v3728
  %v3791 = vadd.f32 %v2920, %v3624
  %v3792 = vadd.f32 %v2921, %v3626
  %v3793 = vadd.f32 %v2922, %v3733
  %v3794 = vadd.f32 %v2923, %v3628
  %v3795 = vadd.f32 %v2924, %v3630
  %v3796 = vadd.f32 %v2925, %v3736
  %v3797 = vadd.f32 %v2926, %v3634
  %v3798 = vadd.f32 %v2927, %v3636
  %v3799 = vadd.f32 %v2928, %v3741
  %v3800 = vadd.f32 %v2929, %v3638
  %v3801 = vadd.f32 %v2930, %v3640
  %v3802 = vadd.f32 %v2931, %v3744
  %v3803 = vadd.f32 %v2932, %v3644
  %v3804 = vadd.f32 %v2933, %v3646
  %v3805 = vadd.f32 %v2934, %v3749
  %v3806 = vadd.f32 %v2935, %v3648
  %v3807 = vadd.f32 %v2936, %v3650
  %v3808 = vadd.f32 %v2937, %v3752
  %v3809 = vadd.f32 %v2938, %v3654
  %v3810 = vadd.f32 %v2939, %v3656
  %v3811 = vadd.f32 %v2940, %v3757
  %v3812 = vadd.f32 %v2941, %v3658
  %v3813 = vadd.f32 %v2942, %v3660
  %v3814 = vadd.f32 %v2943, %v3760
  %v3815 = vadd.f32 %v2944, %v3664
  %v3816 = vadd.f32 %v2945, %v3666
  %v3817 = vadd.f32 %v2946, %v3765
  %v3818 = vadd.f32 %v2947, %v3668
  %v3819 = vadd.f32 %v2948, %v3670
  %v3820 = vadd.f32 %v2949, %v3768
  %v3821 = vadd.f32 %v2950, %v3674
  %v3822 = vadd.f32 %v2951, %v3676
  %v3823 = vadd.f32 %v2952, %v3773
  %v3824 = vadd.f32 %v2953, %v3678
  %v3825 = vadd.f32 %v2954, %v3680
  %v3826 = vadd.f32 %v2955, %v3776
  %v3827 = vld [vmem:[%s4 + $0x20] sm:$0xff]
  %v3828 = vld [vmem:[%s4 + $0x48] sm:$0xff]
  %v3829 = vld [vmem:[%s4 + $0x70] sm:$0xff]
  %v3830 = vld [vmem:[%s4 + $0x98] sm:$0xff]
  %v3831 = vld [vmem:[%s5 + $0x8] sm:$0x3]
  %v3833 = vlaneseq
  %v3834 = vshrl.u32 %v3833, 7
  %v3835 = vsub.s32 0, %v3834
  %v3836 = vrot.slane %v3831, %v3835
  %v3837 = vlaneseq
  %v3838 = vshrl.u32 %v3837, 7
  %v3839 = vsub.s32 1, %v3838
  %v3840 = vrot.slane %v3831, %v3839
  %v3847 = vunpack.c.l.b16 %v3827
  %v3848 = vunpack.c.h.b16 %v3827
  %v3849 = vunpack.c.l.b16 %v3828
  %v3850 = vunpack.c.h.b16 %v3828
  %v3851 = vunpack.c.l.b16 %v3829
  %v3852 = vunpack.c.h.b16 %v3829
  %v3853 = vunpack.c.l.b16 %v3830
  %v3854 = vunpack.c.h.b16 %v3830
  %v3855 = vpack.c.b16 %v3849, %v3847
  %v3856 = vpack.c.b16 %v3850, %v3848
  %v3857 = vpack.c.b16 %v3853, %v3851
  %v3858 = vpack.c.b16 %v3854, %v3852
  %3863 = vmatprep.subr.bf16.mxu0 %v3856
  %3864 = vmatpush1.bf16.msra.mxu0 %v3855
  %3865 = vmatprep.subr.bf16.mxu0 %v3858
  %3866 = vmatpush1.bf16.msra.mxu0 %v3857
  %3867 = vmatprep.subr.bf16.mxu0 0
  %3868 = vmatpush1.bf16.msra.mxu0 0
  %3869 = vmatprep.subr.bf16.mxu0 0
  %3870 = vmatpush1.bf16.msra.mxu0 0
  %3871 = vmatprep.subr.bf16.mxu0 0
  %3872 = vmatpush1.bf16.msra.mxu0 0
  %3873 = vmatprep.subr.bf16.mxu0 0
  %3874 = vmatpush1.bf16.msra.mxu0 0
  %3875 = vmatprep.subr.bf16.mxu0 0
  %3876 = vmatpush1.bf16.msra.mxu0 0
  %3877 = vmatprep.subr.bf16.mxu0 0
  %3878 = vmatpush1.bf16.msra.mxu0 0
  %3879 = vmatprep.subr.bf16.mxu0 0
  %3880 = vmatpush1.bf16.msra.mxu0 0
  %3881 = vmatprep.subr.bf16.mxu0 0
  %3882 = vmatpush1.bf16.msra.mxu0 0
  %3883 = vmatprep.subr.bf16.mxu0 0
  %3884 = vmatpush1.bf16.msra.mxu0 0
  %3885 = vmatprep.subr.bf16.mxu0 0
  %3886 = vmatpush1.bf16.msra.mxu0 0
  %3887 = vmatprep.subr.bf16.mxu0 0
  %3888 = vmatpush1.bf16.msra.mxu0 0
  %3889 = vmatprep.subr.bf16.mxu0 0
  %3890 = vmatpush1.bf16.msra.mxu0 0
  %3891 = vmatprep.subr.bf16.mxu0 0
  %3892 = vmatpush1.bf16.msra.mxu0 0
  %3893 = vmatprep.subr.bf16.mxu0 0
  %3894 = vmatpush1.bf16.msra.mxu0 0
  %3895 = vmatprep.mubr.bf16.mxu0 0
  %3896 = vmatmul.mubr.bf16.gmra.mrb[0].mxu0 %v452
  %v3897 = vpop.f32.mrb[0].mxu0
  %v3898 = vadd.f32 %v3836, %v3897
  %v3899 = vpop.f32.mrb[0].mxu0
  %v3900 = vadd.f32 %v3840, %v3899
  %v3901 = vpop.f32.mrb[0].mxu0
  %v3902 = vadd.f32 %v3836, %v3901
  %v3903 = vpop.f32.mrb[0].mxu0
  %v3904 = vadd.f32 %v3840, %v3903
  %3905 = vmatprep.mubr.bf16.mxu0 0
  %3906 = vmatmul.mubr.bf16.gmra.mrb[0].mxu0 %v455
  %v3907 = vpop.f32.mrb[0].mxu0
  %v3908 = vadd.f32 %v3836, %v3907
  %v3909 = vpop.f32.mrb[0].mxu0
  %v3910 = vadd.f32 %v3840, %v3909
  %v3911 = vpop.f32.mrb[0].mxu0
  %v3912 = vadd.f32 %v3836, %v3911
  %v3913 = vpop.f32.mrb[0].mxu0
  %v3914 = vadd.f32 %v3840, %v3913
  %3915 = vmatprep.mubr.bf16.mxu0 0
  %3916 = vmatmul.mubr.bf16.gmra.mrb[0].mxu0 %v458
  %v3917 = vpop.f32.mrb[0].mxu0
  %v3918 = vadd.f32 %v3836, %v3917
  %v3919 = vpop.f32.mrb[0].mxu0
  %v3920 = vadd.f32 %v3840, %v3919
  %v3921 = vpop.f32.mrb[0].mxu0
  %v3922 = vadd.f32 %v3836, %v3921
  %v3923 = vpop.f32.mrb[0].mxu0
  %v3924 = vadd.f32 %v3840, %v3923
  %3925 = vmatprep.mubr.bf16.mxu0 0
  %3926 = vmatmul.mubr.bf16.gmra.mrb[0].mxu0 %v461
  %v3927 = vpop.f32.mrb[0].mxu0
  %v3928 = vadd.f32 %v3836, %v3927
  %v3929 = vpop.f32.mrb[0].mxu0
  %v3930 = vadd.f32 %v3840, %v3929
  %v3931 = vpop.f32.mrb[0].mxu0
  %v3932 = vadd.f32 %v3836, %v3931
  %v3933 = vpop.f32.mrb[0].mxu0
  %v3934 = vadd.f32 %v3840, %v3933
  %3935 = vmatprep.mubr.bf16.mxu0 0
  %3936 = vmatmul.mubr.bf16.gmra.mrb[0].mxu0 %v464
  %v3937 = vpop.f32.mrb[0].mxu0
  %v3938 = vadd.f32 %v3836, %v3937
  %v3939 = vpop.f32.mrb[0].mxu0
  %v3940 = vadd.f32 %v3840, %v3939
  %v3941 = vpop.f32.mrb[0].mxu0
  %v3942 = vadd.f32 %v3836, %v3941
  %v3943 = vpop.f32.mrb[0].mxu0
  %v3944 = vadd.f32 %v3840, %v3943
  %3945 = vmatprep.mubr.bf16.mxu0 0
  %3946 = vmatmul.mubr.bf16.gmra.mrb[0].mxu0 %v467
  %v3947 = vpop.f32.mrb[0].mxu0
  %v3948 = vadd.f32 %v3836, %v3947
  %v3949 = vpop.f32.mrb[0].mxu0
  %v3950 = vadd.f32 %v3840, %v3949
  %v3951 = vpop.f32.mrb[0].mxu0
  %v3952 = vadd.f32 %v3836, %v3951
  %v3953 = vpop.f32.mrb[0].mxu0
  %v3954 = vadd.f32 %v3840, %v3953
  %3955 = vmatprep.mubr.bf16.mxu0 0
  %3956 = vmatmul.mubr.bf16.gmra.mrb[0].mxu0 %v470
  %v3957 = vpop.f32.mrb[0].mxu0
  %v3958 = vadd.f32 %v3836, %v3957
  %v3959 = vpop.f32.mrb[0].mxu0
  %v3960 = vadd.f32 %v3840, %v3959
  %v3961 = vpop.f32.mrb[0].mxu0
  %v3962 = vadd.f32 %v3836, %v3961
  %v3963 = vpop.f32.mrb[0].mxu0
  %v3964 = vadd.f32 %v3840, %v3963
  %3965 = vmatprep.mubr.bf16.mxu0 0
  %3966 = vmatmul.mubr.bf16.gmra.mrb[0].mxu0 %v473
  %v3967 = vpop.f32.mrb[0].mxu0
  %v3968 = vadd.f32 %v3836, %v3967
  %v3969 = vpop.f32.mrb[0].mxu0
  %v3970 = vadd.f32 %v3840, %v3969
  %v3971 = vpop.f32.mrb[0].mxu0
  %v3972 = vadd.f32 %v3836, %v3971
  %v3973 = vpop.f32.mrb[0].mxu0
  %v3974 = vadd.f32 %v3840, %v3973
  %3975 = vdwg.mxu0
  %v3976 = vpack.c.bf16 %v3902, %v3898
  %v3977 = vpack.c.bf16 %v3904, %v3900
  %v3978 = vpack.c.bf16 %v3912, %v3908
  %v3979 = vpack.c.bf16 %v3914, %v3910
  %v3980 = vpack.c.bf16 %v3922, %v3918
  %v3981 = vpack.c.bf16 %v3924, %v3920
  %v3982 = vpack.c.bf16 %v3932, %v3928
  %v3983 = vpack.c.bf16 %v3934, %v3930
  %v3984 = vpack.c.bf16 %v3942, %v3938
  %v3985 = vpack.c.bf16 %v3944, %v3940
  %v3986 = vpack.c.bf16 %v3952, %v3948
  %v3987 = vpack.c.bf16 %v3954, %v3950
  %v3988 = vpack.c.bf16 %v3962, %v3958
  %v3989 = vpack.c.bf16 %v3964, %v3960
  %v3990 = vpack.c.bf16 %v3972, %v3968
  %v3991 = vpack.c.bf16 %v3974, %v3970
  %v3992 = vxor.u32 %v3976, 2147516416
  %v3993 = vxor.u32 %v3977, 2147516416
  %v3994 = vxor.u32 %v3978, 2147516416
  %v3995 = vxor.u32 %v3979, 2147516416
  %v3996 = vxor.u32 %v3980, 2147516416
  %v3997 = vxor.u32 %v3981, 2147516416
  %v3998 = vxor.u32 %v3982, 2147516416
  %v3999 = vxor.u32 %v3983, 2147516416
  %v4000 = vxor.u32 %v3984, 2147516416
  %v4001 = vxor.u32 %v3985, 2147516416
  %v4002 = vxor.u32 %v3986, 2147516416
  %v4003 = vxor.u32 %v3987, 2147516416
  %v4004 = vxor.u32 %v3988, 2147516416
  %v4005 = vxor.u32 %v3989, 2147516416
  %v4006 = vxor.u32 %v3990, 2147516416
  %v4007 = vxor.u32 %v3991, 2147516416
  %v4009 = vmul.bf16 %v3992, 1069105081
  %v4010 = vpow.bf16.pop %v4009
  %v4012 = vmul.bf16 %v3993, 1069105081
  %v4013 = vpow.bf16.pop %v4012
  %v4015 = vmul.bf16 %v3994, 1069105081
  %v4016 = vpow.bf16.pop %v4015
  %v4018 = vmul.bf16 %v3995, 1069105081
  %v4019 = vpow.bf16.pop %v4018
  %v4021 = vmul.bf16 %v3996, 1069105081
  %v4022 = vpow.bf16.pop %v4021
  %v4024 = vmul.bf16 %v3997, 1069105081
  %v4025 = vpow.bf16.pop %v4024
  %v4027 = vmul.bf16 %v3998, 1069105081
  %v4028 = vpow.bf16.pop %v4027
  %v4030 = vmul.bf16 %v3999, 1069105081
  %v4031 = vpow.bf16.pop %v4030
  %v4033 = vmul.bf16 %v4000, 1069105081
  %v4034 = vpow.bf16.pop %v4033
  %v4036 = vmul.bf16 %v4001, 1069105081
  %v4037 = vpow.bf16.pop %v4036
  %v4039 = vmul.bf16 %v4002, 1069105081
  %v4040 = vpow.bf16.pop %v4039
  %v4042 = vmul.bf16 %v4003, 1069105081
  %v4043 = vpow.bf16.pop %v4042
  %v4045 = vmul.bf16 %v4004, 1069105081
  %v4046 = vpow.bf16.pop %v4045
  %v4048 = vmul.bf16 %v4005, 1069105081
  %v4049 = vpow.bf16.pop %v4048
  %v4051 = vmul.bf16 %v4006, 1069105081
  %v4052 = vpow.bf16.pop %v4051
  %v4054 = vmul.bf16 %v4007, 1069105081
  %v4055 = vpow.bf16.pop %v4054
  %v4056 = vadd.bf16 %v4010, 1065369472
  %v4057 = vadd.bf16 %v4013, 1065369472
  %v4058 = vadd.bf16 %v4016, 1065369472
  %v4059 = vadd.bf16 %v4019, 1065369472
  %v4060 = vadd.bf16 %v4022, 1065369472
  %v4061 = vadd.bf16 %v4025, 1065369472
  %v4062 = vadd.bf16 %v4028, 1065369472
  %v4063 = vadd.bf16 %v4031, 1065369472
  %v4064 = vadd.bf16 %v4034, 1065369472
  %v4065 = vadd.bf16 %v4037, 1065369472
  %v4066 = vadd.bf16 %v4040, 1065369472
  %v4067 = vadd.bf16 %v4043, 1065369472
  %v4068 = vadd.bf16 %v4046, 1065369472
  %v4069 = vadd.bf16 %v4049, 1065369472
  %v4070 = vadd.bf16 %v4052, 1065369472
  %v4071 = vadd.bf16 %v4055, 1065369472
  %v4072 = vrcp.bf16.pop %v4056
  %v4073 = vmul.bf16 1065369472, %v4072
  %v4074 = vrcp.bf16.pop %v4057
  %v4075 = vmul.bf16 1065369472, %v4074
  %v4076 = vrcp.bf16.pop %v4058
  %v4077 = vmul.bf16 1065369472, %v4076
  %v4078 = vrcp.bf16.pop %v4059
  %v4079 = vmul.bf16 1065369472, %v4078
  %v4080 = vrcp.bf16.pop %v4060
  %v4081 = vmul.bf16 1065369472, %v4080
  %v4082 = vrcp.bf16.pop %v4061
  %v4083 = vmul.bf16 1065369472, %v4082
  %v4084 = vrcp.bf16.pop %v4062
  %v4085 = vmul.bf16 1065369472, %v4084
  %v4086 = vrcp.bf16.pop %v4063
  %v4087 = vmul.bf16 1065369472, %v4086
  %v4088 = vrcp.bf16.pop %v4064
  %v4089 = vmul.bf16 1065369472, %v4088
  %v4090 = vrcp.bf16.pop %v4065
  %v4091 = vmul.bf16 1065369472, %v4090
  %v4092 = vrcp.bf16.pop %v4066
  %v4093 = vmul.bf16 1065369472, %v4092
  %v4094 = vrcp.bf16.pop %v4067
  %v4095 = vmul.bf16 1065369472, %v4094
  %v4096 = vrcp.bf16.pop %v4068
  %v4097 = vmul.bf16 1065369472, %v4096
  %v4098 = vrcp.bf16.pop %v4069
  %v4099 = vmul.bf16 1065369472, %v4098
  %v4100 = vrcp.bf16.pop %v4070
  %v4101 = vmul.bf16 1065369472, %v4100
  %v4102 = vrcp.bf16.pop %v4071
  %v4103 = vmul.bf16 1065369472, %v4102
  %v4104 = vmul.bf16 %v3976, %v4073
  %v4105 = vmul.bf16 %v3977, %v4075
  %v4106 = vmul.bf16 %v3978, %v4077
  %v4107 = vmul.bf16 %v3979, %v4079
  %v4108 = vmul.bf16 %v3980, %v4081
  %v4109 = vmul.bf16 %v3981, %v4083
  %v4110 = vmul.bf16 %v3982, %v4085
  %v4111 = vmul.bf16 %v3983, %v4087
  %v4112 = vmul.bf16 %v3984, %v4089
  %v4113 = vmul.bf16 %v3985, %v4091
  %v4114 = vmul.bf16 %v3986, %v4093
  %v4115 = vmul.bf16 %v3987, %v4095
  %v4116 = vmul.bf16 %v3988, %v4097
  %v4117 = vmul.bf16 %v3989, %v4099
  %v4118 = vmul.bf16 %v3990, %v4101
  %v4119 = vmul.bf16 %v3991, %v4103
  %v4120 = vld [vmem:[%s6 + $0x600] sm:$0xff]
  %v4121 = vld [vmem:[%s6 + $0x608] sm:$0xf]
  %v4122 = vld [vmem:[%s6 + $0x60c] sm:$0xff]
  %v4123 = vld [vmem:[%s6 + $0x614] sm:$0xf]
  %v4124 = vld [vmem:[%s6 + $0x618] sm:$0xff]
  %v4125 = vld [vmem:[%s6 + $0x620] sm:$0xf]
  %v4126 = vld [vmem:[%s6 + $0x624] sm:$0xff]
  %v4127 = vld [vmem:[%s6 + $0x62c] sm:$0xf]
  %v4128 = vld [vmem:[%s6 + $0x630] sm:$0xff]
  %v4129 = vld [vmem:[%s6 + $0x638] sm:$0xf]
  %v4130 = vld [vmem:[%s6 + $0x63c] sm:$0xff]
  %v4131 = vld [vmem:[%s6 + $0x644] sm:$0xf]
  %v4132 = vld [vmem:[%s6 + $0x648] sm:$0xff]
  %v4133 = vld [vmem:[%s6 + $0x650] sm:$0xf]
  %v4134 = vld [vmem:[%s6 + $0x654] sm:$0xff]
  %v4135 = vld [vmem:[%s6 + $0x65c] sm:$0xf]
  %v4136 = vld [vmem:[%s6 + $0x660] sm:$0xff]
  %v4137 = vld [vmem:[%s6 + $0x668] sm:$0xf]
  %v4138 = vld [vmem:[%s6 + $0x66c] sm:$0xff]
  %v4139 = vld [vmem:[%s6 + $0x674] sm:$0xf]
  %v4140 = vld [vmem:[%s6 + $0x678] sm:$0xff]
  %v4141 = vld [vmem:[%s6 + $0x680] sm:$0xf]
  %v4142 = vld [vmem:[%s6 + $0x684] sm:$0xff]
  %v4143 = vld [vmem:[%s6 + $0x68c] sm:$0xf]
  %v4144 = vld [vmem:[%s6 + $0x690] sm:$0xff]
  %v4145 = vld [vmem:[%s6 + $0x698] sm:$0xf]
  %v4146 = vld [vmem:[%s6 + $0x69c] sm:$0xff]
  %v4147 = vld [vmem:[%s6 + $0x6a4] sm:$0xf]
  %v4148 = vld [vmem:[%s6 + $0x6a8] sm:$0xff]
  %v4149 = vld [vmem:[%s6 + $0x6b0] sm:$0xf]
  %v4150 = vld [vmem:[%s6 + $0x6b4] sm:$0xff]
  %v4151 = vld [vmem:[%s6 + $0x6bc] sm:$0xf]
  %v4152 = vld [vmem:[%s6 + $0x6c0] sm:$0xff]
  %v4153 = vld [vmem:[%s6 + $0x6c8] sm:$0xf]
  %v4154 = vld [vmem:[%s6 + $0x6cc] sm:$0xff]
  %v4155 = vld [vmem:[%s6 + $0x6d4] sm:$0xf]
  %v4156 = vld [vmem:[%s6 + $0x6d8] sm:$0xff]
  %v4157 = vld [vmem:[%s6 + $0x6e0] sm:$0xf]
  %v4158 = vld [vmem:[%s6 + $0x6e4] sm:$0xff]
  %v4159 = vld [vmem:[%s6 + $0x6ec] sm:$0xf]
  %v4160 = vld [vmem:[%s6 + $0x6f0] sm:$0xff]
  %v4161 = vld [vmem:[%s6 + $0x6f8] sm:$0xf]
  %v4162 = vld [vmem:[%s6 + $0x6fc] sm:$0xff]
  %v4163 = vld [vmem:[%s6 + $0x704] sm:$0xf]
  %v4164 = vld [vmem:[%s6 + $0x708] sm:$0xff]
  %v4165 = vld [vmem:[%s6 + $0x710] sm:$0xf]
  %v4166 = vld [vmem:[%s6 + $0x714] sm:$0xff]
  %v4167 = vld [vmem:[%s6 + $0x71c] sm:$0xf]
  %v4168 = vld [vmem:[%s6 + $0x720] sm:$0xff]
  %v4169 = vld [vmem:[%s6 + $0x728] sm:$0xf]
  %v4170 = vld [vmem:[%s6 + $0x72c] sm:$0xff]
  %v4171 = vld [vmem:[%s6 + $0x734] sm:$0xf]
  %v4172 = vld [vmem:[%s6 + $0x738] sm:$0xff]
  %v4173 = vld [vmem:[%s6 + $0x740] sm:$0xf]
  %v4174 = vld [vmem:[%s6 + $0x744] sm:$0xff]
  %v4175 = vld [vmem:[%s6 + $0x74c] sm:$0xf]
  %v4176 = vld [vmem:[%s6 + $0x750] sm:$0xff]
  %v4177 = vld [vmem:[%s6 + $0x758] sm:$0xf]
  %v4178 = vld [vmem:[%s6 + $0x75c] sm:$0xff]
  %v4179 = vld [vmem:[%s6 + $0x764] sm:$0xf]
  %v4180 = vld [vmem:[%s6 + $0x768] sm:$0xff]
  %v4181 = vld [vmem:[%s6 + $0x770] sm:$0xf]
  %v4182 = vld [vmem:[%s6 + $0x774] sm:$0xff]
  %v4183 = vld [vmem:[%s6 + $0x77c] sm:$0xf]
  %v4248 = vunpack.c.l.b16 %v4120
  %v4249 = vunpack.c.h.b16 %v4120
  %v4250 = vunpack.c.l.b16 %v4121
  %v4251 = vunpack.c.l.b16 %v4122
  %v4252 = vunpack.c.h.b16 %v4122
  %v4253 = vunpack.c.l.b16 %v4123
  %v4254 = vunpack.c.l.b16 %v4124
  %v4255 = vunpack.c.h.b16 %v4124
  %v4256 = vunpack.c.l.b16 %v4125
  %v4257 = vunpack.c.l.b16 %v4126
  %v4258 = vunpack.c.h.b16 %v4126
  %v4259 = vunpack.c.l.b16 %v4127
  %v4260 = vunpack.c.l.b16 %v4128
  %v4261 = vunpack.c.h.b16 %v4128
  %v4262 = vunpack.c.l.b16 %v4129
  %v4263 = vunpack.c.l.b16 %v4130
  %v4264 = vunpack.c.h.b16 %v4130
  %v4265 = vunpack.c.l.b16 %v4131
  %v4266 = vunpack.c.l.b16 %v4132
  %v4267 = vunpack.c.h.b16 %v4132
  %v4268 = vunpack.c.l.b16 %v4133
  %v4269 = vunpack.c.l.b16 %v4134
  %v4270 = vunpack.c.h.b16 %v4134
  %v4271 = vunpack.c.l.b16 %v4135
  %v4272 = vunpack.c.l.b16 %v4136
  %v4273 = vunpack.c.h.b16 %v4136
  %v4274 = vunpack.c.l.b16 %v4137
  %v4275 = vunpack.c.l.b16 %v4138
  %v4276 = vunpack.c.h.b16 %v4138
  %v4277 = vunpack.c.l.b16 %v4139
  %v4278 = vunpack.c.l.b16 %v4140
  %v4279 = vunpack.c.h.b16 %v4140
  %v4280 = vunpack.c.l.b16 %v4141
  %v4281 = vunpack.c.l.b16 %v4142
  %v4282 = vunpack.c.h.b16 %v4142
  %v4283 = vunpack.c.l.b16 %v4143
  %v4284 = vunpack.c.l.b16 %v4144
  %v4285 = vunpack.c.h.b16 %v4144
  %v4286 = vunpack.c.l.b16 %v4145
  %v4287 = vunpack.c.l.b16 %v4146
  %v4288 = vunpack.c.h.b16 %v4146
  %v4289 = vunpack.c.l.b16 %v4147
  %v4290 = vunpack.c.l.b16 %v4148
  %v4291 = vunpack.c.h.b16 %v4148
  %v4292 = vunpack.c.l.b16 %v4149
  %v4293 = vunpack.c.l.b16 %v4150
  %v4294 = vunpack.c.h.b16 %v4150
  %v4295 = vunpack.c.l.b16 %v4151
  %v4296 = vunpack.c.l.b16 %v4152
  %v4297 = vunpack.c.h.b16 %v4152
  %v4298 = vunpack.c.l.b16 %v4153
  %v4299 = vunpack.c.l.b16 %v4154
  %v4300 = vunpack.c.h.b16 %v4154
  %v4301 = vunpack.c.l.b16 %v4155
  %v4302 = vunpack.c.l.b16 %v4156
  %v4303 = vunpack.c.h.b16 %v4156
  %v4304 = vunpack.c.l.b16 %v4157
  %v4305 = vunpack.c.l.b16 %v4158
  %v4306 = vunpack.c.h.b16 %v4158
  %v4307 = vunpack.c.l.b16 %v4159
  %v4308 = vunpack.c.l.b16 %v4160
  %v4309 = vunpack.c.h.b16 %v4160
  %v4310 = vunpack.c.l.b16 %v4161
  %v4311 = vunpack.c.l.b16 %v4162
  %v4312 = vunpack.c.h.b16 %v4162
  %v4313 = vunpack.c.l.b16 %v4163
  %v4314 = vunpack.c.l.b16 %v4164
  %v4315 = vunpack.c.h.b16 %v4164
  %v4316 = vunpack.c.l.b16 %v4165
  %v4317 = vunpack.c.l.b16 %v4166
  %v4318 = vunpack.c.h.b16 %v4166
  %v4319 = vunpack.c.l.b16 %v4167
  %v4320 = vunpack.c.l.b16 %v4168
  %v4321 = vunpack.c.h.b16 %v4168
  %v4322 = vunpack.c.l.b16 %v4169
  %v4323 = vunpack.c.l.b16 %v4170
  %v4324 = vunpack.c.h.b16 %v4170
  %v4325 = vunpack.c.l.b16 %v4171
  %v4326 = vunpack.c.l.b16 %v4172
  %v4327 = vunpack.c.h.b16 %v4172
  %v4328 = vunpack.c.l.b16 %v4173
  %v4329 = vunpack.c.l.b16 %v4174
  %v4330 = vunpack.c.h.b16 %v4174
  %v4331 = vunpack.c.l.b16 %v4175
  %v4332 = vunpack.c.l.b16 %v4176
  %v4333 = vunpack.c.h.b16 %v4176
  %v4334 = vunpack.c.l.b16 %v4177
  %v4335 = vunpack.c.l.b16 %v4178
  %v4336 = vunpack.c.h.b16 %v4178
  %v4337 = vunpack.c.l.b16 %v4179
  %v4338 = vunpack.c.l.b16 %v4180
  %v4339 = vunpack.c.h.b16 %v4180
  %v4340 = vunpack.c.l.b16 %v4181
  %v4341 = vunpack.c.l.b16 %v4182
  %v4342 = vunpack.c.h.b16 %v4182
  %v4343 = vunpack.c.l.b16 %v4183
  %v4344 = vpack.c.b16 %v4251, %v4248
  %v4345 = vpack.c.b16 %v4252, %v4249
  %v4346 = vpack.c.b16 %v4253, %v4250
  %v4347 = vpack.c.b16 %v4257, %v4254
  %v4348 = vpack.c.b16 %v4258, %v4255
  %v4349 = vpack.c.b16 %v4259, %v4256
  %v4350 = vpack.c.b16 %v4263, %v4260
  %v4351 = vpack.c.b16 %v4264, %v4261
  %v4352 = vpack.c.b16 %v4265, %v4262
  %v4353 = vpack.c.b16 %v4269, %v4266
  %v4354 = vpack.c.b16 %v4270, %v4267
  %v4355 = vpack.c.b16 %v4271, %v4268
  %v4356 = vpack.c.b16 %v4275, %v4272
  %v4357 = vpack.c.b16 %v4276, %v4273
  %v4358 = vpack.c.b16 %v4277, %v4274
  %v4359 = vpack.c.b16 %v4281, %v4278
  %v4360 = vpack.c.b16 %v4282, %v4279
  %v4361 = vpack.c.b16 %v4283, %v4280
  %v4362 = vpack.c.b16 %v4287, %v4284
  %v4363 = vpack.c.b16 %v4288, %v4285
  %v4364 = vpack.c.b16 %v4289, %v4286
  %v4365 = vpack.c.b16 %v4293, %v4290
  %v4366 = vpack.c.b16 %v4294, %v4291
  %v4367 = vpack.c.b16 %v4295, %v4292
  %v4368 = vpack.c.b16 %v4299, %v4296
  %v4369 = vpack.c.b16 %v4300, %v4297
  %v4370 = vpack.c.b16 %v4301, %v4298
  %v4371 = vpack.c.b16 %v4305, %v4302
  %v4372 = vpack.c.b16 %v4306, %v4303
  %v4373 = vpack.c.b16 %v4307, %v4304
  %v4374 = vpack.c.b16 %v4311, %v4308
  %v4375 = vpack.c.b16 %v4312, %v4309
  %v4376 = vpack.c.b16 %v4313, %v4310
  %v4377 = vpack.c.b16 %v4317, %v4314
  %v4378 = vpack.c.b16 %v4318, %v4315
  %v4379 = vpack.c.b16 %v4319, %v4316
  %v4380 = vpack.c.b16 %v4323, %v4320
  %v4381 = vpack.c.b16 %v4324, %v4321
  %v4382 = vpack.c.b16 %v4325, %v4322
  %v4383 = vpack.c.b16 %v4329, %v4326
  %v4384 = vpack.c.b16 %v4330, %v4327
  %v4385 = vpack.c.b16 %v4331, %v4328
  %v4386 = vpack.c.b16 %v4335, %v4332
  %v4387 = vpack.c.b16 %v4336, %v4333
  %v4388 = vpack.c.b16 %v4337, %v4334
  %v4389 = vpack.c.b16 %v4341, %v4338
  %v4390 = vpack.c.b16 %v4342, %v4339
  %v4391 = vpack.c.b16 %v4343, %v4340
  %4440 = vmatprep.subr.bf16.mxu0 %v4345
  %4441 = vmatpush1.bf16.msra.mxu0 %v4344
  %4442 = vmatprep.subr.bf16.mxu0 %v4348
  %4443 = vmatpush1.bf16.msra.mxu0 %v4347
  %4444 = vmatprep.subr.bf16.mxu0 %v4351
  %4445 = vmatpush1.bf16.msra.mxu0 %v4350
  %4446 = vmatprep.subr.bf16.mxu0 %v4354
  %4447 = vmatpush1.bf16.msra.mxu0 %v4353
  %4448 = vmatprep.subr.bf16.mxu0 %v4357
  %4449 = vmatpush1.bf16.msra.mxu0 %v4356
  %4450 = vmatprep.subr.bf16.mxu0 %v4360
  %4451 = vmatpush1.bf16.msra.mxu0 %v4359
  %4452 = vmatprep.subr.bf16.mxu0 %v4363
  %4453 = vmatpush1.bf16.msra.mxu0 %v4362
  %4454 = vmatprep.subr.bf16.mxu0 %v4366
  %4455 = vmatpush1.bf16.msra.mxu0 %v4365
  %4456 = vmatprep.subr.bf16.mxu0 %v4369
  %4457 = vmatpush1.bf16.msra.mxu0 %v4368
  %4458 = vmatprep.subr.bf16.mxu0 %v4372
  %4459 = vmatpush1.bf16.msra.mxu0 %v4371
  %4460 = vmatprep.subr.bf16.mxu0 %v4375
  %4461 = vmatpush1.bf16.msra.mxu0 %v4374
  %4462 = vmatprep.subr.bf16.mxu0 %v4378
  %4463 = vmatpush1.bf16.msra.mxu0 %v4377
  %4464 = vmatprep.subr.bf16.mxu0 %v4381
  %4465 = vmatpush1.bf16.msra.mxu0 %v4380
  %4466 = vmatprep.subr.bf16.mxu0 %v4384
  %4467 = vmatpush1.bf16.msra.mxu0 %v4383
  %4468 = vmatprep.subr.bf16.mxu0 %v4387
  %4469 = vmatpush1.bf16.msra.mxu0 %v4386
  %4470 = vmatprep.subr.bf16.mxu0 %v4390
  %4471 = vmatpush1.bf16.msra.mxu0 %v4389
  %4472 = vmatprep.mubr.bf16.mxu0 %v4105
  %4473 = vmatmul.mubr.bf16.gmra.mrb[0].mxu0 %v4104
  %v4474 = vpop.f32.mrb[0].mxu0
  %v4475 = vadd.f32 0.0, %v4474
  %v4476 = vpop.f32.mrb[0].mxu0
  %v4477 = vadd.f32 0.0, %v4476
  %v4478 = vpop.f32.mrb[0].mxu0
  %v4479 = vadd.f32 0.0, %v4478
  %v4480 = vpop.f32.mrb[0].mxu0
  %v4481 = vadd.f32 0.0, %v4480
  %4482 = vmatprep.mubr.bf16.mxu0 %v4107
  %4483 = vmatmul.mubr.bf16.gmra.mrb[0].mxu0 %v4106
  %v4484 = vpop.f32.mrb[0].mxu0
  %v4485 = vadd.f32 0.0, %v4484
  %v4486 = vpop.f32.mrb[0].mxu0
  %v4487 = vadd.f32 0.0, %v4486
  %v4488 = vpop.f32.mrb[0].mxu0
  %v4489 = vadd.f32 0.0, %v4488
  %v4490 = vpop.f32.mrb[0].mxu0
  %v4491 = vadd.f32 0.0, %v4490
  %4492 = vmatprep.mubr.bf16.mxu0 %v4109
  %4493 = vmatmul.mubr.bf16.gmra.mrb[0].mxu0 %v4108
  %v4494 = vpop.f32.mrb[0].mxu0
  %v4495 = vadd.f32 0.0, %v4494
  %v4496 = vpop.f32.mrb[0].mxu0
  %v4497 = vadd.f32 0.0, %v4496
  %v4498 = vpop.f32.mrb[0].mxu0
  %v4499 = vadd.f32 0.0, %v4498
  %v4500 = vpop.f32.mrb[0].mxu0
  %v4501 = vadd.f32 0.0, %v4500
  %4502 = vmatprep.mubr.bf16.mxu0 %v4111
  %4503 = vmatmul.mubr.bf16.gmra.mrb[0].mxu0 %v4110
  %v4504 = vpop.f32.mrb[0].mxu0
  %v4505 = vadd.f32 0.0, %v4504
  %v4506 = vpop.f32.mrb[0].mxu0
  %v4507 = vadd.f32 0.0, %v4506
  %v4508 = vpop.f32.mrb[0].mxu0
  %v4509 = vadd.f32 0.0, %v4508
  %v4510 = vpop.f32.mrb[0].mxu0
  %v4511 = vadd.f32 0.0, %v4510
  %4512 = vmatprep.mubr.bf16.mxu0 %v4113
  %4513 = vmatmul.mubr.bf16.gmra.mrb[0].mxu0 %v4112
  %v4514 = vpop.f32.mrb[0].mxu0
  %v4515 = vadd.f32 0.0, %v4514
  %v4516 = vpop.f32.mrb[0].mxu0
  %v4517 = vadd.f32 0.0, %v4516
  %v4518 = vpop.f32.mrb[0].mxu0
  %v4519 = vadd.f32 0.0, %v4518
  %v4520 = vpop.f32.mrb[0].mxu0
  %v4521 = vadd.f32 0.0, %v4520
  %4522 = vmatprep.mubr.bf16.mxu0 %v4115
  %4523 = vmatmul.mubr.bf16.gmra.mrb[0].mxu0 %v4114
  %v4524 = vpop.f32.mrb[0].mxu0
  %v4525 = vadd.f32 0.0, %v4524
  %v4526 = vpop.f32.mrb[0].mxu0
  %v4527 = vadd.f32 0.0, %v4526
  %v4528 = vpop.f32.mrb[0].mxu0
  %v4529 = vadd.f32 0.0, %v4528
  %v4530 = vpop.f32.mrb[0].mxu0
  %v4531 = vadd.f32 0.0, %v4530
  %4532 = vmatprep.mubr.bf16.mxu0 %v4117
  %4533 = vmatmul.mubr.bf16.gmra.mrb[0].mxu0 %v4116
  %v4534 = vpop.f32.mrb[0].mxu0
  %v4535 = vadd.f32 0.0, %v4534
  %v4536 = vpop.f32.mrb[0].mxu0
  %v4537 = vadd.f32 0.0, %v4536
  %v4538 = vpop.f32.mrb[0].mxu0
  %v4539 = vadd.f32 0.0, %v4538
  %v4540 = vpop.f32.mrb[0].mxu0
  %v4541 = vadd.f32 0.0, %v4540
  %4542 = vmatprep.mubr.bf16.mxu0 %v4119
  %4543 = vmatmul.mubr.bf16.gmra.mrb[0].mxu0 %v4118
  %v4544 = vpop.f32.mrb[0].mxu0
  %v4545 = vadd.f32 0.0, %v4544
  %v4546 = vpop.f32.mrb[0].mxu0
  %v4547 = vadd.f32 0.0, %v4546
  %v4548 = vpop.f32.mrb[0].mxu0
  %v4549 = vadd.f32 0.0, %v4548
  %v4550 = vpop.f32.mrb[0].mxu0
  %v4551 = vadd.f32 0.0, %v4550
  %4552 = vdwg.mxu0
  %4553 = vmatprep.subr.bf16.mxu0 0
  %4554 = vmatpush1.bf16.msra.mxu0 %v4346
  %4555 = vmatprep.subr.bf16.mxu0 0
  %4556 = vmatpush1.bf16.msra.mxu0 %v4349
  %4557 = vmatprep.subr.bf16.mxu0 0
  %4558 = vmatpush1.bf16.msra.mxu0 %v4352
  %4559 = vmatprep.subr.bf16.mxu0 0
  %4560 = vmatpush1.bf16.msra.mxu0 %v4355
  %4561 = vmatprep.subr.bf16.mxu0 0
  %4562 = vmatpush1.bf16.msra.mxu0 %v4358
  %4563 = vmatprep.subr.bf16.mxu0 0
  %4564 = vmatpush1.bf16.msra.mxu0 %v4361
  %4565 = vmatprep.subr.bf16.mxu0 0
  %4566 = vmatpush1.bf16.msra.mxu0 %v4364
  %4567 = vmatprep.subr.bf16.mxu0 0
  %4568 = vmatpush1.bf16.msra.mxu0 %v4367
  %4569 = vmatprep.subr.bf16.mxu0 0
  %4570 = vmatpush1.bf16.msra.mxu0 %v4370
  %4571 = vmatprep.subr.bf16.mxu0 0
  %4572 = vmatpush1.bf16.msra.mxu0 %v4373
  %4573 = vmatprep.subr.bf16.mxu0 0
  %4574 = vmatpush1.bf16.msra.mxu0 %v4376
  %4575 = vmatprep.subr.bf16.mxu0 0
  %4576 = vmatpush1.bf16.msra.mxu0 %v4379
  %4577 = vmatprep.subr.bf16.mxu0 0
  %4578 = vmatpush1.bf16.msra.mxu0 %v4382
  %4579 = vmatprep.subr.bf16.mxu0 0
  %4580 = vmatpush1.bf16.msra.mxu0 %v4385
  %4581 = vmatprep.subr.bf16.mxu0 0
  %4582 = vmatpush1.bf16.msra.mxu0 %v4388
  %4583 = vmatprep.subr.bf16.mxu0 0
  %4584 = vmatpush1.bf16.msra.mxu0 %v4391
  %4585 = vmatprep.mubr.bf16.mxu0 %v4105
  %4586 = vmatmul.mubr.bf16.gmra.mrb[0].mxu0 %v4104
  %v4587 = vpop.f32.mrb[0].mxu0
  %v4588 = vadd.f32 0.0, %v4587
  %v4589 = vpop.f32.mrb[0].mxu0
  %v4590 = vpop.f32.mrb[0].mxu0
  %v4591 = vadd.f32 0.0, %v4590
  %v4592 = vpop.f32.mrb[0].mxu0
  %4593 = vmatprep.mubr.bf16.mxu0 %v4107
  %4594 = vmatmul.mubr.bf16.gmra.mrb[0].mxu0 %v4106
  %v4595 = vpop.f32.mrb[0].mxu0
  %v4596 = vadd.f32 0.0, %v4595
  %v4597 = vpop.f32.mrb[0].mxu0
  %v4598 = vpop.f32.mrb[0].mxu0
  %v4599 = vadd.f32 0.0, %v4598
  %v4600 = vpop.f32.mrb[0].mxu0
  %4601 = vmatprep.mubr.bf16.mxu0 %v4109
  %4602 = vmatmul.mubr.bf16.gmra.mrb[0].mxu0 %v4108
  %v4603 = vpop.f32.mrb[0].mxu0
  %v4604 = vadd.f32 0.0, %v4603
  %v4605 = vpop.f32.mrb[0].mxu0
  %v4606 = vpop.f32.mrb[0].mxu0
  %v4607 = vadd.f32 0.0, %v4606
  %v4608 = vpop.f32.mrb[0].mxu0
  %4609 = vmatprep.mubr.bf16.mxu0 %v4111
  %4610 = vmatmul.mubr.bf16.gmra.mrb[0].mxu0 %v4110
  %v4611 = vpop.f32.mrb[0].mxu0
  %v4612 = vadd.f32 0.0, %v4611
  %v4613 = vpop.f32.mrb[0].mxu0
  %v4614 = vpop.f32.mrb[0].mxu0
  %v4615 = vadd.f32 0.0, %v4614
  %v4616 = vpop.f32.mrb[0].mxu0
  %4617 = vmatprep.mubr.bf16.mxu0 %v4113
  %4618 = vmatmul.mubr.bf16.gmra.mrb[0].mxu0 %v4112
  %v4619 = vpop.f32.mrb[0].mxu0
  %v4620 = vadd.f32 0.0, %v4619
  %v4621 = vpop.f32.mrb[0].mxu0
  %v4622 = vpop.f32.mrb[0].mxu0
  %v4623 = vadd.f32 0.0, %v4622
  %v4624 = vpop.f32.mrb[0].mxu0
  %4625 = vmatprep.mubr.bf16.mxu0 %v4115
  %4626 = vmatmul.mubr.bf16.gmra.mrb[0].mxu0 %v4114
  %v4627 = vpop.f32.mrb[0].mxu0
  %v4628 = vadd.f32 0.0, %v4627
  %v4629 = vpop.f32.mrb[0].mxu0
  %v4630 = vpop.f32.mrb[0].mxu0
  %v4631 = vadd.f32 0.0, %v4630
  %v4632 = vpop.f32.mrb[0].mxu0
  %4633 = vmatprep.mubr.bf16.mxu0 %v4117
  %4634 = vmatmul.mubr.bf16.gmra.mrb[0].mxu0 %v4116
  %v4635 = vpop.f32.mrb[0].mxu0
  %v4636 = vadd.f32 0.0, %v4635
  %v4637 = vpop.f32.mrb[0].mxu0
  %v4638 = vpop.f32.mrb[0].mxu0
  %v4639 = vadd.f32 0.0, %v4638
  %v4640 = vpop.f32.mrb[0].mxu0
  %4641 = vmatprep.mubr.bf16.mxu0 %v4119
  %4642 = vmatmul.mubr.bf16.gmra.mrb[0].mxu0 %v4118
  %v4643 = vpop.f32.mrb[0].mxu0
  %v4644 = vadd.f32 0.0, %v4643
  %v4645 = vpop.f32.mrb[0].mxu0
  %v4646 = vpop.f32.mrb[0].mxu0
  %v4647 = vadd.f32 0.0, %v4646
  %v4648 = vpop.f32.mrb[0].mxu0
  %4649 = vdwg.mxu0
  %v4650 = vadd.f32 %v3779, %v4475
  %v4651 = vadd.f32 %v3780, %v4477
  %v4652 = vadd.f32 %v3781, %v4588
  %v4653 = vadd.f32 %v3782, %v4479
  %v4654 = vadd.f32 %v3783, %v4481
  %v4655 = vadd.f32 %v3784, %v4591
  %v4656 = vadd.f32 %v3785, %v4485
  %v4657 = vadd.f32 %v3786, %v4487
  %v4658 = vadd.f32 %v3787, %v4596
  %v4659 = vadd.f32 %v3788, %v4489
  %v4660 = vadd.f32 %v3789, %v4491
  %v4661 = vadd.f32 %v3790, %v4599
  %v4662 = vadd.f32 %v3791, %v4495
  %v4663 = vadd.f32 %v3792, %v4497
  %v4664 = vadd.f32 %v3793, %v4604
  %v4665 = vadd.f32 %v3794, %v4499
  %v4666 = vadd.f32 %v3795, %v4501
  %v4667 = vadd.f32 %v3796, %v4607
  %v4668 = vadd.f32 %v3797, %v4505
  %v4669 = vadd.f32 %v3798, %v4507
  %v4670 = vadd.f32 %v3799, %v4612
  %v4671 = vadd.f32 %v3800, %v4509
  %v4672 = vadd.f32 %v3801, %v4511
  %v4673 = vadd.f32 %v3802, %v4615
  %v4674 = vadd.f32 %v3803, %v4515
  %v4675 = vadd.f32 %v3804, %v4517
  %v4676 = vadd.f32 %v3805, %v4620
  %v4677 = vadd.f32 %v3806, %v4519
  %v4678 = vadd.f32 %v3807, %v4521
  %v4679 = vadd.f32 %v3808, %v4623
  %v4680 = vadd.f32 %v3809, %v4525
  %v4681 = vadd.f32 %v3810, %v4527
  %v4682 = vadd.f32 %v3811, %v4628
  %v4683 = vadd.f32 %v3812, %v4529
  %v4684 = vadd.f32 %v3813, %v4531
  %v4685 = vadd.f32 %v3814, %v4631
  %v4686 = vadd.f32 %v3815, %v4535
  %v4687 = vadd.f32 %v3816, %v4537
  %v4688 = vadd.f32 %v3817, %v4636
  %v4689 = vadd.f32 %v3818, %v4539
  %v4690 = vadd.f32 %v3819, %v4541
  %v4691 = vadd.f32 %v3820, %v4639
  %v4692 = vadd.f32 %v3821, %v4545
  %v4693 = vadd.f32 %v3822, %v4547
  %v4694 = vadd.f32 %v3823, %v4644
  %v4695 = vadd.f32 %v3824, %v4549
  %v4696 = vadd.f32 %v3825, %v4551
  %v4697 = vadd.f32 %v3826, %v4647
  %v4698 = vld [vmem:[%s7] sm:$0x7]
  %v4700 = vlaneseq
  %v4701 = vshrl.u32 %v4700, 7
  %v4702 = vsub.s32 0, %v4701
  %v4703 = vrot.slane %v4698, %v4702
  %v4704 = vlaneseq
  %v4705 = vshrl.u32 %v4704, 7
  %v4706 = vsub.s32 1, %v4705
  %v4707 = vrot.slane %v4698, %v4706
  %v4708 = vlaneseq
  %v4709 = vshrl.u32 %v4708, 7
  %v4710 = vsub.s32 2, %v4709
  %v4711 = vrot.slane %v4698, %v4710
  %v4715 = vadd.f32 %v4650, %v4703
  %v4716 = vadd.f32 %v4651, %v4707
  %v4717 = vadd.f32 %v4652, %v4711
  %v4718 = vadd.f32 %v4653, %v4703
  %v4719 = vadd.f32 %v4654, %v4707
  %v4720 = vadd.f32 %v4655, %v4711
  %v4721 = vadd.f32 %v4656, %v4703
  %v4722 = vadd.f32 %v4657, %v4707
  %v4723 = vadd.f32 %v4658, %v4711
  %v4724 = vadd.f32 %v4659, %v4703
  %v4725 = vadd.f32 %v4660, %v4707
  %v4726 = vadd.f32 %v4661, %v4711
  %v4727 = vadd.f32 %v4662, %v4703
  %v4728 = vadd.f32 %v4663, %v4707
  %v4729 = vadd.f32 %v4664, %v4711
  %v4730 = vadd.f32 %v4665, %v4703
  %v4731 = vadd.f32 %v4666, %v4707
  %v4732 = vadd.f32 %v4667, %v4711
  %v4733 = vadd.f32 %v4668, %v4703
  %v4734 = vadd.f32 %v4669, %v4707
  %v4735 = vadd.f32 %v4670, %v4711
  %v4736 = vadd.f32 %v4671, %v4703
  %v4737 = vadd.f32 %v4672, %v4707
  %v4738 = vadd.f32 %v4673, %v4711
  %v4739 = vadd.f32 %v4674, %v4703
  %v4740 = vadd.f32 %v4675, %v4707
  %v4741 = vadd.f32 %v4676, %v4711
  %v4742 = vadd.f32 %v4677, %v4703
  %v4743 = vadd.f32 %v4678, %v4707
  %v4744 = vadd.f32 %v4679, %v4711
  %v4745 = vadd.f32 %v4680, %v4703
  %v4746 = vadd.f32 %v4681, %v4707
  %v4747 = vadd.f32 %v4682, %v4711
  %v4748 = vadd.f32 %v4683, %v4703
  %v4749 = vadd.f32 %v4684, %v4707
  %v4750 = vadd.f32 %v4685, %v4711
  %v4751 = vadd.f32 %v4686, %v4703
  %v4752 = vadd.f32 %v4687, %v4707
  %v4753 = vadd.f32 %v4688, %v4711
  %v4754 = vadd.f32 %v4689, %v4703
  %v4755 = vadd.f32 %v4690, %v4707
  %v4756 = vadd.f32 %v4691, %v4711
  %v4757 = vadd.f32 %v4692, %v4703
  %v4758 = vadd.f32 %v4693, %v4707
  %v4759 = vadd.f32 %v4694, %v4711
  %v4760 = vadd.f32 %v4695, %v4703
  %v4761 = vadd.f32 %v4696, %v4707
  %v4762 = vadd.f32 %v4697, %v4711
  %v4763 = vmax.f32 %v4715, 0.0
  %v4764 = vmax.f32 %v4716, 0.0
  %v4765 = vmax.f32 %v4717, 0.0
  %v4766 = vmax.f32 %v4718, 0.0
  %v4767 = vmax.f32 %v4719, 0.0
  %v4768 = vmax.f32 %v4720, 0.0
  %v4769 = vmax.f32 %v4721, 0.0
  %v4770 = vmax.f32 %v4722, 0.0
  %v4771 = vmax.f32 %v4723, 0.0
  %v4772 = vmax.f32 %v4724, 0.0
  %v4773 = vmax.f32 %v4725, 0.0
  %v4774 = vmax.f32 %v4726, 0.0
  %v4775 = vmax.f32 %v4727, 0.0
  %v4776 = vmax.f32 %v4728, 0.0
  %v4777 = vmax.f32 %v4729, 0.0
  %v4778 = vmax.f32 %v4730, 0.0
  %v4779 = vmax.f32 %v4731, 0.0
  %v4780 = vmax.f32 %v4732, 0.0
  %v4781 = vmax.f32 %v4733, 0.0
  %v4782 = vmax.f32 %v4734, 0.0
  %v4783 = vmax.f32 %v4735, 0.0
  %v4784 = vmax.f32 %v4736, 0.0
  %v4785 = vmax.f32 %v4737, 0.0
  %v4786 = vmax.f32 %v4738, 0.0
  %v4787 = vmax.f32 %v4739, 0.0
  %v4788 = vmax.f32 %v4740, 0.0
  %v4789 = vmax.f32 %v4741, 0.0
  %v4790 = vmax.f32 %v4742, 0.0
  %v4791 = vmax.f32 %v4743, 0.0
  %v4792 = vmax.f32 %v4744, 0.0
  %v4793 = vmax.f32 %v4745, 0.0
  %v4794 = vmax.f32 %v4746, 0.0
  %v4795 = vmax.f32 %v4747, 0.0
  %v4796 = vmax.f32 %v4748, 0.0
  %v4797 = vmax.f32 %v4749, 0.0
  %v4798 = vmax.f32 %v4750, 0.0
  %v4799 = vmax.f32 %v4751, 0.0
  %v4800 = vmax.f32 %v4752, 0.0
  %v4801 = vmax.f32 %v4753, 0.0
  %v4802 = vmax.f32 %v4754, 0.0
  %v4803 = vmax.f32 %v4755, 0.0
  %v4804 = vmax.f32 %v4756, 0.0
  %v4805 = vmax.f32 %v4757, 0.0
  %v4806 = vmax.f32 %v4758, 0.0
  %v4807 = vmax.f32 %v4759, 0.0
  %v4808 = vmax.f32 %v4760, 0.0
  %v4809 = vmax.f32 %v4761, 0.0
  %v4810 = vmax.f32 %v4762, 0.0
  %v4811 = vld [vmem:[#allocation2] sm:$0xff]
  %v4812 = vld [vmem:[#allocation2 + $0x8] sm:$0xff]
  %v4813 = vld [vmem:[#allocation2 + $0x10] sm:$0xff]
  %v4814 = vld [vmem:[#allocation2 + $0x18] sm:$0xff]
  %v4815 = vld [vmem:[#allocation2 + $0x20] sm:$0xff]
  %v4816 = vld [vmem:[#allocation2 + $0x28] sm:$0xff]
  %v4817 = vadd.f32 %v4763, %v4766
  %v4818 = vadd.f32 %v4817, %v4769
  %v4819 = vadd.f32 %v4818, %v4772
  %v4820 = vadd.f32 %v4819, %v4775
  %v4821 = vadd.f32 %v4820, %v4778
  %v4822 = vadd.f32 %v4821, %v4781
  %v4823 = vadd.f32 %v4822, %v4784
  %v4824 = vadd.f32 %v4764, %v4767
  %v4825 = vadd.f32 %v4824, %v4770
  %v4826 = vadd.f32 %v4825, %v4773
  %v4827 = vadd.f32 %v4826, %v4776
  %v4828 = vadd.f32 %v4827, %v4779
  %v4829 = vadd.f32 %v4828, %v4782
  %v4830 = vadd.f32 %v4829, %v4785
  %vm4831 = vcmask 523264
  %v4832 = vsel %vm4831, %v4765, 0.0
  %v4833 = vsel %vm4831, %v4768, 0.0
  %v4834 = vadd.f32 %v4832, %v4833
  %v4835 = vsel %vm4831, %v4771, 0.0
  %v4836 = vadd.f32 %v4834, %v4835
  %v4837 = vsel %vm4831, %v4774, 0.0
  %v4838 = vadd.f32 %v4836, %v4837
  %v4839 = vsel %vm4831, %v4777, 0.0
  %v4840 = vadd.f32 %v4838, %v4839
  %v4841 = vsel %vm4831, %v4780, 0.0
  %v4842 = vadd.f32 %v4840, %v4841
  %v4843 = vsel %vm4831, %v4783, 0.0
  %v4844 = vadd.f32 %v4842, %v4843
  %v4845 = vsel %vm4831, %v4786, 0.0
  %v4846 = vadd.f32 %v4844, %v4845
  %v4847 = vadd.f32 %v4787, %v4790
  %v4848 = vadd.f32 %v4847, %v4793
  %v4849 = vadd.f32 %v4848, %v4796
  %v4850 = vadd.f32 %v4849, %v4799
  %v4851 = vadd.f32 %v4850, %v4802
  %v4852 = vadd.f32 %v4851, %v4805
  %v4853 = vadd.f32 %v4852, %v4808
  %v4854 = vadd.f32 %v4788, %v4791
  %v4855 = vadd.f32 %v4854, %v4794
  %v4856 = vadd.f32 %v4855, %v4797
  %v4857 = vadd.f32 %v4856, %v4800
  %v4858 = vadd.f32 %v4857, %v4803
  %v4859 = vadd.f32 %v4858, %v4806
  %v4860 = vadd.f32 %v4859, %v4809
  %v4861 = vsel %vm4831, %v4789, 0.0
  %v4862 = vsel %vm4831, %v4792, 0.0
  %v4863 = vadd.f32 %v4861, %v4862
  %v4864 = vsel %vm4831, %v4795, 0.0
  %v4865 = vadd.f32 %v4863, %v4864
  %v4866 = vsel %vm4831, %v4798, 0.0
  %v4867 = vadd.f32 %v4865, %v4866
  %v4868 = vsel %vm4831, %v4801, 0.0
  %v4869 = vadd.f32 %v4867, %v4868
  %v4870 = vsel %vm4831, %v4804, 0.0
  %v4871 = vadd.f32 %v4869, %v4870
  %v4872 = vsel %vm4831, %v4807, 0.0
  %v4873 = vadd.f32 %v4871, %v4872
  %v4874 = vsel %vm4831, %v4810, 0.0
  %v4875 = vadd.f32 %v4873, %v4874
  %v4876 = vadd.f32 %v4811, %v4823
  %v4877 = vadd.f32 %v4812, %v4830
  %v4878 = vadd.f32 %v4813, %v4846
  %v4879 = vadd.f32 %v4814, %v4853
  %v4880 = vadd.f32 %v4815, %v4860
  %v4881 = vadd.f32 %v4816, %v4875
  %4882 = vst [vmem:[#allocation2] sm:$0xff] %v4876
  %4883 = vst [vmem:[#allocation2 + $0x8] sm:$0xff] %v4877
  %4884 = vst.msk [vmem:[#allocation2 + $0x10] sm:$0xff] %vm4831, %v4878
  %4885 = vst [vmem:[#allocation2 + $0x18] sm:$0xff] %v4879
  %4886 = vst [vmem:[#allocation2 + $0x20] sm:$0xff] %v4880
  %4887 = vst.msk [vmem:[#allocation2 + $0x28] sm:$0xff] %vm4831, %v4881
  // Predicated region
  $region114: #{efficientnet_with_clinical_forward.1} parent=0 // pred_check
    %p4888 = pneg %p90
  $region115: #{efficientnet_with_clinical_forward.1} parent=0 // pred_check_branch
    %4890 = sbr.rel (%p4888) target = $region117
  $region116: #{efficientnet_with_clinical_forward.1} parent=0 // pred_region
    %v4891 = vld [vmem:[#allocation2] sm:$0xff]
    %v4892 = vld [vmem:[#allocation2 + $0x8] sm:$0xff]
    %v4893 = vld [vmem:[#allocation2 + $0x10] sm:$0xff]
    %v4894 = vld [vmem:[#allocation2 + $0x18] sm:$0xff]
    %v4895 = vld [vmem:[#allocation2 + $0x20] sm:$0xff]
    %v4896 = vld [vmem:[#allocation2 + $0x28] sm:$0xff]
    %v4897 = vrot.slane %v4891, 4
    %v4898 = vadd.f32 %v4891, %v4897
    %v4899 = vrot.slane %v4898, 2
    %v4900 = vadd.f32 %v4898, %v4899
    %v4901 = vrot.slane %v4900, 1
    %v4902 = vadd.f32 %v4900, %v4901
    %v4903 = vrot.slane %v4892, 4
    %v4904 = vadd.f32 %v4892, %v4903
    %v4905 = vrot.slane %v4904, 2
    %v4906 = vadd.f32 %v4904, %v4905
    %v4907 = vrot.slane %v4906, 1
    %v4908 = vadd.f32 %v4906, %v4907
    %v4909 = vsel %vm4831, %v4893, 0.0
    %v4910 = vrot.slane %v4909, 4
    %v4911 = vadd.f32 %v4909, %v4910
    %v4912 = vrot.slane %v4911, 2
    %v4913 = vadd.f32 %v4911, %v4912
    %v4914 = vrot.slane %v4913, 1
    %v4915 = vadd.f32 %v4913, %v4914
    %v4916 = vrot.slane %v4894, 4
    %v4917 = vadd.f32 %v4894, %v4916
    %v4918 = vrot.slane %v4917, 2
    %v4919 = vadd.f32 %v4917, %v4918
    %v4920 = vrot.slane %v4919, 1
    %v4921 = vadd.f32 %v4919, %v4920
    %v4922 = vrot.slane %v4895, 4
    %v4923 = vadd.f32 %v4895, %v4922
    %v4924 = vrot.slane %v4923, 2
    %v4925 = vadd.f32 %v4923, %v4924
    %v4926 = vrot.slane %v4925, 1
    %v4927 = vadd.f32 %v4925, %v4926
    %v4928 = vsel %vm4831, %v4896, 0.0
    %v4929 = vrot.slane %v4928, 4
    %v4930 = vadd.f32 %v4928, %v4929
    %v4931 = vrot.slane %v4930, 2
    %v4932 = vadd.f32 %v4930, %v4931
    %v4933 = vrot.slane %v4932, 1
    %v4934 = vadd.f32 %v4932, %v4933
    %v4935 = vmul.f32 %v4902, 0.015625
    %v4936 = vmul.f32 %v4908, 0.015625
    %v4937 = vmul.f32 %v4915, 0.015625
    %v4938 = vmul.f32 %v4921, 0.015625
    %v4939 = vmul.f32 %v4927, 0.015625
    %v4940 = vmul.f32 %v4934, 0.015625
    %v4941 = vld [vmem:[%s1] sm:$0x3]
    %v4942 = vld [vmem:[%s8] sm:$0xff]
    %v4943 = vld [vmem:[%s9] sm:$0x1]
    %v4945 = vlaneseq
    %v4946 = vshrl.u32 %v4945, 7
    %v4947 = vsub.s32 0, %v4946
    %v4948 = vrot.slane %v4943, %v4947
    %vm4950 = vcmask 64512
    %v4952 = vsel %vm4950, %v4941, 0
    %4954 = vmatprep.subr.mxu0 0.0
    %4955 = vmatpush1.msra.mxu0 %v4942
    %4956 = vmatprep.subr.mxu0 0.0
    %4957 = vmatpush1.msra.mxu0 0.0
    %4958 = vmatprep.subr.mxu0 0.0
    %4959 = vmatpush1.msra.mxu0 0.0
    %4960 = vmatprep.subr.mxu0 0.0
    %4961 = vmatpush1.msra.mxu0 0.0
    %4962 = vmatprep.subr.mxu0 0.0
    %4963 = vmatpush1.msra.mxu0 0.0
    %4964 = vmatprep.subr.mxu0 0.0
    %4965 = vmatpush1.msra.mxu0 0.0
    %4966 = vmatprep.subr.mxu0 0.0
    %4967 = vmatpush1.msra.mxu0 0.0
    %4968 = vmatprep.subr.mxu0 0.0
    %4969 = vmatpush1.msra.mxu0 0.0
    %4970 = vmatprep.subr.mxu0 0.0
    %4971 = vmatpush1.msra.mxu0 0.0
    %4972 = vmatprep.subr.mxu0 0.0
    %4973 = vmatpush1.msra.mxu0 0.0
    %4974 = vmatprep.subr.mxu0 0.0
    %4975 = vmatpush1.msra.mxu0 0.0
    %4976 = vmatprep.subr.mxu0 0.0
    %4977 = vmatpush1.msra.mxu0 0.0
    %4978 = vmatprep.subr.mxu0 0.0
    %4979 = vmatpush1.msra.mxu0 0.0
    %4980 = vmatprep.subr.mxu0 0.0
    %4981 = vmatpush1.msra.mxu0 0.0
    %4982 = vmatprep.subr.mxu0 0.0
    %4983 = vmatpush1.msra.mxu0 0.0
    %4984 = vmatprep.subr.mxu0 0.0
    %4985 = vmatpush1.msra.mxu0 0.0
    %4986 = vmatprep.subr.mxu0 0.0
    %4987 = vmatpush1.msra.mxu0 0.0
    %4988 = vmatprep.subr.mxu0 0.0
    %4989 = vmatpush1.msra.mxu0 0.0
    %4990 = vmatprep.subr.mxu0 0.0
    %4991 = vmatpush1.msra.mxu0 0.0
    %4992 = vmatprep.subr.mxu0 0.0
    %4993 = vmatpush1.msra.mxu0 0.0
    %4994 = vmatprep.subr.mxu0 0.0
    %4995 = vmatpush1.msra.mxu0 0.0
    %4996 = vmatprep.subr.mxu0 0.0
    %4997 = vmatpush1.msra.mxu0 0.0
    %4998 = vmatprep.subr.mxu0 0.0
    %4999 = vmatpush1.msra.mxu0 0.0
    %5000 = vmatprep.subr.mxu0 0.0
    %5001 = vmatpush1.msra.mxu0 0.0
    %5002 = vmatprep.subr.mxu0 0.0
    %5003 = vmatpush1.msra.mxu0 0.0
    %5004 = vmatprep.subr.mxu0 0.0
    %5005 = vmatpush1.msra.mxu0 0.0
    %5006 = vmatprep.subr.mxu0 0.0
    %5007 = vmatpush1.msra.mxu0 0.0
    %5008 = vmatprep.subr.mxu0 0.0
    %5009 = vmatpush1.msra.mxu0 0.0
    %5010 = vmatprep.subr.mxu0 0.0
    %5011 = vmatpush1.msra.mxu0 0.0
    %5012 = vmatprep.subr.mxu0 0.0
    %5013 = vmatpush1.msra.mxu0 0.0
    %5014 = vmatprep.subr.mxu0 0.0
    %5015 = vmatpush1.msra.mxu0 0.0
    %5016 = vmatprep.subr.mxu0 0.0
    %5017 = vmatpush1.msra.mxu0 0.0
    %5018 = vmatprep.mubr.f32.mxu0 0.0
    %5019 = vmatmul.mubr.f32.gmra.mrb[0].mxu0 %v4952
    %v5020 = vpop.f32.mrb[0].mxu0
    %v5021 = vadd.f32 %v4948, %v5020
    %v5022 = vpop.f32.mrb[0].mxu0
    %5023 = vdwg.mxu0
    %v5024 = vld [vmem:[%s10] sm:$0x1]
    %v5025 = vld [vmem:[%s11] sm:$0x1]
    %vm5026 = vcmask 123904
    %v5027 = vsel %vm5026, %v5021, 0.0
    %5028 = vadd.xlane.f32.xlu0 %v5027
    %v5029 = vpop.xlane.xlu0 %5028
    %v5030 = vrcp.pop 16.0
    %v5031 = vmul.f32 %v5029, %v5030
    %v5032 = vsub.f32 %v5021, %v5031
    %v5033 = vmul.f32 %v5032, %v5032
    %v5034 = vsel %vm5026, %v5033, 0.0
    %5035 = vadd.xlane.f32.xlu0 %v5034
    %v5036 = vpop.xlane.xlu0 %5035
    %v5037 = vmul.f32 %v5036, %v5030
    %v5038 = vadd.f32 %v5037, 1e-05
    %v5039 = vrsqrt.pop %v5038
    %v5040 = vmul.f32 %v5032, %v5039
    %v5042 = vlaneseq
    %v5043 = vshrl.u32 %v5042, 7
    %v5044 = vsub.s32 0, %v5043
    %v5045 = vrot.slane %v5024, %v5044
    %v5047 = vmul.f32 %v5040, %v5045
    %v5049 = vlaneseq
    %v5050 = vshrl.u32 %v5049, 7
    %v5051 = vsub.s32 0, %v5050
    %v5052 = vrot.slane %v5025, %v5051
    %v5054 = vadd.f32 %v5047, %v5052
    %v5055 = vmul.f32 %v5054, 0.5
    %v5056 = vmul.f32 %v5054, 0.70710677
    %v5057 = verf.f32.pop %v5056
    %v5058 = vadd.f32 %v5057, 1.0
    %v5059 = vmul.f32 %v5055, %v5058
    %v5060 = vld [vmem:[%s12] sm:$0xff]
    %v5061 = vld [vmem:[%s12 + $0x8] sm:$0xff]
    %v5062 = vld [vmem:[%s13] sm:$0x1]
    %v5064 = vlaneseq
    %v5065 = vshrl.u32 %v5064, 7
    %v5066 = vsub.s32 0, %v5065
    %v5067 = vrot.slane %v5062, %v5066
    %v5070 = vsel %vm172, %v5059, 0
    %5072 = vmatprep.subr.mxu0 0.0
    %5073 = vmatpush1.msra.mxu0 %v5060
    %5074 = vmatprep.subr.mxu0 0.0
    %5075 = vmatpush1.msra.mxu0 %v5061
    %5076 = vmatprep.subr.mxu0 0.0
    %5077 = vmatpush1.msra.mxu0 0.0
    %5078 = vmatprep.subr.mxu0 0.0
    %5079 = vmatpush1.msra.mxu0 0.0
    %5080 = vmatprep.subr.mxu0 0.0
    %5081 = vmatpush1.msra.mxu0 0.0
    %5082 = vmatprep.subr.mxu0 0.0
    %5083 = vmatpush1.msra.mxu0 0.0
    %5084 = vmatprep.subr.mxu0 0.0
    %5085 = vmatpush1.msra.mxu0 0.0
    %5086 = vmatprep.subr.mxu0 0.0
    %5087 = vmatpush1.msra.mxu0 0.0
    %5088 = vmatprep.subr.mxu0 0.0
    %5089 = vmatpush1.msra.mxu0 0.0
    %5090 = vmatprep.subr.mxu0 0.0
    %5091 = vmatpush1.msra.mxu0 0.0
    %5092 = vmatprep.subr.mxu0 0.0
    %5093 = vmatpush1.msra.mxu0 0.0
    %5094 = vmatprep.subr.mxu0 0.0
    %5095 = vmatpush1.msra.mxu0 0.0
    %5096 = vmatprep.subr.mxu0 0.0
    %5097 = vmatpush1.msra.mxu0 0.0
    %5098 = vmatprep.subr.mxu0 0.0
    %5099 = vmatpush1.msra.mxu0 0.0
    %5100 = vmatprep.subr.mxu0 0.0
    %5101 = vmatpush1.msra.mxu0 0.0
    %5102 = vmatprep.subr.mxu0 0.0
    %5103 = vmatpush1.msra.mxu0 0.0
    %5104 = vmatprep.subr.mxu0 0.0
    %5105 = vmatpush1.msra.mxu0 0.0
    %5106 = vmatprep.subr.mxu0 0.0
    %5107 = vmatpush1.msra.mxu0 0.0
    %5108 = vmatprep.subr.mxu0 0.0
    %5109 = vmatpush1.msra.mxu0 0.0
    %5110 = vmatprep.subr.mxu0 0.0
    %5111 = vmatpush1.msra.mxu0 0.0
    %5112 = vmatprep.subr.mxu0 0.0
    %5113 = vmatpush1.msra.mxu0 0.0
    %5114 = vmatprep.subr.mxu0 0.0
    %5115 = vmatpush1.msra.mxu0 0.0
    %5116 = vmatprep.subr.mxu0 0.0
    %5117 = vmatpush1.msra.mxu0 0.0
    %5118 = vmatprep.subr.mxu0 0.0
    %5119 = vmatpush1.msra.mxu0 0.0
    %5120 = vmatprep.subr.mxu0 0.0
    %5121 = vmatpush1.msra.mxu0 0.0
    %5122 = vmatprep.subr.mxu0 0.0
    %5123 = vmatpush1.msra.mxu0 0.0
    %5124 = vmatprep.subr.mxu0 0.0
    %5125 = vmatpush1.msra.mxu0 0.0
    %5126 = vmatprep.subr.mxu0 0.0
    %5127 = vmatpush1.msra.mxu0 0.0
    %5128 = vmatprep.subr.mxu0 0.0
    %5129 = vmatpush1.msra.mxu0 0.0
    %5130 = vmatprep.subr.mxu0 0.0
    %5131 = vmatpush1.msra.mxu0 0.0
    %5132 = vmatprep.subr.mxu0 0.0
    %5133 = vmatpush1.msra.mxu0 0.0
    %5134 = vmatprep.subr.mxu0 0.0
    %5135 = vmatpush1.msra.mxu0 0.0
    %5136 = vmatprep.mubr.f32.mxu0 0.0
    %5137 = vmatmul.mubr.f32.gmra.mrb[0].mxu0 %v5070
    %v5138 = vpop.f32.mrb[0].mxu0
    %v5139 = vadd.f32 %v5067, %v5138
    %v5140 = vpop.f32.mrb[0].mxu0
    %5141 = vdwg.mxu0
    %v5142 = vmul.f32 %v5139, 0.5
    %v5143 = vmul.f32 %v5139, 0.70710677
    %v5144 = verf.f32.pop %v5143
    %v5145 = vadd.f32 %v5144, 1.0
    %v5146 = vmul.f32 %v5142, %v5145
    %v5147 = vld [vmem:[%s14] sm:$0xff]
    %v5148 = vld [vmem:[%s14 + $0x8] sm:$0xff]
    %v5149 = vld [vmem:[%s14 + $0x10] sm:$0xff]
    %v5150 = vld [vmem:[%s14 + $0x18] sm:$0xff]
    %v5151 = vld [vmem:[%s14 + $0x20] sm:$0xff]
    %v5152 = vld [vmem:[%s14 + $0x28] sm:$0xff]
    %v5153 = vld [vmem:[%s14 + $0x30] sm:$0xff]
    %v5154 = vld [vmem:[%s14 + $0x38] sm:$0xff]
    %v5155 = vld [vmem:[%s14 + $0x40] sm:$0xff]
    %v5156 = vld [vmem:[%s14 + $0x48] sm:$0xff]
    %v5157 = vld [vmem:[%s14 + $0x50] sm:$0xff]
    %v5158 = vld [vmem:[%s14 + $0x58] sm:$0xff]
    %v5159 = vld [vmem:[%s14 + $0x60] sm:$0xff]
    %v5160 = vld [vmem:[%s14 + $0x68] sm:$0xff]
    %v5161 = vld [vmem:[%s14 + $0x70] sm:$0xff]
    %v5162 = vld [vmem:[%s14 + $0x78] sm:$0xff]
    %v5163 = vld [vmem:[%s14 + $0x80] sm:$0xff]
    %v5164 = vld [vmem:[%s14 + $0x88] sm:$0xff]
    %v5165 = vld [vmem:[%s14 + $0x90] sm:$0xff]
    %v5166 = vld [vmem:[%s14 + $0x98] sm:$0xff]
    %v5167 = vld [vmem:[%s14 + $0xa0] sm:$0xff]
    %v5168 = vld [vmem:[%s14 + $0xa8] sm:$0xff]
    %v5169 = vld [vmem:[%s14 + $0xb0] sm:$0xff]
    %v5170 = vld [vmem:[%s14 + $0xb8] sm:$0xff]
    %v5171 = vld [vmem:[%s14 + $0xc0] sm:$0xff]
    %v5172 = vld [vmem:[%s14 + $0xc8] sm:$0xff]
    %v5173 = vld [vmem:[%s14 + $0xd0] sm:$0xff]
    %v5174 = vld [vmem:[%s14 + $0xd8] sm:$0xff]
    %v5175 = vld [vmem:[%s14 + $0xe0] sm:$0xff]
    %v5176 = vld [vmem:[%s14 + $0xe8] sm:$0xff]
    %v5177 = vld [vmem:[%s14 + $0xf0] sm:$0xff]
    %v5178 = vld [vmem:[%s14 + $0xf8] sm:$0xff]
    %v5179 = vld [vmem:[%s14 + $0x100] sm:$0xff]
    %v5180 = vld [vmem:[%s14 + $0x108] sm:$0xff]
    %v5181 = vld [vmem:[%s14 + $0x110] sm:$0xff]
    %v5182 = vld [vmem:[%s14 + $0x118] sm:$0xff]
    %v5183 = vld [vmem:[%s14 + $0x120] sm:$0xff]
    %v5184 = vld [vmem:[%s14 + $0x128] sm:$0xff]
    %v5185 = vld [vmem:[%s14 + $0x130] sm:$0xff]
    %v5186 = vld [vmem:[%s14 + $0x138] sm:$0xff]
    %v5187 = vld [vmem:[%s14 + $0x140] sm:$0xff]
    %v5188 = vld [vmem:[%s14 + $0x148] sm:$0xff]
    %v5189 = vld [vmem:[%s14 + $0x150] sm:$0xff]
    %v5190 = vld [vmem:[%s14 + $0x158] sm:$0xff]
    %v5191 = vld [vmem:[%s14 + $0x160] sm:$0xff]
    %v5192 = vld [vmem:[%s14 + $0x168] sm:$0xff]
    %v5193 = vld [vmem:[%s14 + $0x170] sm:$0xff]
    %v5194 = vld [vmem:[%s14 + $0x178] sm:$0xff]
    %v5195 = vld [vmem:[%s15] sm:$0x7]
    %v5197 = vlaneseq
    %v5198 = vshrl.u32 %v5197, 7
    %v5199 = vsub.s32 0, %v5198
    %v5200 = vrot.slane %v5195, %v5199
    %v5201 = vlaneseq
    %v5202 = vshrl.u32 %v5201, 7
    %v5203 = vsub.s32 1, %v5202
    %v5204 = vrot.slane %v5195, %v5203
    %v5205 = vlaneseq
    %v5206 = vshrl.u32 %v5205, 7
    %v5207 = vsub.s32 2, %v5206
    %v5208 = vrot.slane %v5195, %v5207
    %5212 = vmatprep.subr.mxu0 %v5148
    %5213 = vmatpush1.msra.mxu0 %v5147
    %5214 = vmatprep.subr.mxu0 %v5151
    %5215 = vmatpush1.msra.mxu0 %v5150
    %5216 = vmatprep.subr.mxu0 %v5154
    %5217 = vmatpush1.msra.mxu0 %v5153
    %5218 = vmatprep.subr.mxu0 %v5157
    %5219 = vmatpush1.msra.mxu0 %v5156
    %5220 = vmatprep.subr.mxu0 %v5160
    %5221 = vmatpush1.msra.mxu0 %v5159
    %5222 = vmatprep.subr.mxu0 %v5163
    %5223 = vmatpush1.msra.mxu0 %v5162
    %5224 = vmatprep.subr.mxu0 %v5166
    %5225 = vmatpush1.msra.mxu0 %v5165
    %5226 = vmatprep.subr.mxu0 %v5169
    %5227 = vmatpush1.msra.mxu0 %v5168
    %5228 = vmatprep.subr.mxu0 %v5172
    %5229 = vmatpush1.msra.mxu0 %v5171
    %5230 = vmatprep.subr.mxu0 %v5175
    %5231 = vmatpush1.msra.mxu0 %v5174
    %5232 = vmatprep.subr.mxu0 %v5178
    %5233 = vmatpush1.msra.mxu0 %v5177
    %5234 = vmatprep.subr.mxu0 %v5181
    %5235 = vmatpush1.msra.mxu0 %v5180
    %5236 = vmatprep.subr.mxu0 %v5184
    %5237 = vmatpush1.msra.mxu0 %v5183
    %5238 = vmatprep.subr.mxu0 %v5187
    %5239 = vmatpush1.msra.mxu0 %v5186
    %5240 = vmatprep.subr.mxu0 %v5190
    %5241 = vmatpush1.msra.mxu0 %v5189
    %5242 = vmatprep.subr.mxu0 %v5193
    %5243 = vmatpush1.msra.mxu0 %v5192
    %5244 = vmatprep.subr.mxu0 0.0
    %5245 = vmatpush1.msra.mxu0 0.0
    %5246 = vmatprep.subr.mxu0 0.0
    %5247 = vmatpush1.msra.mxu0 0.0
    %5248 = vmatprep.subr.mxu0 0.0
    %5249 = vmatpush1.msra.mxu0 0.0
    %5250 = vmatprep.subr.mxu0 0.0
    %5251 = vmatpush1.msra.mxu0 0.0
    %5252 = vmatprep.subr.mxu0 0.0
    %5253 = vmatpush1.msra.mxu0 0.0
    %5254 = vmatprep.subr.mxu0 0.0
    %5255 = vmatpush1.msra.mxu0 0.0
    %5256 = vmatprep.subr.mxu0 0.0
    %5257 = vmatpush1.msra.mxu0 0.0
    %5258 = vmatprep.subr.mxu0 0.0
    %5259 = vmatpush1.msra.mxu0 0.0
    %5260 = vmatprep.subr.mxu0 0.0
    %5261 = vmatpush1.msra.mxu0 0.0
    %5262 = vmatprep.subr.mxu0 0.0
    %5263 = vmatpush1.msra.mxu0 0.0
    %5264 = vmatprep.subr.mxu0 0.0
    %5265 = vmatpush1.msra.mxu0 0.0
    %5266 = vmatprep.subr.mxu0 0.0
    %5267 = vmatpush1.msra.mxu0 0.0
    %5268 = vmatprep.subr.mxu0 0.0
    %5269 = vmatpush1.msra.mxu0 0.0
    %5270 = vmatprep.subr.mxu0 0.0
    %5271 = vmatpush1.msra.mxu0 0.0
    %5272 = vmatprep.subr.mxu0 0.0
    %5273 = vmatpush1.msra.mxu0 0.0
    %5274 = vmatprep.subr.mxu0 0.0
    %5275 = vmatpush1.msra.mxu0 0.0
    %5276 = vmatprep.mubr.f32.mxu0 0.0
    %5277 = vmatmul.mubr.f32.gmra.mrb[0].mxu0 %v5146
    %v5278 = vpop.f32.mrb[0].mxu0
    %v5279 = vadd.f32 %v5200, %v5278
    %v5280 = vpop.f32.mrb[0].mxu0
    %v5281 = vadd.f32 %v5204, %v5280
    %5282 = vdwg.mxu0
    %5283 = vmatprep.subr.mxu0 0.0
    %5284 = vmatpush1.msra.mxu0 %v5149
    %5285 = vmatprep.subr.mxu0 0.0
    %5286 = vmatpush1.msra.mxu0 %v5152
    %5287 = vmatprep.subr.mxu0 0.0
    %5288 = vmatpush1.msra.mxu0 %v5155
    %5289 = vmatprep.subr.mxu0 0.0
    %5290 = vmatpush1.msra.mxu0 %v5158
    %5291 = vmatprep.subr.mxu0 0.0
    %5292 = vmatpush1.msra.mxu0 %v5161
    %5293 = vmatprep.subr.mxu0 0.0
    %5294 = vmatpush1.msra.mxu0 %v5164
    %5295 = vmatprep.subr.mxu0 0.0
    %5296 = vmatpush1.msra.mxu0 %v5167
    %5297 = vmatprep.subr.mxu0 0.0
    %5298 = vmatpush1.msra.mxu0 %v5170
    %5299 = vmatprep.subr.mxu0 0.0
    %5300 = vmatpush1.msra.mxu0 %v5173
    %5301 = vmatprep.subr.mxu0 0.0
    %5302 = vmatpush1.msra.mxu0 %v5176
    %5303 = vmatprep.subr.mxu0 0.0
    %5304 = vmatpush1.msra.mxu0 %v5179
    %5305 = vmatprep.subr.mxu0 0.0
    %5306 = vmatpush1.msra.mxu0 %v5182
    %5307 = vmatprep.subr.mxu0 0.0
    %5308 = vmatpush1.msra.mxu0 %v5185
    %5309 = vmatprep.subr.mxu0 0.0
    %5310 = vmatpush1.msra.mxu0 %v5188
    %5311 = vmatprep.subr.mxu0 0.0
    %5312 = vmatpush1.msra.mxu0 %v5191
    %5313 = vmatprep.subr.mxu0 0.0
    %5314 = vmatpush1.msra.mxu0 %v5194
    %5315 = vmatprep.subr.mxu0 0.0
    %5316 = vmatpush1.msra.mxu0 0.0
    %5317 = vmatprep.subr.mxu0 0.0
    %5318 = vmatpush1.msra.mxu0 0.0
    %5319 = vmatprep.subr.mxu0 0.0
    %5320 = vmatpush1.msra.mxu0 0.0
    %5321 = vmatprep.subr.mxu0 0.0
    %5322 = vmatpush1.msra.mxu0 0.0
    %5323 = vmatprep.subr.mxu0 0.0
    %5324 = vmatpush1.msra.mxu0 0.0
    %5325 = vmatprep.subr.mxu0 0.0
    %5326 = vmatpush1.msra.mxu0 0.0
    %5327 = vmatprep.subr.mxu0 0.0
    %5328 = vmatpush1.msra.mxu0 0.0
    %5329 = vmatprep.subr.mxu0 0.0
    %5330 = vmatpush1.msra.mxu0 0.0
    %5331 = vmatprep.subr.mxu0 0.0
    %5332 = vmatpush1.msra.mxu0 0.0
    %5333 = vmatprep.subr.mxu0 0.0
    %5334 = vmatpush1.msra.mxu0 0.0
    %5335 = vmatprep.subr.mxu0 0.0
    %5336 = vmatpush1.msra.mxu0 0.0
    %5337 = vmatprep.subr.mxu0 0.0
    %5338 = vmatpush1.msra.mxu0 0.0
    %5339 = vmatprep.subr.mxu0 0.0
    %5340 = vmatpush1.msra.mxu0 0.0
    %5341 = vmatprep.subr.mxu0 0.0
    %5342 = vmatpush1.msra.mxu0 0.0
    %5343 = vmatprep.subr.mxu0 0.0
    %5344 = vmatpush1.msra.mxu0 0.0
    %5345 = vmatprep.subr.mxu0 0.0
    %5346 = vmatpush1.msra.mxu0 0.0
    %5347 = vmatprep.mubr.f32.mxu0 0.0
    %5348 = vmatmul.mubr.f32.gmra.mrb[0].mxu0 %v5146
    %v5349 = vpop.f32.mrb[0].mxu0
    %v5350 = vadd.f32 %v5208, %v5349
    %v5351 = vpop.f32.mrb[0].mxu0
    %5352 = vdwg.mxu0
    %v5353 = vxor.u32 %v5279, 2147483648
    %v5354 = vxor.u32 %v5281, 2147483648
    %v5355 = vxor.u32 %v5350, 2147483648
    %v5356 = vmul.f32 %v5353, 1.442695
    %v5357 = vpow.pop %v5356
    %v5358 = vmul.f32 %v5354, 1.442695
    %v5359 = vpow.pop %v5358
    %v5360 = vmul.f32 %v5355, 1.442695
    %v5361 = vpow.pop %v5360
    %v5362 = vadd.f32 %v5357, 1.0
    %v5363 = vadd.f32 %v5359, 1.0
    %v5364 = vadd.f32 %v5361, 1.0
    %v5365 = vrcp.pop %v5362
    %v5366 = vmul.f32 1.0, %v5365
    %v5367 = vrcp.pop %v5363
    %v5368 = vmul.f32 1.0, %v5367
    %v5369 = vrcp.pop %v5364
    %v5370 = vmul.f32 1.0, %v5369
    %v5374 = vrot.slane %v5366, 1
    %v5375 = vrot.slane %v5368, 1
    %v5376 = vrot.slane %v5370, 1
    %v5383 = vmul.f32 %v4935, %v5366
    %v5384 = vmul.f32 %v4936, %v5368
    %v5385 = vmul.f32 %v4937, %v5370
    %v5386 = vmul.f32 %v4938, %v5374
    %v5387 = vmul.f32 %v4939, %v5375
    %v5388 = vmul.f32 %v4940, %v5376
    %v5389 = vld [vmem:[%s16] sm:$0xff]
    %v5390 = vld [vmem:[%s16 + $0x8] sm:$0xff]
    %v5391 = vld [vmem:[%s16 + $0x10] sm:$0xff]
    %v5392 = vld [vmem:[%s16 + $0x18] sm:$0xff]
    %v5393 = vld [vmem:[%s16 + $0x20] sm:$0xff]
    %v5394 = vld [vmem:[%s16 + $0x28] sm:$0xff]
    %v5395 = vld [vmem:[%s16 + $0x30] sm:$0xff]
    %v5396 = vld [vmem:[%s16 + $0x38] sm:$0xff]
    %v5397 = vld [vmem:[%s16 + $0x40] sm:$0xff]
    %v5398 = vld [vmem:[%s16 + $0x48] sm:$0xff]
    %v5399 = vld [vmem:[%s16 + $0x50] sm:$0xff]
    %v5400 = vld [vmem:[%s16 + $0x58] sm:$0xff]
    %v5401 = vld [vmem:[%s16 + $0x60] sm:$0xff]
    %v5402 = vld [vmem:[%s16 + $0x68] sm:$0xff]
    %v5403 = vld [vmem:[%s16 + $0x70] sm:$0xff]
    %v5404 = vld [vmem:[%s16 + $0x78] sm:$0xff]
    %v5405 = vld [vmem:[%s16 + $0x80] sm:$0xff]
    %v5406 = vld [vmem:[%s16 + $0x88] sm:$0xff]
    %v5407 = vld [vmem:[%s16 + $0x90] sm:$0xff]
    %v5408 = vld [vmem:[%s16 + $0x98] sm:$0xff]
    %v5409 = vld [vmem:[%s16 + $0xa0] sm:$0xff]
    %v5410 = vld [vmem:[%s16 + $0xa8] sm:$0xff]
    %v5411 = vld [vmem:[%s16 + $0xb0] sm:$0xff]
    %v5412 = vld [vmem:[%s16 + $0xb8] sm:$0xff]
    %v5413 = vld [vmem:[%s16 + $0xc0] sm:$0xff]
    %v5414 = vld [vmem:[%s16 + $0xc8] sm:$0xff]
    %v5415 = vld [vmem:[%s16 + $0xd0] sm:$0xff]
    %v5416 = vld [vmem:[%s16 + $0xd8] sm:$0xff]
    %v5417 = vld [vmem:[%s16 + $0xe0] sm:$0xff]
    %v5418 = vld [vmem:[%s16 + $0xe8] sm:$0xff]
    %v5419 = vld [vmem:[%s16 + $0xf0] sm:$0xff]
    %v5420 = vld [vmem:[%s16 + $0xf8] sm:$0xff]
    %v5421 = vld [vmem:[%s16 + $0x100] sm:$0xff]
    %v5422 = vld [vmem:[%s16 + $0x108] sm:$0xff]
    %v5423 = vld [vmem:[%s16 + $0x110] sm:$0xff]
    %v5424 = vld [vmem:[%s16 + $0x118] sm:$0xff]
    %v5425 = vld [vmem:[%s16 + $0x120] sm:$0xff]
    %v5426 = vld [vmem:[%s16 + $0x128] sm:$0xff]
    %v5427 = vld [vmem:[%s16 + $0x130] sm:$0xff]
    %v5428 = vld [vmem:[%s16 + $0x138] sm:$0xff]
    %v5429 = vld [vmem:[%s16 + $0x140] sm:$0xff]
    %v5430 = vld [vmem:[%s16 + $0x148] sm:$0xff]
    %v5431 = vld [vmem:[%s16 + $0x150] sm:$0xff]
    %v5432 = vld [vmem:[%s16 + $0x158] sm:$0xff]
    %v5433 = vld [vmem:[%s16 + $0x160] sm:$0xff]
    %v5434 = vld [vmem:[%s16 + $0x168] sm:$0xff]
    %v5435 = vld [vmem:[%s16 + $0x170] sm:$0xff]
    %v5436 = vld [vmem:[%s16 + $0x178] sm:$0xff]
    %v5437 = vld [vmem:[%s16 + $0x180] sm:$0xff]
    %v5438 = vld [vmem:[%s16 + $0x188] sm:$0xff]
    %v5439 = vld [vmem:[%s16 + $0x190] sm:$0xff]
    %v5440 = vld [vmem:[%s16 + $0x198] sm:$0xff]
    %v5441 = vld [vmem:[%s16 + $0x1a0] sm:$0xff]
    %v5442 = vld [vmem:[%s16 + $0x1a8] sm:$0xff]
    %v5443 = vld [vmem:[%s16 + $0x1b0] sm:$0xff]
    %v5444 = vld [vmem:[%s16 + $0x1b8] sm:$0xff]
    %v5445 = vld [vmem:[%s16 + $0x1c0] sm:$0xff]
    %v5446 = vld [vmem:[%s16 + $0x1c8] sm:$0xff]
    %v5447 = vld [vmem:[%s16 + $0x1d0] sm:$0xff]
    %v5448 = vld [vmem:[%s16 + $0x1d8] sm:$0xff]
    %v5449 = vld [vmem:[%s16 + $0x1e0] sm:$0xff]
    %v5450 = vld [vmem:[%s16 + $0x1e8] sm:$0xff]
    %v5451 = vld [vmem:[%s16 + $0x1f0] sm:$0xff]
    %v5452 = vld [vmem:[%s16 + $0x1f8] sm:$0xff]
    %v5453 = vld [vmem:[%s16 + $0x200] sm:$0xff]
    %v5454 = vld [vmem:[%s16 + $0x208] sm:$0xff]
    %v5455 = vld [vmem:[%s16 + $0x210] sm:$0xff]
    %v5456 = vld [vmem:[%s16 + $0x218] sm:$0xff]
    %v5457 = vld [vmem:[%s16 + $0x220] sm:$0xff]
    %v5458 = vld [vmem:[%s16 + $0x228] sm:$0xff]
    %v5459 = vld [vmem:[%s16 + $0x230] sm:$0xff]
    %v5460 = vld [vmem:[%s16 + $0x238] sm:$0xff]
    %v5461 = vld [vmem:[%s16 + $0x240] sm:$0xff]
    %v5462 = vld [vmem:[%s16 + $0x248] sm:$0xff]
    %v5463 = vld [vmem:[%s16 + $0x250] sm:$0xff]
    %v5464 = vld [vmem:[%s16 + $0x258] sm:$0xff]
    %v5465 = vld [vmem:[%s16 + $0x260] sm:$0xff]
    %v5466 = vld [vmem:[%s16 + $0x268] sm:$0xff]
    %v5467 = vld [vmem:[%s16 + $0x270] sm:$0xff]
    %v5468 = vld [vmem:[%s16 + $0x278] sm:$0xff]
    %v5469 = vld [vmem:[%s16 + $0x280] sm:$0xff]
    %v5470 = vld [vmem:[%s16 + $0x288] sm:$0xff]
    %v5471 = vld [vmem:[%s16 + $0x290] sm:$0xff]
    %v5472 = vld [vmem:[%s16 + $0x298] sm:$0xff]
    %v5473 = vld [vmem:[%s16 + $0x2a0] sm:$0xff]
    %v5474 = vld [vmem:[%s16 + $0x2a8] sm:$0xff]
    %v5475 = vld [vmem:[%s16 + $0x2b0] sm:$0xff]
    %v5476 = vld [vmem:[%s16 + $0x2b8] sm:$0xff]
    %v5477 = vld [vmem:[%s16 + $0x2c0] sm:$0xff]
    %v5478 = vld [vmem:[%s16 + $0x2c8] sm:$0xff]
    %v5479 = vld [vmem:[%s16 + $0x2d0] sm:$0xff]
    %v5480 = vld [vmem:[%s16 + $0x2d8] sm:$0xff]
    %v5481 = vld [vmem:[%s16 + $0x2e0] sm:$0xff]
    %v5482 = vld [vmem:[%s16 + $0x2e8] sm:$0xff]
    %v5483 = vld [vmem:[%s16 + $0x2f0] sm:$0xff]
    %v5484 = vld [vmem:[%s16 + $0x2f8] sm:$0xff]
    %v5485 = vld [vmem:[%s16 + $0x300] sm:$0xff]
    %v5486 = vld [vmem:[%s16 + $0x308] sm:$0xff]
    %v5487 = vld [vmem:[%s16 + $0x310] sm:$0xff]
    %v5488 = vld [vmem:[%s16 + $0x318] sm:$0xff]
    %v5489 = vld [vmem:[%s16 + $0x320] sm:$0xff]
    %v5490 = vld [vmem:[%s16 + $0x328] sm:$0xff]
    %v5491 = vld [vmem:[%s16 + $0x330] sm:$0xff]
    %v5492 = vld [vmem:[%s16 + $0x338] sm:$0xff]
    %v5493 = vld [vmem:[%s16 + $0x340] sm:$0xff]
    %v5494 = vld [vmem:[%s16 + $0x348] sm:$0xff]
    %v5495 = vld [vmem:[%s16 + $0x350] sm:$0xff]
    %v5496 = vld [vmem:[%s16 + $0x358] sm:$0xff]
    %v5497 = vld [vmem:[%s16 + $0x360] sm:$0xff]
    %v5498 = vld [vmem:[%s16 + $0x368] sm:$0xff]
    %v5499 = vld [vmem:[%s16 + $0x370] sm:$0xff]
    %v5500 = vld [vmem:[%s16 + $0x378] sm:$0xff]
    %v5501 = vld [vmem:[%s16 + $0x380] sm:$0xff]
    %v5502 = vld [vmem:[%s16 + $0x388] sm:$0xff]
    %v5503 = vld [vmem:[%s16 + $0x390] sm:$0xff]
    %v5504 = vld [vmem:[%s16 + $0x398] sm:$0xff]
    %v5505 = vld [vmem:[%s16 + $0x3a0] sm:$0xff]
    %v5506 = vld [vmem:[%s16 + $0x3a8] sm:$0xff]
    %v5507 = vld [vmem:[%s16 + $0x3b0] sm:$0xff]
    %v5508 = vld [vmem:[%s16 + $0x3b8] sm:$0xff]
    %v5509 = vld [vmem:[%s16 + $0x3c0] sm:$0xff]
    %v5510 = vld [vmem:[%s16 + $0x3c8] sm:$0xff]
    %v5511 = vld [vmem:[%s16 + $0x3d0] sm:$0xff]
    %v5512 = vld [vmem:[%s16 + $0x3d8] sm:$0xff]
    %v5513 = vld [vmem:[%s16 + $0x3e0] sm:$0xff]
    %v5514 = vld [vmem:[%s16 + $0x3e8] sm:$0xff]
    %v5515 = vld [vmem:[%s16 + $0x3f0] sm:$0xff]
    %v5516 = vld [vmem:[%s16 + $0x3f8] sm:$0xff]
    %v5517 = vld [vmem:[%s16 + $0x400] sm:$0xff]
    %v5518 = vld [vmem:[%s16 + $0x408] sm:$0xff]
    %v5519 = vld [vmem:[%s16 + $0x410] sm:$0xff]
    %v5520 = vld [vmem:[%s16 + $0x418] sm:$0xff]
    %v5521 = vld [vmem:[%s16 + $0x420] sm:$0xff]
    %v5522 = vld [vmem:[%s16 + $0x428] sm:$0xff]
    %v5523 = vld [vmem:[%s16 + $0x430] sm:$0xff]
    %v5524 = vld [vmem:[%s16 + $0x438] sm:$0xff]
    %v5525 = vld [vmem:[%s16 + $0x440] sm:$0xff]
    %v5526 = vld [vmem:[%s16 + $0x448] sm:$0xff]
    %v5527 = vld [vmem:[%s16 + $0x450] sm:$0xff]
    %v5528 = vld [vmem:[%s16 + $0x458] sm:$0xff]
    %v5529 = vld [vmem:[%s16 + $0x460] sm:$0xff]
    %v5530 = vld [vmem:[%s16 + $0x468] sm:$0xff]
    %v5531 = vld [vmem:[%s16 + $0x470] sm:$0xff]
    %v5532 = vld [vmem:[%s16 + $0x478] sm:$0xff]
    %v5533 = vld [vmem:[%s16 + $0x480] sm:$0xff]
    %v5534 = vld [vmem:[%s16 + $0x488] sm:$0xff]
    %v5535 = vld [vmem:[%s16 + $0x490] sm:$0xff]
    %v5536 = vld [vmem:[%s16 + $0x498] sm:$0xff]
    %v5537 = vld [vmem:[%s16 + $0x4a0] sm:$0xff]
    %v5538 = vld [vmem:[%s16 + $0x4a8] sm:$0xff]
    %v5539 = vld [vmem:[%s16 + $0x4b0] sm:$0xff]
    %v5540 = vld [vmem:[%s16 + $0x4b8] sm:$0xff]
    %v5541 = vld [vmem:[%s16 + $0x4c0] sm:$0xff]
    %v5542 = vld [vmem:[%s16 + $0x4c8] sm:$0xff]
    %v5543 = vld [vmem:[%s16 + $0x4d0] sm:$0xff]
    %v5544 = vld [vmem:[%s16 + $0x4d8] sm:$0xff]
    %v5545 = vld [vmem:[%s16 + $0x4e0] sm:$0xff]
    %v5546 = vld [vmem:[%s16 + $0x4e8] sm:$0xff]
    %v5547 = vld [vmem:[%s16 + $0x4f0] sm:$0xff]
    %v5548 = vld [vmem:[%s16 + $0x4f8] sm:$0xff]
    %v5549 = vld [vmem:[%s17] sm:$0xff]
    %v5550 = vld [vmem:[%s17 + $0x8] sm:$0xff]
    %v5551 = vld [vmem:[%s17 + $0x10] sm:$0xff]
    %v5552 = vld [vmem:[%s17 + $0x18] sm:$0xff]
    %v5553 = vld [vmem:[%s17 + $0x20] sm:$0xff]
    %v5554 = vld [vmem:[%s17 + $0x28] sm:$0xff]
    %v5555 = vld [vmem:[%s17 + $0x30] sm:$0xff]
    %v5556 = vld [vmem:[%s17 + $0x38] sm:$0xff]
    %5557 = vmatprep.subr.mxu0 %v5550
    %5558 = vmatpush1.msra.mxu0 %v5549
    %5559 = vmatprep.subr.mxu0 %v5554
    %5560 = vmatpush1.msra.mxu0 %v5553
    %5561 = vmatprep.subr.mxu0 0.0
    %5562 = vmatpush1.msra.mxu0 0.0
    %5563 = vmatprep.subr.mxu0 0.0
    %5564 = vmatpush1.msra.mxu0 0.0
    %5565 = vmatprep.subr.mxu0 0.0
    %5566 = vmatpush1.msra.mxu0 0.0
    %5567 = vmatprep.subr.mxu0 0.0
    %5568 = vmatpush1.msra.mxu0 0.0
    %5569 = vmatprep.subr.mxu0 0.0
    %5570 = vmatpush1.msra.mxu0 0.0
    %5571 = vmatprep.subr.mxu0 0.0
    %5572 = vmatpush1.msra.mxu0 0.0
    %5573 = vmatprep.subr.mxu0 0.0
    %5574 = vmatpush1.msra.mxu0 0.0
    %5575 = vmatprep.subr.mxu0 0.0
    %5576 = vmatpush1.msra.mxu0 0.0
    %5577 = vmatprep.subr.mxu0 0.0
    %5578 = vmatpush1.msra.mxu0 0.0
    %5579 = vmatprep.subr.mxu0 0.0
    %5580 = vmatpush1.msra.mxu0 0.0
    %5581 = vmatprep.subr.mxu0 0.0
    %5582 = vmatpush1.msra.mxu0 0.0
    %5583 = vmatprep.subr.mxu0 0.0
    %5584 = vmatpush1.msra.mxu0 0.0
    %5585 = vmatprep.subr.mxu0 0.0
    %5586 = vmatpush1.msra.mxu0 0.0
    %5587 = vmatprep.subr.mxu0 0.0
    %5588 = vmatpush1.msra.mxu0 0.0
    %5589 = vmatprep.subr.mxu0 0.0
    %5590 = vmatpush1.msra.mxu0 0.0
    %5591 = vmatprep.subr.mxu0 0.0
    %5592 = vmatpush1.msra.mxu0 0.0
    %5593 = vmatprep.subr.mxu0 0.0
    %5594 = vmatpush1.msra.mxu0 0.0
    %5595 = vmatprep.subr.mxu0 0.0
    %5596 = vmatpush1.msra.mxu0 0.0
    %5597 = vmatprep.subr.mxu0 0.0
    %5598 = vmatpush1.msra.mxu0 0.0
    %5599 = vmatprep.subr.mxu0 0.0
    %5600 = vmatpush1.msra.mxu0 0.0
    %5601 = vmatprep.subr.mxu0 0.0
    %5602 = vmatpush1.msra.mxu0 0.0
    %5603 = vmatprep.subr.mxu0 0.0
    %5604 = vmatpush1.msra.mxu0 0.0
    %5605 = vmatprep.subr.mxu0 0.0
    %5606 = vmatpush1.msra.mxu0 0.0
    %5607 = vmatprep.subr.mxu0 0.0
    %5608 = vmatpush1.msra.mxu0 0.0
    %5609 = vmatprep.subr.mxu0 0.0
    %5610 = vmatpush1.msra.mxu0 0.0
    %5611 = vmatprep.subr.mxu0 0.0
    %5612 = vmatpush1.msra.mxu0 0.0
    %5613 = vmatprep.subr.mxu0 0.0
    %5614 = vmatpush1.msra.mxu0 0.0
    %5615 = vmatprep.subr.mxu0 0.0
    %5616 = vmatpush1.msra.mxu0 0.0
    %5617 = vmatprep.subr.mxu0 0.0
    %5618 = vmatpush1.msra.mxu0 0.0
    %5619 = vmatprep.subr.mxu0 0.0
    %5620 = vmatpush1.msra.mxu0 0.0
    %5621 = vmatprep.mubr.f32.mxu0 0.0
    %5622 = vmatmul.mubr.f32.gmra.mrb[0].mxu0 %v5070
    %v5623 = vpop.f32.mrb[0].mxu0
    %v5624 = vadd.f32 0.0, %v5623
    %v5625 = vpop.f32.mrb[0].mxu0
    %v5626 = vadd.f32 0.0, %v5625
    %5627 = vdwg.mxu0
    %5628 = vmatprep.subr.mxu0 %v5552
    %5629 = vmatpush1.msra.mxu0 %v5551
    %5630 = vmatprep.subr.mxu0 %v5556
    %5631 = vmatpush1.msra.mxu0 %v5555
    %5632 = vmatprep.subr.mxu0 0.0
    %5633 = vmatpush1.msra.mxu0 0.0
    %5634 = vmatprep.subr.mxu0 0.0
    %5635 = vmatpush1.msra.mxu0 0.0
    %5636 = vmatprep.subr.mxu0 0.0
    %5637 = vmatpush1.msra.mxu0 0.0
    %5638 = vmatprep.subr.mxu0 0.0
    %5639 = vmatpush1.msra.mxu0 0.0
    %5640 = vmatprep.subr.mxu0 0.0
    %5641 = vmatpush1.msra.mxu0 0.0
    %5642 = vmatprep.subr.mxu0 0.0
    %5643 = vmatpush1.msra.mxu0 0.0
    %5644 = vmatprep.subr.mxu0 0.0
    %5645 = vmatpush1.msra.mxu0 0.0
    %5646 = vmatprep.subr.mxu0 0.0
    %5647 = vmatpush1.msra.mxu0 0.0
    %5648 = vmatprep.subr.mxu0 0.0
    %5649 = vmatpush1.msra.mxu0 0.0
    %5650 = vmatprep.subr.mxu0 0.0
    %5651 = vmatpush1.msra.mxu0 0.0
    %5652 = vmatprep.subr.mxu0 0.0
    %5653 = vmatpush1.msra.mxu0 0.0
    %5654 = vmatprep.subr.mxu0 0.0
    %5655 = vmatpush1.msra.mxu0 0.0
    %5656 = vmatprep.subr.mxu0 0.0
    %5657 = vmatpush1.msra.mxu0 0.0
    %5658 = vmatprep.subr.mxu0 0.0
    %5659 = vmatpush1.msra.mxu0 0.0
    %5660 = vmatprep.subr.mxu0 0.0
    %5661 = vmatpush1.msra.mxu0 0.0
    %5662 = vmatprep.subr.mxu0 0.0
    %5663 = vmatpush1.msra.mxu0 0.0
    %5664 = vmatprep.subr.mxu0 0.0
    %5665 = vmatpush1.msra.mxu0 0.0
    %5666 = vmatprep.subr.mxu0 0.0
    %5667 = vmatpush1.msra.mxu0 0.0
    %5668 = vmatprep.subr.mxu0 0.0
    %5669 = vmatpush1.msra.mxu0 0.0
    %5670 = vmatprep.subr.mxu0 0.0
    %5671 = vmatpush1.msra.mxu0 0.0
    %5672 = vmatprep.subr.mxu0 0.0
    %5673 = vmatpush1.msra.mxu0 0.0
    %5674 = vmatprep.subr.mxu0 0.0
    %5675 = vmatpush1.msra.mxu0 0.0
    %5676 = vmatprep.subr.mxu0 0.0
    %5677 = vmatpush1.msra.mxu0 0.0
    %5678 = vmatprep.subr.mxu0 0.0
    %5679 = vmatpush1.msra.mxu0 0.0
    %5680 = vmatprep.subr.mxu0 0.0
    %5681 = vmatpush1.msra.mxu0 0.0
    %5682 = vmatprep.subr.mxu0 0.0
    %5683 = vmatpush1.msra.mxu0 0.0
    %5684 = vmatprep.subr.mxu0 0.0
    %5685 = vmatpush1.msra.mxu0 0.0
    %5686 = vmatprep.subr.mxu0 0.0
    %5687 = vmatpush1.msra.mxu0 0.0
    %5688 = vmatprep.subr.mxu0 0.0
    %5689 = vmatpush1.msra.mxu0 0.0
    %5690 = vmatprep.subr.mxu0 0.0
    %5691 = vmatpush1.msra.mxu0 0.0
    %5692 = vmatprep.mubr.f32.mxu0 0.0
    %5693 = vmatmul.mubr.f32.gmra.mrb[0].mxu0 %v5070
    %v5694 = vpop.f32.mrb[0].mxu0
    %v5695 = vadd.f32 0.0, %v5694
    %v5696 = vpop.f32.mrb[0].mxu0
    %v5697 = vadd.f32 0.0, %v5696
    %5698 = vdwg.mxu0
    %v5705 = vrot.slane %v5386, 7
    %vm5706 = vcmask 1041409
    %v5707 = vsel %vm5706, %v5705, %v5383
    %v5708 = vrot.slane %v5387, 7
    %v5709 = vsel %vm5706, %v5708, %v5384
    %v5710 = vrot.slane %v5388, 7
    %v5711 = vsel %vm5706, %v5710, %v5385
    %v5714 = vsel %vm4831, %v5711, 0
    %5716 = vmatprep.subr.mxu0 %v5390
    %5717 = vmatpush1.msra.mxu0 %v5389
    %5718 = vmatprep.subr.mxu0 %v5394
    %5719 = vmatpush1.msra.mxu0 %v5393
    %5720 = vmatprep.subr.mxu0 %v5398
    %5721 = vmatpush1.msra.mxu0 %v5397
    %5722 = vmatprep.subr.mxu0 %v5402
    %5723 = vmatpush1.msra.mxu0 %v5401
    %5724 = vmatprep.subr.mxu0 %v5406
    %5725 = vmatpush1.msra.mxu0 %v5405
    %5726 = vmatprep.subr.mxu0 %v5410
    %5727 = vmatpush1.msra.mxu0 %v5409
    %5728 = vmatprep.subr.mxu0 %v5414
    %5729 = vmatpush1.msra.mxu0 %v5413
    %5730 = vmatprep.subr.mxu0 %v5418
    %5731 = vmatpush1.msra.mxu0 %v5417
    %5732 = vmatprep.subr.mxu0 %v5422
    %5733 = vmatpush1.msra.mxu0 %v5421
    %5734 = vmatprep.subr.mxu0 %v5426
    %5735 = vmatpush1.msra.mxu0 %v5425
    %5736 = vmatprep.subr.mxu0 %v5430
    %5737 = vmatpush1.msra.mxu0 %v5429
    %5738 = vmatprep.subr.mxu0 %v5434
    %5739 = vmatpush1.msra.mxu0 %v5433
    %5740 = vmatprep.subr.mxu0 %v5438
    %5741 = vmatpush1.msra.mxu0 %v5437
    %5742 = vmatprep.subr.mxu0 %v5442
    %5743 = vmatpush1.msra.mxu0 %v5441
    %5744 = vmatprep.subr.mxu0 %v5446
    %5745 = vmatpush1.msra.mxu0 %v5445
    %5746 = vmatprep.subr.mxu0 %v5450
    %5747 = vmatpush1.msra.mxu0 %v5449
    %5748 = vmatprep.subr.mxu0 %v5454
    %5749 = vmatpush1.msra.mxu0 %v5453
    %5750 = vmatprep.subr.mxu0 %v5458
    %5751 = vmatpush1.msra.mxu0 %v5457
    %5752 = vmatprep.subr.mxu0 %v5462
    %5753 = vmatpush1.msra.mxu0 %v5461
    %5754 = vmatprep.subr.mxu0 %v5466
    %5755 = vmatpush1.msra.mxu0 %v5465
    %5756 = vmatprep.subr.mxu0 %v5470
    %5757 = vmatpush1.msra.mxu0 %v5469
    %5758 = vmatprep.subr.mxu0 %v5474
    %5759 = vmatpush1.msra.mxu0 %v5473
    %5760 = vmatprep.subr.mxu0 %v5478
    %5761 = vmatpush1.msra.mxu0 %v5477
    %5762 = vmatprep.subr.mxu0 %v5482
    %5763 = vmatpush1.msra.mxu0 %v5481
    %5764 = vmatprep.subr.mxu0 %v5486
    %5765 = vmatpush1.msra.mxu0 %v5485
    %5766 = vmatprep.subr.mxu0 %v5490
    %5767 = vmatpush1.msra.mxu0 %v5489
    %5768 = vmatprep.subr.mxu0 %v5494
    %5769 = vmatpush1.msra.mxu0 %v5493
    %5770 = vmatprep.subr.mxu0 %v5498
    %5771 = vmatpush1.msra.mxu0 %v5497
    %5772 = vmatprep.subr.mxu0 %v5502
    %5773 = vmatpush1.msra.mxu0 %v5501
    %5774 = vmatprep.subr.mxu0 %v5506
    %5775 = vmatpush1.msra.mxu0 %v5505
    %5776 = vmatprep.subr.mxu0 %v5510
    %5777 = vmatpush1.msra.mxu0 %v5509
    %5778 = vmatprep.subr.mxu0 %v5514
    %5779 = vmatpush1.msra.mxu0 %v5513
    %5780 = vmatprep.mubr.f32.mxu0 %v5709
    %5781 = vmatmul.mubr.f32.gmra.mrb[0].mxu0 %v5707
    %v5782 = vpop.f32.mrb[0].mxu0
    %v5783 = vadd.f32 %v5624, %v5782
    %v5784 = vpop.f32.mrb[0].mxu0
    %v5785 = vadd.f32 %v5626, %v5784
    %5786 = vdwg.mxu0
    %5787 = vmatprep.subr.mxu0 %v5518
    %5788 = vmatpush1.msra.mxu0 %v5517
    %5789 = vmatprep.subr.mxu0 %v5522
    %5790 = vmatpush1.msra.mxu0 %v5521
    %5791 = vmatprep.subr.mxu0 %v5526
    %5792 = vmatpush1.msra.mxu0 %v5525
    %5793 = vmatprep.subr.mxu0 %v5530
    %5794 = vmatpush1.msra.mxu0 %v5529
    %5795 = vmatprep.subr.mxu0 %v5534
    %5796 = vmatpush1.msra.mxu0 %v5533
    %5797 = vmatprep.subr.mxu0 %v5538
    %5798 = vmatpush1.msra.mxu0 %v5537
    %5799 = vmatprep.subr.mxu0 %v5542
    %5800 = vmatpush1.msra.mxu0 %v5541
    %5801 = vmatprep.subr.mxu0 %v5546
    %5802 = vmatpush1.msra.mxu0 %v5545
    %5803 = vmatprep.subr.mxu0 0.0
    %5804 = vmatpush1.msra.mxu0 0.0
    %5805 = vmatprep.subr.mxu0 0.0
    %5806 = vmatpush1.msra.mxu0 0.0
    %5807 = vmatprep.subr.mxu0 0.0
    %5808 = vmatpush1.msra.mxu0 0.0
    %5809 = vmatprep.subr.mxu0 0.0
    %5810 = vmatpush1.msra.mxu0 0.0
    %5811 = vmatprep.subr.mxu0 0.0
    %5812 = vmatpush1.msra.mxu0 0.0
    %5813 = vmatprep.subr.mxu0 0.0
    %5814 = vmatpush1.msra.mxu0 0.0
    %5815 = vmatprep.subr.mxu0 0.0
    %5816 = vmatpush1.msra.mxu0 0.0
    %5817 = vmatprep.subr.mxu0 0.0
    %5818 = vmatpush1.msra.mxu0 0.0
    %5819 = vmatprep.subr.mxu0 0.0
    %5820 = vmatpush1.msra.mxu0 0.0
    %5821 = vmatprep.subr.mxu0 0.0
    %5822 = vmatpush1.msra.mxu0 0.0
    %5823 = vmatprep.subr.mxu0 0.0
    %5824 = vmatpush1.msra.mxu0 0.0
    %5825 = vmatprep.subr.mxu0 0.0
    %5826 = vmatpush1.msra.mxu0 0.0
    %5827 = vmatprep.subr.mxu0 0.0
    %5828 = vmatpush1.msra.mxu0 0.0
    %5829 = vmatprep.subr.mxu0 0.0
    %5830 = vmatpush1.msra.mxu0 0.0
    %5831 = vmatprep.subr.mxu0 0.0
    %5832 = vmatpush1.msra.mxu0 0.0
    %5833 = vmatprep.subr.mxu0 0.0
    %5834 = vmatpush1.msra.mxu0 0.0
    %5835 = vmatprep.subr.mxu0 0.0
    %5836 = vmatpush1.msra.mxu0 0.0
    %5837 = vmatprep.subr.mxu0 0.0
    %5838 = vmatpush1.msra.mxu0 0.0
    %5839 = vmatprep.subr.mxu0 0.0
    %5840 = vmatpush1.msra.mxu0 0.0
    %5841 = vmatprep.subr.mxu0 0.0
    %5842 = vmatpush1.msra.mxu0 0.0
    %5843 = vmatprep.subr.mxu0 0.0
    %5844 = vmatpush1.msra.mxu0 0.0
    %5845 = vmatprep.subr.mxu0 0.0
    %5846 = vmatpush1.msra.mxu0 0.0
    %5847 = vmatprep.subr.mxu0 0.0
    %5848 = vmatpush1.msra.mxu0 0.0
    %5849 = vmatprep.subr.mxu0 0.0
    %5850 = vmatpush1.msra.mxu0 0.0
    %5851 = vmatprep.mubr.f32.mxu0 0.0
    %5852 = vmatmul.mubr.f32.gmra.mrb[0].mxu0 %v5714
    %v5853 = vpop.f32.mrb[0].mxu0
    %v5854 = vadd.f32 %v5783, %v5853
    %v5855 = vpop.f32.mrb[0].mxu0
    %v5856 = vadd.f32 %v5785, %v5855
    %5857 = vdwg.mxu0
    %5858 = vmatprep.subr.mxu0 %v5392
    %5859 = vmatpush1.msra.mxu0 %v5391
    %5860 = vmatprep.subr.mxu0 %v5396
    %5861 = vmatpush1.msra.mxu0 %v5395
    %5862 = vmatprep.subr.mxu0 %v5400
    %5863 = vmatpush1.msra.mxu0 %v5399
    %5864 = vmatprep.subr.mxu0 %v5404
    %5865 = vmatpush1.msra.mxu0 %v5403
    %5866 = vmatprep.subr.mxu0 %v5408
    %5867 = vmatpush1.msra.mxu0 %v5407
    %5868 = vmatprep.subr.mxu0 %v5412
    %5869 = vmatpush1.msra.mxu0 %v5411
    %5870 = vmatprep.subr.mxu0 %v5416
    %5871 = vmatpush1.msra.mxu0 %v5415
    %5872 = vmatprep.subr.mxu0 %v5420
    %5873 = vmatpush1.msra.mxu0 %v5419
    %5874 = vmatprep.subr.mxu0 %v5424
    %5875 = vmatpush1.msra.mxu0 %v5423
    %5876 = vmatprep.subr.mxu0 %v5428
    %5877 = vmatpush1.msra.mxu0 %v5427
    %5878 = vmatprep.subr.mxu0 %v5432
    %5879 = vmatpush1.msra.mxu0 %v5431
    %5880 = vmatprep.subr.mxu0 %v5436
    %5881 = vmatpush1.msra.mxu0 %v5435
    %5882 = vmatprep.subr.mxu0 %v5440
    %5883 = vmatpush1.msra.mxu0 %v5439
    %5884 = vmatprep.subr.mxu0 %v5444
    %5885 = vmatpush1.msra.mxu0 %v5443
    %5886 = vmatprep.subr.mxu0 %v5448
    %5887 = vmatpush1.msra.mxu0 %v5447
    %5888 = vmatprep.subr.mxu0 %v5452
    %5889 = vmatpush1.msra.mxu0 %v5451
    %5890 = vmatprep.subr.mxu0 %v5456
    %5891 = vmatpush1.msra.mxu0 %v5455
    %5892 = vmatprep.subr.mxu0 %v5460
    %5893 = vmatpush1.msra.mxu0 %v5459
    %5894 = vmatprep.subr.mxu0 %v5464
    %5895 = vmatpush1.msra.mxu0 %v5463
    %5896 = vmatprep.subr.mxu0 %v5468
    %5897 = vmatpush1.msra.mxu0 %v5467
    %5898 = vmatprep.subr.mxu0 %v5472
    %5899 = vmatpush1.msra.mxu0 %v5471
    %5900 = vmatprep.subr.mxu0 %v5476
    %5901 = vmatpush1.msra.mxu0 %v5475
    %5902 = vmatprep.subr.mxu0 %v5480
    %5903 = vmatpush1.msra.mxu0 %v5479
    %5904 = vmatprep.subr.mxu0 %v5484
    %5905 = vmatpush1.msra.mxu0 %v5483
    %5906 = vmatprep.subr.mxu0 %v5488
    %5907 = vmatpush1.msra.mxu0 %v5487
    %5908 = vmatprep.subr.mxu0 %v5492
    %5909 = vmatpush1.msra.mxu0 %v5491
    %5910 = vmatprep.subr.mxu0 %v5496
    %5911 = vmatpush1.msra.mxu0 %v5495
    %5912 = vmatprep.subr.mxu0 %v5500
    %5913 = vmatpush1.msra.mxu0 %v5499
    %5914 = vmatprep.subr.mxu0 %v5504
    %5915 = vmatpush1.msra.mxu0 %v5503
    %5916 = vmatprep.subr.mxu0 %v5508
    %5917 = vmatpush1.msra.mxu0 %v5507
    %5918 = vmatprep.subr.mxu0 %v5512
    %5919 = vmatpush1.msra.mxu0 %v5511
    %5920 = vmatprep.subr.mxu0 %v5516
    %5921 = vmatpush1.msra.mxu0 %v5515
    %5922 = vmatprep.mubr.f32.mxu0 %v5709
    %5923 = vmatmul.mubr.f32.gmra.mrb[0].mxu0 %v5707
    %v5924 = vpop.f32.mrb[0].mxu0
    %v5925 = vadd.f32 %v5695, %v5924
    %v5926 = vpop.f32.mrb[0].mxu0
    %v5927 = vadd.f32 %v5697, %v5926
    %5928 = vdwg.mxu0
    %5929 = vmatprep.subr.mxu0 %v5520
    %5930 = vmatpush1.msra.mxu0 %v5519
    %5931 = vmatprep.subr.mxu0 %v5524
    %5932 = vmatpush1.msra.mxu0 %v5523
    %5933 = vmatprep.subr.mxu0 %v5528
    %5934 = vmatpush1.msra.mxu0 %v5527
    %5935 = vmatprep.subr.mxu0 %v5532
    %5936 = vmatpush1.msra.mxu0 %v5531
    %5937 = vmatprep.subr.mxu0 %v5536
    %5938 = vmatpush1.msra.mxu0 %v5535
    %5939 = vmatprep.subr.mxu0 %v5540
    %5940 = vmatpush1.msra.mxu0 %v5539
    %5941 = vmatprep.subr.mxu0 %v5544
    %5942 = vmatpush1.msra.mxu0 %v5543
    %5943 = vmatprep.subr.mxu0 %v5548
    %5944 = vmatpush1.msra.mxu0 %v5547
    %5945 = vmatprep.subr.mxu0 0.0
    %5946 = vmatpush1.msra.mxu0 0.0
    %5947 = vmatprep.subr.mxu0 0.0
    %5948 = vmatpush1.msra.mxu0 0.0
    %5949 = vmatprep.subr.mxu0 0.0
    %5950 = vmatpush1.msra.mxu0 0.0
    %5951 = vmatprep.subr.mxu0 0.0
    %5952 = vmatpush1.msra.mxu0 0.0
    %5953 = vmatprep.subr.mxu0 0.0
    %5954 = vmatpush1.msra.mxu0 0.0
    %5955 = vmatprep.subr.mxu0 0.0
    %5956 = vmatpush1.msra.mxu0 0.0
    %5957 = vmatprep.subr.mxu0 0.0
    %5958 = vmatpush1.msra.mxu0 0.0
    %5959 = vmatprep.subr.mxu0 0.0
    %5960 = vmatpush1.msra.mxu0 0.0
    %5961 = vmatprep.subr.mxu0 0.0
    %5962 = vmatpush1.msra.mxu0 0.0
    %5963 = vmatprep.subr.mxu0 0.0
    %5964 = vmatpush1.msra.mxu0 0.0
    %5965 = vmatprep.subr.mxu0 0.0
    %5966 = vmatpush1.msra.mxu0 0.0
    %5967 = vmatprep.subr.mxu0 0.0
    %5968 = vmatpush1.msra.mxu0 0.0
    %5969 = vmatprep.subr.mxu0 0.0
    %5970 = vmatpush1.msra.mxu0 0.0
    %5971 = vmatprep.subr.mxu0 0.0
    %5972 = vmatpush1.msra.mxu0 0.0
    %5973 = vmatprep.subr.mxu0 0.0
    %5974 = vmatpush1.msra.mxu0 0.0
    %5975 = vmatprep.subr.mxu0 0.0
    %5976 = vmatpush1.msra.mxu0 0.0
    %5977 = vmatprep.subr.mxu0 0.0
    %5978 = vmatpush1.msra.mxu0 0.0
    %5979 = vmatprep.subr.mxu0 0.0
    %5980 = vmatpush1.msra.mxu0 0.0
    %5981 = vmatprep.subr.mxu0 0.0
    %5982 = vmatpush1.msra.mxu0 0.0
    %5983 = vmatprep.subr.mxu0 0.0
    %5984 = vmatpush1.msra.mxu0 0.0
    %5985 = vmatprep.subr.mxu0 0.0
    %5986 = vmatpush1.msra.mxu0 0.0
    %5987 = vmatprep.subr.mxu0 0.0
    %5988 = vmatpush1.msra.mxu0 0.0
    %5989 = vmatprep.subr.mxu0 0.0
    %5990 = vmatpush1.msra.mxu0 0.0
    %5991 = vmatprep.subr.mxu0 0.0
    %5992 = vmatpush1.msra.mxu0 0.0
    %5993 = vmatprep.mubr.f32.mxu0 0.0
    %5994 = vmatmul.mubr.f32.gmra.mrb[0].mxu0 %v5714
    %v5995 = vpop.f32.mrb[0].mxu0
    %v5996 = vadd.f32 %v5925, %v5995
    %v5997 = vpop.f32.mrb[0].mxu0
    %v5998 = vadd.f32 %v5927, %v5997
    %5999 = vdwg.mxu0
    %v6000 = vld [vmem:[%s18] sm:$0xf]
    %v6002 = vlaneseq
    %v6003 = vshrl.u32 %v6002, 7
    %v6004 = vsub.s32 0, %v6003
    %v6005 = vrot.slane %v6000, %v6004
    %v6006 = vlaneseq
    %v6007 = vshrl.u32 %v6006, 7
    %v6008 = vsub.s32 1, %v6007
    %v6009 = vrot.slane %v6000, %v6008
    %v6010 = vlaneseq
    %v6011 = vshrl.u32 %v6010, 7
    %v6012 = vsub.s32 2, %v6011
    %v6013 = vrot.slane %v6000, %v6012
    %v6014 = vlaneseq
    %v6015 = vshrl.u32 %v6014, 7
    %v6016 = vsub.s32 3, %v6015
    %v6017 = vrot.slane %v6000, %v6016
    %v6022 = vadd.f32 %v5854, %v6005
    %v6023 = vadd.f32 %v5856, %v6009
    %v6024 = vadd.f32 %v5996, %v6013
    %v6025 = vadd.f32 %v5998, %v6017
    %v6026 = vld [vmem:[%s19] sm:$0xf]
    %v6027 = vld [vmem:[%s20] sm:$0xf]
    %vm6028 = vcmask 1041408
    %v6029 = vsel %vm6028, %v6022, 0.0
    %v6030 = vsel %vm6028, %v6023, 0.0
    %v6031 = vadd.f32 %v6029, %v6030
    %v6032 = vsel %vm6028, %v6024, 0.0
    %v6033 = vadd.f32 %v6031, %v6032
    %v6034 = vsel %vm6028, %v6025, 0.0
    %v6035 = vadd.f32 %v6033, %v6034
    %6036 = vadd.xlane.f32.xlu0 %v6035
    %v6037 = vpop.xlane.xlu0 %6036
    %v6038 = vrcp.pop 512.0
    %v6039 = vmul.f32 %v6037, %v6038
    %v6040 = vsub.f32 %v6022, %v6039
    %v6041 = vsub.f32 %v6023, %v6039
    %v6042 = vsub.f32 %v6024, %v6039
    %v6043 = vsub.f32 %v6025, %v6039
    %v6044 = vmul.f32 %v6040, %v6040
    %v6045 = vmul.f32 %v6041, %v6041
    %v6046 = vmul.f32 %v6042, %v6042
    %v6047 = vmul.f32 %v6043, %v6043
    %v6048 = vsel %vm6028, %v6044, 0.0
    %v6049 = vsel %vm6028, %v6045, 0.0
    %v6050 = vadd.f32 %v6048, %v6049
    %v6051 = vsel %vm6028, %v6046, 0.0
    %v6052 = vadd.f32 %v6050, %v6051
    %v6053 = vsel %vm6028, %v6047, 0.0
    %v6054 = vadd.f32 %v6052, %v6053
    %6055 = vadd.xlane.f32.xlu0 %v6054
    %v6056 = vpop.xlane.xlu0 %6055
    %v6057 = vmul.f32 %v6056, %v6038
    %v6058 = vadd.f32 %v6057, 1e-05
    %v6059 = vrsqrt.pop %v6058
    %v6060 = vmul.f32 %v6040, %v6059
    %v6061 = vmul.f32 %v6041, %v6059
    %v6062 = vmul.f32 %v6042, %v6059
    %v6063 = vmul.f32 %v6043, %v6059
    %v6065 = vlaneseq
    %v6066 = vshrl.u32 %v6065, 7
    %v6067 = vsub.s32 0, %v6066
    %v6068 = vrot.slane %v6026, %v6067
    %v6069 = vlaneseq
    %v6070 = vshrl.u32 %v6069, 7
    %v6071 = vsub.s32 1, %v6070
    %v6072 = vrot.slane %v6026, %v6071
    %v6073 = vlaneseq
    %v6074 = vshrl.u32 %v6073, 7
    %v6075 = vsub.s32 2, %v6074
    %v6076 = vrot.slane %v6026, %v6075
    %v6077 = vlaneseq
    %v6078 = vshrl.u32 %v6077, 7
    %v6079 = vsub.s32 3, %v6078
    %v6080 = vrot.slane %v6026, %v6079
    %v6085 = vmul.f32 %v6060, %v6068
    %v6086 = vmul.f32 %v6061, %v6072
    %v6087 = vmul.f32 %v6062, %v6076
    %v6088 = vmul.f32 %v6063, %v6080
    %v6090 = vlaneseq
    %v6091 = vshrl.u32 %v6090, 7
    %v6092 = vsub.s32 0, %v6091
    %v6093 = vrot.slane %v6027, %v6092
    %v6094 = vlaneseq
    %v6095 = vshrl.u32 %v6094, 7
    %v6096 = vsub.s32 1, %v6095
    %v6097 = vrot.slane %v6027, %v6096
    %v6098 = vlaneseq
    %v6099 = vshrl.u32 %v6098, 7
    %v6100 = vsub.s32 2, %v6099
    %v6101 = vrot.slane %v6027, %v6100
    %v6102 = vlaneseq
    %v6103 = vshrl.u32 %v6102, 7
    %v6104 = vsub.s32 3, %v6103
    %v6105 = vrot.slane %v6027, %v6104
    %v6110 = vadd.f32 %v6085, %v6093
    %v6111 = vadd.f32 %v6086, %v6097
    %v6112 = vadd.f32 %v6087, %v6101
    %v6113 = vadd.f32 %v6088, %v6105
    %v6114 = vmul.f32 %v6110, 0.5
    %v6115 = vmul.f32 %v6111, 0.5
    %v6116 = vmul.f32 %v6112, 0.5
    %v6117 = vmul.f32 %v6113, 0.5
    %v6118 = vmul.f32 %v6110, 0.70710677
    %v6119 = vmul.f32 %v6111, 0.70710677
    %v6120 = vmul.f32 %v6112, 0.70710677
    %v6121 = vmul.f32 %v6113, 0.70710677
    %v6122 = verf.f32.pop %v6118
    %v6123 = verf.f32.pop %v6119
    %v6124 = verf.f32.pop %v6120
    %v6125 = verf.f32.pop %v6121
    %v6126 = vadd.f32 %v6122, 1.0
    %v6127 = vadd.f32 %v6123, 1.0
    %v6128 = vadd.f32 %v6124, 1.0
    %v6129 = vadd.f32 %v6125, 1.0
    %v6130 = vmul.f32 %v6114, %v6126
    %v6131 = vmul.f32 %v6115, %v6127
    %v6132 = vmul.f32 %v6116, %v6128
    %v6133 = vmul.f32 %v6117, %v6129
    %v6134 = vld [vmem:[%s21] sm:$0xff]
    %v6135 = vld [vmem:[%s21 + $0x8] sm:$0xff]
    %v6136 = vld [vmem:[%s21 + $0x10] sm:$0xff]
    %v6137 = vld [vmem:[%s21 + $0x18] sm:$0xff]
    %v6138 = vld [vmem:[%s21 + $0x20] sm:$0xff]
    %v6139 = vld [vmem:[%s21 + $0x28] sm:$0xff]
    %v6140 = vld [vmem:[%s21 + $0x30] sm:$0xff]
    %v6141 = vld [vmem:[%s21 + $0x38] sm:$0xff]
    %v6142 = vld [vmem:[%s21 + $0x40] sm:$0xff]
    %v6143 = vld [vmem:[%s21 + $0x48] sm:$0xff]
    %v6144 = vld [vmem:[%s21 + $0x50] sm:$0xff]
    %v6145 = vld [vmem:[%s21 + $0x58] sm:$0xff]
    %v6146 = vld [vmem:[%s21 + $0x60] sm:$0xff]
    %v6147 = vld [vmem:[%s21 + $0x68] sm:$0xff]
    %v6148 = vld [vmem:[%s21 + $0x70] sm:$0xff]
    %v6149 = vld [vmem:[%s21 + $0x78] sm:$0xff]
    %v6150 = vld [vmem:[%s21 + $0x80] sm:$0xff]
    %v6151 = vld [vmem:[%s21 + $0x88] sm:$0xff]
    %v6152 = vld [vmem:[%s21 + $0x90] sm:$0xff]
    %v6153 = vld [vmem:[%s21 + $0x98] sm:$0xff]
    %v6154 = vld [vmem:[%s21 + $0xa0] sm:$0xff]
    %v6155 = vld [vmem:[%s21 + $0xa8] sm:$0xff]
    %v6156 = vld [vmem:[%s21 + $0xb0] sm:$0xff]
    %v6157 = vld [vmem:[%s21 + $0xb8] sm:$0xff]
    %v6158 = vld [vmem:[%s21 + $0xc0] sm:$0xff]
    %v6159 = vld [vmem:[%s21 + $0xc8] sm:$0xff]
    %v6160 = vld [vmem:[%s21 + $0xd0] sm:$0xff]
    %v6161 = vld [vmem:[%s21 + $0xd8] sm:$0xff]
    %v6162 = vld [vmem:[%s21 + $0xe0] sm:$0xff]
    %v6163 = vld [vmem:[%s21 + $0xe8] sm:$0xff]
    %v6164 = vld [vmem:[%s21 + $0xf0] sm:$0xff]
    %v6165 = vld [vmem:[%s21 + $0xf8] sm:$0xff]
    %v6166 = vld [vmem:[%s21 + $0x100] sm:$0xff]
    %v6167 = vld [vmem:[%s21 + $0x108] sm:$0xff]
    %v6168 = vld [vmem:[%s21 + $0x110] sm:$0xff]
    %v6169 = vld [vmem:[%s21 + $0x118] sm:$0xff]
    %v6170 = vld [vmem:[%s21 + $0x120] sm:$0xff]
    %v6171 = vld [vmem:[%s21 + $0x128] sm:$0xff]
    %v6172 = vld [vmem:[%s21 + $0x130] sm:$0xff]
    %v6173 = vld [vmem:[%s21 + $0x138] sm:$0xff]
    %v6174 = vld [vmem:[%s21 + $0x140] sm:$0xff]
    %v6175 = vld [vmem:[%s21 + $0x148] sm:$0xff]
    %v6176 = vld [vmem:[%s21 + $0x150] sm:$0xff]
    %v6177 = vld [vmem:[%s21 + $0x158] sm:$0xff]
    %v6178 = vld [vmem:[%s21 + $0x160] sm:$0xff]
    %v6179 = vld [vmem:[%s21 + $0x168] sm:$0xff]
    %v6180 = vld [vmem:[%s21 + $0x170] sm:$0xff]
    %v6181 = vld [vmem:[%s21 + $0x178] sm:$0xff]
    %v6182 = vld [vmem:[%s21 + $0x180] sm:$0xff]
    %v6183 = vld [vmem:[%s21 + $0x188] sm:$0xff]
    %v6184 = vld [vmem:[%s21 + $0x190] sm:$0xff]
    %v6185 = vld [vmem:[%s21 + $0x198] sm:$0xff]
    %v6186 = vld [vmem:[%s21 + $0x1a0] sm:$0xff]
    %v6187 = vld [vmem:[%s21 + $0x1a8] sm:$0xff]
    %v6188 = vld [vmem:[%s21 + $0x1b0] sm:$0xff]
    %v6189 = vld [vmem:[%s21 + $0x1b8] sm:$0xff]
    %v6190 = vld [vmem:[%s21 + $0x1c0] sm:$0xff]
    %v6191 = vld [vmem:[%s21 + $0x1c8] sm:$0xff]
    %v6192 = vld [vmem:[%s21 + $0x1d0] sm:$0xff]
    %v6193 = vld [vmem:[%s21 + $0x1d8] sm:$0xff]
    %v6194 = vld [vmem:[%s21 + $0x1e0] sm:$0xff]
    %v6195 = vld [vmem:[%s21 + $0x1e8] sm:$0xff]
    %v6196 = vld [vmem:[%s21 + $0x1f0] sm:$0xff]
    %v6197 = vld [vmem:[%s21 + $0x1f8] sm:$0xff]
    %v6198 = vld [vmem:[%s22] sm:$0x1]
    %v6200 = vlaneseq
    %v6201 = vshrl.u32 %v6200, 7
    %v6202 = vsub.s32 0, %v6201
    %v6203 = vrot.slane %v6198, %v6202
    %6205 = vmatprep.subr.mxu0 0.0
    %6206 = vmatpush1.msra.mxu0 %v6134
    %6207 = vmatprep.subr.mxu0 0.0
    %6208 = vmatpush1.msra.mxu0 %v6135
    %6209 = vmatprep.subr.mxu0 0.0
    %6210 = vmatpush1.msra.mxu0 %v6136
    %6211 = vmatprep.subr.mxu0 0.0
    %6212 = vmatpush1.msra.mxu0 %v6137
    %6213 = vmatprep.subr.mxu0 0.0
    %6214 = vmatpush1.msra.mxu0 %v6138
    %6215 = vmatprep.subr.mxu0 0.0
    %6216 = vmatpush1.msra.mxu0 %v6139
    %6217 = vmatprep.subr.mxu0 0.0
    %6218 = vmatpush1.msra.mxu0 %v6140
    %6219 = vmatprep.subr.mxu0 0.0
    %6220 = vmatpush1.msra.mxu0 %v6141
    %6221 = vmatprep.subr.mxu0 0.0
    %6222 = vmatpush1.msra.mxu0 %v6142
    %6223 = vmatprep.subr.mxu0 0.0
    %6224 = vmatpush1.msra.mxu0 %v6143
    %6225 = vmatprep.subr.mxu0 0.0
    %6226 = vmatpush1.msra.mxu0 %v6144
    %6227 = vmatprep.subr.mxu0 0.0
    %6228 = vmatpush1.msra.mxu0 %v6145
    %6229 = vmatprep.subr.mxu0 0.0
    %6230 = vmatpush1.msra.mxu0 %v6146
    %6231 = vmatprep.subr.mxu0 0.0
    %6232 = vmatpush1.msra.mxu0 %v6147
    %6233 = vmatprep.subr.mxu0 0.0
    %6234 = vmatpush1.msra.mxu0 %v6148
    %6235 = vmatprep.subr.mxu0 0.0
    %6236 = vmatpush1.msra.mxu0 %v6149
    %6237 = vmatprep.subr.mxu0 0.0
    %6238 = vmatpush1.msra.mxu0 %v6150
    %6239 = vmatprep.subr.mxu0 0.0
    %6240 = vmatpush1.msra.mxu0 %v6151
    %6241 = vmatprep.subr.mxu0 0.0
    %6242 = vmatpush1.msra.mxu0 %v6152
    %6243 = vmatprep.subr.mxu0 0.0
    %6244 = vmatpush1.msra.mxu0 %v6153
    %6245 = vmatprep.subr.mxu0 0.0
    %6246 = vmatpush1.msra.mxu0 %v6154
    %6247 = vmatprep.subr.mxu0 0.0
    %6248 = vmatpush1.msra.mxu0 %v6155
    %6249 = vmatprep.subr.mxu0 0.0
    %6250 = vmatpush1.msra.mxu0 %v6156
    %6251 = vmatprep.subr.mxu0 0.0
    %6252 = vmatpush1.msra.mxu0 %v6157
    %6253 = vmatprep.subr.mxu0 0.0
    %6254 = vmatpush1.msra.mxu0 %v6158
    %6255 = vmatprep.subr.mxu0 0.0
    %6256 = vmatpush1.msra.mxu0 %v6159
    %6257 = vmatprep.subr.mxu0 0.0
    %6258 = vmatpush1.msra.mxu0 %v6160
    %6259 = vmatprep.subr.mxu0 0.0
    %6260 = vmatpush1.msra.mxu0 %v6161
    %6261 = vmatprep.subr.mxu0 0.0
    %6262 = vmatpush1.msra.mxu0 %v6162
    %6263 = vmatprep.subr.mxu0 0.0
    %6264 = vmatpush1.msra.mxu0 %v6163
    %6265 = vmatprep.subr.mxu0 0.0
    %6266 = vmatpush1.msra.mxu0 %v6164
    %6267 = vmatprep.subr.mxu0 0.0
    %6268 = vmatpush1.msra.mxu0 %v6165
    %6269 = vmatprep.mubr.f32.mxu0 %v6131
    %6270 = vmatmul.mubr.f32.gmra.mrb[0].mxu0 %v6130
    %v6271 = vpop.f32.mrb[0].mxu0
    %v6272 = vadd.f32 %v6203, %v6271
    %v6273 = vpop.f32.mrb[0].mxu0
    %6274 = vdwg.mxu0
    %6275 = vmatprep.subr.mxu0 0.0
    %6276 = vmatpush1.msra.mxu0 %v6166
    %6277 = vmatprep.subr.mxu0 0.0
    %6278 = vmatpush1.msra.mxu0 %v6167
    %6279 = vmatprep.subr.mxu0 0.0
    %6280 = vmatpush1.msra.mxu0 %v6168
    %6281 = vmatprep.subr.mxu0 0.0
    %6282 = vmatpush1.msra.mxu0 %v6169
    %6283 = vmatprep.subr.mxu0 0.0
    %6284 = vmatpush1.msra.mxu0 %v6170
    %6285 = vmatprep.subr.mxu0 0.0
    %6286 = vmatpush1.msra.mxu0 %v6171
    %6287 = vmatprep.subr.mxu0 0.0
    %6288 = vmatpush1.msra.mxu0 %v6172
    %6289 = vmatprep.subr.mxu0 0.0
    %6290 = vmatpush1.msra.mxu0 %v6173
    %6291 = vmatprep.subr.mxu0 0.0
    %6292 = vmatpush1.msra.mxu0 %v6174
    %6293 = vmatprep.subr.mxu0 0.0
    %6294 = vmatpush1.msra.mxu0 %v6175
    %6295 = vmatprep.subr.mxu0 0.0
    %6296 = vmatpush1.msra.mxu0 %v6176
    %6297 = vmatprep.subr.mxu0 0.0
    %6298 = vmatpush1.msra.mxu0 %v6177
    %6299 = vmatprep.subr.mxu0 0.0
    %6300 = vmatpush1.msra.mxu0 %v6178
    %6301 = vmatprep.subr.mxu0 0.0
    %6302 = vmatpush1.msra.mxu0 %v6179
    %6303 = vmatprep.subr.mxu0 0.0
    %6304 = vmatpush1.msra.mxu0 %v6180
    %6305 = vmatprep.subr.mxu0 0.0
    %6306 = vmatpush1.msra.mxu0 %v6181
    %6307 = vmatprep.subr.mxu0 0.0
    %6308 = vmatpush1.msra.mxu0 %v6182
    %6309 = vmatprep.subr.mxu0 0.0
    %6310 = vmatpush1.msra.mxu0 %v6183
    %6311 = vmatprep.subr.mxu0 0.0
    %6312 = vmatpush1.msra.mxu0 %v6184
    %6313 = vmatprep.subr.mxu0 0.0
    %6314 = vmatpush1.msra.mxu0 %v6185
    %6315 = vmatprep.subr.mxu0 0.0
    %6316 = vmatpush1.msra.mxu0 %v6186
    %6317 = vmatprep.subr.mxu0 0.0
    %6318 = vmatpush1.msra.mxu0 %v6187
    %6319 = vmatprep.subr.mxu0 0.0
    %6320 = vmatpush1.msra.mxu0 %v6188
    %6321 = vmatprep.subr.mxu0 0.0
    %6322 = vmatpush1.msra.mxu0 %v6189
    %6323 = vmatprep.subr.mxu0 0.0
    %6324 = vmatpush1.msra.mxu0 %v6190
    %6325 = vmatprep.subr.mxu0 0.0
    %6326 = vmatpush1.msra.mxu0 %v6191
    %6327 = vmatprep.subr.mxu0 0.0
    %6328 = vmatpush1.msra.mxu0 %v6192
    %6329 = vmatprep.subr.mxu0 0.0
    %6330 = vmatpush1.msra.mxu0 %v6193
    %6331 = vmatprep.subr.mxu0 0.0
    %6332 = vmatpush1.msra.mxu0 %v6194
    %6333 = vmatprep.subr.mxu0 0.0
    %6334 = vmatpush1.msra.mxu0 %v6195
    %6335 = vmatprep.subr.mxu0 0.0
    %6336 = vmatpush1.msra.mxu0 %v6196
    %6337 = vmatprep.subr.mxu0 0.0
    %6338 = vmatpush1.msra.mxu0 %v6197
    %6339 = vmatprep.mubr.f32.mxu0 %v6133
    %6340 = vmatmul.mubr.f32.gmra.mrb[0].mxu0 %v6132
    %v6341 = vpop.f32.mrb[0].mxu0
    %v6342 = vadd.f32 %v6272, %v6341
    %v6343 = vpop.f32.mrb[0].mxu0
    %6344 = vdwg.mxu0
    %v6345 = vld [vmem:[%s23] sm:$0x1]
    %v6346 = vld [vmem:[%s24] sm:$0x1]
    %v6347 = vsel %vm6028, %v6342, 0.0
    %6348 = vadd.xlane.f32.xlu0 %v6347
    %v6349 = vpop.xlane.xlu0 %6348
    %v6350 = vrcp.pop 128.0
    %v6351 = vmul.f32 %v6349, %v6350
    %v6352 = vsub.f32 %v6342, %v6351
    %v6353 = vmul.f32 %v6352, %v6352
    %v6354 = vsel %vm6028, %v6353, 0.0
    %6355 = vadd.xlane.f32.xlu0 %v6354
    %v6356 = vpop.xlane.xlu0 %6355
    %v6357 = vmul.f32 %v6356, %v6350
    %v6358 = vadd.f32 %v6357, 1e-05
    %v6359 = vrsqrt.pop %v6358
    %v6360 = vmul.f32 %v6352, %v6359
    %v6362 = vlaneseq
    %v6363 = vshrl.u32 %v6362, 7
    %v6364 = vsub.s32 0, %v6363
    %v6365 = vrot.slane %v6345, %v6364
    %v6367 = vmul.f32 %v6360, %v6365
    %v6369 = vlaneseq
    %v6370 = vshrl.u32 %v6369, 7
    %v6371 = vsub.s32 0, %v6370
    %v6372 = vrot.slane %v6346, %v6371
    %v6374 = vadd.f32 %v6367, %v6372
    %v6375 = vmul.f32 %v6374, 0.5
    %v6376 = vmul.f32 %v6374, 0.70710677
    %v6377 = verf.f32.pop %v6376
    %v6378 = vadd.f32 %v6377, 1.0
    %v6379 = vmul.f32 %v6375, %v6378
    %v6380 = vld [vmem:[%s25] sm:$0xff]
    %v6381 = vld [vmem:[%s25 + $0x8] sm:$0xff]
    %v6382 = vld [vmem:[%s25 + $0x10] sm:$0xff]
    %v6383 = vld [vmem:[%s25 + $0x18] sm:$0xff]
    %v6384 = vld [vmem:[%s25 + $0x20] sm:$0xff]
    %v6385 = vld [vmem:[%s25 + $0x28] sm:$0xff]
    %v6386 = vld [vmem:[%s25 + $0x30] sm:$0xff]
    %v6387 = vld [vmem:[%s25 + $0x38] sm:$0xff]
    %v6388 = vld [vmem:[%s25 + $0x40] sm:$0xff]
    %v6389 = vld [vmem:[%s25 + $0x48] sm:$0xff]
    %v6390 = vld [vmem:[%s25 + $0x50] sm:$0xff]
    %v6391 = vld [vmem:[%s25 + $0x58] sm:$0xff]
    %v6392 = vld [vmem:[%s25 + $0x60] sm:$0xff]
    %v6393 = vld [vmem:[%s25 + $0x68] sm:$0xff]
    %v6394 = vld [vmem:[%s25 + $0x70] sm:$0xff]
    %v6395 = vld [vmem:[%s25 + $0x78] sm:$0xff]
    %v6396 = vld [vmem:[#allocation3] sm:$0x1]
    %v6398 = vlaneseq
    %v6399 = vshrl.u32 %v6398, 7
    %v6400 = vsub.s32 0, %v6399
    %v6401 = vrot.slane %v6396, %v6400
    %6403 = vmatprep.subr.mxu0 0.0
    %6404 = vmatpush1.msra.mxu0 %v6380
    %6405 = vmatprep.subr.mxu0 0.0
    %6406 = vmatpush1.msra.mxu0 %v6381
    %6407 = vmatprep.subr.mxu0 0.0
    %6408 = vmatpush1.msra.mxu0 %v6382
    %6409 = vmatprep.subr.mxu0 0.0
    %6410 = vmatpush1.msra.mxu0 %v6383
    %6411 = vmatprep.subr.mxu0 0.0
    %6412 = vmatpush1.msra.mxu0 %v6384
    %6413 = vmatprep.subr.mxu0 0.0
    %6414 = vmatpush1.msra.mxu0 %v6385
    %6415 = vmatprep.subr.mxu0 0.0
    %6416 = vmatpush1.msra.mxu0 %v6386
    %6417 = vmatprep.subr.mxu0 0.0
    %6418 = vmatpush1.msra.mxu0 %v6387
    %6419 = vmatprep.subr.mxu0 0.0
    %6420 = vmatpush1.msra.mxu0 %v6388
    %6421 = vmatprep.subr.mxu0 0.0
    %6422 = vmatpush1.msra.mxu0 %v6389
    %6423 = vmatprep.subr.mxu0 0.0
    %6424 = vmatpush1.msra.mxu0 %v6390
    %6425 = vmatprep.subr.mxu0 0.0
    %6426 = vmatpush1.msra.mxu0 %v6391
    %6427 = vmatprep.subr.mxu0 0.0
    %6428 = vmatpush1.msra.mxu0 %v6392
    %6429 = vmatprep.subr.mxu0 0.0
    %6430 = vmatpush1.msra.mxu0 %v6393
    %6431 = vmatprep.subr.mxu0 0.0
    %6432 = vmatpush1.msra.mxu0 %v6394
    %6433 = vmatprep.subr.mxu0 0.0
    %6434 = vmatpush1.msra.mxu0 %v6395
    %6435 = vmatprep.subr.mxu0 0.0
    %6436 = vmatpush1.msra.mxu0 0.0
    %6437 = vmatprep.subr.mxu0 0.0
    %6438 = vmatpush1.msra.mxu0 0.0
    %6439 = vmatprep.subr.mxu0 0.0
    %6440 = vmatpush1.msra.mxu0 0.0
    %6441 = vmatprep.subr.mxu0 0.0
    %6442 = vmatpush1.msra.mxu0 0.0
    %6443 = vmatprep.subr.mxu0 0.0
    %6444 = vmatpush1.msra.mxu0 0.0
    %6445 = vmatprep.subr.mxu0 0.0
    %6446 = vmatpush1.msra.mxu0 0.0
    %6447 = vmatprep.subr.mxu0 0.0
    %6448 = vmatpush1.msra.mxu0 0.0
    %6449 = vmatprep.subr.mxu0 0.0
    %6450 = vmatpush1.msra.mxu0 0.0
    %6451 = vmatprep.subr.mxu0 0.0
    %6452 = vmatpush1.msra.mxu0 0.0
    %6453 = vmatprep.subr.mxu0 0.0
    %6454 = vmatpush1.msra.mxu0 0.0
    %6455 = vmatprep.subr.mxu0 0.0
    %6456 = vmatpush1.msra.mxu0 0.0
    %6457 = vmatprep.subr.mxu0 0.0
    %6458 = vmatpush1.msra.mxu0 0.0
    %6459 = vmatprep.subr.mxu0 0.0
    %6460 = vmatpush1.msra.mxu0 0.0
    %6461 = vmatprep.subr.mxu0 0.0
    %6462 = vmatpush1.msra.mxu0 0.0
    %6463 = vmatprep.subr.mxu0 0.0
    %6464 = vmatpush1.msra.mxu0 0.0
    %6465 = vmatprep.subr.mxu0 0.0
    %6466 = vmatpush1.msra.mxu0 0.0
    %6467 = vmatprep.mubr.f32.mxu0 0.0
    %6468 = vmatmul.mubr.f32.gmra.mrb[0].mxu0 %v6379
    %v6469 = vpop.f32.mrb[0].mxu0
    %v6470 = vadd.f32 %v6401, %v6469
    %v6471 = vpop.f32.mrb[0].mxu0
    %6472 = vdwg.mxu0
    %vm6473 = vcmask 1024
    %6474 = vst.msk [vmem:[%s27] sm:$0x3] %vm6473, %v6470
  $region117: #{efficientnet_with_clinical_forward.1} parent=0 // pred_fallthru
    _
  // Predicated region
  $region118: #{efficientnet_with_clinical_forward.1} parent=0 // pred_check
    _
  $region119: #{efficientnet_with_clinical_forward.1} parent=0 // pred_check_branch
    %6476 = sbr.rel (0) target = $region121
  $region120: #{efficientnet_with_clinical_forward.1} parent=0 // pred_region
    _
  $region121: #{efficientnet_with_clinical_forward.1} parent=0 // pred_fallthru
    _
  // Predicated region
  $region122: #{efficientnet_with_clinical_forward.1} parent=0 // pred_check
    _
  $region123: #{efficientnet_with_clinical_forward.1} parent=0 // pred_check_branch
    %6478 = sbr.rel (0) target = $region125
  $region124: #{efficientnet_with_clinical_forward.1} parent=0 // pred_region
    _
  $region125: #{efficientnet_with_clinical_forward.1} parent=0 // pred_fallthru
    _

</llo_original>
